<compile_context>
chip_gen: v7x
topology: tpu7x:2x2x1
jax: 0.10.0
libtpu: 0.0.40
codegen_flags: <defaults>
</compile_context>

<pallas_src>
import functools

import jax
import jax.numpy as jnp
from jax import lax
from jax.experimental import pallas as pl
from jax.experimental.pallas import tpu as pltpu

N_EMBD = 64
NUM_HEADS = 4
HEAD_SIZE = N_EMBD // NUM_HEADS   # 16


def mha_kernel(x_ref, wqkv_ref, wp_ref, bp_ref, o_ref, qkv_ref, ctx_ref, *,
               num_heads, head_size, compute_dtype):
    bblk, T, C = x_ref.shape
    rows = bblk * T

    # Fused QKV projection: one tall (rows, C) @ (C, 3C) MXU matmul for all
    # heads / all of q,k,v.  The attention scale is already folded into the
    # Wq columns by the wrapper, so no per-score multiply is needed below.
    # T % 8 == 0 (asserted in wrapper) => these reshapes are leading-dim
    # merges/splits only (no VMEM repack).
    x2 = x_ref[...].reshape(rows, C).astype(compute_dtype)
    qkv_ref[...] = jnp.dot(
        x2, wqkv_ref[...].astype(compute_dtype),
        preferred_element_type=jnp.float32).reshape(bblk, T, 3 * C)

    # Causal mask with a large finite negative (no inf - inf => NaN risk).
    row_id = lax.broadcasted_iota(jnp.int32, (T, T), 0)
    col_id = lax.broadcasted_iota(jnp.int32, (T, T), 1)
    causal = (row_id >= col_id)[None, :, :]                       # (1, T, T)
    neg = jnp.float32(jnp.finfo(jnp.float32).min / 2)

    for h in range(num_heads):                                    # static unroll (4)
        off = h * head_size
        # Static Ref slices into the staged qkv scratch: offset loads (views),
        # not lane-shuffled value copies.
        qh = qkv_ref[:, :, 0 * C + off:0 * C + off + head_size].astype(compute_dtype)
        kh = qkv_ref[:, :, 1 * C + off:1 * C + off + head_size].astype(compute_dtype)
        vh = qkv_ref[:, :, 2 * C + off:2 * C + off + head_size].astype(compute_dtype)

        # Scale already folded into Wq -> raw QK^T here.
        s = jnp.einsum('btd,bsd->bts', qh, kh,
                       preferred_element_type=jnp.float32)        # (bblk, T, T)
        s = jnp.where(causal, s, neg)

        # Numerically-stable softmax; divide goes to the EUP via reciprocal.
        s = s - jnp.max(s, axis=-1, keepdims=True)
        p = jnp.exp(s)
        inv = pl.reciprocal(jnp.sum(p, axis=-1, keepdims=True), approx=True)
        p = p * inv

        # Write this head's context straight into its lane offsets of the
        # (bblk, T, C) context scratch (no lane-axis concat of values).
        ctx_ref[:, :, off:off + head_size] = jnp.einsum(
            'bts,bsd->btd', p.astype(compute_dtype), vh,
            preferred_element_type=jnp.float32)                   # (bblk, T, hs)

    # Single K=C output projection for all heads: one (rows, C) @ (C, C) MXU
    # matmul instead of num_heads K=head_size matmuls + accumulator adds.
    ctx2 = ctx_ref[...].reshape(rows, C).astype(compute_dtype)
    y = jnp.dot(ctx2, wp_ref[...].astype(compute_dtype),
                preferred_element_type=jnp.float32) + bp_ref[...]
    o_ref[...] = y.reshape(bblk, T, C).astype(o_ref.dtype)


def _choose_batch_block(B, T, C, *, target_rows=256,
                        vmem_budget_bytes=24 * 1024 * 1024):
    """Size the batch block for MXU row fill under a VMEM budget.

    Picks the smallest divisor of B reaching bblk*T >= target_rows (a full MXU
    pass on v6e/v7x, two on v5e); if none reaches it, the largest divisor whose
    working set still fits.  No longer forces >= 2 grid steps: v5e/v6e have a
    single TensorCore, so fewer, fatter steps win (see v7x TODO above).
    """
    def vmem_bytes(d):
        rows = d * T
        io = 2 * 2 * rows * C * 4                       # double-buffered x + out
        scratch = rows * 3 * C * 4 + rows * C * 4       # qkv + ctx scratch
        scores = 2 * d * T * T * 4                      # s and p slabs (per head)
        weights = (3 * C * C + C * C + C) * 4
        return io + scratch + scores + weights

    best = 1
    for d in sorted(d for d in range(1, B + 1) if B % d == 0):
        if vmem_bytes(d) > vmem_budget_bytes:
            break
        best = d
        if d * T >= target_rows:
            break
    return best


def multi_head_attention(x, wq, wk, wv, wp, bp, *,
                         num_heads=NUM_HEADS, compute_dtype=jnp.float32,
                         batch_block=None,
                         vmem_limit_bytes=32 * 1024 * 1024):
    """x: (B, T, C); wq/wk/wv/wp: (C, C) laid out for x @ W; bp: (1, C).

    compute_dtype=jnp.bfloat16 casts the MXU operands (x, wqkv, wp, p) to bf16
    while accumulation and the softmax path stay float32 -- recommended on
    v6e/v7x as T/C grow; default float32 matches the f32 PyTorch module.
    """
    B, T, C = x.shape
    assert C % num_heads == 0
    head_size = C // num_heads
    # T must be a sublane multiple so the in-kernel (bblk*T, C) <-> (bblk, T, C)
    # reshapes are zero-copy leading-dim merges.  For block_size=500, pad the
    # sequence to 504 in the wrapper and mask the tail.
    assert T % 8 == 0, "pad T to a multiple of 8 (e.g. 500 -> 504)"

    bblk = batch_block if batch_block is not None else _choose_batch_block(B, T, C)
    assert B % bblk == 0, "batch block must divide B"

    # Fold the HeartGPT attention scale (n_embd**-0.5 -- deliberately NOT
    # head_size**-0.5, matching the module) into the Wq columns: a one-time
    # (C, C) op in the wrapper, zero in-kernel cost.
    scale = jnp.asarray(C ** -0.5, wq.dtype)
    wqkv = jnp.concatenate([wq * scale, wk, wv], axis=1)          # (C, 3C)

    kernel = functools.partial(mha_kernel, num_heads=num_heads,
                               head_size=head_size, compute_dtype=compute_dtype)
    return pl.pallas_call(
        kernel,
        out_shape=jax.ShapeDtypeStruct((B, T, C), x.dtype),
        grid_spec=pltpu.PrefetchScalarGridSpec(
            num_scalar_prefetch=0,
            grid=(B // bblk,),
            in_specs=[
                pl.BlockSpec((bblk, T, C), lambda b: (b, 0, 0)),   # x
                pl.BlockSpec((C, 3 * C), lambda b: (0, 0)),        # scaled Wq|Wk|Wv
                pl.BlockSpec((C, C), lambda b: (0, 0)),            # Wproj
                pl.BlockSpec((1, C), lambda b: (0, 0)),            # bproj
            ],
            out_specs=pl.BlockSpec((bblk, T, C), lambda b: (b, 0, 0)),
            scratch_shapes=[
                pltpu.VMEM((bblk, T, 3 * C), jnp.float32),         # staged qkv
                pltpu.VMEM((bblk, T, C), jnp.float32),             # per-head ctx
            ],
        ),
        compiler_params=pltpu.CompilerParams(
            dimension_semantics=("parallel",),
            vmem_limit_bytes=vmem_limit_bytes,   # raise toward 64-96 MiB on v5e/v6e for big bblk
        ),
    )(x, wqkv, wp, bp)


def reference_mha(x, wq, wk, wv, wp, bp):
    """Pure-JAX reference matching the PyTorch forward (dropout = identity)."""
    B, T, C = x.shape
    q = x @ wq
    k = x @ wk
    v = x @ wv
    scale = C ** -0.5
    mask = jnp.tril(jnp.ones((T, T), dtype=bool))
    outs = []
    for h in range(NUM_HEADS):
        sl = slice(h * HEAD_SIZE, (h + 1) * HEAD_SIZE)
        wei = jnp.einsum("btd,bsd->bts", q[:, :, sl], k[:, :, sl]) * scale
        wei = jnp.where(mask[None], wei, -jnp.inf)
        wei = jax.nn.softmax(wei, axis=-1)
        outs.append(jnp.einsum("bts,bsd->btd", wei, v[:, :, sl]))
    out = jnp.concatenate(outs, axis=-1)
    return out @ wp + bp


if __name__ == "__main__":
    # Small but non-trivial: B=8, T=16 -> bblk=8, grid=(1,) (row-fill-first
    # heuristic; per-step rows = 128).
    B, T, C = 8, 16, N_EMBD

    key = jax.random.PRNGKey(0)
    kx, kq, kk, kv, kp, kb = jax.random.split(key, 6)

    x = jax.random.normal(kx, (B, T, C), dtype=jnp.float32)
    # Per-head Linear(n_embd, head_size, bias=False) weights, concatenated
    # over heads and stored transposed so the kernel computes x @ W.
    wq = jax.random.normal(kq, (C, C), dtype=jnp.float32) * 0.05
    wk = jax.random.normal(kk, (C, C), dtype=jnp.float32) * 0.05
    wv = jax.random.normal(kv, (C, C), dtype=jnp.float32) * 0.05
    # proj = Linear(n_embd, n_embd) with bias, stored transposed.
    wp = jax.random.normal(kp, (C, C), dtype=jnp.float32) * 0.05
    bp = jax.random.normal(kb, (1, C), dtype=jnp.float32) * 0.05

    out = multi_head_attention(x, wq, wk, wv, wp, bp)
    out = jax.block_until_ready(out)

    ref = reference_mha(x, wq, wk, wv, wp, bp)
    assert out.shape == (B, T, C)
    # Tolerance accounts for the EUP approximate reciprocal in the softmax
    # (relative error ~1e-4); everything else accumulates in float32.
    assert jnp.allclose(out, ref, atol=2e-3, rtol=2e-3), "mismatch vs reference"

    print("KERNEL_OK")
</pallas_src>

<mosaic_0001>
module attributes {stable_mosaic.version = 11 : i64} {
  func.func @mha_kernel(%arg0: i32, %arg1: memref<8x16x64xf32, #tpu.memory_space<vmem>>, %arg2: memref<64x192xf32, #tpu.memory_space<vmem>>, %arg3: memref<64x64xf32, #tpu.memory_space<vmem>>, %arg4: memref<1x64xf32, #tpu.memory_space<vmem>>, %arg5: memref<8x16x64xf32, #tpu.memory_space<vmem>>, %arg6: memref<8x16x192xf32, #tpu.memory_space<vmem>>, %arg7: memref<8x16x64xf32, #tpu.memory_space<vmem>>) attributes {dimension_semantics = [#tpu.dimension_semantics<parallel>], iteration_bounds = array<i64: 1>, scalar_prefetch = 0 : i64, scratch_operands = 2 : i64, tpu.core_type = #tpu.core_type<tc>, window_params = [{transform_indices = @transform_0, window_bounds = array<i64: 8, 16, 64>}, {pipeline_mode = #tpu.pipeline_mode<synchronous>, transform_indices = @transform_1, window_bounds = array<i64: 64, 192>}, {pipeline_mode = #tpu.pipeline_mode<synchronous>, transform_indices = @transform_2, window_bounds = array<i64: 64, 64>}, {pipeline_mode = #tpu.pipeline_mode<synchronous>, transform_indices = @transform_3, window_bounds = array<i64: 1, 64>}, {transform_indices = @transform_4, window_bounds = array<i64: 8, 16, 64>}]} {
    %c0 = arith.constant 0 : index
    %c0_0 = arith.constant 0 : index
    %c0_1 = arith.constant 0 : index
    %0 = vector.load %arg1[%c0, %c0_0, %c0_1] : memref<8x16x64xf32, #tpu.memory_space<vmem>>, vector<8x16x64xf32>
    %1 = vector.shape_cast %0 : vector<8x16x64xf32> to vector<128x64xf32>
    %c0_2 = arith.constant 0 : index
    %c0_3 = arith.constant 0 : index
    %2 = vector.load %arg2[%c0_2, %c0_3] : memref<64x192xf32, #tpu.memory_space<vmem>>, vector<64x192xf32>
    %cst = arith.constant dense<0.000000e+00> : vector<128x192xf32>
    %3 = tpu.matmul %1, %2, %cst {dimension_numbers = #tpu.dot_dimension_numbers<[1], [0], [0], [1], [0, 0, 1, 1], [], []>} : vector<128x64xf32>, vector<64x192xf32>, vector<128x192xf32> -> vector<128x192xf32>
    %4 = vector.shape_cast %3 : vector<128x192xf32> to vector<8x16x192xf32>
    %c0_4 = arith.constant 0 : index
    %c0_5 = arith.constant 0 : index
    %c0_6 = arith.constant 0 : index
    %5 = vector.load %arg6[%c0_4, %c0_5, %c0_6] : memref<8x16x192xf32, #tpu.memory_space<vmem>>, vector<8x16x192xf32>
    tpu.vector_store %arg6[%c0_4, %c0_5, %c0_6], %4 {strides = array<i32>} : memref<8x16x192xf32, #tpu.memory_space<vmem>>, vector<8x16x192xf32>,
    %6 = tpu.iota {dimensions = array<i32: 0>} : vector<16x16xi32>
    %7 = tpu.iota {dimensions = array<i32: 1>} : vector<16x16xi32>
    %8 = arith.cmpi sge, %6, %7 : vector<16x16xi32>
    %9 = vector.shape_cast %8 : vector<16x16xi1> to vector<1x16x16xi1>
    %c0_7 = arith.constant 0 : index
    %c0_8 = arith.constant 0 : index
    %c0_9 = arith.constant 0 : index
    %10 = vector.load %arg6[%c0_7, %c0_8, %c0_9] : memref<8x16x192xf32, #tpu.memory_space<vmem>>, vector<8x16x16xf32>
    %c0_10 = arith.constant 0 : index
    %c0_11 = arith.constant 0 : index
    %c64 = arith.constant 64 : index
    %11 = vector.load %arg6[%c0_10, %c0_11, %c64] : memref<8x16x192xf32, #tpu.memory_space<vmem>>, vector<8x16x16xf32>
    %c0_12 = arith.constant 0 : index
    %c0_13 = arith.constant 0 : index
    %c128 = arith.constant 128 : index
    %12 = vector.load %arg6[%c0_12, %c0_13, %c128] : memref<8x16x192xf32, #tpu.memory_space<vmem>>, vector<8x16x16xf32>
    "tpu.trace_start"() <{level = 10 : i32, message = "btd,bsd->bts"}> : () -> ()
    %cst_14 = arith.constant dense<0.000000e+00> : vector<8x16x16xf32>
    %13 = tpu.matmul %10, %11, %cst_14 {dimension_numbers = #tpu.dot_dimension_numbers<[2], [2], [1], [1], [0, 0, 0, 1, 1, 1], [0], [0]>} : vector<8x16x16xf32>, vector<8x16x16xf32>, vector<8x16x16xf32> -> vector<8x16x16xf32>
    %cst_15 = arith.constant -1.70141173E+38 : f32
    "tpu.trace_stop"() : () -> ()
    %14 = vector.shape_cast %9 : vector<1x16x16xi1> to vector<1x16x16xi1>
    %15 = vector.broadcast %14 : vector<1x16x16xi1> to vector<8x16x16xi1>
    %16 = vector.broadcast %cst_15 : f32 to vector<8x16x16xf32>
    %17 = arith.select %15, %13, %16 : vector<8x16x16xi1>, vector<8x16x16xf32>
    %cst_16 = arith.constant dense<0xFF800000> : vector<8x16xf32>
    %18 = vector.multi_reduction <maximumf>, %17, %cst_16 [2] : vector<8x16x16xf32> to vector<8x16xf32>
    %19 = vector.shape_cast %18 : vector<8x16xf32> to vector<8x16x1xf32>
    %20 = vector.broadcast %19 : vector<8x16x1xf32> to vector<8x16x16xf32>
    %21 = arith.subf %17, %20 : vector<8x16x16xf32>
    %22 = math.exp %21 : vector<8x16x16xf32>
    %cst_17 = arith.constant dense<0.000000e+00> : vector<8x16xf32>
    %23 = vector.multi_reduction <add>, %22, %cst_17 [2] : vector<8x16x16xf32> to vector<8x16xf32>
    %24 = vector.shape_cast %23 : vector<8x16xf32> to vector<8x16x1xf32>
    %25 = tpu.reciprocal %24 {approx = true} : vector<8x16x1xf32> -> vector<8x16x1xf32>
    %26 = vector.broadcast %25 : vector<8x16x1xf32> to vector<8x16x16xf32>
    %27 = arith.mulf %22, %26 : vector<8x16x16xf32>
    "tpu.trace_start"() <{level = 10 : i32, message = "bts,bsd->btd"}> : () -> ()
    %cst_18 = arith.constant dense<0.000000e+00> : vector<8x16x16xf32>
    %28 = tpu.matmul %27, %12, %cst_18 {dimension_numbers = #tpu.dot_dimension_numbers<[2], [1], [1], [2], [0, 0, 0, 1, 1, 2], [0], [0]>} : vector<8x16x16xf32>, vector<8x16x16xf32>, vector<8x16x16xf32> -> vector<8x16x16xf32>
    "tpu.trace_stop"() : () -> ()
    %c0_19 = arith.constant 0 : index
    %c0_20 = arith.constant 0 : index
    %c0_21 = arith.constant 0 : index
    %29 = vector.load %arg7[%c0_19, %c0_20, %c0_21] : memref<8x16x64xf32, #tpu.memory_space<vmem>>, vector<8x16x16xf32>
    tpu.vector_store %arg7[%c0_19, %c0_20, %c0_21], %28 {strides = array<i32>} : memref<8x16x64xf32, #tpu.memory_space<vmem>>, vector<8x16x16xf32>,
    %c0_22 = arith.constant 0 : index
    %c0_23 = arith.constant 0 : index
    %c16 = arith.constant 16 : index
    %30 = vector.load %arg6[%c0_22, %c0_23, %c16] : memref<8x16x192xf32, #tpu.memory_space<vmem>>, vector<8x16x16xf32>
    %c0_24 = arith.constant 0 : index
    %c0_25 = arith.constant 0 : index
    %c80 = arith.constant 80 : index
    %31 = vector.load %arg6[%c0_24, %c0_25, %c80] : memref<8x16x192xf32, #tpu.memory_space<vmem>>, vector<8x16x16xf32>
    %c0_26 = arith.constant 0 : index
    %c0_27 = arith.constant 0 : index
    %c144 = arith.constant 144 : index
    %32 = vector.load %arg6[%c0_26, %c0_27, %c144] : memref<8x16x192xf32, #tpu.memory_space<vmem>>, vector<8x16x16xf32>
    "tpu.trace_start"() <{level = 10 : i32, message = "btd,bsd->bts"}> : () -> ()
    %cst_28 = arith.constant dense<0.000000e+00> : vector<8x16x16xf32>
    %33 = tpu.matmul %30, %31, %cst_28 {dimension_numbers = #tpu.dot_dimension_numbers<[2], [2], [1], [1], [0, 0, 0, 1, 1, 1], [0], [0]>} : vector<8x16x16xf32>, vector<8x16x16xf32>, vector<8x16x16xf32> -> vector<8x16x16xf32>
    %cst_29 = arith.constant -1.70141173E+38 : f32
    "tpu.trace_stop"() : () -> ()
    %34 = vector.shape_cast %9 : vector<1x16x16xi1> to vector<1x16x16xi1>
    %35 = vector.broadcast %34 : vector<1x16x16xi1> to vector<8x16x16xi1>
    %36 = vector.broadcast %cst_29 : f32 to vector<8x16x16xf32>
    %37 = arith.select %35, %33, %36 : vector<8x16x16xi1>, vector<8x16x16xf32>
    %cst_30 = arith.constant dense<0xFF800000> : vector<8x16xf32>
    %38 = vector.multi_reduction <maximumf>, %37, %cst_30 [2] : vector<8x16x16xf32> to vector<8x16xf32>
    %39 = vector.shape_cast %38 : vector<8x16xf32> to vector<8x16x1xf32>
    %40 = vector.broadcast %39 : vector<8x16x1xf32> to vector<8x16x16xf32>
    %41 = arith.subf %37, %40 : vector<8x16x16xf32>
    %42 = math.exp %41 : vector<8x16x16xf32>
    %cst_31 = arith.constant dense<0.000000e+00> : vector<8x16xf32>
    %43 = vector.multi_reduction <add>, %42, %cst_31 [2] : vector<8x16x16xf32> to vector<8x16xf32>
    %44 = vector.shape_cast %43 : vector<8x16xf32> to vector<8x16x1xf32>
    %45 = tpu.reciprocal %44 {approx = true} : vector<8x16x1xf32> -> vector<8x16x1xf32>
    %46 = vector.broadcast %45 : vector<8x16x1xf32> to vector<8x16x16xf32>
    %47 = arith.mulf %42, %46 : vector<8x16x16xf32>
    "tpu.trace_start"() <{level = 10 : i32, message = "bts,bsd->btd"}> : () -> ()
    %cst_32 = arith.constant dense<0.000000e+00> : vector<8x16x16xf32>
    %48 = tpu.matmul %47, %32, %cst_32 {dimension_numbers = #tpu.dot_dimension_numbers<[2], [1], [1], [2], [0, 0, 0, 1, 1, 2], [0], [0]>} : vector<8x16x16xf32>, vector<8x16x16xf32>, vector<8x16x16xf32> -> vector<8x16x16xf32>
    "tpu.trace_stop"() : () -> ()
    %c0_33 = arith.constant 0 : index
    %c0_34 = arith.constant 0 : index
    %c16_35 = arith.constant 16 : index
    %49 = vector.load %arg7[%c0_33, %c0_34, %c16_35] : memref<8x16x64xf32, #tpu.memory_space<vmem>>, vector<8x16x16xf32>
    tpu.vector_store %arg7[%c0_33, %c0_34, %c16_35], %48 {strides = array<i32>} : memref<8x16x64xf32, #tpu.memory_space<vmem>>, vector<8x16x16xf32>,
    %c0_36 = arith.constant 0 : index
    %c0_37 = arith.constant 0 : index
    %c32 = arith.constant 32 : index
    %50 = vector.load %arg6[%c0_36, %c0_37, %c32] : memref<8x16x192xf32, #tpu.memory_space<vmem>>, vector<8x16x16xf32>
    %c0_38 = arith.constant 0 : index
    %c0_39 = arith.constant 0 : index
    %c96 = arith.constant 96 : index
    %51 = vector.load %arg6[%c0_38, %c0_39, %c96] : memref<8x16x192xf32, #tpu.memory_space<vmem>>, vector<8x16x16xf32>
    %c0_40 = arith.constant 0 : index
    %c0_41 = arith.constant 0 : index
    %c160 = arith.constant 160 : index
    %52 = vector.load %arg6[%c0_40, %c0_41, %c160] : memref<8x16x192xf32, #tpu.memory_space<vmem>>, vector<8x16x16xf32>
    "tpu.trace_start"() <{level = 10 : i32, message = "btd,bsd->bts"}> : () -> ()
    %cst_42 = arith.constant dense<0.000000e+00> : vector<8x16x16xf32>
    %53 = tpu.matmul %50, %51, %cst_42 {dimension_numbers = #tpu.dot_dimension_numbers<[2], [2], [1], [1], [0, 0, 0, 1, 1, 1], [0], [0]>} : vector<8x16x16xf32>, vector<8x16x16xf32>, vector<8x16x16xf32> -> vector<8x16x16xf32>
    %cst_43 = arith.constant -1.70141173E+38 : f32
    "tpu.trace_stop"() : () -> ()
    %54 = vector.shape_cast %9 : vector<1x16x16xi1> to vector<1x16x16xi1>
    %55 = vector.broadcast %54 : vector<1x16x16xi1> to vector<8x16x16xi1>
    %56 = vector.broadcast %cst_43 : f32 to vector<8x16x16xf32>
    %57 = arith.select %55, %53, %56 : vector<8x16x16xi1>, vector<8x16x16xf32>
    %cst_44 = arith.constant dense<0xFF800000> : vector<8x16xf32>
    %58 = vector.multi_reduction <maximumf>, %57, %cst_44 [2] : vector<8x16x16xf32> to vector<8x16xf32>
    %59 = vector.shape_cast %58 : vector<8x16xf32> to vector<8x16x1xf32>
    %60 = vector.broadcast %59 : vector<8x16x1xf32> to vector<8x16x16xf32>
    %61 = arith.subf %57, %60 : vector<8x16x16xf32>
    %62 = math.exp %61 : vector<8x16x16xf32>
    %cst_45 = arith.constant dense<0.000000e+00> : vector<8x16xf32>
    %63 = vector.multi_reduction <add>, %62, %cst_45 [2] : vector<8x16x16xf32> to vector<8x16xf32>
    %64 = vector.shape_cast %63 : vector<8x16xf32> to vector<8x16x1xf32>
    %65 = tpu.reciprocal %64 {approx = true} : vector<8x16x1xf32> -> vector<8x16x1xf32>
    %66 = vector.broadcast %65 : vector<8x16x1xf32> to vector<8x16x16xf32>
    %67 = arith.mulf %62, %66 : vector<8x16x16xf32>
    "tpu.trace_start"() <{level = 10 : i32, message = "bts,bsd->btd"}> : () -> ()
    %cst_46 = arith.constant dense<0.000000e+00> : vector<8x16x16xf32>
    %68 = tpu.matmul %67, %52, %cst_46 {dimension_numbers = #tpu.dot_dimension_numbers<[2], [1], [1], [2], [0, 0, 0, 1, 1, 2], [0], [0]>} : vector<8x16x16xf32>, vector<8x16x16xf32>, vector<8x16x16xf32> -> vector<8x16x16xf32>
    "tpu.trace_stop"() : () -> ()
    %c0_47 = arith.constant 0 : index
    %c0_48 = arith.constant 0 : index
    %c32_49 = arith.constant 32 : index
    %69 = vector.load %arg7[%c0_47, %c0_48, %c32_49] : memref<8x16x64xf32, #tpu.memory_space<vmem>>, vector<8x16x16xf32>
    tpu.vector_store %arg7[%c0_47, %c0_48, %c32_49], %68 {strides = array<i32>} : memref<8x16x64xf32, #tpu.memory_space<vmem>>, vector<8x16x16xf32>,
    %c0_50 = arith.constant 0 : index
    %c0_51 = arith.constant 0 : index
    %c48 = arith.constant 48 : index
    %70 = vector.load %arg6[%c0_50, %c0_51, %c48] : memref<8x16x192xf32, #tpu.memory_space<vmem>>, vector<8x16x16xf32>
    %c0_52 = arith.constant 0 : index
    %c0_53 = arith.constant 0 : index
    %c112 = arith.constant 112 : index
    %71 = vector.load %arg6[%c0_52, %c0_53, %c112] : memref<8x16x192xf32, #tpu.memory_space<vmem>>, vector<8x16x16xf32>
    %c0_54 = arith.constant 0 : index
    %c0_55 = arith.constant 0 : index
    %c176 = arith.constant 176 : index
    %72 = vector.load %arg6[%c0_54, %c0_55, %c176] : memref<8x16x192xf32, #tpu.memory_space<vmem>>, vector<8x16x16xf32>
    "tpu.trace_start"() <{level = 10 : i32, message = "btd,bsd->bts"}> : () -> ()
    %cst_56 = arith.constant dense<0.000000e+00> : vector<8x16x16xf32>
    %73 = tpu.matmul %70, %71, %cst_56 {dimension_numbers = #tpu.dot_dimension_numbers<[2], [2], [1], [1], [0, 0, 0, 1, 1, 1], [0], [0]>} : vector<8x16x16xf32>, vector<8x16x16xf32>, vector<8x16x16xf32> -> vector<8x16x16xf32>
    %cst_57 = arith.constant -1.70141173E+38 : f32
    "tpu.trace_stop"() : () -> ()
    %74 = vector.shape_cast %9 : vector<1x16x16xi1> to vector<1x16x16xi1>
    %75 = vector.broadcast %74 : vector<1x16x16xi1> to vector<8x16x16xi1>
    %76 = vector.broadcast %cst_57 : f32 to vector<8x16x16xf32>
    %77 = arith.select %75, %73, %76 : vector<8x16x16xi1>, vector<8x16x16xf32>
    %cst_58 = arith.constant dense<0xFF800000> : vector<8x16xf32>
    %78 = vector.multi_reduction <maximumf>, %77, %cst_58 [2] : vector<8x16x16xf32> to vector<8x16xf32>
    %79 = vector.shape_cast %78 : vector<8x16xf32> to vector<8x16x1xf32>
    %80 = vector.broadcast %79 : vector<8x16x1xf32> to vector<8x16x16xf32>
    %81 = arith.subf %77, %80 : vector<8x16x16xf32>
    %82 = math.exp %81 : vector<8x16x16xf32>
    %cst_59 = arith.constant dense<0.000000e+00> : vector<8x16xf32>
    %83 = vector.multi_reduction <add>, %82, %cst_59 [2] : vector<8x16x16xf32> to vector<8x16xf32>
    %84 = vector.shape_cast %83 : vector<8x16xf32> to vector<8x16x1xf32>
    %85 = tpu.reciprocal %84 {approx = true} : vector<8x16x1xf32> -> vector<8x16x1xf32>
    %86 = vector.broadcast %85 : vector<8x16x1xf32> to vector<8x16x16xf32>
    %87 = arith.mulf %82, %86 : vector<8x16x16xf32>
    "tpu.trace_start"() <{level = 10 : i32, message = "bts,bsd->btd"}> : () -> ()
    %cst_60 = arith.constant dense<0.000000e+00> : vector<8x16x16xf32>
    %88 = tpu.matmul %87, %72, %cst_60 {dimension_numbers = #tpu.dot_dimension_numbers<[2], [1], [1], [2], [0, 0, 0, 1, 1, 2], [0], [0]>} : vector<8x16x16xf32>, vector<8x16x16xf32>, vector<8x16x16xf32> -> vector<8x16x16xf32>
    "tpu.trace_stop"() : () -> ()
    %c0_61 = arith.constant 0 : index
    %c0_62 = arith.constant 0 : index
    %c48_63 = arith.constant 48 : index
    %89 = vector.load %arg7[%c0_61, %c0_62, %c48_63] : memref<8x16x64xf32, #tpu.memory_space<vmem>>, vector<8x16x16xf32>
    tpu.vector_store %arg7[%c0_61, %c0_62, %c48_63], %88 {strides = array<i32>} : memref<8x16x64xf32, #tpu.memory_space<vmem>>, vector<8x16x16xf32>,
    %c0_64 = arith.constant 0 : index
    %c0_65 = arith.constant 0 : index
    %c0_66 = arith.constant 0 : index
    %90 = vector.load %arg7[%c0_64, %c0_65, %c0_66] : memref<8x16x64xf32, #tpu.memory_space<vmem>>, vector<8x16x64xf32>
    %91 = vector.shape_cast %90 : vector<8x16x64xf32> to vector<128x64xf32>
    %c0_67 = arith.constant 0 : index
    %c0_68 = arith.constant 0 : index
    %92 = vector.load %arg3[%c0_67, %c0_68] : memref<64x64xf32, #tpu.memory_space<vmem>>, vector<64x64xf32>
    %cst_69 = arith.constant dense<0.000000e+00> : vector<128x64xf32>
    %93 = tpu.matmul %91, %92, %cst_69 {dimension_numbers = #tpu.dot_dimension_numbers<[1], [0], [0], [1], [0, 0, 1, 1], [], []>} : vector<128x64xf32>, vector<64x64xf32>, vector<128x64xf32> -> vector<128x64xf32>
    %c0_70 = arith.constant 0 : index
    %c0_71 = arith.constant 0 : index
    %94 = vector.load %arg4[%c0_70, %c0_71] : memref<1x64xf32, #tpu.memory_space<vmem>>, vector<1x64xf32>
    %95 = vector.broadcast %94 : vector<1x64xf32> to vector<128x64xf32>
    %96 = arith.addf %93, %95 : vector<128x64xf32>
    %97 = vector.shape_cast %96 : vector<128x64xf32> to vector<8x16x64xf32>
    %c0_72 = arith.constant 0 : index
    %c0_73 = arith.constant 0 : index
    %c0_74 = arith.constant 0 : index
    %98 = vector.load %arg5[%c0_72, %c0_73, %c0_74] : memref<8x16x64xf32, #tpu.memory_space<vmem>>, vector<8x16x64xf32>
    tpu.vector_store %arg5[%c0_72, %c0_73, %c0_74], %97 {strides = array<i32>} : memref<8x16x64xf32, #tpu.memory_space<vmem>>, vector<8x16x64xf32>,
    return
  }
  func.func @transform_0(%arg0: i32) -> (i32, i32, i32) {
    %c0_i32 = arith.constant 0 : i32
    %c0_i32_0 = arith.constant 0 : i32
    %c0_i32_1 = arith.constant 0 : i32
    return %arg0, %c0_i32, %c0_i32_0 : i32, i32, i32
  }
  func.func @transform_1(%arg0: i32) -> (i32, i32) {
    %c0_i32 = arith.constant 0 : i32
    %c0_i32_0 = arith.constant 0 : i32
    %c0_i32_1 = arith.constant 0 : i32
    return %c0_i32, %c0_i32_0 : i32, i32
  }
  func.func @transform_2(%arg0: i32) -> (i32, i32) {
    %c0_i32 = arith.constant 0 : i32
    %c0_i32_0 = arith.constant 0 : i32
    %c0_i32_1 = arith.constant 0 : i32
    return %c0_i32, %c0_i32_0 : i32, i32
  }
  func.func @transform_3(%arg0: i32) -> (i32, i32) {
    %c0_i32 = arith.constant 0 : i32
    %c0_i32_0 = arith.constant 0 : i32
    %c0_i32_1 = arith.constant 0 : i32
    return %c0_i32, %c0_i32_0 : i32, i32
  }
  func.func @transform_4(%arg0: i32) -> (i32, i32, i32) {
    %c0_i32 = arith.constant 0 : i32
    %c0_i32_0 = arith.constant 0 : i32
    %c0_i32_1 = arith.constant 0 : i32
    return %arg0, %c0_i32, %c0_i32_0 : i32, i32, i32
  }
}

</mosaic_0001>

<llo_original>
// kernel: tpu_custom_call.1
$region0: #{tpu_custom_call.1}
  #allocation0 [shape = 'u32[]', space=smem, size = 0x4, offset = 0x4, fixed_abs, tag = 'smem constant byte address 0x4 - core index']
  #allocation1 [shape = 'u32[144,128]{1,0:T(1,128)}', space=vmem, size = 0x12000, scoped, tag = 'internal scratch']
  #allocation2 [shape = 'f32[8,16,192]{2,1,0:T(8,128)}', space=vmem, size = 0x20000, scoped, tag = 'scratch operand']
  #allocation3 [shape = 'f32[8,16,64]{2,1,0:T(8,128)}', space=vmem, size = 0x10000, scoped, tag = 'scratch operand']
  %s0 = inlined_call_operand.hbm [shape: f32[8,16,64], index: 0, kind: input, shape index: {}]
  %s1 = inlined_call_operand.hbm [shape: f32[64,192], index: 1, kind: input, shape index: {}]
  %s2 = inlined_call_operand.hbm [shape: f32[64,64], index: 2, kind: input, shape index: {}]
  %s3 = inlined_call_operand.vmem [shape: f32[1,64], index: 3, kind: input, shape index: {}]
  %s4 = inlined_call_operand.hbm [shape: f32[8,16,64], index: 4, kind: output, shape index: {}]
  %s5 = sld [smem:[#allocation0]]
  $region38: #{tpu_custom_call.1} parent=0
    _
  %s7 = ssub.s32 1, %s5
  %s8 = scalar_select 0, %s7, %s5
  $region1: #{tpu_custom_call.1} parent=0
    #allocation4 [shape = 'u8[65536]{0}', space=vmem, size = 0x10000, scoped, tag = 'input window, operand 0, single buffered']
    #allocation5 [shape = 's32[1]{0}', space=sflag, size = 0x4, scoped, tag = 'scoped memory for tpu_custom_call.1']
    #allocation6 [shape = 's32[1]{0}', space=sflag, size = 0x4, scoped, tag = 'scoped memory for tpu_custom_call.1']
    #allocation7 [shape = 'u8[65536]{0}', space=vmem, size = 0x10000, scoped, tag = 'input window, operand 1, single buffered']
    #allocation8 [shape = 's32[1]{0}', space=sflag, size = 0x4, scoped, tag = 'scoped memory for tpu_custom_call.1']
    #allocation9 [shape = 'u8[32768]{0}', space=vmem, size = 0x8000, scoped, tag = 'input window, operand 2, single buffered']
    #allocation10 [shape = 'u8[65536]{0}', space=vmem, size = 0x10000, scoped, tag = 'output window, operand 0, single buffered']
    %9 = vsyncpa [#allocation5], 0
    %10 = vsyncpa [#allocation8], 0
    %11 = vsyncpa [#allocation6], 0
    // Predicated region
    $region2: #{tpu_custom_call.1} parent=1 // pred_check
      _
    $region3: #{tpu_custom_call.1} parent=1 // pred_check_branch
      %13 = sbr.rel (0) target = $region5
    $region4: #{tpu_custom_call.1} parent=1 // pred_region
      %s15 = ssub.s32 2048, 2048
      %16 = vsyncadd [#allocation5], %s15
      %s17 = sshll.u32 [#allocation4], 4
      %s18 = int_to_ptr.vmem [resolvable:$true] %s17
      %23 = dma.hbm_to_vmem [thread:$0]  %s0, 2048, %s18, [#allocation5], 128, 128, 8
    $region5: #{tpu_custom_call.1} parent=1 // pred_fallthru
      _
    // Predicated region
    $region6: #{tpu_custom_call.1} parent=1 // pred_check
      _
    $region7: #{tpu_custom_call.1} parent=1 // pred_check_branch
      %25 = sbr.rel (0) target = $region9
    $region8: #{tpu_custom_call.1} parent=1 // pred_region
      %s27 = ssub.s32 2048, 2048
      %28 = vsyncadd [#allocation8], %s27
      %s29 = sshll.u32 [#allocation7], 4
      %s30 = int_to_ptr.vmem [resolvable:$true] %s29
      %35 = dma.hbm_to_vmem [thread:$0]  %s1, 2048, %s30, [#allocation8], 256, 256, 16
    $region9: #{tpu_custom_call.1} parent=1 // pred_fallthru
      _
    // Predicated region
    $region10: #{tpu_custom_call.1} parent=1 // pred_check
      _
    $region11: #{tpu_custom_call.1} parent=1 // pred_check_branch
      %37 = sbr.rel (0) target = $region13
    $region12: #{tpu_custom_call.1} parent=1 // pred_region
      %s39 = ssub.s32 1024, 1024
      %40 = vsyncadd [#allocation8], %s39
      %s41 = sshll.u32 [#allocation9], 4
      %s42 = int_to_ptr.vmem [resolvable:$true] %s41
      %47 = dma.hbm_to_vmem [thread:$0]  %s2, 1024, %s42, [#allocation8], 128, 128, 8
    $region13: #{tpu_custom_call.1} parent=1 // pred_fallthru
      _
    // Predicated region
    $region14: #{tpu_custom_call.1} parent=1 // pred_check
      _
    $region15: #{tpu_custom_call.1} parent=1 // pred_check_branch
      %49 = sbr.rel (0) target = $region17
    $region16: #{tpu_custom_call.1} parent=1 // pred_region
      _
    $region17: #{tpu_custom_call.1} parent=1 // pred_fallthru
      _
    // Predicated region
    $region18: #{tpu_custom_call.1} parent=1 // pred_check
      _
    $region19: #{tpu_custom_call.1} parent=1 // pred_check_branch
      %51 = sbr.rel (0) target = $region21
    $region20: #{tpu_custom_call.1} parent=1 // pred_region
      %52 = dma.done [#allocation5], 2048
    $region21: #{tpu_custom_call.1} parent=1 // pred_fallthru
      _
    // Predicated region
    $region22: #{tpu_custom_call.1} parent=1 // pred_check
      _
    $region23: #{tpu_custom_call.1} parent=1 // pred_check_branch
      %54 = sbr.rel (0) target = $region25
    $region24: #{tpu_custom_call.1} parent=1 // pred_region
      %55 = dma.done [#allocation8], 2048
    $region25: #{tpu_custom_call.1} parent=1 // pred_fallthru
      _
    // Predicated region
    $region26: #{tpu_custom_call.1} parent=1 // pred_check
      _
    $region27: #{tpu_custom_call.1} parent=1 // pred_check_branch
      %57 = sbr.rel (0) target = $region29
    $region28: #{tpu_custom_call.1} parent=1 // pred_region
      %58 = dma.done [#allocation8], 1024
    $region29: #{tpu_custom_call.1} parent=1 // pred_fallthru
      _
    %v59 = vld [vmem:[#allocation4] sm:$0xff]
    %v60 = vld [vmem:[#allocation4 + $0x8] sm:$0xff]
    %v61 = vld [vmem:[#allocation4 + $0x10] sm:$0xff]
    %v62 = vld [vmem:[#allocation4 + $0x18] sm:$0xff]
    %v63 = vld [vmem:[#allocation4 + $0x20] sm:$0xff]
    %v64 = vld [vmem:[#allocation4 + $0x28] sm:$0xff]
    %v65 = vld [vmem:[#allocation4 + $0x30] sm:$0xff]
    %v66 = vld [vmem:[#allocation4 + $0x38] sm:$0xff]
    %v67 = vld [vmem:[#allocation4 + $0x40] sm:$0xff]
    %v68 = vld [vmem:[#allocation4 + $0x48] sm:$0xff]
    %v69 = vld [vmem:[#allocation4 + $0x50] sm:$0xff]
    %v70 = vld [vmem:[#allocation4 + $0x58] sm:$0xff]
    %v71 = vld [vmem:[#allocation4 + $0x60] sm:$0xff]
    %v72 = vld [vmem:[#allocation4 + $0x68] sm:$0xff]
    %v73 = vld [vmem:[#allocation4 + $0x70] sm:$0xff]
    %v74 = vld [vmem:[#allocation4 + $0x78] sm:$0xff]
    %v75 = vld [vmem:[#allocation7] sm:$0xff]
    %v76 = vld [vmem:[#allocation7 + $0x8] sm:$0xff]
    %v77 = vld [vmem:[#allocation7 + $0x10] sm:$0xff]
    %v78 = vld [vmem:[#allocation7 + $0x18] sm:$0xff]
    %v79 = vld [vmem:[#allocation7 + $0x20] sm:$0xff]
    %v80 = vld [vmem:[#allocation7 + $0x28] sm:$0xff]
    %v81 = vld [vmem:[#allocation7 + $0x30] sm:$0xff]
    %v82 = vld [vmem:[#allocation7 + $0x38] sm:$0xff]
    %v83 = vld [vmem:[#allocation7 + $0x40] sm:$0xff]
    %v84 = vld [vmem:[#allocation7 + $0x48] sm:$0xff]
    %v85 = vld [vmem:[#allocation7 + $0x50] sm:$0xff]
    %v86 = vld [vmem:[#allocation7 + $0x58] sm:$0xff]
    %v87 = vld [vmem:[#allocation7 + $0x60] sm:$0xff]
    %v88 = vld [vmem:[#allocation7 + $0x68] sm:$0xff]
    %v89 = vld [vmem:[#allocation7 + $0x70] sm:$0xff]
    %v90 = vld [vmem:[#allocation7 + $0x78] sm:$0xff]
    %vm91 = vcmask 523264
    %v93 = vsel %vm91, %v59, 0
    %v96 = vsel %vm91, %v60, 0
    %v99 = vsel %vm91, %v61, 0
    %v102 = vsel %vm91, %v62, 0
    %v105 = vsel %vm91, %v63, 0
    %v108 = vsel %vm91, %v64, 0
    %v111 = vsel %vm91, %v65, 0
    %v114 = vsel %vm91, %v66, 0
    %v117 = vsel %vm91, %v67, 0
    %v120 = vsel %vm91, %v68, 0
    %v123 = vsel %vm91, %v69, 0
    %v126 = vsel %vm91, %v70, 0
    %v129 = vsel %vm91, %v71, 0
    %v132 = vsel %vm91, %v72, 0
    %v135 = vsel %vm91, %v73, 0
    %v138 = vsel %vm91, %v74, 0
    %140 = vmatprep.subr.mxu0 %v76
    %141 = vmatpush1.msra.mxu0 %v75
    %142 = vmatprep.subr.mxu0 %v78
    %143 = vmatpush1.msra.mxu0 %v77
    %144 = vmatprep.subr.mxu0 %v80
    %145 = vmatpush1.msra.mxu0 %v79
    %146 = vmatprep.subr.mxu0 %v82
    %147 = vmatpush1.msra.mxu0 %v81
    %148 = vmatprep.subr.mxu0 %v84
    %149 = vmatpush1.msra.mxu0 %v83
    %150 = vmatprep.subr.mxu0 %v86
    %151 = vmatpush1.msra.mxu0 %v85
    %152 = vmatprep.subr.mxu0 %v88
    %153 = vmatpush1.msra.mxu0 %v87
    %154 = vmatprep.subr.mxu0 %v90
    %155 = vmatpush1.msra.mxu0 %v89
    %156 = vmatprep.subr.mxu0 0.0
    %157 = vmatpush1.msra.mxu0 0.0
    %158 = vmatprep.subr.mxu0 0.0
    %159 = vmatpush1.msra.mxu0 0.0
    %160 = vmatprep.subr.mxu0 0.0
    %161 = vmatpush1.msra.mxu0 0.0
    %162 = vmatprep.subr.mxu0 0.0
    %163 = vmatpush1.msra.mxu0 0.0
    %164 = vmatprep.subr.mxu0 0.0
    %165 = vmatpush1.msra.mxu0 0.0
    %166 = vmatprep.subr.mxu0 0.0
    %167 = vmatpush1.msra.mxu0 0.0
    %168 = vmatprep.subr.mxu0 0.0
    %169 = vmatpush1.msra.mxu0 0.0
    %170 = vmatprep.subr.mxu0 0.0
    %171 = vmatpush1.msra.mxu0 0.0
    %172 = vmatprep.subr.mxu0 0.0
    %173 = vmatpush1.msra.mxu0 0.0
    %174 = vmatprep.subr.mxu0 0.0
    %175 = vmatpush1.msra.mxu0 0.0
    %176 = vmatprep.subr.mxu0 0.0
    %177 = vmatpush1.msra.mxu0 0.0
    %178 = vmatprep.subr.mxu0 0.0
    %179 = vmatpush1.msra.mxu0 0.0
    %180 = vmatprep.subr.mxu0 0.0
    %181 = vmatpush1.msra.mxu0 0.0
    %182 = vmatprep.subr.mxu0 0.0
    %183 = vmatpush1.msra.mxu0 0.0
    %184 = vmatprep.subr.mxu0 0.0
    %185 = vmatpush1.msra.mxu0 0.0
    %186 = vmatprep.subr.mxu0 0.0
    %187 = vmatpush1.msra.mxu0 0.0
    %188 = vmatprep.subr.mxu0 0.0
    %189 = vmatpush1.msra.mxu0 0.0
    %190 = vmatprep.subr.mxu0 0.0
    %191 = vmatpush1.msra.mxu0 0.0
    %192 = vmatprep.subr.mxu0 0.0
    %193 = vmatpush1.msra.mxu0 0.0
    %194 = vmatprep.subr.mxu0 0.0
    %195 = vmatpush1.msra.mxu0 0.0
    %196 = vmatprep.subr.mxu0 0.0
    %197 = vmatpush1.msra.mxu0 0.0
    %198 = vmatprep.subr.mxu0 0.0
    %199 = vmatpush1.msra.mxu0 0.0
    %200 = vmatprep.subr.mxu0 0.0
    %201 = vmatpush1.msra.mxu0 0.0
    %202 = vmatprep.subr.mxu0 0.0
    %203 = vmatpush1.msra.mxu0 0.0
    %204 = vmatprep.mubr.f32.mxu0 0.0
    %205 = vmatmul.mubr.f32.gmra.mrb[0].mxu0 %v93
    %v206 = vpop.f32.mrb[0].mxu0
    %v207 = vadd.f32 0.0, %v206
    %v208 = vpop.f32.mrb[0].mxu0
    %v209 = vadd.f32 0.0, %v208
    %210 = vmatprep.mubr.f32.mxu0 0.0
    %211 = vmatmul.mubr.f32.gmra.mrb[0].mxu0 %v96
    %v212 = vpop.f32.mrb[0].mxu0
    %v213 = vadd.f32 0.0, %v212
    %v214 = vpop.f32.mrb[0].mxu0
    %v215 = vadd.f32 0.0, %v214
    %216 = vmatprep.mubr.f32.mxu0 0.0
    %217 = vmatmul.mubr.f32.gmra.mrb[0].mxu0 %v99
    %v218 = vpop.f32.mrb[0].mxu0
    %v219 = vadd.f32 0.0, %v218
    %v220 = vpop.f32.mrb[0].mxu0
    %v221 = vadd.f32 0.0, %v220
    %222 = vmatprep.mubr.f32.mxu0 0.0
    %223 = vmatmul.mubr.f32.gmra.mrb[0].mxu0 %v102
    %v224 = vpop.f32.mrb[0].mxu0
    %v225 = vadd.f32 0.0, %v224
    %v226 = vpop.f32.mrb[0].mxu0
    %v227 = vadd.f32 0.0, %v226
    %228 = vmatprep.mubr.f32.mxu0 0.0
    %229 = vmatmul.mubr.f32.gmra.mrb[0].mxu0 %v105
    %v230 = vpop.f32.mrb[0].mxu0
    %v231 = vadd.f32 0.0, %v230
    %v232 = vpop.f32.mrb[0].mxu0
    %v233 = vadd.f32 0.0, %v232
    %234 = vmatprep.mubr.f32.mxu0 0.0
    %235 = vmatmul.mubr.f32.gmra.mrb[0].mxu0 %v108
    %v236 = vpop.f32.mrb[0].mxu0
    %v237 = vadd.f32 0.0, %v236
    %v238 = vpop.f32.mrb[0].mxu0
    %v239 = vadd.f32 0.0, %v238
    %240 = vmatprep.mubr.f32.mxu0 0.0
    %241 = vmatmul.mubr.f32.gmra.mrb[0].mxu0 %v111
    %v242 = vpop.f32.mrb[0].mxu0
    %v243 = vadd.f32 0.0, %v242
    %v244 = vpop.f32.mrb[0].mxu0
    %v245 = vadd.f32 0.0, %v244
    %246 = vmatprep.mubr.f32.mxu0 0.0
    %247 = vmatmul.mubr.f32.gmra.mrb[0].mxu0 %v114
    %v248 = vpop.f32.mrb[0].mxu0
    %v249 = vadd.f32 0.0, %v248
    %v250 = vpop.f32.mrb[0].mxu0
    %v251 = vadd.f32 0.0, %v250
    %252 = vmatprep.mubr.f32.mxu0 0.0
    %253 = vmatmul.mubr.f32.gmra.mrb[0].mxu0 %v117
    %v254 = vpop.f32.mrb[0].mxu0
    %v255 = vadd.f32 0.0, %v254
    %v256 = vpop.f32.mrb[0].mxu0
    %v257 = vadd.f32 0.0, %v256
    %258 = vmatprep.mubr.f32.mxu0 0.0
    %259 = vmatmul.mubr.f32.gmra.mrb[0].mxu0 %v120
    %v260 = vpop.f32.mrb[0].mxu0
    %v261 = vadd.f32 0.0, %v260
    %v262 = vpop.f32.mrb[0].mxu0
    %v263 = vadd.f32 0.0, %v262
    %264 = vmatprep.mubr.f32.mxu0 0.0
    %265 = vmatmul.mubr.f32.gmra.mrb[0].mxu0 %v123
    %v266 = vpop.f32.mrb[0].mxu0
    %v267 = vadd.f32 0.0, %v266
    %v268 = vpop.f32.mrb[0].mxu0
    %v269 = vadd.f32 0.0, %v268
    %270 = vmatprep.mubr.f32.mxu0 0.0
    %271 = vmatmul.mubr.f32.gmra.mrb[0].mxu0 %v126
    %v272 = vpop.f32.mrb[0].mxu0
    %v273 = vadd.f32 0.0, %v272
    %v274 = vpop.f32.mrb[0].mxu0
    %v275 = vadd.f32 0.0, %v274
    %276 = vmatprep.mubr.f32.mxu0 0.0
    %277 = vmatmul.mubr.f32.gmra.mrb[0].mxu0 %v129
    %v278 = vpop.f32.mrb[0].mxu0
    %v279 = vadd.f32 0.0, %v278
    %v280 = vpop.f32.mrb[0].mxu0
    %v281 = vadd.f32 0.0, %v280
    %282 = vmatprep.mubr.f32.mxu0 0.0
    %283 = vmatmul.mubr.f32.gmra.mrb[0].mxu0 %v132
    %v284 = vpop.f32.mrb[0].mxu0
    %v285 = vadd.f32 0.0, %v284
    %v286 = vpop.f32.mrb[0].mxu0
    %v287 = vadd.f32 0.0, %v286
    %288 = vmatprep.mubr.f32.mxu0 0.0
    %289 = vmatmul.mubr.f32.gmra.mrb[0].mxu0 %v135
    %v290 = vpop.f32.mrb[0].mxu0
    %v291 = vadd.f32 0.0, %v290
    %v292 = vpop.f32.mrb[0].mxu0
    %v293 = vadd.f32 0.0, %v292
    %294 = vmatprep.mubr.f32.mxu0 0.0
    %295 = vmatmul.mubr.f32.gmra.mrb[0].mxu0 %v138
    %v296 = vpop.f32.mrb[0].mxu0
    %v297 = vadd.f32 0.0, %v296
    %v298 = vpop.f32.mrb[0].mxu0
    %v299 = vadd.f32 0.0, %v298
    %300 = vdwg.mxu0
    %301 = vst [vmem:[#allocation2] sm:$0xff] %v207
    %302 = vst.msk [vmem:[#allocation2 + $0x8] sm:$0xff] %vm91, %v209
    %303 = vst [vmem:[#allocation2 + $0x10] sm:$0xff] %v213
    %304 = vst.msk [vmem:[#allocation2 + $0x18] sm:$0xff] %vm91, %v215
    %305 = vst [vmem:[#allocation2 + $0x20] sm:$0xff] %v219
    %306 = vst.msk [vmem:[#allocation2 + $0x28] sm:$0xff] %vm91, %v221
    %307 = vst [vmem:[#allocation2 + $0x30] sm:$0xff] %v225
    %308 = vst.msk [vmem:[#allocation2 + $0x38] sm:$0xff] %vm91, %v227
    %309 = vst [vmem:[#allocation2 + $0x40] sm:$0xff] %v231
    %310 = vst.msk [vmem:[#allocation2 + $0x48] sm:$0xff] %vm91, %v233
    %311 = vst [vmem:[#allocation2 + $0x50] sm:$0xff] %v237
    %312 = vst.msk [vmem:[#allocation2 + $0x58] sm:$0xff] %vm91, %v239
    %313 = vst [vmem:[#allocation2 + $0x60] sm:$0xff] %v243
    %314 = vst.msk [vmem:[#allocation2 + $0x68] sm:$0xff] %vm91, %v245
    %315 = vst [vmem:[#allocation2 + $0x70] sm:$0xff] %v249
    %316 = vst.msk [vmem:[#allocation2 + $0x78] sm:$0xff] %vm91, %v251
    %317 = vst [vmem:[#allocation2 + $0x80] sm:$0xff] %v255
    %318 = vst.msk [vmem:[#allocation2 + $0x88] sm:$0xff] %vm91, %v257
    %319 = vst [vmem:[#allocation2 + $0x90] sm:$0xff] %v261
    %320 = vst.msk [vmem:[#allocation2 + $0x98] sm:$0xff] %vm91, %v263
    %321 = vst [vmem:[#allocation2 + $0xa0] sm:$0xff] %v267
    %322 = vst.msk [vmem:[#allocation2 + $0xa8] sm:$0xff] %vm91, %v269
    %323 = vst [vmem:[#allocation2 + $0xb0] sm:$0xff] %v273
    %324 = vst.msk [vmem:[#allocation2 + $0xb8] sm:$0xff] %vm91, %v275
    %325 = vst [vmem:[#allocation2 + $0xc0] sm:$0xff] %v279
    %326 = vst.msk [vmem:[#allocation2 + $0xc8] sm:$0xff] %vm91, %v281
    %327 = vst [vmem:[#allocation2 + $0xd0] sm:$0xff] %v285
    %328 = vst.msk [vmem:[#allocation2 + $0xd8] sm:$0xff] %vm91, %v287
    %329 = vst [vmem:[#allocation2 + $0xe0] sm:$0xff] %v291
    %330 = vst.msk [vmem:[#allocation2 + $0xe8] sm:$0xff] %vm91, %v293
    %331 = vst [vmem:[#allocation2 + $0xf0] sm:$0xff] %v297
    %332 = vst.msk [vmem:[#allocation2 + $0xf8] sm:$0xff] %vm91, %v299
    %v333 = vlaneseq
    %v334 = vshrl.u32 %v333, 7
    %v335 = vadd.s32 %v334, 8
    %v336 = vlaneseq
    %v337 = vand.u32 %v336, 127
    %vm338 = vcmp.ge.s32.totalorder %v334, %v337
    %vm339 = vcmp.ge.s32.totalorder %v335, %v337
    %v340 = vld [vmem:[#allocation2] sm:$0xff]
    %v341 = vld [vmem:[#allocation2 + $0x10] sm:$0xff]
    %v342 = vld [vmem:[#allocation2 + $0x20] sm:$0xff]
    %v343 = vld [vmem:[#allocation2 + $0x30] sm:$0xff]
    %v344 = vld [vmem:[#allocation2 + $0x40] sm:$0xff]
    %v345 = vld [vmem:[#allocation2 + $0x50] sm:$0xff]
    %v346 = vld [vmem:[#allocation2 + $0x60] sm:$0xff]
    %v347 = vld [vmem:[#allocation2 + $0x70] sm:$0xff]
    %v348 = vld [vmem:[#allocation2 + $0x80] sm:$0xff]
    %v349 = vld [vmem:[#allocation2 + $0x90] sm:$0xff]
    %v350 = vld [vmem:[#allocation2 + $0xa0] sm:$0xff]
    %v351 = vld [vmem:[#allocation2 + $0xb0] sm:$0xff]
    %v352 = vld [vmem:[#allocation2 + $0xc0] sm:$0xff]
    %v353 = vld [vmem:[#allocation2 + $0xd0] sm:$0xff]
    %v354 = vld [vmem:[#allocation2 + $0xe0] sm:$0xff]
    %v355 = vld [vmem:[#allocation2 + $0xf0] sm:$0xff]
    %v356 = vld [vmem:[#allocation2 + $0x8] sm:$0xff]
    %v357 = vld [vmem:[#allocation2 + $0x18] sm:$0xff]
    %v358 = vld [vmem:[#allocation2 + $0x28] sm:$0xff]
    %v359 = vld [vmem:[#allocation2 + $0x38] sm:$0xff]
    %v360 = vld [vmem:[#allocation2 + $0x48] sm:$0xff]
    %v361 = vld [vmem:[#allocation2 + $0x58] sm:$0xff]
    %v362 = vld [vmem:[#allocation2 + $0x68] sm:$0xff]
    %v363 = vld [vmem:[#allocation2 + $0x78] sm:$0xff]
    %v364 = vld [vmem:[#allocation2 + $0x88] sm:$0xff]
    %v365 = vld [vmem:[#allocation2 + $0x98] sm:$0xff]
    %v366 = vld [vmem:[#allocation2 + $0xa8] sm:$0xff]
    %v367 = vld [vmem:[#allocation2 + $0xb8] sm:$0xff]
    %v368 = vld [vmem:[#allocation2 + $0xc8] sm:$0xff]
    %v369 = vld [vmem:[#allocation2 + $0xd8] sm:$0xff]
    %v370 = vld [vmem:[#allocation2 + $0xe8] sm:$0xff]
    %v371 = vld [vmem:[#allocation2 + $0xf8] sm:$0xff]
    %374 = vrot.lane.b32.xlu0 %v340, 64
    %v375 = vpop.permute.xlu0 %374
    %376 = vrot.lane.b32.xlu0 %v341, 64
    %v377 = vpop.permute.xlu0 %376
    %vm378 = vcmask 130048
    %v379 = vsel %vm378, %v340, 0
    %v381 = vsel %vm378, %v341, 0
    %v383 = vsel %vm378, %v375, 0
    %v385 = vsel %vm378, %v377, 0
    %387 = vmatprep.subr.mxu0 0.0
    %388 = vmatpush1.xpose.msra.mxu0 %v383
    %389 = vmatprep.subr.mxu0 0.0
    %390 = vmatpush1.xpose.msra.mxu0 %v385
    %391 = vmatprep.subr.mxu0 0.0
    %392 = vmatpush1.xpose.msra.mxu0 0.0
    %393 = vmatprep.subr.mxu0 0.0
    %394 = vmatpush1.xpose.msra.mxu0 0.0
    %395 = vmatprep.subr.mxu0 0.0
    %396 = vmatpush1.xpose.msra.mxu0 0.0
    %397 = vmatprep.subr.mxu0 0.0
    %398 = vmatpush1.xpose.msra.mxu0 0.0
    %399 = vmatprep.subr.mxu0 0.0
    %400 = vmatpush1.xpose.msra.mxu0 0.0
    %401 = vmatprep.subr.mxu0 0.0
    %402 = vmatpush1.xpose.msra.mxu0 0.0
    %403 = vmatprep.subr.mxu0 0.0
    %404 = vmatpush1.xpose.msra.mxu0 0.0
    %405 = vmatprep.subr.mxu0 0.0
    %406 = vmatpush1.xpose.msra.mxu0 0.0
    %407 = vmatprep.subr.mxu0 0.0
    %408 = vmatpush1.xpose.msra.mxu0 0.0
    %409 = vmatprep.subr.mxu0 0.0
    %410 = vmatpush1.xpose.msra.mxu0 0.0
    %411 = vmatprep.subr.mxu0 0.0
    %412 = vmatpush1.xpose.msra.mxu0 0.0
    %413 = vmatprep.subr.mxu0 0.0
    %414 = vmatpush1.xpose.msra.mxu0 0.0
    %415 = vmatprep.subr.mxu0 0.0
    %416 = vmatpush1.xpose.msra.mxu0 0.0
    %417 = vmatprep.subr.mxu0 0.0
    %418 = vmatpush1.xpose.msra.mxu0 0.0
    %419 = vmatprep.subr.mxu0 0.0
    %420 = vmatpush1.xpose.msra.mxu0 0.0
    %421 = vmatprep.subr.mxu0 0.0
    %422 = vmatpush1.xpose.msra.mxu0 0.0
    %423 = vmatprep.subr.mxu0 0.0
    %424 = vmatpush1.xpose.msra.mxu0 0.0
    %425 = vmatprep.subr.mxu0 0.0
    %426 = vmatpush1.xpose.msra.mxu0 0.0
    %427 = vmatprep.subr.mxu0 0.0
    %428 = vmatpush1.xpose.msra.mxu0 0.0
    %429 = vmatprep.subr.mxu0 0.0
    %430 = vmatpush1.xpose.msra.mxu0 0.0
    %431 = vmatprep.subr.mxu0 0.0
    %432 = vmatpush1.xpose.msra.mxu0 0.0
    %433 = vmatprep.subr.mxu0 0.0
    %434 = vmatpush1.xpose.msra.mxu0 0.0
    %435 = vmatprep.subr.mxu0 0.0
    %436 = vmatpush1.xpose.msra.mxu0 0.0
    %437 = vmatprep.subr.mxu0 0.0
    %438 = vmatpush1.xpose.msra.mxu0 0.0
    %439 = vmatprep.subr.mxu0 0.0
    %440 = vmatpush1.xpose.msra.mxu0 0.0
    %441 = vmatprep.subr.mxu0 0.0
    %442 = vmatpush1.xpose.msra.mxu0 0.0
    %443 = vmatprep.subr.mxu0 0.0
    %444 = vmatpush1.xpose.msra.mxu0 0.0
    %445 = vmatprep.subr.mxu0 0.0
    %446 = vmatpush1.xpose.msra.mxu0 0.0
    %447 = vmatprep.subr.mxu0 0.0
    %448 = vmatpush1.xpose.msra.mxu0 0.0
    %449 = vmatprep.subr.mxu0 0.0
    %450 = vmatpush1.xpose.msra.mxu0 0.0
    %451 = vmatprep.mubr.f32.mxu0 0.0
    %452 = vmatmul.mubr.f32.gmra.mrb[0].mxu0 %v379
    %v453 = vpop.f32.mrb[0].mxu0
    %v454 = vadd.f32 0.0, %v453
    %v455 = vpop.f32.mrb[0].mxu0
    %456 = vmatprep.mubr.f32.mxu0 0.0
    %457 = vmatmul.mubr.f32.gmra.mrb[0].mxu0 %v381
    %v458 = vpop.f32.mrb[0].mxu0
    %v459 = vadd.f32 0.0, %v458
    %v460 = vpop.f32.mrb[0].mxu0
    %461 = vdwg.mxu0
    %464 = vrot.lane.b32.xlu0 %v342, 64
    %v465 = vpop.permute.xlu0 %464
    %466 = vrot.lane.b32.xlu0 %v343, 64
    %v467 = vpop.permute.xlu0 %466
    %v468 = vsel %vm378, %v342, 0
    %v470 = vsel %vm378, %v343, 0
    %v472 = vsel %vm378, %v465, 0
    %v474 = vsel %vm378, %v467, 0
    %476 = vmatprep.subr.mxu0 0.0
    %477 = vmatpush1.xpose.msra.mxu0 %v472
    %478 = vmatprep.subr.mxu0 0.0
    %479 = vmatpush1.xpose.msra.mxu0 %v474
    %480 = vmatprep.subr.mxu0 0.0
    %481 = vmatpush1.xpose.msra.mxu0 0.0
    %482 = vmatprep.subr.mxu0 0.0
    %483 = vmatpush1.xpose.msra.mxu0 0.0
    %484 = vmatprep.subr.mxu0 0.0
    %485 = vmatpush1.xpose.msra.mxu0 0.0
    %486 = vmatprep.subr.mxu0 0.0
    %487 = vmatpush1.xpose.msra.mxu0 0.0
    %488 = vmatprep.subr.mxu0 0.0
    %489 = vmatpush1.xpose.msra.mxu0 0.0
    %490 = vmatprep.subr.mxu0 0.0
    %491 = vmatpush1.xpose.msra.mxu0 0.0
    %492 = vmatprep.subr.mxu0 0.0
    %493 = vmatpush1.xpose.msra.mxu0 0.0
    %494 = vmatprep.subr.mxu0 0.0
    %495 = vmatpush1.xpose.msra.mxu0 0.0
    %496 = vmatprep.subr.mxu0 0.0
    %497 = vmatpush1.xpose.msra.mxu0 0.0
    %498 = vmatprep.subr.mxu0 0.0
    %499 = vmatpush1.xpose.msra.mxu0 0.0
    %500 = vmatprep.subr.mxu0 0.0
    %501 = vmatpush1.xpose.msra.mxu0 0.0
    %502 = vmatprep.subr.mxu0 0.0
    %503 = vmatpush1.xpose.msra.mxu0 0.0
    %504 = vmatprep.subr.mxu0 0.0
    %505 = vmatpush1.xpose.msra.mxu0 0.0
    %506 = vmatprep.subr.mxu0 0.0
    %507 = vmatpush1.xpose.msra.mxu0 0.0
    %508 = vmatprep.subr.mxu0 0.0
    %509 = vmatpush1.xpose.msra.mxu0 0.0
    %510 = vmatprep.subr.mxu0 0.0
    %511 = vmatpush1.xpose.msra.mxu0 0.0
    %512 = vmatprep.subr.mxu0 0.0
    %513 = vmatpush1.xpose.msra.mxu0 0.0
    %514 = vmatprep.subr.mxu0 0.0
    %515 = vmatpush1.xpose.msra.mxu0 0.0
    %516 = vmatprep.subr.mxu0 0.0
    %517 = vmatpush1.xpose.msra.mxu0 0.0
    %518 = vmatprep.subr.mxu0 0.0
    %519 = vmatpush1.xpose.msra.mxu0 0.0
    %520 = vmatprep.subr.mxu0 0.0
    %521 = vmatpush1.xpose.msra.mxu0 0.0
    %522 = vmatprep.subr.mxu0 0.0
    %523 = vmatpush1.xpose.msra.mxu0 0.0
    %524 = vmatprep.subr.mxu0 0.0
    %525 = vmatpush1.xpose.msra.mxu0 0.0
    %526 = vmatprep.subr.mxu0 0.0
    %527 = vmatpush1.xpose.msra.mxu0 0.0
    %528 = vmatprep.subr.mxu0 0.0
    %529 = vmatpush1.xpose.msra.mxu0 0.0
    %530 = vmatprep.subr.mxu0 0.0
    %531 = vmatpush1.xpose.msra.mxu0 0.0
    %532 = vmatprep.subr.mxu0 0.0
    %533 = vmatpush1.xpose.msra.mxu0 0.0
    %534 = vmatprep.subr.mxu0 0.0
    %535 = vmatpush1.xpose.msra.mxu0 0.0
    %536 = vmatprep.subr.mxu0 0.0
    %537 = vmatpush1.xpose.msra.mxu0 0.0
    %538 = vmatprep.subr.mxu0 0.0
    %539 = vmatpush1.xpose.msra.mxu0 0.0
    %540 = vmatprep.mubr.f32.mxu0 0.0
    %541 = vmatmul.mubr.f32.gmra.mrb[0].mxu0 %v468
    %v542 = vpop.f32.mrb[0].mxu0
    %v543 = vadd.f32 0.0, %v542
    %v544 = vpop.f32.mrb[0].mxu0
    %545 = vmatprep.mubr.f32.mxu0 0.0
    %546 = vmatmul.mubr.f32.gmra.mrb[0].mxu0 %v470
    %v547 = vpop.f32.mrb[0].mxu0
    %v548 = vadd.f32 0.0, %v547
    %v549 = vpop.f32.mrb[0].mxu0
    %550 = vdwg.mxu0
    %553 = vrot.lane.b32.xlu0 %v344, 64
    %v554 = vpop.permute.xlu0 %553
    %555 = vrot.lane.b32.xlu0 %v345, 64
    %v556 = vpop.permute.xlu0 %555
    %v557 = vsel %vm378, %v344, 0
    %v559 = vsel %vm378, %v345, 0
    %v561 = vsel %vm378, %v554, 0
    %v563 = vsel %vm378, %v556, 0
    %565 = vmatprep.subr.mxu0 0.0
    %566 = vmatpush1.xpose.msra.mxu0 %v561
    %567 = vmatprep.subr.mxu0 0.0
    %568 = vmatpush1.xpose.msra.mxu0 %v563
    %569 = vmatprep.subr.mxu0 0.0
    %570 = vmatpush1.xpose.msra.mxu0 0.0
    %571 = vmatprep.subr.mxu0 0.0
    %572 = vmatpush1.xpose.msra.mxu0 0.0
    %573 = vmatprep.subr.mxu0 0.0
    %574 = vmatpush1.xpose.msra.mxu0 0.0
    %575 = vmatprep.subr.mxu0 0.0
    %576 = vmatpush1.xpose.msra.mxu0 0.0
    %577 = vmatprep.subr.mxu0 0.0
    %578 = vmatpush1.xpose.msra.mxu0 0.0
    %579 = vmatprep.subr.mxu0 0.0
    %580 = vmatpush1.xpose.msra.mxu0 0.0
    %581 = vmatprep.subr.mxu0 0.0
    %582 = vmatpush1.xpose.msra.mxu0 0.0
    %583 = vmatprep.subr.mxu0 0.0
    %584 = vmatpush1.xpose.msra.mxu0 0.0
    %585 = vmatprep.subr.mxu0 0.0
    %586 = vmatpush1.xpose.msra.mxu0 0.0
    %587 = vmatprep.subr.mxu0 0.0
    %588 = vmatpush1.xpose.msra.mxu0 0.0
    %589 = vmatprep.subr.mxu0 0.0
    %590 = vmatpush1.xpose.msra.mxu0 0.0
    %591 = vmatprep.subr.mxu0 0.0
    %592 = vmatpush1.xpose.msra.mxu0 0.0
    %593 = vmatprep.subr.mxu0 0.0
    %594 = vmatpush1.xpose.msra.mxu0 0.0
    %595 = vmatprep.subr.mxu0 0.0
    %596 = vmatpush1.xpose.msra.mxu0 0.0
    %597 = vmatprep.subr.mxu0 0.0
    %598 = vmatpush1.xpose.msra.mxu0 0.0
    %599 = vmatprep.subr.mxu0 0.0
    %600 = vmatpush1.xpose.msra.mxu0 0.0
    %601 = vmatprep.subr.mxu0 0.0
    %602 = vmatpush1.xpose.msra.mxu0 0.0
    %603 = vmatprep.subr.mxu0 0.0
    %604 = vmatpush1.xpose.msra.mxu0 0.0
    %605 = vmatprep.subr.mxu0 0.0
    %606 = vmatpush1.xpose.msra.mxu0 0.0
    %607 = vmatprep.subr.mxu0 0.0
    %608 = vmatpush1.xpose.msra.mxu0 0.0
    %609 = vmatprep.subr.mxu0 0.0
    %610 = vmatpush1.xpose.msra.mxu0 0.0
    %611 = vmatprep.subr.mxu0 0.0
    %612 = vmatpush1.xpose.msra.mxu0 0.0
    %613 = vmatprep.subr.mxu0 0.0
    %614 = vmatpush1.xpose.msra.mxu0 0.0
    %615 = vmatprep.subr.mxu0 0.0
    %616 = vmatpush1.xpose.msra.mxu0 0.0
    %617 = vmatprep.subr.mxu0 0.0
    %618 = vmatpush1.xpose.msra.mxu0 0.0
    %619 = vmatprep.subr.mxu0 0.0
    %620 = vmatpush1.xpose.msra.mxu0 0.0
    %621 = vmatprep.subr.mxu0 0.0
    %622 = vmatpush1.xpose.msra.mxu0 0.0
    %623 = vmatprep.subr.mxu0 0.0
    %624 = vmatpush1.xpose.msra.mxu0 0.0
    %625 = vmatprep.subr.mxu0 0.0
    %626 = vmatpush1.xpose.msra.mxu0 0.0
    %627 = vmatprep.subr.mxu0 0.0
    %628 = vmatpush1.xpose.msra.mxu0 0.0
    %629 = vmatprep.mubr.f32.mxu0 0.0
    %630 = vmatmul.mubr.f32.gmra.mrb[0].mxu0 %v557
    %v631 = vpop.f32.mrb[0].mxu0
    %v632 = vadd.f32 0.0, %v631
    %v633 = vpop.f32.mrb[0].mxu0
    %634 = vmatprep.mubr.f32.mxu0 0.0
    %635 = vmatmul.mubr.f32.gmra.mrb[0].mxu0 %v559
    %v636 = vpop.f32.mrb[0].mxu0
    %v637 = vadd.f32 0.0, %v636
    %v638 = vpop.f32.mrb[0].mxu0
    %639 = vdwg.mxu0
    %642 = vrot.lane.b32.xlu0 %v346, 64
    %v643 = vpop.permute.xlu0 %642
    %644 = vrot.lane.b32.xlu0 %v347, 64
    %v645 = vpop.permute.xlu0 %644
    %v646 = vsel %vm378, %v346, 0
    %v648 = vsel %vm378, %v347, 0
    %v650 = vsel %vm378, %v643, 0
    %v652 = vsel %vm378, %v645, 0
    %654 = vmatprep.subr.mxu0 0.0
    %655 = vmatpush1.xpose.msra.mxu0 %v650
    %656 = vmatprep.subr.mxu0 0.0
    %657 = vmatpush1.xpose.msra.mxu0 %v652
    %658 = vmatprep.subr.mxu0 0.0
    %659 = vmatpush1.xpose.msra.mxu0 0.0
    %660 = vmatprep.subr.mxu0 0.0
    %661 = vmatpush1.xpose.msra.mxu0 0.0
    %662 = vmatprep.subr.mxu0 0.0
    %663 = vmatpush1.xpose.msra.mxu0 0.0
    %664 = vmatprep.subr.mxu0 0.0
    %665 = vmatpush1.xpose.msra.mxu0 0.0
    %666 = vmatprep.subr.mxu0 0.0
    %667 = vmatpush1.xpose.msra.mxu0 0.0
    %668 = vmatprep.subr.mxu0 0.0
    %669 = vmatpush1.xpose.msra.mxu0 0.0
    %670 = vmatprep.subr.mxu0 0.0
    %671 = vmatpush1.xpose.msra.mxu0 0.0
    %672 = vmatprep.subr.mxu0 0.0
    %673 = vmatpush1.xpose.msra.mxu0 0.0
    %674 = vmatprep.subr.mxu0 0.0
    %675 = vmatpush1.xpose.msra.mxu0 0.0
    %676 = vmatprep.subr.mxu0 0.0
    %677 = vmatpush1.xpose.msra.mxu0 0.0
    %678 = vmatprep.subr.mxu0 0.0
    %679 = vmatpush1.xpose.msra.mxu0 0.0
    %680 = vmatprep.subr.mxu0 0.0
    %681 = vmatpush1.xpose.msra.mxu0 0.0
    %682 = vmatprep.subr.mxu0 0.0
    %683 = vmatpush1.xpose.msra.mxu0 0.0
    %684 = vmatprep.subr.mxu0 0.0
    %685 = vmatpush1.xpose.msra.mxu0 0.0
    %686 = vmatprep.subr.mxu0 0.0
    %687 = vmatpush1.xpose.msra.mxu0 0.0
    %688 = vmatprep.subr.mxu0 0.0
    %689 = vmatpush1.xpose.msra.mxu0 0.0
    %690 = vmatprep.subr.mxu0 0.0
    %691 = vmatpush1.xpose.msra.mxu0 0.0
    %692 = vmatprep.subr.mxu0 0.0
    %693 = vmatpush1.xpose.msra.mxu0 0.0
    %694 = vmatprep.subr.mxu0 0.0
    %695 = vmatpush1.xpose.msra.mxu0 0.0
    %696 = vmatprep.subr.mxu0 0.0
    %697 = vmatpush1.xpose.msra.mxu0 0.0
    %698 = vmatprep.subr.mxu0 0.0
    %699 = vmatpush1.xpose.msra.mxu0 0.0
    %700 = vmatprep.subr.mxu0 0.0
    %701 = vmatpush1.xpose.msra.mxu0 0.0
    %702 = vmatprep.subr.mxu0 0.0
    %703 = vmatpush1.xpose.msra.mxu0 0.0
    %704 = vmatprep.subr.mxu0 0.0
    %705 = vmatpush1.xpose.msra.mxu0 0.0
    %706 = vmatprep.subr.mxu0 0.0
    %707 = vmatpush1.xpose.msra.mxu0 0.0
    %708 = vmatprep.subr.mxu0 0.0
    %709 = vmatpush1.xpose.msra.mxu0 0.0
    %710 = vmatprep.subr.mxu0 0.0
    %711 = vmatpush1.xpose.msra.mxu0 0.0
    %712 = vmatprep.subr.mxu0 0.0
    %713 = vmatpush1.xpose.msra.mxu0 0.0
    %714 = vmatprep.subr.mxu0 0.0
    %715 = vmatpush1.xpose.msra.mxu0 0.0
    %716 = vmatprep.subr.mxu0 0.0
    %717 = vmatpush1.xpose.msra.mxu0 0.0
    %718 = vmatprep.mubr.f32.mxu0 0.0
    %719 = vmatmul.mubr.f32.gmra.mrb[0].mxu0 %v646
    %v720 = vpop.f32.mrb[0].mxu0
    %v721 = vadd.f32 0.0, %v720
    %v722 = vpop.f32.mrb[0].mxu0
    %723 = vmatprep.mubr.f32.mxu0 0.0
    %724 = vmatmul.mubr.f32.gmra.mrb[0].mxu0 %v648
    %v725 = vpop.f32.mrb[0].mxu0
    %v726 = vadd.f32 0.0, %v725
    %v727 = vpop.f32.mrb[0].mxu0
    %728 = vdwg.mxu0
    %731 = vrot.lane.b32.xlu0 %v348, 64
    %v732 = vpop.permute.xlu0 %731
    %733 = vrot.lane.b32.xlu0 %v349, 64
    %v734 = vpop.permute.xlu0 %733
    %v735 = vsel %vm378, %v348, 0
    %v737 = vsel %vm378, %v349, 0
    %v739 = vsel %vm378, %v732, 0
    %v741 = vsel %vm378, %v734, 0
    %743 = vmatprep.subr.mxu0 0.0
    %744 = vmatpush1.xpose.msra.mxu0 %v739
    %745 = vmatprep.subr.mxu0 0.0
    %746 = vmatpush1.xpose.msra.mxu0 %v741
    %747 = vmatprep.subr.mxu0 0.0
    %748 = vmatpush1.xpose.msra.mxu0 0.0
    %749 = vmatprep.subr.mxu0 0.0
    %750 = vmatpush1.xpose.msra.mxu0 0.0
    %751 = vmatprep.subr.mxu0 0.0
    %752 = vmatpush1.xpose.msra.mxu0 0.0
    %753 = vmatprep.subr.mxu0 0.0
    %754 = vmatpush1.xpose.msra.mxu0 0.0
    %755 = vmatprep.subr.mxu0 0.0
    %756 = vmatpush1.xpose.msra.mxu0 0.0
    %757 = vmatprep.subr.mxu0 0.0
    %758 = vmatpush1.xpose.msra.mxu0 0.0
    %759 = vmatprep.subr.mxu0 0.0
    %760 = vmatpush1.xpose.msra.mxu0 0.0
    %761 = vmatprep.subr.mxu0 0.0
    %762 = vmatpush1.xpose.msra.mxu0 0.0
    %763 = vmatprep.subr.mxu0 0.0
    %764 = vmatpush1.xpose.msra.mxu0 0.0
    %765 = vmatprep.subr.mxu0 0.0
    %766 = vmatpush1.xpose.msra.mxu0 0.0
    %767 = vmatprep.subr.mxu0 0.0
    %768 = vmatpush1.xpose.msra.mxu0 0.0
    %769 = vmatprep.subr.mxu0 0.0
    %770 = vmatpush1.xpose.msra.mxu0 0.0
    %771 = vmatprep.subr.mxu0 0.0
    %772 = vmatpush1.xpose.msra.mxu0 0.0
    %773 = vmatprep.subr.mxu0 0.0
    %774 = vmatpush1.xpose.msra.mxu0 0.0
    %775 = vmatprep.subr.mxu0 0.0
    %776 = vmatpush1.xpose.msra.mxu0 0.0
    %777 = vmatprep.subr.mxu0 0.0
    %778 = vmatpush1.xpose.msra.mxu0 0.0
    %779 = vmatprep.subr.mxu0 0.0
    %780 = vmatpush1.xpose.msra.mxu0 0.0
    %781 = vmatprep.subr.mxu0 0.0
    %782 = vmatpush1.xpose.msra.mxu0 0.0
    %783 = vmatprep.subr.mxu0 0.0
    %784 = vmatpush1.xpose.msra.mxu0 0.0
    %785 = vmatprep.subr.mxu0 0.0
    %786 = vmatpush1.xpose.msra.mxu0 0.0
    %787 = vmatprep.subr.mxu0 0.0
    %788 = vmatpush1.xpose.msra.mxu0 0.0
    %789 = vmatprep.subr.mxu0 0.0
    %790 = vmatpush1.xpose.msra.mxu0 0.0
    %791 = vmatprep.subr.mxu0 0.0
    %792 = vmatpush1.xpose.msra.mxu0 0.0
    %793 = vmatprep.subr.mxu0 0.0
    %794 = vmatpush1.xpose.msra.mxu0 0.0
    %795 = vmatprep.subr.mxu0 0.0
    %796 = vmatpush1.xpose.msra.mxu0 0.0
    %797 = vmatprep.subr.mxu0 0.0
    %798 = vmatpush1.xpose.msra.mxu0 0.0
    %799 = vmatprep.subr.mxu0 0.0
    %800 = vmatpush1.xpose.msra.mxu0 0.0
    %801 = vmatprep.subr.mxu0 0.0
    %802 = vmatpush1.xpose.msra.mxu0 0.0
    %803 = vmatprep.subr.mxu0 0.0
    %804 = vmatpush1.xpose.msra.mxu0 0.0
    %805 = vmatprep.subr.mxu0 0.0
    %806 = vmatpush1.xpose.msra.mxu0 0.0
    %807 = vmatprep.mubr.f32.mxu0 0.0
    %808 = vmatmul.mubr.f32.gmra.mrb[0].mxu0 %v735
    %v809 = vpop.f32.mrb[0].mxu0
    %v810 = vadd.f32 0.0, %v809
    %v811 = vpop.f32.mrb[0].mxu0
    %812 = vmatprep.mubr.f32.mxu0 0.0
    %813 = vmatmul.mubr.f32.gmra.mrb[0].mxu0 %v737
    %v814 = vpop.f32.mrb[0].mxu0
    %v815 = vadd.f32 0.0, %v814
    %v816 = vpop.f32.mrb[0].mxu0
    %817 = vdwg.mxu0
    %820 = vrot.lane.b32.xlu0 %v350, 64
    %v821 = vpop.permute.xlu0 %820
    %822 = vrot.lane.b32.xlu0 %v351, 64
    %v823 = vpop.permute.xlu0 %822
    %v824 = vsel %vm378, %v350, 0
    %v826 = vsel %vm378, %v351, 0
    %v828 = vsel %vm378, %v821, 0
    %v830 = vsel %vm378, %v823, 0
    %832 = vmatprep.subr.mxu0 0.0
    %833 = vmatpush1.xpose.msra.mxu0 %v828
    %834 = vmatprep.subr.mxu0 0.0
    %835 = vmatpush1.xpose.msra.mxu0 %v830
    %836 = vmatprep.subr.mxu0 0.0
    %837 = vmatpush1.xpose.msra.mxu0 0.0
    %838 = vmatprep.subr.mxu0 0.0
    %839 = vmatpush1.xpose.msra.mxu0 0.0
    %840 = vmatprep.subr.mxu0 0.0
    %841 = vmatpush1.xpose.msra.mxu0 0.0
    %842 = vmatprep.subr.mxu0 0.0
    %843 = vmatpush1.xpose.msra.mxu0 0.0
    %844 = vmatprep.subr.mxu0 0.0
    %845 = vmatpush1.xpose.msra.mxu0 0.0
    %846 = vmatprep.subr.mxu0 0.0
    %847 = vmatpush1.xpose.msra.mxu0 0.0
    %848 = vmatprep.subr.mxu0 0.0
    %849 = vmatpush1.xpose.msra.mxu0 0.0
    %850 = vmatprep.subr.mxu0 0.0
    %851 = vmatpush1.xpose.msra.mxu0 0.0
    %852 = vmatprep.subr.mxu0 0.0
    %853 = vmatpush1.xpose.msra.mxu0 0.0
    %854 = vmatprep.subr.mxu0 0.0
    %855 = vmatpush1.xpose.msra.mxu0 0.0
    %856 = vmatprep.subr.mxu0 0.0
    %857 = vmatpush1.xpose.msra.mxu0 0.0
    %858 = vmatprep.subr.mxu0 0.0
    %859 = vmatpush1.xpose.msra.mxu0 0.0
    %860 = vmatprep.subr.mxu0 0.0
    %861 = vmatpush1.xpose.msra.mxu0 0.0
    %862 = vmatprep.subr.mxu0 0.0
    %863 = vmatpush1.xpose.msra.mxu0 0.0
    %864 = vmatprep.subr.mxu0 0.0
    %865 = vmatpush1.xpose.msra.mxu0 0.0
    %866 = vmatprep.subr.mxu0 0.0
    %867 = vmatpush1.xpose.msra.mxu0 0.0
    %868 = vmatprep.subr.mxu0 0.0
    %869 = vmatpush1.xpose.msra.mxu0 0.0
    %870 = vmatprep.subr.mxu0 0.0
    %871 = vmatpush1.xpose.msra.mxu0 0.0
    %872 = vmatprep.subr.mxu0 0.0
    %873 = vmatpush1.xpose.msra.mxu0 0.0
    %874 = vmatprep.subr.mxu0 0.0
    %875 = vmatpush1.xpose.msra.mxu0 0.0
    %876 = vmatprep.subr.mxu0 0.0
    %877 = vmatpush1.xpose.msra.mxu0 0.0
    %878 = vmatprep.subr.mxu0 0.0
    %879 = vmatpush1.xpose.msra.mxu0 0.0
    %880 = vmatprep.subr.mxu0 0.0
    %881 = vmatpush1.xpose.msra.mxu0 0.0
    %882 = vmatprep.subr.mxu0 0.0
    %883 = vmatpush1.xpose.msra.mxu0 0.0
    %884 = vmatprep.subr.mxu0 0.0
    %885 = vmatpush1.xpose.msra.mxu0 0.0
    %886 = vmatprep.subr.mxu0 0.0
    %887 = vmatpush1.xpose.msra.mxu0 0.0
    %888 = vmatprep.subr.mxu0 0.0
    %889 = vmatpush1.xpose.msra.mxu0 0.0
    %890 = vmatprep.subr.mxu0 0.0
    %891 = vmatpush1.xpose.msra.mxu0 0.0
    %892 = vmatprep.subr.mxu0 0.0
    %893 = vmatpush1.xpose.msra.mxu0 0.0
    %894 = vmatprep.subr.mxu0 0.0
    %895 = vmatpush1.xpose.msra.mxu0 0.0
    %896 = vmatprep.mubr.f32.mxu0 0.0
    %897 = vmatmul.mubr.f32.gmra.mrb[0].mxu0 %v824
    %v898 = vpop.f32.mrb[0].mxu0
    %v899 = vadd.f32 0.0, %v898
    %v900 = vpop.f32.mrb[0].mxu0
    %901 = vmatprep.mubr.f32.mxu0 0.0
    %902 = vmatmul.mubr.f32.gmra.mrb[0].mxu0 %v826
    %v903 = vpop.f32.mrb[0].mxu0
    %v904 = vadd.f32 0.0, %v903
    %v905 = vpop.f32.mrb[0].mxu0
    %906 = vdwg.mxu0
    %909 = vrot.lane.b32.xlu0 %v352, 64
    %v910 = vpop.permute.xlu0 %909
    %911 = vrot.lane.b32.xlu0 %v353, 64
    %v912 = vpop.permute.xlu0 %911
    %v913 = vsel %vm378, %v352, 0
    %v915 = vsel %vm378, %v353, 0
    %v917 = vsel %vm378, %v910, 0
    %v919 = vsel %vm378, %v912, 0
    %921 = vmatprep.subr.mxu0 0.0
    %922 = vmatpush1.xpose.msra.mxu0 %v917
    %923 = vmatprep.subr.mxu0 0.0
    %924 = vmatpush1.xpose.msra.mxu0 %v919
    %925 = vmatprep.subr.mxu0 0.0
    %926 = vmatpush1.xpose.msra.mxu0 0.0
    %927 = vmatprep.subr.mxu0 0.0
    %928 = vmatpush1.xpose.msra.mxu0 0.0
    %929 = vmatprep.subr.mxu0 0.0
    %930 = vmatpush1.xpose.msra.mxu0 0.0
    %931 = vmatprep.subr.mxu0 0.0
    %932 = vmatpush1.xpose.msra.mxu0 0.0
    %933 = vmatprep.subr.mxu0 0.0
    %934 = vmatpush1.xpose.msra.mxu0 0.0
    %935 = vmatprep.subr.mxu0 0.0
    %936 = vmatpush1.xpose.msra.mxu0 0.0
    %937 = vmatprep.subr.mxu0 0.0
    %938 = vmatpush1.xpose.msra.mxu0 0.0
    %939 = vmatprep.subr.mxu0 0.0
    %940 = vmatpush1.xpose.msra.mxu0 0.0
    %941 = vmatprep.subr.mxu0 0.0
    %942 = vmatpush1.xpose.msra.mxu0 0.0
    %943 = vmatprep.subr.mxu0 0.0
    %944 = vmatpush1.xpose.msra.mxu0 0.0
    %945 = vmatprep.subr.mxu0 0.0
    %946 = vmatpush1.xpose.msra.mxu0 0.0
    %947 = vmatprep.subr.mxu0 0.0
    %948 = vmatpush1.xpose.msra.mxu0 0.0
    %949 = vmatprep.subr.mxu0 0.0
    %950 = vmatpush1.xpose.msra.mxu0 0.0
    %951 = vmatprep.subr.mxu0 0.0
    %952 = vmatpush1.xpose.msra.mxu0 0.0
    %953 = vmatprep.subr.mxu0 0.0
    %954 = vmatpush1.xpose.msra.mxu0 0.0
    %955 = vmatprep.subr.mxu0 0.0
    %956 = vmatpush1.xpose.msra.mxu0 0.0
    %957 = vmatprep.subr.mxu0 0.0
    %958 = vmatpush1.xpose.msra.mxu0 0.0
    %959 = vmatprep.subr.mxu0 0.0
    %960 = vmatpush1.xpose.msra.mxu0 0.0
    %961 = vmatprep.subr.mxu0 0.0
    %962 = vmatpush1.xpose.msra.mxu0 0.0
    %963 = vmatprep.subr.mxu0 0.0
    %964 = vmatpush1.xpose.msra.mxu0 0.0
    %965 = vmatprep.subr.mxu0 0.0
    %966 = vmatpush1.xpose.msra.mxu0 0.0
    %967 = vmatprep.subr.mxu0 0.0
    %968 = vmatpush1.xpose.msra.mxu0 0.0
    %969 = vmatprep.subr.mxu0 0.0
    %970 = vmatpush1.xpose.msra.mxu0 0.0
    %971 = vmatprep.subr.mxu0 0.0
    %972 = vmatpush1.xpose.msra.mxu0 0.0
    %973 = vmatprep.subr.mxu0 0.0
    %974 = vmatpush1.xpose.msra.mxu0 0.0
    %975 = vmatprep.subr.mxu0 0.0
    %976 = vmatpush1.xpose.msra.mxu0 0.0
    %977 = vmatprep.subr.mxu0 0.0
    %978 = vmatpush1.xpose.msra.mxu0 0.0
    %979 = vmatprep.subr.mxu0 0.0
    %980 = vmatpush1.xpose.msra.mxu0 0.0
    %981 = vmatprep.subr.mxu0 0.0
    %982 = vmatpush1.xpose.msra.mxu0 0.0
    %983 = vmatprep.subr.mxu0 0.0
    %984 = vmatpush1.xpose.msra.mxu0 0.0
    %985 = vmatprep.mubr.f32.mxu0 0.0
    %986 = vmatmul.mubr.f32.gmra.mrb[0].mxu0 %v913
    %v987 = vpop.f32.mrb[0].mxu0
    %v988 = vadd.f32 0.0, %v987
    %v989 = vpop.f32.mrb[0].mxu0
    %990 = vmatprep.mubr.f32.mxu0 0.0
    %991 = vmatmul.mubr.f32.gmra.mrb[0].mxu0 %v915
    %v992 = vpop.f32.mrb[0].mxu0
    %v993 = vadd.f32 0.0, %v992
    %v994 = vpop.f32.mrb[0].mxu0
    %995 = vdwg.mxu0
    %998 = vrot.lane.b32.xlu0 %v354, 64
    %v999 = vpop.permute.xlu0 %998
    %1000 = vrot.lane.b32.xlu0 %v355, 64
    %v1001 = vpop.permute.xlu0 %1000
    %v1002 = vsel %vm378, %v354, 0
    %v1004 = vsel %vm378, %v355, 0
    %v1006 = vsel %vm378, %v999, 0
    %v1008 = vsel %vm378, %v1001, 0
    %1010 = vmatprep.subr.mxu0 0.0
    %1011 = vmatpush1.xpose.msra.mxu0 %v1006
    %1012 = vmatprep.subr.mxu0 0.0
    %1013 = vmatpush1.xpose.msra.mxu0 %v1008
    %1014 = vmatprep.subr.mxu0 0.0
    %1015 = vmatpush1.xpose.msra.mxu0 0.0
    %1016 = vmatprep.subr.mxu0 0.0
    %1017 = vmatpush1.xpose.msra.mxu0 0.0
    %1018 = vmatprep.subr.mxu0 0.0
    %1019 = vmatpush1.xpose.msra.mxu0 0.0
    %1020 = vmatprep.subr.mxu0 0.0
    %1021 = vmatpush1.xpose.msra.mxu0 0.0
    %1022 = vmatprep.subr.mxu0 0.0
    %1023 = vmatpush1.xpose.msra.mxu0 0.0
    %1024 = vmatprep.subr.mxu0 0.0
    %1025 = vmatpush1.xpose.msra.mxu0 0.0
    %1026 = vmatprep.subr.mxu0 0.0
    %1027 = vmatpush1.xpose.msra.mxu0 0.0
    %1028 = vmatprep.subr.mxu0 0.0
    %1029 = vmatpush1.xpose.msra.mxu0 0.0
    %1030 = vmatprep.subr.mxu0 0.0
    %1031 = vmatpush1.xpose.msra.mxu0 0.0
    %1032 = vmatprep.subr.mxu0 0.0
    %1033 = vmatpush1.xpose.msra.mxu0 0.0
    %1034 = vmatprep.subr.mxu0 0.0
    %1035 = vmatpush1.xpose.msra.mxu0 0.0
    %1036 = vmatprep.subr.mxu0 0.0
    %1037 = vmatpush1.xpose.msra.mxu0 0.0
    %1038 = vmatprep.subr.mxu0 0.0
    %1039 = vmatpush1.xpose.msra.mxu0 0.0
    %1040 = vmatprep.subr.mxu0 0.0
    %1041 = vmatpush1.xpose.msra.mxu0 0.0
    %1042 = vmatprep.subr.mxu0 0.0
    %1043 = vmatpush1.xpose.msra.mxu0 0.0
    %1044 = vmatprep.subr.mxu0 0.0
    %1045 = vmatpush1.xpose.msra.mxu0 0.0
    %1046 = vmatprep.subr.mxu0 0.0
    %1047 = vmatpush1.xpose.msra.mxu0 0.0
    %1048 = vmatprep.subr.mxu0 0.0
    %1049 = vmatpush1.xpose.msra.mxu0 0.0
    %1050 = vmatprep.subr.mxu0 0.0
    %1051 = vmatpush1.xpose.msra.mxu0 0.0
    %1052 = vmatprep.subr.mxu0 0.0
    %1053 = vmatpush1.xpose.msra.mxu0 0.0
    %1054 = vmatprep.subr.mxu0 0.0
    %1055 = vmatpush1.xpose.msra.mxu0 0.0
    %1056 = vmatprep.subr.mxu0 0.0
    %1057 = vmatpush1.xpose.msra.mxu0 0.0
    %1058 = vmatprep.subr.mxu0 0.0
    %1059 = vmatpush1.xpose.msra.mxu0 0.0
    %1060 = vmatprep.subr.mxu0 0.0
    %1061 = vmatpush1.xpose.msra.mxu0 0.0
    %1062 = vmatprep.subr.mxu0 0.0
    %1063 = vmatpush1.xpose.msra.mxu0 0.0
    %1064 = vmatprep.subr.mxu0 0.0
    %1065 = vmatpush1.xpose.msra.mxu0 0.0
    %1066 = vmatprep.subr.mxu0 0.0
    %1067 = vmatpush1.xpose.msra.mxu0 0.0
    %1068 = vmatprep.subr.mxu0 0.0
    %1069 = vmatpush1.xpose.msra.mxu0 0.0
    %1070 = vmatprep.subr.mxu0 0.0
    %1071 = vmatpush1.xpose.msra.mxu0 0.0
    %1072 = vmatprep.subr.mxu0 0.0
    %1073 = vmatpush1.xpose.msra.mxu0 0.0
    %1074 = vmatprep.mubr.f32.mxu0 0.0
    %1075 = vmatmul.mubr.f32.gmra.mrb[0].mxu0 %v1002
    %v1076 = vpop.f32.mrb[0].mxu0
    %v1077 = vadd.f32 0.0, %v1076
    %v1078 = vpop.f32.mrb[0].mxu0
    %1079 = vmatprep.mubr.f32.mxu0 0.0
    %1080 = vmatmul.mubr.f32.gmra.mrb[0].mxu0 %v1004
    %v1081 = vpop.f32.mrb[0].mxu0
    %v1082 = vadd.f32 0.0, %v1081
    %v1083 = vpop.f32.mrb[0].mxu0
    %1084 = vdwg.mxu0
    %v1085 = vsel %vm338, 1, 0
    %v1086 = vsel %vm339, 1, 0
    %vm1087 = vcmp.eq.s32.totalorder %v1085, 1
    %vm1088 = vcmp.eq.s32.totalorder %v1086, 1
    %v1089 = vsel %vm1087, %v454, -1.7014117e+38
    %v1090 = vsel %vm1088, %v459, -1.7014117e+38
    %v1091 = vsel %vm1087, %v543, -1.7014117e+38
    %v1092 = vsel %vm1088, %v548, -1.7014117e+38
    %v1093 = vsel %vm1087, %v632, -1.7014117e+38
    %v1094 = vsel %vm1088, %v637, -1.7014117e+38
    %v1095 = vsel %vm1087, %v721, -1.7014117e+38
    %v1096 = vsel %vm1088, %v726, -1.7014117e+38
    %v1097 = vsel %vm1087, %v810, -1.7014117e+38
    %v1098 = vsel %vm1088, %v815, -1.7014117e+38
    %v1099 = vsel %vm1087, %v899, -1.7014117e+38
    %v1100 = vsel %vm1088, %v904, -1.7014117e+38
    %v1101 = vsel %vm1087, %v988, -1.7014117e+38
    %v1102 = vsel %vm1088, %v993, -1.7014117e+38
    %v1103 = vsel %vm1087, %v1077, -1.7014117e+38
    %v1104 = vsel %vm1088, %v1082, -1.7014117e+38
    %v1105 = vsel %vm378, %v1089, -inf
    %1106 = vmax.xlane.f32.xlu0 %v1105
    %v1107 = vpop.xlane.xlu0 %1106
    %v1108 = vsel %vm378, %v1090, -inf
    %1109 = vmax.xlane.f32.xlu0 %v1108
    %v1110 = vpop.xlane.xlu0 %1109
    %v1111 = vsel %vm378, %v1091, -inf
    %1112 = vmax.xlane.f32.xlu0 %v1111
    %v1113 = vpop.xlane.xlu0 %1112
    %v1114 = vsel %vm378, %v1092, -inf
    %1115 = vmax.xlane.f32.xlu0 %v1114
    %v1116 = vpop.xlane.xlu0 %1115
    %v1117 = vsel %vm378, %v1093, -inf
    %1118 = vmax.xlane.f32.xlu0 %v1117
    %v1119 = vpop.xlane.xlu0 %1118
    %v1120 = vsel %vm378, %v1094, -inf
    %1121 = vmax.xlane.f32.xlu0 %v1120
    %v1122 = vpop.xlane.xlu0 %1121
    %v1123 = vsel %vm378, %v1095, -inf
    %1124 = vmax.xlane.f32.xlu0 %v1123
    %v1125 = vpop.xlane.xlu0 %1124
    %v1126 = vsel %vm378, %v1096, -inf
    %1127 = vmax.xlane.f32.xlu0 %v1126
    %v1128 = vpop.xlane.xlu0 %1127
    %v1129 = vsel %vm378, %v1097, -inf
    %1130 = vmax.xlane.f32.xlu0 %v1129
    %v1131 = vpop.xlane.xlu0 %1130
    %v1132 = vsel %vm378, %v1098, -inf
    %1133 = vmax.xlane.f32.xlu0 %v1132
    %v1134 = vpop.xlane.xlu0 %1133
    %v1135 = vsel %vm378, %v1099, -inf
    %1136 = vmax.xlane.f32.xlu0 %v1135
    %v1137 = vpop.xlane.xlu0 %1136
    %v1138 = vsel %vm378, %v1100, -inf
    %1139 = vmax.xlane.f32.xlu0 %v1138
    %v1140 = vpop.xlane.xlu0 %1139
    %v1141 = vsel %vm378, %v1101, -inf
    %1142 = vmax.xlane.f32.xlu0 %v1141
    %v1143 = vpop.xlane.xlu0 %1142
    %v1144 = vsel %vm378, %v1102, -inf
    %1145 = vmax.xlane.f32.xlu0 %v1144
    %v1146 = vpop.xlane.xlu0 %1145
    %v1147 = vsel %vm378, %v1103, -inf
    %1148 = vmax.xlane.f32.xlu0 %v1147
    %v1149 = vpop.xlane.xlu0 %1148
    %v1150 = vsel %vm378, %v1104, -inf
    %1151 = vmax.xlane.f32.xlu0 %v1150
    %v1152 = vpop.xlane.xlu0 %1151
    %v1153 = vsub.f32 %v1089, %v1107
    %v1154 = vsub.f32 %v1090, %v1110
    %v1155 = vsub.f32 %v1091, %v1113
    %v1156 = vsub.f32 %v1092, %v1116
    %v1157 = vsub.f32 %v1093, %v1119
    %v1158 = vsub.f32 %v1094, %v1122
    %v1159 = vsub.f32 %v1095, %v1125
    %v1160 = vsub.f32 %v1096, %v1128
    %v1161 = vsub.f32 %v1097, %v1131
    %v1162 = vsub.f32 %v1098, %v1134
    %v1163 = vsub.f32 %v1099, %v1137
    %v1164 = vsub.f32 %v1100, %v1140
    %v1165 = vsub.f32 %v1101, %v1143
    %v1166 = vsub.f32 %v1102, %v1146
    %v1167 = vsub.f32 %v1103, %v1149
    %v1168 = vsub.f32 %v1104, %v1152
    %v1169 = vmul.f32 %v1153, 1.442695
    %v1170 = vpow.pop %v1169
    %v1171 = vmul.f32 %v1154, 1.442695
    %v1172 = vpow.pop %v1171
    %v1173 = vmul.f32 %v1155, 1.442695
    %v1174 = vpow.pop %v1173
    %v1175 = vmul.f32 %v1156, 1.442695
    %v1176 = vpow.pop %v1175
    %v1177 = vmul.f32 %v1157, 1.442695
    %v1178 = vpow.pop %v1177
    %v1179 = vmul.f32 %v1158, 1.442695
    %v1180 = vpow.pop %v1179
    %v1181 = vmul.f32 %v1159, 1.442695
    %v1182 = vpow.pop %v1181
    %v1183 = vmul.f32 %v1160, 1.442695
    %v1184 = vpow.pop %v1183
    %v1185 = vmul.f32 %v1161, 1.442695
    %v1186 = vpow.pop %v1185
    %v1187 = vmul.f32 %v1162, 1.442695
    %v1188 = vpow.pop %v1187
    %v1189 = vmul.f32 %v1163, 1.442695
    %v1190 = vpow.pop %v1189
    %v1191 = vmul.f32 %v1164, 1.442695
    %v1192 = vpow.pop %v1191
    %v1193 = vmul.f32 %v1165, 1.442695
    %v1194 = vpow.pop %v1193
    %v1195 = vmul.f32 %v1166, 1.442695
    %v1196 = vpow.pop %v1195
    %v1197 = vmul.f32 %v1167, 1.442695
    %v1198 = vpow.pop %v1197
    %v1199 = vmul.f32 %v1168, 1.442695
    %v1200 = vpow.pop %v1199
    %v1201 = vsel %vm378, %v1170, 0.0
    %1202 = vadd.xlane.f32.xlu0 %v1201
    %v1203 = vpop.xlane.xlu0 %1202
    %v1204 = vsel %vm378, %v1172, 0.0
    %1205 = vadd.xlane.f32.xlu0 %v1204
    %v1206 = vpop.xlane.xlu0 %1205
    %v1207 = vsel %vm378, %v1174, 0.0
    %1208 = vadd.xlane.f32.xlu0 %v1207
    %v1209 = vpop.xlane.xlu0 %1208
    %v1210 = vsel %vm378, %v1176, 0.0
    %1211 = vadd.xlane.f32.xlu0 %v1210
    %v1212 = vpop.xlane.xlu0 %1211
    %v1213 = vsel %vm378, %v1178, 0.0
    %1214 = vadd.xlane.f32.xlu0 %v1213
    %v1215 = vpop.xlane.xlu0 %1214
    %v1216 = vsel %vm378, %v1180, 0.0
    %1217 = vadd.xlane.f32.xlu0 %v1216
    %v1218 = vpop.xlane.xlu0 %1217
    %v1219 = vsel %vm378, %v1182, 0.0
    %1220 = vadd.xlane.f32.xlu0 %v1219
    %v1221 = vpop.xlane.xlu0 %1220
    %v1222 = vsel %vm378, %v1184, 0.0
    %1223 = vadd.xlane.f32.xlu0 %v1222
    %v1224 = vpop.xlane.xlu0 %1223
    %v1225 = vsel %vm378, %v1186, 0.0
    %1226 = vadd.xlane.f32.xlu0 %v1225
    %v1227 = vpop.xlane.xlu0 %1226
    %v1228 = vsel %vm378, %v1188, 0.0
    %1229 = vadd.xlane.f32.xlu0 %v1228
    %v1230 = vpop.xlane.xlu0 %1229
    %v1231 = vsel %vm378, %v1190, 0.0
    %1232 = vadd.xlane.f32.xlu0 %v1231
    %v1233 = vpop.xlane.xlu0 %1232
    %v1234 = vsel %vm378, %v1192, 0.0
    %1235 = vadd.xlane.f32.xlu0 %v1234
    %v1236 = vpop.xlane.xlu0 %1235
    %v1237 = vsel %vm378, %v1194, 0.0
    %1238 = vadd.xlane.f32.xlu0 %v1237
    %v1239 = vpop.xlane.xlu0 %1238
    %v1240 = vsel %vm378, %v1196, 0.0
    %1241 = vadd.xlane.f32.xlu0 %v1240
    %v1242 = vpop.xlane.xlu0 %1241
    %v1243 = vsel %vm378, %v1198, 0.0
    %1244 = vadd.xlane.f32.xlu0 %v1243
    %v1245 = vpop.xlane.xlu0 %1244
    %v1246 = vsel %vm378, %v1200, 0.0
    %1247 = vadd.xlane.f32.xlu0 %v1246
    %v1248 = vpop.xlane.xlu0 %1247
    %v1249 = vrcp.pop %v1203
    %v1250 = vrcp.pop %v1206
    %v1251 = vrcp.pop %v1209
    %v1252 = vrcp.pop %v1212
    %v1253 = vrcp.pop %v1215
    %v1254 = vrcp.pop %v1218
    %v1255 = vrcp.pop %v1221
    %v1256 = vrcp.pop %v1224
    %v1257 = vrcp.pop %v1227
    %v1258 = vrcp.pop %v1230
    %v1259 = vrcp.pop %v1233
    %v1260 = vrcp.pop %v1236
    %v1261 = vrcp.pop %v1239
    %v1262 = vrcp.pop %v1242
    %v1263 = vrcp.pop %v1245
    %v1264 = vrcp.pop %v1248
    %v1265 = vmul.f32 %v1170, %v1249
    %v1266 = vmul.f32 %v1172, %v1250
    %v1267 = vmul.f32 %v1174, %v1251
    %v1268 = vmul.f32 %v1176, %v1252
    %v1269 = vmul.f32 %v1178, %v1253
    %v1270 = vmul.f32 %v1180, %v1254
    %v1271 = vmul.f32 %v1182, %v1255
    %v1272 = vmul.f32 %v1184, %v1256
    %v1273 = vmul.f32 %v1186, %v1257
    %v1274 = vmul.f32 %v1188, %v1258
    %v1275 = vmul.f32 %v1190, %v1259
    %v1276 = vmul.f32 %v1192, %v1260
    %v1277 = vmul.f32 %v1194, %v1261
    %v1278 = vmul.f32 %v1196, %v1262
    %v1279 = vmul.f32 %v1198, %v1263
    %v1280 = vmul.f32 %v1200, %v1264
    %v1282 = vsel %vm378, %v1265, 0
    %v1285 = vsel %vm378, %v1266, 0
    %1287 = vmatprep.subr.mxu0 0.0
    %1288 = vmatpush1.msra.mxu0 %v356
    %1289 = vmatprep.subr.mxu0 0.0
    %1290 = vmatpush1.msra.mxu0 %v357
    %1291 = vmatprep.subr.mxu0 0.0
    %1292 = vmatpush1.msra.mxu0 0.0
    %1293 = vmatprep.subr.mxu0 0.0
    %1294 = vmatpush1.msra.mxu0 0.0
    %1295 = vmatprep.subr.mxu0 0.0
    %1296 = vmatpush1.msra.mxu0 0.0
    %1297 = vmatprep.subr.mxu0 0.0
    %1298 = vmatpush1.msra.mxu0 0.0
    %1299 = vmatprep.subr.mxu0 0.0
    %1300 = vmatpush1.msra.mxu0 0.0
    %1301 = vmatprep.subr.mxu0 0.0
    %1302 = vmatpush1.msra.mxu0 0.0
    %1303 = vmatprep.subr.mxu0 0.0
    %1304 = vmatpush1.msra.mxu0 0.0
    %1305 = vmatprep.subr.mxu0 0.0
    %1306 = vmatpush1.msra.mxu0 0.0
    %1307 = vmatprep.subr.mxu0 0.0
    %1308 = vmatpush1.msra.mxu0 0.0
    %1309 = vmatprep.subr.mxu0 0.0
    %1310 = vmatpush1.msra.mxu0 0.0
    %1311 = vmatprep.subr.mxu0 0.0
    %1312 = vmatpush1.msra.mxu0 0.0
    %1313 = vmatprep.subr.mxu0 0.0
    %1314 = vmatpush1.msra.mxu0 0.0
    %1315 = vmatprep.subr.mxu0 0.0
    %1316 = vmatpush1.msra.mxu0 0.0
    %1317 = vmatprep.subr.mxu0 0.0
    %1318 = vmatpush1.msra.mxu0 0.0
    %1319 = vmatprep.subr.mxu0 0.0
    %1320 = vmatpush1.msra.mxu0 0.0
    %1321 = vmatprep.subr.mxu0 0.0
    %1322 = vmatpush1.msra.mxu0 0.0
    %1323 = vmatprep.subr.mxu0 0.0
    %1324 = vmatpush1.msra.mxu0 0.0
    %1325 = vmatprep.subr.mxu0 0.0
    %1326 = vmatpush1.msra.mxu0 0.0
    %1327 = vmatprep.subr.mxu0 0.0
    %1328 = vmatpush1.msra.mxu0 0.0
    %1329 = vmatprep.subr.mxu0 0.0
    %1330 = vmatpush1.msra.mxu0 0.0
    %1331 = vmatprep.subr.mxu0 0.0
    %1332 = vmatpush1.msra.mxu0 0.0
    %1333 = vmatprep.subr.mxu0 0.0
    %1334 = vmatpush1.msra.mxu0 0.0
    %1335 = vmatprep.subr.mxu0 0.0
    %1336 = vmatpush1.msra.mxu0 0.0
    %1337 = vmatprep.subr.mxu0 0.0
    %1338 = vmatpush1.msra.mxu0 0.0
    %1339 = vmatprep.subr.mxu0 0.0
    %1340 = vmatpush1.msra.mxu0 0.0
    %1341 = vmatprep.subr.mxu0 0.0
    %1342 = vmatpush1.msra.mxu0 0.0
    %1343 = vmatprep.subr.mxu0 0.0
    %1344 = vmatpush1.msra.mxu0 0.0
    %1345 = vmatprep.subr.mxu0 0.0
    %1346 = vmatpush1.msra.mxu0 0.0
    %1347 = vmatprep.subr.mxu0 0.0
    %1348 = vmatpush1.msra.mxu0 0.0
    %1349 = vmatprep.subr.mxu0 0.0
    %1350 = vmatpush1.msra.mxu0 0.0
    %1351 = vmatprep.mubr.f32.mxu0 0.0
    %1352 = vmatmul.mubr.f32.gmra.mrb[0].mxu0 %v1282
    %v1353 = vpop.f32.mrb[0].mxu0
    %v1354 = vadd.f32 0.0, %v1353
    %v1355 = vpop.f32.mrb[0].mxu0
    %1356 = vmatprep.mubr.f32.mxu0 0.0
    %1357 = vmatmul.mubr.f32.gmra.mrb[0].mxu0 %v1285
    %v1358 = vpop.f32.mrb[0].mxu0
    %v1359 = vadd.f32 0.0, %v1358
    %v1360 = vpop.f32.mrb[0].mxu0
    %1361 = vdwg.mxu0
    %v1363 = vsel %vm378, %v1267, 0
    %v1366 = vsel %vm378, %v1268, 0
    %1368 = vmatprep.subr.mxu0 0.0
    %1369 = vmatpush1.msra.mxu0 %v358
    %1370 = vmatprep.subr.mxu0 0.0
    %1371 = vmatpush1.msra.mxu0 %v359
    %1372 = vmatprep.subr.mxu0 0.0
    %1373 = vmatpush1.msra.mxu0 0.0
    %1374 = vmatprep.subr.mxu0 0.0
    %1375 = vmatpush1.msra.mxu0 0.0
    %1376 = vmatprep.subr.mxu0 0.0
    %1377 = vmatpush1.msra.mxu0 0.0
    %1378 = vmatprep.subr.mxu0 0.0
    %1379 = vmatpush1.msra.mxu0 0.0
    %1380 = vmatprep.subr.mxu0 0.0
    %1381 = vmatpush1.msra.mxu0 0.0
    %1382 = vmatprep.subr.mxu0 0.0
    %1383 = vmatpush1.msra.mxu0 0.0
    %1384 = vmatprep.subr.mxu0 0.0
    %1385 = vmatpush1.msra.mxu0 0.0
    %1386 = vmatprep.subr.mxu0 0.0
    %1387 = vmatpush1.msra.mxu0 0.0
    %1388 = vmatprep.subr.mxu0 0.0
    %1389 = vmatpush1.msra.mxu0 0.0
    %1390 = vmatprep.subr.mxu0 0.0
    %1391 = vmatpush1.msra.mxu0 0.0
    %1392 = vmatprep.subr.mxu0 0.0
    %1393 = vmatpush1.msra.mxu0 0.0
    %1394 = vmatprep.subr.mxu0 0.0
    %1395 = vmatpush1.msra.mxu0 0.0
    %1396 = vmatprep.subr.mxu0 0.0
    %1397 = vmatpush1.msra.mxu0 0.0
    %1398 = vmatprep.subr.mxu0 0.0
    %1399 = vmatpush1.msra.mxu0 0.0
    %1400 = vmatprep.subr.mxu0 0.0
    %1401 = vmatpush1.msra.mxu0 0.0
    %1402 = vmatprep.subr.mxu0 0.0
    %1403 = vmatpush1.msra.mxu0 0.0
    %1404 = vmatprep.subr.mxu0 0.0
    %1405 = vmatpush1.msra.mxu0 0.0
    %1406 = vmatprep.subr.mxu0 0.0
    %1407 = vmatpush1.msra.mxu0 0.0
    %1408 = vmatprep.subr.mxu0 0.0
    %1409 = vmatpush1.msra.mxu0 0.0
    %1410 = vmatprep.subr.mxu0 0.0
    %1411 = vmatpush1.msra.mxu0 0.0
    %1412 = vmatprep.subr.mxu0 0.0
    %1413 = vmatpush1.msra.mxu0 0.0
    %1414 = vmatprep.subr.mxu0 0.0
    %1415 = vmatpush1.msra.mxu0 0.0
    %1416 = vmatprep.subr.mxu0 0.0
    %1417 = vmatpush1.msra.mxu0 0.0
    %1418 = vmatprep.subr.mxu0 0.0
    %1419 = vmatpush1.msra.mxu0 0.0
    %1420 = vmatprep.subr.mxu0 0.0
    %1421 = vmatpush1.msra.mxu0 0.0
    %1422 = vmatprep.subr.mxu0 0.0
    %1423 = vmatpush1.msra.mxu0 0.0
    %1424 = vmatprep.subr.mxu0 0.0
    %1425 = vmatpush1.msra.mxu0 0.0
    %1426 = vmatprep.subr.mxu0 0.0
    %1427 = vmatpush1.msra.mxu0 0.0
    %1428 = vmatprep.subr.mxu0 0.0
    %1429 = vmatpush1.msra.mxu0 0.0
    %1430 = vmatprep.subr.mxu0 0.0
    %1431 = vmatpush1.msra.mxu0 0.0
    %1432 = vmatprep.mubr.f32.mxu0 0.0
    %1433 = vmatmul.mubr.f32.gmra.mrb[0].mxu0 %v1363
    %v1434 = vpop.f32.mrb[0].mxu0
    %v1435 = vadd.f32 0.0, %v1434
    %v1436 = vpop.f32.mrb[0].mxu0
    %1437 = vmatprep.mubr.f32.mxu0 0.0
    %1438 = vmatmul.mubr.f32.gmra.mrb[0].mxu0 %v1366
    %v1439 = vpop.f32.mrb[0].mxu0
    %v1440 = vadd.f32 0.0, %v1439
    %v1441 = vpop.f32.mrb[0].mxu0
    %1442 = vdwg.mxu0
    %v1444 = vsel %vm378, %v1269, 0
    %v1447 = vsel %vm378, %v1270, 0
    %1449 = vmatprep.subr.mxu0 0.0
    %1450 = vmatpush1.msra.mxu0 %v360
    %1451 = vmatprep.subr.mxu0 0.0
    %1452 = vmatpush1.msra.mxu0 %v361
    %1453 = vmatprep.subr.mxu0 0.0
    %1454 = vmatpush1.msra.mxu0 0.0
    %1455 = vmatprep.subr.mxu0 0.0
    %1456 = vmatpush1.msra.mxu0 0.0
    %1457 = vmatprep.subr.mxu0 0.0
    %1458 = vmatpush1.msra.mxu0 0.0
    %1459 = vmatprep.subr.mxu0 0.0
    %1460 = vmatpush1.msra.mxu0 0.0
    %1461 = vmatprep.subr.mxu0 0.0
    %1462 = vmatpush1.msra.mxu0 0.0
    %1463 = vmatprep.subr.mxu0 0.0
    %1464 = vmatpush1.msra.mxu0 0.0
    %1465 = vmatprep.subr.mxu0 0.0
    %1466 = vmatpush1.msra.mxu0 0.0
    %1467 = vmatprep.subr.mxu0 0.0
    %1468 = vmatpush1.msra.mxu0 0.0
    %1469 = vmatprep.subr.mxu0 0.0
    %1470 = vmatpush1.msra.mxu0 0.0
    %1471 = vmatprep.subr.mxu0 0.0
    %1472 = vmatpush1.msra.mxu0 0.0
    %1473 = vmatprep.subr.mxu0 0.0
    %1474 = vmatpush1.msra.mxu0 0.0
    %1475 = vmatprep.subr.mxu0 0.0
    %1476 = vmatpush1.msra.mxu0 0.0
    %1477 = vmatprep.subr.mxu0 0.0
    %1478 = vmatpush1.msra.mxu0 0.0
    %1479 = vmatprep.subr.mxu0 0.0
    %1480 = vmatpush1.msra.mxu0 0.0
    %1481 = vmatprep.subr.mxu0 0.0
    %1482 = vmatpush1.msra.mxu0 0.0
    %1483 = vmatprep.subr.mxu0 0.0
    %1484 = vmatpush1.msra.mxu0 0.0
    %1485 = vmatprep.subr.mxu0 0.0
    %1486 = vmatpush1.msra.mxu0 0.0
    %1487 = vmatprep.subr.mxu0 0.0
    %1488 = vmatpush1.msra.mxu0 0.0
    %1489 = vmatprep.subr.mxu0 0.0
    %1490 = vmatpush1.msra.mxu0 0.0
    %1491 = vmatprep.subr.mxu0 0.0
    %1492 = vmatpush1.msra.mxu0 0.0
    %1493 = vmatprep.subr.mxu0 0.0
    %1494 = vmatpush1.msra.mxu0 0.0
    %1495 = vmatprep.subr.mxu0 0.0
    %1496 = vmatpush1.msra.mxu0 0.0
    %1497 = vmatprep.subr.mxu0 0.0
    %1498 = vmatpush1.msra.mxu0 0.0
    %1499 = vmatprep.subr.mxu0 0.0
    %1500 = vmatpush1.msra.mxu0 0.0
    %1501 = vmatprep.subr.mxu0 0.0
    %1502 = vmatpush1.msra.mxu0 0.0
    %1503 = vmatprep.subr.mxu0 0.0
    %1504 = vmatpush1.msra.mxu0 0.0
    %1505 = vmatprep.subr.mxu0 0.0
    %1506 = vmatpush1.msra.mxu0 0.0
    %1507 = vmatprep.subr.mxu0 0.0
    %1508 = vmatpush1.msra.mxu0 0.0
    %1509 = vmatprep.subr.mxu0 0.0
    %1510 = vmatpush1.msra.mxu0 0.0
    %1511 = vmatprep.subr.mxu0 0.0
    %1512 = vmatpush1.msra.mxu0 0.0
    %1513 = vmatprep.mubr.f32.mxu0 0.0
    %1514 = vmatmul.mubr.f32.gmra.mrb[0].mxu0 %v1444
    %v1515 = vpop.f32.mrb[0].mxu0
    %v1516 = vadd.f32 0.0, %v1515
    %v1517 = vpop.f32.mrb[0].mxu0
    %1518 = vmatprep.mubr.f32.mxu0 0.0
    %1519 = vmatmul.mubr.f32.gmra.mrb[0].mxu0 %v1447
    %v1520 = vpop.f32.mrb[0].mxu0
    %v1521 = vadd.f32 0.0, %v1520
    %v1522 = vpop.f32.mrb[0].mxu0
    %1523 = vdwg.mxu0
    %v1525 = vsel %vm378, %v1271, 0
    %v1528 = vsel %vm378, %v1272, 0
    %1530 = vmatprep.subr.mxu0 0.0
    %1531 = vmatpush1.msra.mxu0 %v362
    %1532 = vmatprep.subr.mxu0 0.0
    %1533 = vmatpush1.msra.mxu0 %v363
    %1534 = vmatprep.subr.mxu0 0.0
    %1535 = vmatpush1.msra.mxu0 0.0
    %1536 = vmatprep.subr.mxu0 0.0
    %1537 = vmatpush1.msra.mxu0 0.0
    %1538 = vmatprep.subr.mxu0 0.0
    %1539 = vmatpush1.msra.mxu0 0.0
    %1540 = vmatprep.subr.mxu0 0.0
    %1541 = vmatpush1.msra.mxu0 0.0
    %1542 = vmatprep.subr.mxu0 0.0
    %1543 = vmatpush1.msra.mxu0 0.0
    %1544 = vmatprep.subr.mxu0 0.0
    %1545 = vmatpush1.msra.mxu0 0.0
    %1546 = vmatprep.subr.mxu0 0.0
    %1547 = vmatpush1.msra.mxu0 0.0
    %1548 = vmatprep.subr.mxu0 0.0
    %1549 = vmatpush1.msra.mxu0 0.0
    %1550 = vmatprep.subr.mxu0 0.0
    %1551 = vmatpush1.msra.mxu0 0.0
    %1552 = vmatprep.subr.mxu0 0.0
    %1553 = vmatpush1.msra.mxu0 0.0
    %1554 = vmatprep.subr.mxu0 0.0
    %1555 = vmatpush1.msra.mxu0 0.0
    %1556 = vmatprep.subr.mxu0 0.0
    %1557 = vmatpush1.msra.mxu0 0.0
    %1558 = vmatprep.subr.mxu0 0.0
    %1559 = vmatpush1.msra.mxu0 0.0
    %1560 = vmatprep.subr.mxu0 0.0
    %1561 = vmatpush1.msra.mxu0 0.0
    %1562 = vmatprep.subr.mxu0 0.0
    %1563 = vmatpush1.msra.mxu0 0.0
    %1564 = vmatprep.subr.mxu0 0.0
    %1565 = vmatpush1.msra.mxu0 0.0
    %1566 = vmatprep.subr.mxu0 0.0
    %1567 = vmatpush1.msra.mxu0 0.0
    %1568 = vmatprep.subr.mxu0 0.0
    %1569 = vmatpush1.msra.mxu0 0.0
    %1570 = vmatprep.subr.mxu0 0.0
    %1571 = vmatpush1.msra.mxu0 0.0
    %1572 = vmatprep.subr.mxu0 0.0
    %1573 = vmatpush1.msra.mxu0 0.0
    %1574 = vmatprep.subr.mxu0 0.0
    %1575 = vmatpush1.msra.mxu0 0.0
    %1576 = vmatprep.subr.mxu0 0.0
    %1577 = vmatpush1.msra.mxu0 0.0
    %1578 = vmatprep.subr.mxu0 0.0
    %1579 = vmatpush1.msra.mxu0 0.0
    %1580 = vmatprep.subr.mxu0 0.0
    %1581 = vmatpush1.msra.mxu0 0.0
    %1582 = vmatprep.subr.mxu0 0.0
    %1583 = vmatpush1.msra.mxu0 0.0
    %1584 = vmatprep.subr.mxu0 0.0
    %1585 = vmatpush1.msra.mxu0 0.0
    %1586 = vmatprep.subr.mxu0 0.0
    %1587 = vmatpush1.msra.mxu0 0.0
    %1588 = vmatprep.subr.mxu0 0.0
    %1589 = vmatpush1.msra.mxu0 0.0
    %1590 = vmatprep.subr.mxu0 0.0
    %1591 = vmatpush1.msra.mxu0 0.0
    %1592 = vmatprep.subr.mxu0 0.0
    %1593 = vmatpush1.msra.mxu0 0.0
    %1594 = vmatprep.mubr.f32.mxu0 0.0
    %1595 = vmatmul.mubr.f32.gmra.mrb[0].mxu0 %v1525
    %v1596 = vpop.f32.mrb[0].mxu0
    %v1597 = vadd.f32 0.0, %v1596
    %v1598 = vpop.f32.mrb[0].mxu0
    %1599 = vmatprep.mubr.f32.mxu0 0.0
    %1600 = vmatmul.mubr.f32.gmra.mrb[0].mxu0 %v1528
    %v1601 = vpop.f32.mrb[0].mxu0
    %v1602 = vadd.f32 0.0, %v1601
    %v1603 = vpop.f32.mrb[0].mxu0
    %1604 = vdwg.mxu0
    %v1606 = vsel %vm378, %v1273, 0
    %v1609 = vsel %vm378, %v1274, 0
    %1611 = vmatprep.subr.mxu0 0.0
    %1612 = vmatpush1.msra.mxu0 %v364
    %1613 = vmatprep.subr.mxu0 0.0
    %1614 = vmatpush1.msra.mxu0 %v365
    %1615 = vmatprep.subr.mxu0 0.0
    %1616 = vmatpush1.msra.mxu0 0.0
    %1617 = vmatprep.subr.mxu0 0.0
    %1618 = vmatpush1.msra.mxu0 0.0
    %1619 = vmatprep.subr.mxu0 0.0
    %1620 = vmatpush1.msra.mxu0 0.0
    %1621 = vmatprep.subr.mxu0 0.0
    %1622 = vmatpush1.msra.mxu0 0.0
    %1623 = vmatprep.subr.mxu0 0.0
    %1624 = vmatpush1.msra.mxu0 0.0
    %1625 = vmatprep.subr.mxu0 0.0
    %1626 = vmatpush1.msra.mxu0 0.0
    %1627 = vmatprep.subr.mxu0 0.0
    %1628 = vmatpush1.msra.mxu0 0.0
    %1629 = vmatprep.subr.mxu0 0.0
    %1630 = vmatpush1.msra.mxu0 0.0
    %1631 = vmatprep.subr.mxu0 0.0
    %1632 = vmatpush1.msra.mxu0 0.0
    %1633 = vmatprep.subr.mxu0 0.0
    %1634 = vmatpush1.msra.mxu0 0.0
    %1635 = vmatprep.subr.mxu0 0.0
    %1636 = vmatpush1.msra.mxu0 0.0
    %1637 = vmatprep.subr.mxu0 0.0
    %1638 = vmatpush1.msra.mxu0 0.0
    %1639 = vmatprep.subr.mxu0 0.0
    %1640 = vmatpush1.msra.mxu0 0.0
    %1641 = vmatprep.subr.mxu0 0.0
    %1642 = vmatpush1.msra.mxu0 0.0
    %1643 = vmatprep.subr.mxu0 0.0
    %1644 = vmatpush1.msra.mxu0 0.0
    %1645 = vmatprep.subr.mxu0 0.0
    %1646 = vmatpush1.msra.mxu0 0.0
    %1647 = vmatprep.subr.mxu0 0.0
    %1648 = vmatpush1.msra.mxu0 0.0
    %1649 = vmatprep.subr.mxu0 0.0
    %1650 = vmatpush1.msra.mxu0 0.0
    %1651 = vmatprep.subr.mxu0 0.0
    %1652 = vmatpush1.msra.mxu0 0.0
    %1653 = vmatprep.subr.mxu0 0.0
    %1654 = vmatpush1.msra.mxu0 0.0
    %1655 = vmatprep.subr.mxu0 0.0
    %1656 = vmatpush1.msra.mxu0 0.0
    %1657 = vmatprep.subr.mxu0 0.0
    %1658 = vmatpush1.msra.mxu0 0.0
    %1659 = vmatprep.subr.mxu0 0.0
    %1660 = vmatpush1.msra.mxu0 0.0
    %1661 = vmatprep.subr.mxu0 0.0
    %1662 = vmatpush1.msra.mxu0 0.0
    %1663 = vmatprep.subr.mxu0 0.0
    %1664 = vmatpush1.msra.mxu0 0.0
    %1665 = vmatprep.subr.mxu0 0.0
    %1666 = vmatpush1.msra.mxu0 0.0
    %1667 = vmatprep.subr.mxu0 0.0
    %1668 = vmatpush1.msra.mxu0 0.0
    %1669 = vmatprep.subr.mxu0 0.0
    %1670 = vmatpush1.msra.mxu0 0.0
    %1671 = vmatprep.subr.mxu0 0.0
    %1672 = vmatpush1.msra.mxu0 0.0
    %1673 = vmatprep.subr.mxu0 0.0
    %1674 = vmatpush1.msra.mxu0 0.0
    %1675 = vmatprep.mubr.f32.mxu0 0.0
    %1676 = vmatmul.mubr.f32.gmra.mrb[0].mxu0 %v1606
    %v1677 = vpop.f32.mrb[0].mxu0
    %v1678 = vadd.f32 0.0, %v1677
    %v1679 = vpop.f32.mrb[0].mxu0
    %1680 = vmatprep.mubr.f32.mxu0 0.0
    %1681 = vmatmul.mubr.f32.gmra.mrb[0].mxu0 %v1609
    %v1682 = vpop.f32.mrb[0].mxu0
    %v1683 = vadd.f32 0.0, %v1682
    %v1684 = vpop.f32.mrb[0].mxu0
    %1685 = vdwg.mxu0
    %v1687 = vsel %vm378, %v1275, 0
    %v1690 = vsel %vm378, %v1276, 0
    %1692 = vmatprep.subr.mxu0 0.0
    %1693 = vmatpush1.msra.mxu0 %v366
    %1694 = vmatprep.subr.mxu0 0.0
    %1695 = vmatpush1.msra.mxu0 %v367
    %1696 = vmatprep.subr.mxu0 0.0
    %1697 = vmatpush1.msra.mxu0 0.0
    %1698 = vmatprep.subr.mxu0 0.0
    %1699 = vmatpush1.msra.mxu0 0.0
    %1700 = vmatprep.subr.mxu0 0.0
    %1701 = vmatpush1.msra.mxu0 0.0
    %1702 = vmatprep.subr.mxu0 0.0
    %1703 = vmatpush1.msra.mxu0 0.0
    %1704 = vmatprep.subr.mxu0 0.0
    %1705 = vmatpush1.msra.mxu0 0.0
    %1706 = vmatprep.subr.mxu0 0.0
    %1707 = vmatpush1.msra.mxu0 0.0
    %1708 = vmatprep.subr.mxu0 0.0
    %1709 = vmatpush1.msra.mxu0 0.0
    %1710 = vmatprep.subr.mxu0 0.0
    %1711 = vmatpush1.msra.mxu0 0.0
    %1712 = vmatprep.subr.mxu0 0.0
    %1713 = vmatpush1.msra.mxu0 0.0
    %1714 = vmatprep.subr.mxu0 0.0
    %1715 = vmatpush1.msra.mxu0 0.0
    %1716 = vmatprep.subr.mxu0 0.0
    %1717 = vmatpush1.msra.mxu0 0.0
    %1718 = vmatprep.subr.mxu0 0.0
    %1719 = vmatpush1.msra.mxu0 0.0
    %1720 = vmatprep.subr.mxu0 0.0
    %1721 = vmatpush1.msra.mxu0 0.0
    %1722 = vmatprep.subr.mxu0 0.0
    %1723 = vmatpush1.msra.mxu0 0.0
    %1724 = vmatprep.subr.mxu0 0.0
    %1725 = vmatpush1.msra.mxu0 0.0
    %1726 = vmatprep.subr.mxu0 0.0
    %1727 = vmatpush1.msra.mxu0 0.0
    %1728 = vmatprep.subr.mxu0 0.0
    %1729 = vmatpush1.msra.mxu0 0.0
    %1730 = vmatprep.subr.mxu0 0.0
    %1731 = vmatpush1.msra.mxu0 0.0
    %1732 = vmatprep.subr.mxu0 0.0
    %1733 = vmatpush1.msra.mxu0 0.0
    %1734 = vmatprep.subr.mxu0 0.0
    %1735 = vmatpush1.msra.mxu0 0.0
    %1736 = vmatprep.subr.mxu0 0.0
    %1737 = vmatpush1.msra.mxu0 0.0
    %1738 = vmatprep.subr.mxu0 0.0
    %1739 = vmatpush1.msra.mxu0 0.0
    %1740 = vmatprep.subr.mxu0 0.0
    %1741 = vmatpush1.msra.mxu0 0.0
    %1742 = vmatprep.subr.mxu0 0.0
    %1743 = vmatpush1.msra.mxu0 0.0
    %1744 = vmatprep.subr.mxu0 0.0
    %1745 = vmatpush1.msra.mxu0 0.0
    %1746 = vmatprep.subr.mxu0 0.0
    %1747 = vmatpush1.msra.mxu0 0.0
    %1748 = vmatprep.subr.mxu0 0.0
    %1749 = vmatpush1.msra.mxu0 0.0
    %1750 = vmatprep.subr.mxu0 0.0
    %1751 = vmatpush1.msra.mxu0 0.0
    %1752 = vmatprep.subr.mxu0 0.0
    %1753 = vmatpush1.msra.mxu0 0.0
    %1754 = vmatprep.subr.mxu0 0.0
    %1755 = vmatpush1.msra.mxu0 0.0
    %1756 = vmatprep.mubr.f32.mxu0 0.0
    %1757 = vmatmul.mubr.f32.gmra.mrb[0].mxu0 %v1687
    %v1758 = vpop.f32.mrb[0].mxu0
    %v1759 = vadd.f32 0.0, %v1758
    %v1760 = vpop.f32.mrb[0].mxu0
    %1761 = vmatprep.mubr.f32.mxu0 0.0
    %1762 = vmatmul.mubr.f32.gmra.mrb[0].mxu0 %v1690
    %v1763 = vpop.f32.mrb[0].mxu0
    %v1764 = vadd.f32 0.0, %v1763
    %v1765 = vpop.f32.mrb[0].mxu0
    %1766 = vdwg.mxu0
    %v1768 = vsel %vm378, %v1277, 0
    %v1771 = vsel %vm378, %v1278, 0
    %1773 = vmatprep.subr.mxu0 0.0
    %1774 = vmatpush1.msra.mxu0 %v368
    %1775 = vmatprep.subr.mxu0 0.0
    %1776 = vmatpush1.msra.mxu0 %v369
    %1777 = vmatprep.subr.mxu0 0.0
    %1778 = vmatpush1.msra.mxu0 0.0
    %1779 = vmatprep.subr.mxu0 0.0
    %1780 = vmatpush1.msra.mxu0 0.0
    %1781 = vmatprep.subr.mxu0 0.0
    %1782 = vmatpush1.msra.mxu0 0.0
    %1783 = vmatprep.subr.mxu0 0.0
    %1784 = vmatpush1.msra.mxu0 0.0
    %1785 = vmatprep.subr.mxu0 0.0
    %1786 = vmatpush1.msra.mxu0 0.0
    %1787 = vmatprep.subr.mxu0 0.0
    %1788 = vmatpush1.msra.mxu0 0.0
    %1789 = vmatprep.subr.mxu0 0.0
    %1790 = vmatpush1.msra.mxu0 0.0
    %1791 = vmatprep.subr.mxu0 0.0
    %1792 = vmatpush1.msra.mxu0 0.0
    %1793 = vmatprep.subr.mxu0 0.0
    %1794 = vmatpush1.msra.mxu0 0.0
    %1795 = vmatprep.subr.mxu0 0.0
    %1796 = vmatpush1.msra.mxu0 0.0
    %1797 = vmatprep.subr.mxu0 0.0
    %1798 = vmatpush1.msra.mxu0 0.0
    %1799 = vmatprep.subr.mxu0 0.0
    %1800 = vmatpush1.msra.mxu0 0.0
    %1801 = vmatprep.subr.mxu0 0.0
    %1802 = vmatpush1.msra.mxu0 0.0
    %1803 = vmatprep.subr.mxu0 0.0
    %1804 = vmatpush1.msra.mxu0 0.0
    %1805 = vmatprep.subr.mxu0 0.0
    %1806 = vmatpush1.msra.mxu0 0.0
    %1807 = vmatprep.subr.mxu0 0.0
    %1808 = vmatpush1.msra.mxu0 0.0
    %1809 = vmatprep.subr.mxu0 0.0
    %1810 = vmatpush1.msra.mxu0 0.0
    %1811 = vmatprep.subr.mxu0 0.0
    %1812 = vmatpush1.msra.mxu0 0.0
    %1813 = vmatprep.subr.mxu0 0.0
    %1814 = vmatpush1.msra.mxu0 0.0
    %1815 = vmatprep.subr.mxu0 0.0
    %1816 = vmatpush1.msra.mxu0 0.0
    %1817 = vmatprep.subr.mxu0 0.0
    %1818 = vmatpush1.msra.mxu0 0.0
    %1819 = vmatprep.subr.mxu0 0.0
    %1820 = vmatpush1.msra.mxu0 0.0
    %1821 = vmatprep.subr.mxu0 0.0
    %1822 = vmatpush1.msra.mxu0 0.0
    %1823 = vmatprep.subr.mxu0 0.0
    %1824 = vmatpush1.msra.mxu0 0.0
    %1825 = vmatprep.subr.mxu0 0.0
    %1826 = vmatpush1.msra.mxu0 0.0
    %1827 = vmatprep.subr.mxu0 0.0
    %1828 = vmatpush1.msra.mxu0 0.0
    %1829 = vmatprep.subr.mxu0 0.0
    %1830 = vmatpush1.msra.mxu0 0.0
    %1831 = vmatprep.subr.mxu0 0.0
    %1832 = vmatpush1.msra.mxu0 0.0
    %1833 = vmatprep.subr.mxu0 0.0
    %1834 = vmatpush1.msra.mxu0 0.0
    %1835 = vmatprep.subr.mxu0 0.0
    %1836 = vmatpush1.msra.mxu0 0.0
    %1837 = vmatprep.mubr.f32.mxu0 0.0
    %1838 = vmatmul.mubr.f32.gmra.mrb[0].mxu0 %v1768
    %v1839 = vpop.f32.mrb[0].mxu0
    %v1840 = vadd.f32 0.0, %v1839
    %v1841 = vpop.f32.mrb[0].mxu0
    %1842 = vmatprep.mubr.f32.mxu0 0.0
    %1843 = vmatmul.mubr.f32.gmra.mrb[0].mxu0 %v1771
    %v1844 = vpop.f32.mrb[0].mxu0
    %v1845 = vadd.f32 0.0, %v1844
    %v1846 = vpop.f32.mrb[0].mxu0
    %1847 = vdwg.mxu0
    %v1849 = vsel %vm378, %v1279, 0
    %v1852 = vsel %vm378, %v1280, 0
    %1854 = vmatprep.subr.mxu0 0.0
    %1855 = vmatpush1.msra.mxu0 %v370
    %1856 = vmatprep.subr.mxu0 0.0
    %1857 = vmatpush1.msra.mxu0 %v371
    %1858 = vmatprep.subr.mxu0 0.0
    %1859 = vmatpush1.msra.mxu0 0.0
    %1860 = vmatprep.subr.mxu0 0.0
    %1861 = vmatpush1.msra.mxu0 0.0
    %1862 = vmatprep.subr.mxu0 0.0
    %1863 = vmatpush1.msra.mxu0 0.0
    %1864 = vmatprep.subr.mxu0 0.0
    %1865 = vmatpush1.msra.mxu0 0.0
    %1866 = vmatprep.subr.mxu0 0.0
    %1867 = vmatpush1.msra.mxu0 0.0
    %1868 = vmatprep.subr.mxu0 0.0
    %1869 = vmatpush1.msra.mxu0 0.0
    %1870 = vmatprep.subr.mxu0 0.0
    %1871 = vmatpush1.msra.mxu0 0.0
    %1872 = vmatprep.subr.mxu0 0.0
    %1873 = vmatpush1.msra.mxu0 0.0
    %1874 = vmatprep.subr.mxu0 0.0
    %1875 = vmatpush1.msra.mxu0 0.0
    %1876 = vmatprep.subr.mxu0 0.0
    %1877 = vmatpush1.msra.mxu0 0.0
    %1878 = vmatprep.subr.mxu0 0.0
    %1879 = vmatpush1.msra.mxu0 0.0
    %1880 = vmatprep.subr.mxu0 0.0
    %1881 = vmatpush1.msra.mxu0 0.0
    %1882 = vmatprep.subr.mxu0 0.0
    %1883 = vmatpush1.msra.mxu0 0.0
    %1884 = vmatprep.subr.mxu0 0.0
    %1885 = vmatpush1.msra.mxu0 0.0
    %1886 = vmatprep.subr.mxu0 0.0
    %1887 = vmatpush1.msra.mxu0 0.0
    %1888 = vmatprep.subr.mxu0 0.0
    %1889 = vmatpush1.msra.mxu0 0.0
    %1890 = vmatprep.subr.mxu0 0.0
    %1891 = vmatpush1.msra.mxu0 0.0
    %1892 = vmatprep.subr.mxu0 0.0
    %1893 = vmatpush1.msra.mxu0 0.0
    %1894 = vmatprep.subr.mxu0 0.0
    %1895 = vmatpush1.msra.mxu0 0.0
    %1896 = vmatprep.subr.mxu0 0.0
    %1897 = vmatpush1.msra.mxu0 0.0
    %1898 = vmatprep.subr.mxu0 0.0
    %1899 = vmatpush1.msra.mxu0 0.0
    %1900 = vmatprep.subr.mxu0 0.0
    %1901 = vmatpush1.msra.mxu0 0.0
    %1902 = vmatprep.subr.mxu0 0.0
    %1903 = vmatpush1.msra.mxu0 0.0
    %1904 = vmatprep.subr.mxu0 0.0
    %1905 = vmatpush1.msra.mxu0 0.0
    %1906 = vmatprep.subr.mxu0 0.0
    %1907 = vmatpush1.msra.mxu0 0.0
    %1908 = vmatprep.subr.mxu0 0.0
    %1909 = vmatpush1.msra.mxu0 0.0
    %1910 = vmatprep.subr.mxu0 0.0
    %1911 = vmatpush1.msra.mxu0 0.0
    %1912 = vmatprep.subr.mxu0 0.0
    %1913 = vmatpush1.msra.mxu0 0.0
    %1914 = vmatprep.subr.mxu0 0.0
    %1915 = vmatpush1.msra.mxu0 0.0
    %1916 = vmatprep.subr.mxu0 0.0
    %1917 = vmatpush1.msra.mxu0 0.0
    %1918 = vmatprep.mubr.f32.mxu0 0.0
    %1919 = vmatmul.mubr.f32.gmra.mrb[0].mxu0 %v1849
    %v1920 = vpop.f32.mrb[0].mxu0
    %v1921 = vadd.f32 0.0, %v1920
    %v1922 = vpop.f32.mrb[0].mxu0
    %1923 = vmatprep.mubr.f32.mxu0 0.0
    %1924 = vmatmul.mubr.f32.gmra.mrb[0].mxu0 %v1852
    %v1925 = vpop.f32.mrb[0].mxu0
    %v1926 = vadd.f32 0.0, %v1925
    %v1927 = vpop.f32.mrb[0].mxu0
    %1928 = vdwg.mxu0
    %1929 = vst.msk [vmem:[#allocation3] sm:$0xff] %vm378, %v1354
    %1930 = vst.msk [vmem:[#allocation3 + $0x8] sm:$0xff] %vm378, %v1359
    %1931 = vst.msk [vmem:[#allocation3 + $0x10] sm:$0xff] %vm378, %v1435
    %1932 = vst.msk [vmem:[#allocation3 + $0x18] sm:$0xff] %vm378, %v1440
    %1933 = vst.msk [vmem:[#allocation3 + $0x20] sm:$0xff] %vm378, %v1516
    %1934 = vst.msk [vmem:[#allocation3 + $0x28] sm:$0xff] %vm378, %v1521
    %1935 = vst.msk [vmem:[#allocation3 + $0x30] sm:$0xff] %vm378, %v1597
    %1936 = vst.msk [vmem:[#allocation3 + $0x38] sm:$0xff] %vm378, %v1602
    %1937 = vst.msk [vmem:[#allocation3 + $0x40] sm:$0xff] %vm378, %v1678
    %1938 = vst.msk [vmem:[#allocation3 + $0x48] sm:$0xff] %vm378, %v1683
    %1939 = vst.msk [vmem:[#allocation3 + $0x50] sm:$0xff] %vm378, %v1759
    %1940 = vst.msk [vmem:[#allocation3 + $0x58] sm:$0xff] %vm378, %v1764
    %1941 = vst.msk [vmem:[#allocation3 + $0x60] sm:$0xff] %vm378, %v1840
    %1942 = vst.msk [vmem:[#allocation3 + $0x68] sm:$0xff] %vm378, %v1845
    %1943 = vst.msk [vmem:[#allocation3 + $0x70] sm:$0xff] %vm378, %v1921
    %1944 = vst.msk [vmem:[#allocation3 + $0x78] sm:$0xff] %vm378, %v1926
    %v1945 = vld [vmem:[#allocation2] sm:$0xff]
    %v1946 = vld [vmem:[#allocation2 + $0x10] sm:$0xff]
    %v1947 = vld [vmem:[#allocation2 + $0x20] sm:$0xff]
    %v1948 = vld [vmem:[#allocation2 + $0x30] sm:$0xff]
    %v1949 = vld [vmem:[#allocation2 + $0x40] sm:$0xff]
    %v1950 = vld [vmem:[#allocation2 + $0x50] sm:$0xff]
    %v1951 = vld [vmem:[#allocation2 + $0x60] sm:$0xff]
    %v1952 = vld [vmem:[#allocation2 + $0x70] sm:$0xff]
    %v1953 = vld [vmem:[#allocation2 + $0x80] sm:$0xff]
    %v1954 = vld [vmem:[#allocation2 + $0x90] sm:$0xff]
    %v1955 = vld [vmem:[#allocation2 + $0xa0] sm:$0xff]
    %v1956 = vld [vmem:[#allocation2 + $0xb0] sm:$0xff]
    %v1957 = vld [vmem:[#allocation2 + $0xc0] sm:$0xff]
    %v1958 = vld [vmem:[#allocation2 + $0xd0] sm:$0xff]
    %v1959 = vld [vmem:[#allocation2 + $0xe0] sm:$0xff]
    %v1960 = vld [vmem:[#allocation2 + $0xf0] sm:$0xff]
    %v1961 = vld [vmem:[#allocation2 + $0x8] sm:$0xff]
    %v1962 = vld [vmem:[#allocation2 + $0x18] sm:$0xff]
    %v1963 = vld [vmem:[#allocation2 + $0x28] sm:$0xff]
    %v1964 = vld [vmem:[#allocation2 + $0x38] sm:$0xff]
    %v1965 = vld [vmem:[#allocation2 + $0x48] sm:$0xff]
    %v1966 = vld [vmem:[#allocation2 + $0x58] sm:$0xff]
    %v1967 = vld [vmem:[#allocation2 + $0x68] sm:$0xff]
    %v1968 = vld [vmem:[#allocation2 + $0x78] sm:$0xff]
    %v1969 = vld [vmem:[#allocation2 + $0x88] sm:$0xff]
    %v1970 = vld [vmem:[#allocation2 + $0x98] sm:$0xff]
    %v1971 = vld [vmem:[#allocation2 + $0xa8] sm:$0xff]
    %v1972 = vld [vmem:[#allocation2 + $0xb8] sm:$0xff]
    %v1973 = vld [vmem:[#allocation2 + $0xc8] sm:$0xff]
    %v1974 = vld [vmem:[#allocation2 + $0xd8] sm:$0xff]
    %v1975 = vld [vmem:[#allocation2 + $0xe8] sm:$0xff]
    %v1976 = vld [vmem:[#allocation2 + $0xf8] sm:$0xff]
    %1979 = vrot.lane.b32.xlu0 %v1945, 112
    %v1980 = vpop.permute.xlu0 %1979
    %1981 = vrot.lane.b32.xlu0 %v1946, 112
    %v1982 = vpop.permute.xlu0 %1981
    %1983 = vrot.lane.b32.xlu0 %v1945, 48
    %v1984 = vpop.permute.xlu0 %1983
    %1985 = vrot.lane.b32.xlu0 %v1946, 48
    %v1986 = vpop.permute.xlu0 %1985
    %v1987 = vsel %vm378, %v1980, 0
    %v1989 = vsel %vm378, %v1982, 0
    %v1991 = vsel %vm378, %v1984, 0
    %v1993 = vsel %vm378, %v1986, 0
    %1995 = vmatprep.subr.mxu0 0.0
    %1996 = vmatpush1.xpose.msra.mxu0 %v1991
    %1997 = vmatprep.subr.mxu0 0.0
    %1998 = vmatpush1.xpose.msra.mxu0 %v1993
    %1999 = vmatprep.subr.mxu0 0.0
    %2000 = vmatpush1.xpose.msra.mxu0 0.0
    %2001 = vmatprep.subr.mxu0 0.0
    %2002 = vmatpush1.xpose.msra.mxu0 0.0
    %2003 = vmatprep.subr.mxu0 0.0
    %2004 = vmatpush1.xpose.msra.mxu0 0.0
    %2005 = vmatprep.subr.mxu0 0.0
    %2006 = vmatpush1.xpose.msra.mxu0 0.0
    %2007 = vmatprep.subr.mxu0 0.0
    %2008 = vmatpush1.xpose.msra.mxu0 0.0
    %2009 = vmatprep.subr.mxu0 0.0
    %2010 = vmatpush1.xpose.msra.mxu0 0.0
    %2011 = vmatprep.subr.mxu0 0.0
    %2012 = vmatpush1.xpose.msra.mxu0 0.0
    %2013 = vmatprep.subr.mxu0 0.0
    %2014 = vmatpush1.xpose.msra.mxu0 0.0
    %2015 = vmatprep.subr.mxu0 0.0
    %2016 = vmatpush1.xpose.msra.mxu0 0.0
    %2017 = vmatprep.subr.mxu0 0.0
    %2018 = vmatpush1.xpose.msra.mxu0 0.0
    %2019 = vmatprep.subr.mxu0 0.0
    %2020 = vmatpush1.xpose.msra.mxu0 0.0
    %2021 = vmatprep.subr.mxu0 0.0
    %2022 = vmatpush1.xpose.msra.mxu0 0.0
    %2023 = vmatprep.subr.mxu0 0.0
    %2024 = vmatpush1.xpose.msra.mxu0 0.0
    %2025 = vmatprep.subr.mxu0 0.0
    %2026 = vmatpush1.xpose.msra.mxu0 0.0
    %2027 = vmatprep.subr.mxu0 0.0
    %2028 = vmatpush1.xpose.msra.mxu0 0.0
    %2029 = vmatprep.subr.mxu0 0.0
    %2030 = vmatpush1.xpose.msra.mxu0 0.0
    %2031 = vmatprep.subr.mxu0 0.0
    %2032 = vmatpush1.xpose.msra.mxu0 0.0
    %2033 = vmatprep.subr.mxu0 0.0
    %2034 = vmatpush1.xpose.msra.mxu0 0.0
    %2035 = vmatprep.subr.mxu0 0.0
    %2036 = vmatpush1.xpose.msra.mxu0 0.0
    %2037 = vmatprep.subr.mxu0 0.0
    %2038 = vmatpush1.xpose.msra.mxu0 0.0
    %2039 = vmatprep.subr.mxu0 0.0
    %2040 = vmatpush1.xpose.msra.mxu0 0.0
    %2041 = vmatprep.subr.mxu0 0.0
    %2042 = vmatpush1.xpose.msra.mxu0 0.0
    %2043 = vmatprep.subr.mxu0 0.0
    %2044 = vmatpush1.xpose.msra.mxu0 0.0
    %2045 = vmatprep.subr.mxu0 0.0
    %2046 = vmatpush1.xpose.msra.mxu0 0.0
    %2047 = vmatprep.subr.mxu0 0.0
    %2048 = vmatpush1.xpose.msra.mxu0 0.0
    %2049 = vmatprep.subr.mxu0 0.0
    %2050 = vmatpush1.xpose.msra.mxu0 0.0
    %2051 = vmatprep.subr.mxu0 0.0
    %2052 = vmatpush1.xpose.msra.mxu0 0.0
    %2053 = vmatprep.subr.mxu0 0.0
    %2054 = vmatpush1.xpose.msra.mxu0 0.0
    %2055 = vmatprep.subr.mxu0 0.0
    %2056 = vmatpush1.xpose.msra.mxu0 0.0
    %2057 = vmatprep.subr.mxu0 0.0
    %2058 = vmatpush1.xpose.msra.mxu0 0.0
    %2059 = vmatprep.mubr.f32.mxu0 0.0
    %2060 = vmatmul.mubr.f32.gmra.mrb[0].mxu0 %v1987
    %v2061 = vpop.f32.mrb[0].mxu0
    %v2062 = vadd.f32 0.0, %v2061
    %v2063 = vpop.f32.mrb[0].mxu0
    %2064 = vmatprep.mubr.f32.mxu0 0.0
    %2065 = vmatmul.mubr.f32.gmra.mrb[0].mxu0 %v1989
    %v2066 = vpop.f32.mrb[0].mxu0
    %v2067 = vadd.f32 0.0, %v2066
    %v2068 = vpop.f32.mrb[0].mxu0
    %2069 = vdwg.mxu0
    %2072 = vrot.lane.b32.xlu0 %v1947, 112
    %v2073 = vpop.permute.xlu0 %2072
    %2074 = vrot.lane.b32.xlu0 %v1948, 112
    %v2075 = vpop.permute.xlu0 %2074
    %2076 = vrot.lane.b32.xlu0 %v1947, 48
    %v2077 = vpop.permute.xlu0 %2076
    %2078 = vrot.lane.b32.xlu0 %v1948, 48
    %v2079 = vpop.permute.xlu0 %2078
    %v2080 = vsel %vm378, %v2073, 0
    %v2082 = vsel %vm378, %v2075, 0
    %v2084 = vsel %vm378, %v2077, 0
    %v2086 = vsel %vm378, %v2079, 0
    %2088 = vmatprep.subr.mxu0 0.0
    %2089 = vmatpush1.xpose.msra.mxu0 %v2084
    %2090 = vmatprep.subr.mxu0 0.0
    %2091 = vmatpush1.xpose.msra.mxu0 %v2086
    %2092 = vmatprep.subr.mxu0 0.0
    %2093 = vmatpush1.xpose.msra.mxu0 0.0
    %2094 = vmatprep.subr.mxu0 0.0
    %2095 = vmatpush1.xpose.msra.mxu0 0.0
    %2096 = vmatprep.subr.mxu0 0.0
    %2097 = vmatpush1.xpose.msra.mxu0 0.0
    %2098 = vmatprep.subr.mxu0 0.0
    %2099 = vmatpush1.xpose.msra.mxu0 0.0
    %2100 = vmatprep.subr.mxu0 0.0
    %2101 = vmatpush1.xpose.msra.mxu0 0.0
    %2102 = vmatprep.subr.mxu0 0.0
    %2103 = vmatpush1.xpose.msra.mxu0 0.0
    %2104 = vmatprep.subr.mxu0 0.0
    %2105 = vmatpush1.xpose.msra.mxu0 0.0
    %2106 = vmatprep.subr.mxu0 0.0
    %2107 = vmatpush1.xpose.msra.mxu0 0.0
    %2108 = vmatprep.subr.mxu0 0.0
    %2109 = vmatpush1.xpose.msra.mxu0 0.0
    %2110 = vmatprep.subr.mxu0 0.0
    %2111 = vmatpush1.xpose.msra.mxu0 0.0
    %2112 = vmatprep.subr.mxu0 0.0
    %2113 = vmatpush1.xpose.msra.mxu0 0.0
    %2114 = vmatprep.subr.mxu0 0.0
    %2115 = vmatpush1.xpose.msra.mxu0 0.0
    %2116 = vmatprep.subr.mxu0 0.0
    %2117 = vmatpush1.xpose.msra.mxu0 0.0
    %2118 = vmatprep.subr.mxu0 0.0
    %2119 = vmatpush1.xpose.msra.mxu0 0.0
    %2120 = vmatprep.subr.mxu0 0.0
    %2121 = vmatpush1.xpose.msra.mxu0 0.0
    %2122 = vmatprep.subr.mxu0 0.0
    %2123 = vmatpush1.xpose.msra.mxu0 0.0
    %2124 = vmatprep.subr.mxu0 0.0
    %2125 = vmatpush1.xpose.msra.mxu0 0.0
    %2126 = vmatprep.subr.mxu0 0.0
    %2127 = vmatpush1.xpose.msra.mxu0 0.0
    %2128 = vmatprep.subr.mxu0 0.0
    %2129 = vmatpush1.xpose.msra.mxu0 0.0
    %2130 = vmatprep.subr.mxu0 0.0
    %2131 = vmatpush1.xpose.msra.mxu0 0.0
    %2132 = vmatprep.subr.mxu0 0.0
    %2133 = vmatpush1.xpose.msra.mxu0 0.0
    %2134 = vmatprep.subr.mxu0 0.0
    %2135 = vmatpush1.xpose.msra.mxu0 0.0
    %2136 = vmatprep.subr.mxu0 0.0
    %2137 = vmatpush1.xpose.msra.mxu0 0.0
    %2138 = vmatprep.subr.mxu0 0.0
    %2139 = vmatpush1.xpose.msra.mxu0 0.0
    %2140 = vmatprep.subr.mxu0 0.0
    %2141 = vmatpush1.xpose.msra.mxu0 0.0
    %2142 = vmatprep.subr.mxu0 0.0
    %2143 = vmatpush1.xpose.msra.mxu0 0.0
    %2144 = vmatprep.subr.mxu0 0.0
    %2145 = vmatpush1.xpose.msra.mxu0 0.0
    %2146 = vmatprep.subr.mxu0 0.0
    %2147 = vmatpush1.xpose.msra.mxu0 0.0
    %2148 = vmatprep.subr.mxu0 0.0
    %2149 = vmatpush1.xpose.msra.mxu0 0.0
    %2150 = vmatprep.subr.mxu0 0.0
    %2151 = vmatpush1.xpose.msra.mxu0 0.0
    %2152 = vmatprep.mubr.f32.mxu0 0.0
    %2153 = vmatmul.mubr.f32.gmra.mrb[0].mxu0 %v2080
    %v2154 = vpop.f32.mrb[0].mxu0
    %v2155 = vadd.f32 0.0, %v2154
    %v2156 = vpop.f32.mrb[0].mxu0
    %2157 = vmatprep.mubr.f32.mxu0 0.0
    %2158 = vmatmul.mubr.f32.gmra.mrb[0].mxu0 %v2082
    %v2159 = vpop.f32.mrb[0].mxu0
    %v2160 = vadd.f32 0.0, %v2159
    %v2161 = vpop.f32.mrb[0].mxu0
    %2162 = vdwg.mxu0
    %2165 = vrot.lane.b32.xlu0 %v1949, 112
    %v2166 = vpop.permute.xlu0 %2165
    %2167 = vrot.lane.b32.xlu0 %v1950, 112
    %v2168 = vpop.permute.xlu0 %2167
    %2169 = vrot.lane.b32.xlu0 %v1949, 48
    %v2170 = vpop.permute.xlu0 %2169
    %2171 = vrot.lane.b32.xlu0 %v1950, 48
    %v2172 = vpop.permute.xlu0 %2171
    %v2173 = vsel %vm378, %v2166, 0
    %v2175 = vsel %vm378, %v2168, 0
    %v2177 = vsel %vm378, %v2170, 0
    %v2179 = vsel %vm378, %v2172, 0
    %2181 = vmatprep.subr.mxu0 0.0
    %2182 = vmatpush1.xpose.msra.mxu0 %v2177
    %2183 = vmatprep.subr.mxu0 0.0
    %2184 = vmatpush1.xpose.msra.mxu0 %v2179
    %2185 = vmatprep.subr.mxu0 0.0
    %2186 = vmatpush1.xpose.msra.mxu0 0.0
    %2187 = vmatprep.subr.mxu0 0.0
    %2188 = vmatpush1.xpose.msra.mxu0 0.0
    %2189 = vmatprep.subr.mxu0 0.0
    %2190 = vmatpush1.xpose.msra.mxu0 0.0
    %2191 = vmatprep.subr.mxu0 0.0
    %2192 = vmatpush1.xpose.msra.mxu0 0.0
    %2193 = vmatprep.subr.mxu0 0.0
    %2194 = vmatpush1.xpose.msra.mxu0 0.0
    %2195 = vmatprep.subr.mxu0 0.0
    %2196 = vmatpush1.xpose.msra.mxu0 0.0
    %2197 = vmatprep.subr.mxu0 0.0
    %2198 = vmatpush1.xpose.msra.mxu0 0.0
    %2199 = vmatprep.subr.mxu0 0.0
    %2200 = vmatpush1.xpose.msra.mxu0 0.0
    %2201 = vmatprep.subr.mxu0 0.0
    %2202 = vmatpush1.xpose.msra.mxu0 0.0
    %2203 = vmatprep.subr.mxu0 0.0
    %2204 = vmatpush1.xpose.msra.mxu0 0.0
    %2205 = vmatprep.subr.mxu0 0.0
    %2206 = vmatpush1.xpose.msra.mxu0 0.0
    %2207 = vmatprep.subr.mxu0 0.0
    %2208 = vmatpush1.xpose.msra.mxu0 0.0
    %2209 = vmatprep.subr.mxu0 0.0
    %2210 = vmatpush1.xpose.msra.mxu0 0.0
    %2211 = vmatprep.subr.mxu0 0.0
    %2212 = vmatpush1.xpose.msra.mxu0 0.0
    %2213 = vmatprep.subr.mxu0 0.0
    %2214 = vmatpush1.xpose.msra.mxu0 0.0
    %2215 = vmatprep.subr.mxu0 0.0
    %2216 = vmatpush1.xpose.msra.mxu0 0.0
    %2217 = vmatprep.subr.mxu0 0.0
    %2218 = vmatpush1.xpose.msra.mxu0 0.0
    %2219 = vmatprep.subr.mxu0 0.0
    %2220 = vmatpush1.xpose.msra.mxu0 0.0
    %2221 = vmatprep.subr.mxu0 0.0
    %2222 = vmatpush1.xpose.msra.mxu0 0.0
    %2223 = vmatprep.subr.mxu0 0.0
    %2224 = vmatpush1.xpose.msra.mxu0 0.0
    %2225 = vmatprep.subr.mxu0 0.0
    %2226 = vmatpush1.xpose.msra.mxu0 0.0
    %2227 = vmatprep.subr.mxu0 0.0
    %2228 = vmatpush1.xpose.msra.mxu0 0.0
    %2229 = vmatprep.subr.mxu0 0.0
    %2230 = vmatpush1.xpose.msra.mxu0 0.0
    %2231 = vmatprep.subr.mxu0 0.0
    %2232 = vmatpush1.xpose.msra.mxu0 0.0
    %2233 = vmatprep.subr.mxu0 0.0
    %2234 = vmatpush1.xpose.msra.mxu0 0.0
    %2235 = vmatprep.subr.mxu0 0.0
    %2236 = vmatpush1.xpose.msra.mxu0 0.0
    %2237 = vmatprep.subr.mxu0 0.0
    %2238 = vmatpush1.xpose.msra.mxu0 0.0
    %2239 = vmatprep.subr.mxu0 0.0
    %2240 = vmatpush1.xpose.msra.mxu0 0.0
    %2241 = vmatprep.subr.mxu0 0.0
    %2242 = vmatpush1.xpose.msra.mxu0 0.0
    %2243 = vmatprep.subr.mxu0 0.0
    %2244 = vmatpush1.xpose.msra.mxu0 0.0
    %2245 = vmatprep.mubr.f32.mxu0 0.0
    %2246 = vmatmul.mubr.f32.gmra.mrb[0].mxu0 %v2173
    %v2247 = vpop.f32.mrb[0].mxu0
    %v2248 = vadd.f32 0.0, %v2247
    %v2249 = vpop.f32.mrb[0].mxu0
    %2250 = vmatprep.mubr.f32.mxu0 0.0
    %2251 = vmatmul.mubr.f32.gmra.mrb[0].mxu0 %v2175
    %v2252 = vpop.f32.mrb[0].mxu0
    %v2253 = vadd.f32 0.0, %v2252
    %v2254 = vpop.f32.mrb[0].mxu0
    %2255 = vdwg.mxu0
    %2258 = vrot.lane.b32.xlu0 %v1951, 112
    %v2259 = vpop.permute.xlu0 %2258
    %2260 = vrot.lane.b32.xlu0 %v1952, 112
    %v2261 = vpop.permute.xlu0 %2260
    %2262 = vrot.lane.b32.xlu0 %v1951, 48
    %v2263 = vpop.permute.xlu0 %2262
    %2264 = vrot.lane.b32.xlu0 %v1952, 48
    %v2265 = vpop.permute.xlu0 %2264
    %v2266 = vsel %vm378, %v2259, 0
    %v2268 = vsel %vm378, %v2261, 0
    %v2270 = vsel %vm378, %v2263, 0
    %v2272 = vsel %vm378, %v2265, 0
    %2274 = vmatprep.subr.mxu0 0.0
    %2275 = vmatpush1.xpose.msra.mxu0 %v2270
    %2276 = vmatprep.subr.mxu0 0.0
    %2277 = vmatpush1.xpose.msra.mxu0 %v2272
    %2278 = vmatprep.subr.mxu0 0.0
    %2279 = vmatpush1.xpose.msra.mxu0 0.0
    %2280 = vmatprep.subr.mxu0 0.0
    %2281 = vmatpush1.xpose.msra.mxu0 0.0
    %2282 = vmatprep.subr.mxu0 0.0
    %2283 = vmatpush1.xpose.msra.mxu0 0.0
    %2284 = vmatprep.subr.mxu0 0.0
    %2285 = vmatpush1.xpose.msra.mxu0 0.0
    %2286 = vmatprep.subr.mxu0 0.0
    %2287 = vmatpush1.xpose.msra.mxu0 0.0
    %2288 = vmatprep.subr.mxu0 0.0
    %2289 = vmatpush1.xpose.msra.mxu0 0.0
    %2290 = vmatprep.subr.mxu0 0.0
    %2291 = vmatpush1.xpose.msra.mxu0 0.0
    %2292 = vmatprep.subr.mxu0 0.0
    %2293 = vmatpush1.xpose.msra.mxu0 0.0
    %2294 = vmatprep.subr.mxu0 0.0
    %2295 = vmatpush1.xpose.msra.mxu0 0.0
    %2296 = vmatprep.subr.mxu0 0.0
    %2297 = vmatpush1.xpose.msra.mxu0 0.0
    %2298 = vmatprep.subr.mxu0 0.0
    %2299 = vmatpush1.xpose.msra.mxu0 0.0
    %2300 = vmatprep.subr.mxu0 0.0
    %2301 = vmatpush1.xpose.msra.mxu0 0.0
    %2302 = vmatprep.subr.mxu0 0.0
    %2303 = vmatpush1.xpose.msra.mxu0 0.0
    %2304 = vmatprep.subr.mxu0 0.0
    %2305 = vmatpush1.xpose.msra.mxu0 0.0
    %2306 = vmatprep.subr.mxu0 0.0
    %2307 = vmatpush1.xpose.msra.mxu0 0.0
    %2308 = vmatprep.subr.mxu0 0.0
    %2309 = vmatpush1.xpose.msra.mxu0 0.0
    %2310 = vmatprep.subr.mxu0 0.0
    %2311 = vmatpush1.xpose.msra.mxu0 0.0
    %2312 = vmatprep.subr.mxu0 0.0
    %2313 = vmatpush1.xpose.msra.mxu0 0.0
    %2314 = vmatprep.subr.mxu0 0.0
    %2315 = vmatpush1.xpose.msra.mxu0 0.0
    %2316 = vmatprep.subr.mxu0 0.0
    %2317 = vmatpush1.xpose.msra.mxu0 0.0
    %2318 = vmatprep.subr.mxu0 0.0
    %2319 = vmatpush1.xpose.msra.mxu0 0.0
    %2320 = vmatprep.subr.mxu0 0.0
    %2321 = vmatpush1.xpose.msra.mxu0 0.0
    %2322 = vmatprep.subr.mxu0 0.0
    %2323 = vmatpush1.xpose.msra.mxu0 0.0
    %2324 = vmatprep.subr.mxu0 0.0
    %2325 = vmatpush1.xpose.msra.mxu0 0.0
    %2326 = vmatprep.subr.mxu0 0.0
    %2327 = vmatpush1.xpose.msra.mxu0 0.0
    %2328 = vmatprep.subr.mxu0 0.0
    %2329 = vmatpush1.xpose.msra.mxu0 0.0
    %2330 = vmatprep.subr.mxu0 0.0
    %2331 = vmatpush1.xpose.msra.mxu0 0.0
    %2332 = vmatprep.subr.mxu0 0.0
    %2333 = vmatpush1.xpose.msra.mxu0 0.0
    %2334 = vmatprep.subr.mxu0 0.0
    %2335 = vmatpush1.xpose.msra.mxu0 0.0
    %2336 = vmatprep.subr.mxu0 0.0
    %2337 = vmatpush1.xpose.msra.mxu0 0.0
    %2338 = vmatprep.mubr.f32.mxu0 0.0
    %2339 = vmatmul.mubr.f32.gmra.mrb[0].mxu0 %v2266
    %v2340 = vpop.f32.mrb[0].mxu0
    %v2341 = vadd.f32 0.0, %v2340
    %v2342 = vpop.f32.mrb[0].mxu0
    %2343 = vmatprep.mubr.f32.mxu0 0.0
    %2344 = vmatmul.mubr.f32.gmra.mrb[0].mxu0 %v2268
    %v2345 = vpop.f32.mrb[0].mxu0
    %v2346 = vadd.f32 0.0, %v2345
    %v2347 = vpop.f32.mrb[0].mxu0
    %2348 = vdwg.mxu0
    %2351 = vrot.lane.b32.xlu0 %v1953, 112
    %v2352 = vpop.permute.xlu0 %2351
    %2353 = vrot.lane.b32.xlu0 %v1954, 112
    %v2354 = vpop.permute.xlu0 %2353
    %2355 = vrot.lane.b32.xlu0 %v1953, 48
    %v2356 = vpop.permute.xlu0 %2355
    %2357 = vrot.lane.b32.xlu0 %v1954, 48
    %v2358 = vpop.permute.xlu0 %2357
    %v2359 = vsel %vm378, %v2352, 0
    %v2361 = vsel %vm378, %v2354, 0
    %v2363 = vsel %vm378, %v2356, 0
    %v2365 = vsel %vm378, %v2358, 0
    %2367 = vmatprep.subr.mxu0 0.0
    %2368 = vmatpush1.xpose.msra.mxu0 %v2363
    %2369 = vmatprep.subr.mxu0 0.0
    %2370 = vmatpush1.xpose.msra.mxu0 %v2365
    %2371 = vmatprep.subr.mxu0 0.0
    %2372 = vmatpush1.xpose.msra.mxu0 0.0
    %2373 = vmatprep.subr.mxu0 0.0
    %2374 = vmatpush1.xpose.msra.mxu0 0.0
    %2375 = vmatprep.subr.mxu0 0.0
    %2376 = vmatpush1.xpose.msra.mxu0 0.0
    %2377 = vmatprep.subr.mxu0 0.0
    %2378 = vmatpush1.xpose.msra.mxu0 0.0
    %2379 = vmatprep.subr.mxu0 0.0
    %2380 = vmatpush1.xpose.msra.mxu0 0.0
    %2381 = vmatprep.subr.mxu0 0.0
    %2382 = vmatpush1.xpose.msra.mxu0 0.0
    %2383 = vmatprep.subr.mxu0 0.0
    %2384 = vmatpush1.xpose.msra.mxu0 0.0
    %2385 = vmatprep.subr.mxu0 0.0
    %2386 = vmatpush1.xpose.msra.mxu0 0.0
    %2387 = vmatprep.subr.mxu0 0.0
    %2388 = vmatpush1.xpose.msra.mxu0 0.0
    %2389 = vmatprep.subr.mxu0 0.0
    %2390 = vmatpush1.xpose.msra.mxu0 0.0
    %2391 = vmatprep.subr.mxu0 0.0
    %2392 = vmatpush1.xpose.msra.mxu0 0.0
    %2393 = vmatprep.subr.mxu0 0.0
    %2394 = vmatpush1.xpose.msra.mxu0 0.0
    %2395 = vmatprep.subr.mxu0 0.0
    %2396 = vmatpush1.xpose.msra.mxu0 0.0
    %2397 = vmatprep.subr.mxu0 0.0
    %2398 = vmatpush1.xpose.msra.mxu0 0.0
    %2399 = vmatprep.subr.mxu0 0.0
    %2400 = vmatpush1.xpose.msra.mxu0 0.0
    %2401 = vmatprep.subr.mxu0 0.0
    %2402 = vmatpush1.xpose.msra.mxu0 0.0
    %2403 = vmatprep.subr.mxu0 0.0
    %2404 = vmatpush1.xpose.msra.mxu0 0.0
    %2405 = vmatprep.subr.mxu0 0.0
    %2406 = vmatpush1.xpose.msra.mxu0 0.0
    %2407 = vmatprep.subr.mxu0 0.0
    %2408 = vmatpush1.xpose.msra.mxu0 0.0
    %2409 = vmatprep.subr.mxu0 0.0
    %2410 = vmatpush1.xpose.msra.mxu0 0.0
    %2411 = vmatprep.subr.mxu0 0.0
    %2412 = vmatpush1.xpose.msra.mxu0 0.0
    %2413 = vmatprep.subr.mxu0 0.0
    %2414 = vmatpush1.xpose.msra.mxu0 0.0
    %2415 = vmatprep.subr.mxu0 0.0
    %2416 = vmatpush1.xpose.msra.mxu0 0.0
    %2417 = vmatprep.subr.mxu0 0.0
    %2418 = vmatpush1.xpose.msra.mxu0 0.0
    %2419 = vmatprep.subr.mxu0 0.0
    %2420 = vmatpush1.xpose.msra.mxu0 0.0
    %2421 = vmatprep.subr.mxu0 0.0
    %2422 = vmatpush1.xpose.msra.mxu0 0.0
    %2423 = vmatprep.subr.mxu0 0.0
    %2424 = vmatpush1.xpose.msra.mxu0 0.0
    %2425 = vmatprep.subr.mxu0 0.0
    %2426 = vmatpush1.xpose.msra.mxu0 0.0
    %2427 = vmatprep.subr.mxu0 0.0
    %2428 = vmatpush1.xpose.msra.mxu0 0.0
    %2429 = vmatprep.subr.mxu0 0.0
    %2430 = vmatpush1.xpose.msra.mxu0 0.0
    %2431 = vmatprep.mubr.f32.mxu0 0.0
    %2432 = vmatmul.mubr.f32.gmra.mrb[0].mxu0 %v2359
    %v2433 = vpop.f32.mrb[0].mxu0
    %v2434 = vadd.f32 0.0, %v2433
    %v2435 = vpop.f32.mrb[0].mxu0
    %2436 = vmatprep.mubr.f32.mxu0 0.0
    %2437 = vmatmul.mubr.f32.gmra.mrb[0].mxu0 %v2361
    %v2438 = vpop.f32.mrb[0].mxu0
    %v2439 = vadd.f32 0.0, %v2438
    %v2440 = vpop.f32.mrb[0].mxu0
    %2441 = vdwg.mxu0
    %2444 = vrot.lane.b32.xlu0 %v1955, 112
    %v2445 = vpop.permute.xlu0 %2444
    %2446 = vrot.lane.b32.xlu0 %v1956, 112
    %v2447 = vpop.permute.xlu0 %2446
    %2448 = vrot.lane.b32.xlu0 %v1955, 48
    %v2449 = vpop.permute.xlu0 %2448
    %2450 = vrot.lane.b32.xlu0 %v1956, 48
    %v2451 = vpop.permute.xlu0 %2450
    %v2452 = vsel %vm378, %v2445, 0
    %v2454 = vsel %vm378, %v2447, 0
    %v2456 = vsel %vm378, %v2449, 0
    %v2458 = vsel %vm378, %v2451, 0
    %2460 = vmatprep.subr.mxu0 0.0
    %2461 = vmatpush1.xpose.msra.mxu0 %v2456
    %2462 = vmatprep.subr.mxu0 0.0
    %2463 = vmatpush1.xpose.msra.mxu0 %v2458
    %2464 = vmatprep.subr.mxu0 0.0
    %2465 = vmatpush1.xpose.msra.mxu0 0.0
    %2466 = vmatprep.subr.mxu0 0.0
    %2467 = vmatpush1.xpose.msra.mxu0 0.0
    %2468 = vmatprep.subr.mxu0 0.0
    %2469 = vmatpush1.xpose.msra.mxu0 0.0
    %2470 = vmatprep.subr.mxu0 0.0
    %2471 = vmatpush1.xpose.msra.mxu0 0.0
    %2472 = vmatprep.subr.mxu0 0.0
    %2473 = vmatpush1.xpose.msra.mxu0 0.0
    %2474 = vmatprep.subr.mxu0 0.0
    %2475 = vmatpush1.xpose.msra.mxu0 0.0
    %2476 = vmatprep.subr.mxu0 0.0
    %2477 = vmatpush1.xpose.msra.mxu0 0.0
    %2478 = vmatprep.subr.mxu0 0.0
    %2479 = vmatpush1.xpose.msra.mxu0 0.0
    %2480 = vmatprep.subr.mxu0 0.0
    %2481 = vmatpush1.xpose.msra.mxu0 0.0
    %2482 = vmatprep.subr.mxu0 0.0
    %2483 = vmatpush1.xpose.msra.mxu0 0.0
    %2484 = vmatprep.subr.mxu0 0.0
    %2485 = vmatpush1.xpose.msra.mxu0 0.0
    %2486 = vmatprep.subr.mxu0 0.0
    %2487 = vmatpush1.xpose.msra.mxu0 0.0
    %2488 = vmatprep.subr.mxu0 0.0
    %2489 = vmatpush1.xpose.msra.mxu0 0.0
    %2490 = vmatprep.subr.mxu0 0.0
    %2491 = vmatpush1.xpose.msra.mxu0 0.0
    %2492 = vmatprep.subr.mxu0 0.0
    %2493 = vmatpush1.xpose.msra.mxu0 0.0
    %2494 = vmatprep.subr.mxu0 0.0
    %2495 = vmatpush1.xpose.msra.mxu0 0.0
    %2496 = vmatprep.subr.mxu0 0.0
    %2497 = vmatpush1.xpose.msra.mxu0 0.0
    %2498 = vmatprep.subr.mxu0 0.0
    %2499 = vmatpush1.xpose.msra.mxu0 0.0
    %2500 = vmatprep.subr.mxu0 0.0
    %2501 = vmatpush1.xpose.msra.mxu0 0.0
    %2502 = vmatprep.subr.mxu0 0.0
    %2503 = vmatpush1.xpose.msra.mxu0 0.0
    %2504 = vmatprep.subr.mxu0 0.0
    %2505 = vmatpush1.xpose.msra.mxu0 0.0
    %2506 = vmatprep.subr.mxu0 0.0
    %2507 = vmatpush1.xpose.msra.mxu0 0.0
    %2508 = vmatprep.subr.mxu0 0.0
    %2509 = vmatpush1.xpose.msra.mxu0 0.0
    %2510 = vmatprep.subr.mxu0 0.0
    %2511 = vmatpush1.xpose.msra.mxu0 0.0
    %2512 = vmatprep.subr.mxu0 0.0
    %2513 = vmatpush1.xpose.msra.mxu0 0.0
    %2514 = vmatprep.subr.mxu0 0.0
    %2515 = vmatpush1.xpose.msra.mxu0 0.0
    %2516 = vmatprep.subr.mxu0 0.0
    %2517 = vmatpush1.xpose.msra.mxu0 0.0
    %2518 = vmatprep.subr.mxu0 0.0
    %2519 = vmatpush1.xpose.msra.mxu0 0.0
    %2520 = vmatprep.subr.mxu0 0.0
    %2521 = vmatpush1.xpose.msra.mxu0 0.0
    %2522 = vmatprep.subr.mxu0 0.0
    %2523 = vmatpush1.xpose.msra.mxu0 0.0
    %2524 = vmatprep.mubr.f32.mxu0 0.0
    %2525 = vmatmul.mubr.f32.gmra.mrb[0].mxu0 %v2452
    %v2526 = vpop.f32.mrb[0].mxu0
    %v2527 = vadd.f32 0.0, %v2526
    %v2528 = vpop.f32.mrb[0].mxu0
    %2529 = vmatprep.mubr.f32.mxu0 0.0
    %2530 = vmatmul.mubr.f32.gmra.mrb[0].mxu0 %v2454
    %v2531 = vpop.f32.mrb[0].mxu0
    %v2532 = vadd.f32 0.0, %v2531
    %v2533 = vpop.f32.mrb[0].mxu0
    %2534 = vdwg.mxu0
    %2537 = vrot.lane.b32.xlu0 %v1957, 112
    %v2538 = vpop.permute.xlu0 %2537
    %2539 = vrot.lane.b32.xlu0 %v1958, 112
    %v2540 = vpop.permute.xlu0 %2539
    %2541 = vrot.lane.b32.xlu0 %v1957, 48
    %v2542 = vpop.permute.xlu0 %2541
    %2543 = vrot.lane.b32.xlu0 %v1958, 48
    %v2544 = vpop.permute.xlu0 %2543
    %v2545 = vsel %vm378, %v2538, 0
    %v2547 = vsel %vm378, %v2540, 0
    %v2549 = vsel %vm378, %v2542, 0
    %v2551 = vsel %vm378, %v2544, 0
    %2553 = vmatprep.subr.mxu0 0.0
    %2554 = vmatpush1.xpose.msra.mxu0 %v2549
    %2555 = vmatprep.subr.mxu0 0.0
    %2556 = vmatpush1.xpose.msra.mxu0 %v2551
    %2557 = vmatprep.subr.mxu0 0.0
    %2558 = vmatpush1.xpose.msra.mxu0 0.0
    %2559 = vmatprep.subr.mxu0 0.0
    %2560 = vmatpush1.xpose.msra.mxu0 0.0
    %2561 = vmatprep.subr.mxu0 0.0
    %2562 = vmatpush1.xpose.msra.mxu0 0.0
    %2563 = vmatprep.subr.mxu0 0.0
    %2564 = vmatpush1.xpose.msra.mxu0 0.0
    %2565 = vmatprep.subr.mxu0 0.0
    %2566 = vmatpush1.xpose.msra.mxu0 0.0
    %2567 = vmatprep.subr.mxu0 0.0
    %2568 = vmatpush1.xpose.msra.mxu0 0.0
    %2569 = vmatprep.subr.mxu0 0.0
    %2570 = vmatpush1.xpose.msra.mxu0 0.0
    %2571 = vmatprep.subr.mxu0 0.0
    %2572 = vmatpush1.xpose.msra.mxu0 0.0
    %2573 = vmatprep.subr.mxu0 0.0
    %2574 = vmatpush1.xpose.msra.mxu0 0.0
    %2575 = vmatprep.subr.mxu0 0.0
    %2576 = vmatpush1.xpose.msra.mxu0 0.0
    %2577 = vmatprep.subr.mxu0 0.0
    %2578 = vmatpush1.xpose.msra.mxu0 0.0
    %2579 = vmatprep.subr.mxu0 0.0
    %2580 = vmatpush1.xpose.msra.mxu0 0.0
    %2581 = vmatprep.subr.mxu0 0.0
    %2582 = vmatpush1.xpose.msra.mxu0 0.0
    %2583 = vmatprep.subr.mxu0 0.0
    %2584 = vmatpush1.xpose.msra.mxu0 0.0
    %2585 = vmatprep.subr.mxu0 0.0
    %2586 = vmatpush1.xpose.msra.mxu0 0.0
    %2587 = vmatprep.subr.mxu0 0.0
    %2588 = vmatpush1.xpose.msra.mxu0 0.0
    %2589 = vmatprep.subr.mxu0 0.0
    %2590 = vmatpush1.xpose.msra.mxu0 0.0
    %2591 = vmatprep.subr.mxu0 0.0
    %2592 = vmatpush1.xpose.msra.mxu0 0.0
    %2593 = vmatprep.subr.mxu0 0.0
    %2594 = vmatpush1.xpose.msra.mxu0 0.0
    %2595 = vmatprep.subr.mxu0 0.0
    %2596 = vmatpush1.xpose.msra.mxu0 0.0
    %2597 = vmatprep.subr.mxu0 0.0
    %2598 = vmatpush1.xpose.msra.mxu0 0.0
    %2599 = vmatprep.subr.mxu0 0.0
    %2600 = vmatpush1.xpose.msra.mxu0 0.0
    %2601 = vmatprep.subr.mxu0 0.0
    %2602 = vmatpush1.xpose.msra.mxu0 0.0
    %2603 = vmatprep.subr.mxu0 0.0
    %2604 = vmatpush1.xpose.msra.mxu0 0.0
    %2605 = vmatprep.subr.mxu0 0.0
    %2606 = vmatpush1.xpose.msra.mxu0 0.0
    %2607 = vmatprep.subr.mxu0 0.0
    %2608 = vmatpush1.xpose.msra.mxu0 0.0
    %2609 = vmatprep.subr.mxu0 0.0
    %2610 = vmatpush1.xpose.msra.mxu0 0.0
    %2611 = vmatprep.subr.mxu0 0.0
    %2612 = vmatpush1.xpose.msra.mxu0 0.0
    %2613 = vmatprep.subr.mxu0 0.0
    %2614 = vmatpush1.xpose.msra.mxu0 0.0
    %2615 = vmatprep.subr.mxu0 0.0
    %2616 = vmatpush1.xpose.msra.mxu0 0.0
    %2617 = vmatprep.mubr.f32.mxu0 0.0
    %2618 = vmatmul.mubr.f32.gmra.mrb[0].mxu0 %v2545
    %v2619 = vpop.f32.mrb[0].mxu0
    %v2620 = vadd.f32 0.0, %v2619
    %v2621 = vpop.f32.mrb[0].mxu0
    %2622 = vmatprep.mubr.f32.mxu0 0.0
    %2623 = vmatmul.mubr.f32.gmra.mrb[0].mxu0 %v2547
    %v2624 = vpop.f32.mrb[0].mxu0
    %v2625 = vadd.f32 0.0, %v2624
    %v2626 = vpop.f32.mrb[0].mxu0
    %2627 = vdwg.mxu0
    %2630 = vrot.lane.b32.xlu0 %v1959, 112
    %v2631 = vpop.permute.xlu0 %2630
    %2632 = vrot.lane.b32.xlu0 %v1960, 112
    %v2633 = vpop.permute.xlu0 %2632
    %2634 = vrot.lane.b32.xlu0 %v1959, 48
    %v2635 = vpop.permute.xlu0 %2634
    %2636 = vrot.lane.b32.xlu0 %v1960, 48
    %v2637 = vpop.permute.xlu0 %2636
    %v2638 = vsel %vm378, %v2631, 0
    %v2640 = vsel %vm378, %v2633, 0
    %v2642 = vsel %vm378, %v2635, 0
    %v2644 = vsel %vm378, %v2637, 0
    %2646 = vmatprep.subr.mxu0 0.0
    %2647 = vmatpush1.xpose.msra.mxu0 %v2642
    %2648 = vmatprep.subr.mxu0 0.0
    %2649 = vmatpush1.xpose.msra.mxu0 %v2644
    %2650 = vmatprep.subr.mxu0 0.0
    %2651 = vmatpush1.xpose.msra.mxu0 0.0
    %2652 = vmatprep.subr.mxu0 0.0
    %2653 = vmatpush1.xpose.msra.mxu0 0.0
    %2654 = vmatprep.subr.mxu0 0.0
    %2655 = vmatpush1.xpose.msra.mxu0 0.0
    %2656 = vmatprep.subr.mxu0 0.0
    %2657 = vmatpush1.xpose.msra.mxu0 0.0
    %2658 = vmatprep.subr.mxu0 0.0
    %2659 = vmatpush1.xpose.msra.mxu0 0.0
    %2660 = vmatprep.subr.mxu0 0.0
    %2661 = vmatpush1.xpose.msra.mxu0 0.0
    %2662 = vmatprep.subr.mxu0 0.0
    %2663 = vmatpush1.xpose.msra.mxu0 0.0
    %2664 = vmatprep.subr.mxu0 0.0
    %2665 = vmatpush1.xpose.msra.mxu0 0.0
    %2666 = vmatprep.subr.mxu0 0.0
    %2667 = vmatpush1.xpose.msra.mxu0 0.0
    %2668 = vmatprep.subr.mxu0 0.0
    %2669 = vmatpush1.xpose.msra.mxu0 0.0
    %2670 = vmatprep.subr.mxu0 0.0
    %2671 = vmatpush1.xpose.msra.mxu0 0.0
    %2672 = vmatprep.subr.mxu0 0.0
    %2673 = vmatpush1.xpose.msra.mxu0 0.0
    %2674 = vmatprep.subr.mxu0 0.0
    %2675 = vmatpush1.xpose.msra.mxu0 0.0
    %2676 = vmatprep.subr.mxu0 0.0
    %2677 = vmatpush1.xpose.msra.mxu0 0.0
    %2678 = vmatprep.subr.mxu0 0.0
    %2679 = vmatpush1.xpose.msra.mxu0 0.0
    %2680 = vmatprep.subr.mxu0 0.0
    %2681 = vmatpush1.xpose.msra.mxu0 0.0
    %2682 = vmatprep.subr.mxu0 0.0
    %2683 = vmatpush1.xpose.msra.mxu0 0.0
    %2684 = vmatprep.subr.mxu0 0.0
    %2685 = vmatpush1.xpose.msra.mxu0 0.0
    %2686 = vmatprep.subr.mxu0 0.0
    %2687 = vmatpush1.xpose.msra.mxu0 0.0
    %2688 = vmatprep.subr.mxu0 0.0
    %2689 = vmatpush1.xpose.msra.mxu0 0.0
    %2690 = vmatprep.subr.mxu0 0.0
    %2691 = vmatpush1.xpose.msra.mxu0 0.0
    %2692 = vmatprep.subr.mxu0 0.0
    %2693 = vmatpush1.xpose.msra.mxu0 0.0
    %2694 = vmatprep.subr.mxu0 0.0
    %2695 = vmatpush1.xpose.msra.mxu0 0.0
    %2696 = vmatprep.subr.mxu0 0.0
    %2697 = vmatpush1.xpose.msra.mxu0 0.0
    %2698 = vmatprep.subr.mxu0 0.0
    %2699 = vmatpush1.xpose.msra.mxu0 0.0
    %2700 = vmatprep.subr.mxu0 0.0
    %2701 = vmatpush1.xpose.msra.mxu0 0.0
    %2702 = vmatprep.subr.mxu0 0.0
    %2703 = vmatpush1.xpose.msra.mxu0 0.0
    %2704 = vmatprep.subr.mxu0 0.0
    %2705 = vmatpush1.xpose.msra.mxu0 0.0
    %2706 = vmatprep.subr.mxu0 0.0
    %2707 = vmatpush1.xpose.msra.mxu0 0.0
    %2708 = vmatprep.subr.mxu0 0.0
    %2709 = vmatpush1.xpose.msra.mxu0 0.0
    %2710 = vmatprep.mubr.f32.mxu0 0.0
    %2711 = vmatmul.mubr.f32.gmra.mrb[0].mxu0 %v2638
    %v2712 = vpop.f32.mrb[0].mxu0
    %v2713 = vadd.f32 0.0, %v2712
    %v2714 = vpop.f32.mrb[0].mxu0
    %2715 = vmatprep.mubr.f32.mxu0 0.0
    %2716 = vmatmul.mubr.f32.gmra.mrb[0].mxu0 %v2640
    %v2717 = vpop.f32.mrb[0].mxu0
    %v2718 = vadd.f32 0.0, %v2717
    %v2719 = vpop.f32.mrb[0].mxu0
    %2720 = vdwg.mxu0
    %v2721 = vsel %vm1087, %v2062, -1.7014117e+38
    %v2722 = vsel %vm1088, %v2067, -1.7014117e+38
    %v2723 = vsel %vm1087, %v2155, -1.7014117e+38
    %v2724 = vsel %vm1088, %v2160, -1.7014117e+38
    %v2725 = vsel %vm1087, %v2248, -1.7014117e+38
    %v2726 = vsel %vm1088, %v2253, -1.7014117e+38
    %v2727 = vsel %vm1087, %v2341, -1.7014117e+38
    %v2728 = vsel %vm1088, %v2346, -1.7014117e+38
    %v2729 = vsel %vm1087, %v2434, -1.7014117e+38
    %v2730 = vsel %vm1088, %v2439, -1.7014117e+38
    %v2731 = vsel %vm1087, %v2527, -1.7014117e+38
    %v2732 = vsel %vm1088, %v2532, -1.7014117e+38
    %v2733 = vsel %vm1087, %v2620, -1.7014117e+38
    %v2734 = vsel %vm1088, %v2625, -1.7014117e+38
    %v2735 = vsel %vm1087, %v2713, -1.7014117e+38
    %v2736 = vsel %vm1088, %v2718, -1.7014117e+38
    %v2737 = vsel %vm378, %v2721, -inf
    %2738 = vmax.xlane.f32.xlu0 %v2737
    %v2739 = vpop.xlane.xlu0 %2738
    %v2740 = vsel %vm378, %v2722, -inf
    %2741 = vmax.xlane.f32.xlu0 %v2740
    %v2742 = vpop.xlane.xlu0 %2741
    %v2743 = vsel %vm378, %v2723, -inf
    %2744 = vmax.xlane.f32.xlu0 %v2743
    %v2745 = vpop.xlane.xlu0 %2744
    %v2746 = vsel %vm378, %v2724, -inf
    %2747 = vmax.xlane.f32.xlu0 %v2746
    %v2748 = vpop.xlane.xlu0 %2747
    %v2749 = vsel %vm378, %v2725, -inf
    %2750 = vmax.xlane.f32.xlu0 %v2749
    %v2751 = vpop.xlane.xlu0 %2750
    %v2752 = vsel %vm378, %v2726, -inf
    %2753 = vmax.xlane.f32.xlu0 %v2752
    %v2754 = vpop.xlane.xlu0 %2753
    %v2755 = vsel %vm378, %v2727, -inf
    %2756 = vmax.xlane.f32.xlu0 %v2755
    %v2757 = vpop.xlane.xlu0 %2756
    %v2758 = vsel %vm378, %v2728, -inf
    %2759 = vmax.xlane.f32.xlu0 %v2758
    %v2760 = vpop.xlane.xlu0 %2759
    %v2761 = vsel %vm378, %v2729, -inf
    %2762 = vmax.xlane.f32.xlu0 %v2761
    %v2763 = vpop.xlane.xlu0 %2762
    %v2764 = vsel %vm378, %v2730, -inf
    %2765 = vmax.xlane.f32.xlu0 %v2764
    %v2766 = vpop.xlane.xlu0 %2765
    %v2767 = vsel %vm378, %v2731, -inf
    %2768 = vmax.xlane.f32.xlu0 %v2767
    %v2769 = vpop.xlane.xlu0 %2768
    %v2770 = vsel %vm378, %v2732, -inf
    %2771 = vmax.xlane.f32.xlu0 %v2770
    %v2772 = vpop.xlane.xlu0 %2771
    %v2773 = vsel %vm378, %v2733, -inf
    %2774 = vmax.xlane.f32.xlu0 %v2773
    %v2775 = vpop.xlane.xlu0 %2774
    %v2776 = vsel %vm378, %v2734, -inf
    %2777 = vmax.xlane.f32.xlu0 %v2776
    %v2778 = vpop.xlane.xlu0 %2777
    %v2779 = vsel %vm378, %v2735, -inf
    %2780 = vmax.xlane.f32.xlu0 %v2779
    %v2781 = vpop.xlane.xlu0 %2780
    %v2782 = vsel %vm378, %v2736, -inf
    %2783 = vmax.xlane.f32.xlu0 %v2782
    %v2784 = vpop.xlane.xlu0 %2783
    %v2785 = vsub.f32 %v2721, %v2739
    %v2786 = vsub.f32 %v2722, %v2742
    %v2787 = vsub.f32 %v2723, %v2745
    %v2788 = vsub.f32 %v2724, %v2748
    %v2789 = vsub.f32 %v2725, %v2751
    %v2790 = vsub.f32 %v2726, %v2754
    %v2791 = vsub.f32 %v2727, %v2757
    %v2792 = vsub.f32 %v2728, %v2760
    %v2793 = vsub.f32 %v2729, %v2763
    %v2794 = vsub.f32 %v2730, %v2766
    %v2795 = vsub.f32 %v2731, %v2769
    %v2796 = vsub.f32 %v2732, %v2772
    %v2797 = vsub.f32 %v2733, %v2775
    %v2798 = vsub.f32 %v2734, %v2778
    %v2799 = vsub.f32 %v2735, %v2781
    %v2800 = vsub.f32 %v2736, %v2784
    %v2801 = vmul.f32 %v2785, 1.442695
    %v2802 = vpow.pop %v2801
    %v2803 = vmul.f32 %v2786, 1.442695
    %v2804 = vpow.pop %v2803
    %v2805 = vmul.f32 %v2787, 1.442695
    %v2806 = vpow.pop %v2805
    %v2807 = vmul.f32 %v2788, 1.442695
    %v2808 = vpow.pop %v2807
    %v2809 = vmul.f32 %v2789, 1.442695
    %v2810 = vpow.pop %v2809
    %v2811 = vmul.f32 %v2790, 1.442695
    %v2812 = vpow.pop %v2811
    %v2813 = vmul.f32 %v2791, 1.442695
    %v2814 = vpow.pop %v2813
    %v2815 = vmul.f32 %v2792, 1.442695
    %v2816 = vpow.pop %v2815
    %v2817 = vmul.f32 %v2793, 1.442695
    %v2818 = vpow.pop %v2817
    %v2819 = vmul.f32 %v2794, 1.442695
    %v2820 = vpow.pop %v2819
    %v2821 = vmul.f32 %v2795, 1.442695
    %v2822 = vpow.pop %v2821
    %v2823 = vmul.f32 %v2796, 1.442695
    %v2824 = vpow.pop %v2823
    %v2825 = vmul.f32 %v2797, 1.442695
    %v2826 = vpow.pop %v2825
    %v2827 = vmul.f32 %v2798, 1.442695
    %v2828 = vpow.pop %v2827
    %v2829 = vmul.f32 %v2799, 1.442695
    %v2830 = vpow.pop %v2829
    %v2831 = vmul.f32 %v2800, 1.442695
    %v2832 = vpow.pop %v2831
    %v2833 = vsel %vm378, %v2802, 0.0
    %2834 = vadd.xlane.f32.xlu0 %v2833
    %v2835 = vpop.xlane.xlu0 %2834
    %v2836 = vsel %vm378, %v2804, 0.0
    %2837 = vadd.xlane.f32.xlu0 %v2836
    %v2838 = vpop.xlane.xlu0 %2837
    %v2839 = vsel %vm378, %v2806, 0.0
    %2840 = vadd.xlane.f32.xlu0 %v2839
    %v2841 = vpop.xlane.xlu0 %2840
    %v2842 = vsel %vm378, %v2808, 0.0
    %2843 = vadd.xlane.f32.xlu0 %v2842
    %v2844 = vpop.xlane.xlu0 %2843
    %v2845 = vsel %vm378, %v2810, 0.0
    %2846 = vadd.xlane.f32.xlu0 %v2845
    %v2847 = vpop.xlane.xlu0 %2846
    %v2848 = vsel %vm378, %v2812, 0.0
    %2849 = vadd.xlane.f32.xlu0 %v2848
    %v2850 = vpop.xlane.xlu0 %2849
    %v2851 = vsel %vm378, %v2814, 0.0
    %2852 = vadd.xlane.f32.xlu0 %v2851
    %v2853 = vpop.xlane.xlu0 %2852
    %v2854 = vsel %vm378, %v2816, 0.0
    %2855 = vadd.xlane.f32.xlu0 %v2854
    %v2856 = vpop.xlane.xlu0 %2855
    %v2857 = vsel %vm378, %v2818, 0.0
    %2858 = vadd.xlane.f32.xlu0 %v2857
    %v2859 = vpop.xlane.xlu0 %2858
    %v2860 = vsel %vm378, %v2820, 0.0
    %2861 = vadd.xlane.f32.xlu0 %v2860
    %v2862 = vpop.xlane.xlu0 %2861
    %v2863 = vsel %vm378, %v2822, 0.0
    %2864 = vadd.xlane.f32.xlu0 %v2863
    %v2865 = vpop.xlane.xlu0 %2864
    %v2866 = vsel %vm378, %v2824, 0.0
    %2867 = vadd.xlane.f32.xlu0 %v2866
    %v2868 = vpop.xlane.xlu0 %2867
    %v2869 = vsel %vm378, %v2826, 0.0
    %2870 = vadd.xlane.f32.xlu0 %v2869
    %v2871 = vpop.xlane.xlu0 %2870
    %v2872 = vsel %vm378, %v2828, 0.0
    %2873 = vadd.xlane.f32.xlu0 %v2872
    %v2874 = vpop.xlane.xlu0 %2873
    %v2875 = vsel %vm378, %v2830, 0.0
    %2876 = vadd.xlane.f32.xlu0 %v2875
    %v2877 = vpop.xlane.xlu0 %2876
    %v2878 = vsel %vm378, %v2832, 0.0
    %2879 = vadd.xlane.f32.xlu0 %v2878
    %v2880 = vpop.xlane.xlu0 %2879
    %v2881 = vrcp.pop %v2835
    %v2882 = vrcp.pop %v2838
    %v2883 = vrcp.pop %v2841
    %v2884 = vrcp.pop %v2844
    %v2885 = vrcp.pop %v2847
    %v2886 = vrcp.pop %v2850
    %v2887 = vrcp.pop %v2853
    %v2888 = vrcp.pop %v2856
    %v2889 = vrcp.pop %v2859
    %v2890 = vrcp.pop %v2862
    %v2891 = vrcp.pop %v2865
    %v2892 = vrcp.pop %v2868
    %v2893 = vrcp.pop %v2871
    %v2894 = vrcp.pop %v2874
    %v2895 = vrcp.pop %v2877
    %v2896 = vrcp.pop %v2880
    %v2897 = vmul.f32 %v2802, %v2881
    %v2898 = vmul.f32 %v2804, %v2882
    %v2899 = vmul.f32 %v2806, %v2883
    %v2900 = vmul.f32 %v2808, %v2884
    %v2901 = vmul.f32 %v2810, %v2885
    %v2902 = vmul.f32 %v2812, %v2886
    %v2903 = vmul.f32 %v2814, %v2887
    %v2904 = vmul.f32 %v2816, %v2888
    %v2905 = vmul.f32 %v2818, %v2889
    %v2906 = vmul.f32 %v2820, %v2890
    %v2907 = vmul.f32 %v2822, %v2891
    %v2908 = vmul.f32 %v2824, %v2892
    %v2909 = vmul.f32 %v2826, %v2893
    %v2910 = vmul.f32 %v2828, %v2894
    %v2911 = vmul.f32 %v2830, %v2895
    %v2912 = vmul.f32 %v2832, %v2896
    %2915 = vrot.lane.b32.xlu0 %v1961, 112
    %v2916 = vpop.permute.xlu0 %2915
    %2917 = vrot.lane.b32.xlu0 %v1962, 112
    %v2918 = vpop.permute.xlu0 %2917
    %v2922 = vsel %vm378, %v2897, 0
    %v2925 = vsel %vm378, %v2898, 0
    %2927 = vmatprep.subr.mxu0 0.0
    %2928 = vmatpush1.msra.mxu0 %v2916
    %2929 = vmatprep.subr.mxu0 0.0
    %2930 = vmatpush1.msra.mxu0 %v2918
    %2931 = vmatprep.subr.mxu0 0.0
    %2932 = vmatpush1.msra.mxu0 0.0
    %2933 = vmatprep.subr.mxu0 0.0
    %2934 = vmatpush1.msra.mxu0 0.0
    %2935 = vmatprep.subr.mxu0 0.0
    %2936 = vmatpush1.msra.mxu0 0.0
    %2937 = vmatprep.subr.mxu0 0.0
    %2938 = vmatpush1.msra.mxu0 0.0
    %2939 = vmatprep.subr.mxu0 0.0
    %2940 = vmatpush1.msra.mxu0 0.0
    %2941 = vmatprep.subr.mxu0 0.0
    %2942 = vmatpush1.msra.mxu0 0.0
    %2943 = vmatprep.subr.mxu0 0.0
    %2944 = vmatpush1.msra.mxu0 0.0
    %2945 = vmatprep.subr.mxu0 0.0
    %2946 = vmatpush1.msra.mxu0 0.0
    %2947 = vmatprep.subr.mxu0 0.0
    %2948 = vmatpush1.msra.mxu0 0.0
    %2949 = vmatprep.subr.mxu0 0.0
    %2950 = vmatpush1.msra.mxu0 0.0
    %2951 = vmatprep.subr.mxu0 0.0
    %2952 = vmatpush1.msra.mxu0 0.0
    %2953 = vmatprep.subr.mxu0 0.0
    %2954 = vmatpush1.msra.mxu0 0.0
    %2955 = vmatprep.subr.mxu0 0.0
    %2956 = vmatpush1.msra.mxu0 0.0
    %2957 = vmatprep.subr.mxu0 0.0
    %2958 = vmatpush1.msra.mxu0 0.0
    %2959 = vmatprep.subr.mxu0 0.0
    %2960 = vmatpush1.msra.mxu0 0.0
    %2961 = vmatprep.subr.mxu0 0.0
    %2962 = vmatpush1.msra.mxu0 0.0
    %2963 = vmatprep.subr.mxu0 0.0
    %2964 = vmatpush1.msra.mxu0 0.0
    %2965 = vmatprep.subr.mxu0 0.0
    %2966 = vmatpush1.msra.mxu0 0.0
    %2967 = vmatprep.subr.mxu0 0.0
    %2968 = vmatpush1.msra.mxu0 0.0
    %2969 = vmatprep.subr.mxu0 0.0
    %2970 = vmatpush1.msra.mxu0 0.0
    %2971 = vmatprep.subr.mxu0 0.0
    %2972 = vmatpush1.msra.mxu0 0.0
    %2973 = vmatprep.subr.mxu0 0.0
    %2974 = vmatpush1.msra.mxu0 0.0
    %2975 = vmatprep.subr.mxu0 0.0
    %2976 = vmatpush1.msra.mxu0 0.0
    %2977 = vmatprep.subr.mxu0 0.0
    %2978 = vmatpush1.msra.mxu0 0.0
    %2979 = vmatprep.subr.mxu0 0.0
    %2980 = vmatpush1.msra.mxu0 0.0
    %2981 = vmatprep.subr.mxu0 0.0
    %2982 = vmatpush1.msra.mxu0 0.0
    %2983 = vmatprep.subr.mxu0 0.0
    %2984 = vmatpush1.msra.mxu0 0.0
    %2985 = vmatprep.subr.mxu0 0.0
    %2986 = vmatpush1.msra.mxu0 0.0
    %2987 = vmatprep.subr.mxu0 0.0
    %2988 = vmatpush1.msra.mxu0 0.0
    %2989 = vmatprep.subr.mxu0 0.0
    %2990 = vmatpush1.msra.mxu0 0.0
    %2991 = vmatprep.mubr.f32.mxu0 0.0
    %2992 = vmatmul.mubr.f32.gmra.mrb[0].mxu0 %v2922
    %v2993 = vpop.f32.mrb[0].mxu0
    %v2994 = vadd.f32 0.0, %v2993
    %v2995 = vpop.f32.mrb[0].mxu0
    %2996 = vmatprep.mubr.f32.mxu0 0.0
    %2997 = vmatmul.mubr.f32.gmra.mrb[0].mxu0 %v2925
    %v2998 = vpop.f32.mrb[0].mxu0
    %v2999 = vadd.f32 0.0, %v2998
    %v3000 = vpop.f32.mrb[0].mxu0
    %3001 = vdwg.mxu0
    %3004 = vrot.lane.b32.xlu0 %v1963, 112
    %v3005 = vpop.permute.xlu0 %3004
    %3006 = vrot.lane.b32.xlu0 %v1964, 112
    %v3007 = vpop.permute.xlu0 %3006
    %v3011 = vsel %vm378, %v2899, 0
    %v3014 = vsel %vm378, %v2900, 0
    %3016 = vmatprep.subr.mxu0 0.0
    %3017 = vmatpush1.msra.mxu0 %v3005
    %3018 = vmatprep.subr.mxu0 0.0
    %3019 = vmatpush1.msra.mxu0 %v3007
    %3020 = vmatprep.subr.mxu0 0.0
    %3021 = vmatpush1.msra.mxu0 0.0
    %3022 = vmatprep.subr.mxu0 0.0
    %3023 = vmatpush1.msra.mxu0 0.0
    %3024 = vmatprep.subr.mxu0 0.0
    %3025 = vmatpush1.msra.mxu0 0.0
    %3026 = vmatprep.subr.mxu0 0.0
    %3027 = vmatpush1.msra.mxu0 0.0
    %3028 = vmatprep.subr.mxu0 0.0
    %3029 = vmatpush1.msra.mxu0 0.0
    %3030 = vmatprep.subr.mxu0 0.0
    %3031 = vmatpush1.msra.mxu0 0.0
    %3032 = vmatprep.subr.mxu0 0.0
    %3033 = vmatpush1.msra.mxu0 0.0
    %3034 = vmatprep.subr.mxu0 0.0
    %3035 = vmatpush1.msra.mxu0 0.0
    %3036 = vmatprep.subr.mxu0 0.0
    %3037 = vmatpush1.msra.mxu0 0.0
    %3038 = vmatprep.subr.mxu0 0.0
    %3039 = vmatpush1.msra.mxu0 0.0
    %3040 = vmatprep.subr.mxu0 0.0
    %3041 = vmatpush1.msra.mxu0 0.0
    %3042 = vmatprep.subr.mxu0 0.0
    %3043 = vmatpush1.msra.mxu0 0.0
    %3044 = vmatprep.subr.mxu0 0.0
    %3045 = vmatpush1.msra.mxu0 0.0
    %3046 = vmatprep.subr.mxu0 0.0
    %3047 = vmatpush1.msra.mxu0 0.0
    %3048 = vmatprep.subr.mxu0 0.0
    %3049 = vmatpush1.msra.mxu0 0.0
    %3050 = vmatprep.subr.mxu0 0.0
    %3051 = vmatpush1.msra.mxu0 0.0
    %3052 = vmatprep.subr.mxu0 0.0
    %3053 = vmatpush1.msra.mxu0 0.0
    %3054 = vmatprep.subr.mxu0 0.0
    %3055 = vmatpush1.msra.mxu0 0.0
    %3056 = vmatprep.subr.mxu0 0.0
    %3057 = vmatpush1.msra.mxu0 0.0
    %3058 = vmatprep.subr.mxu0 0.0
    %3059 = vmatpush1.msra.mxu0 0.0
    %3060 = vmatprep.subr.mxu0 0.0
    %3061 = vmatpush1.msra.mxu0 0.0
    %3062 = vmatprep.subr.mxu0 0.0
    %3063 = vmatpush1.msra.mxu0 0.0
    %3064 = vmatprep.subr.mxu0 0.0
    %3065 = vmatpush1.msra.mxu0 0.0
    %3066 = vmatprep.subr.mxu0 0.0
    %3067 = vmatpush1.msra.mxu0 0.0
    %3068 = vmatprep.subr.mxu0 0.0
    %3069 = vmatpush1.msra.mxu0 0.0
    %3070 = vmatprep.subr.mxu0 0.0
    %3071 = vmatpush1.msra.mxu0 0.0
    %3072 = vmatprep.subr.mxu0 0.0
    %3073 = vmatpush1.msra.mxu0 0.0
    %3074 = vmatprep.subr.mxu0 0.0
    %3075 = vmatpush1.msra.mxu0 0.0
    %3076 = vmatprep.subr.mxu0 0.0
    %3077 = vmatpush1.msra.mxu0 0.0
    %3078 = vmatprep.subr.mxu0 0.0
    %3079 = vmatpush1.msra.mxu0 0.0
    %3080 = vmatprep.mubr.f32.mxu0 0.0
    %3081 = vmatmul.mubr.f32.gmra.mrb[0].mxu0 %v3011
    %v3082 = vpop.f32.mrb[0].mxu0
    %v3083 = vadd.f32 0.0, %v3082
    %v3084 = vpop.f32.mrb[0].mxu0
    %3085 = vmatprep.mubr.f32.mxu0 0.0
    %3086 = vmatmul.mubr.f32.gmra.mrb[0].mxu0 %v3014
    %v3087 = vpop.f32.mrb[0].mxu0
    %v3088 = vadd.f32 0.0, %v3087
    %v3089 = vpop.f32.mrb[0].mxu0
    %3090 = vdwg.mxu0
    %3093 = vrot.lane.b32.xlu0 %v1965, 112
    %v3094 = vpop.permute.xlu0 %3093
    %3095 = vrot.lane.b32.xlu0 %v1966, 112
    %v3096 = vpop.permute.xlu0 %3095
    %v3100 = vsel %vm378, %v2901, 0
    %v3103 = vsel %vm378, %v2902, 0
    %3105 = vmatprep.subr.mxu0 0.0
    %3106 = vmatpush1.msra.mxu0 %v3094
    %3107 = vmatprep.subr.mxu0 0.0
    %3108 = vmatpush1.msra.mxu0 %v3096
    %3109 = vmatprep.subr.mxu0 0.0
    %3110 = vmatpush1.msra.mxu0 0.0
    %3111 = vmatprep.subr.mxu0 0.0
    %3112 = vmatpush1.msra.mxu0 0.0
    %3113 = vmatprep.subr.mxu0 0.0
    %3114 = vmatpush1.msra.mxu0 0.0
    %3115 = vmatprep.subr.mxu0 0.0
    %3116 = vmatpush1.msra.mxu0 0.0
    %3117 = vmatprep.subr.mxu0 0.0
    %3118 = vmatpush1.msra.mxu0 0.0
    %3119 = vmatprep.subr.mxu0 0.0
    %3120 = vmatpush1.msra.mxu0 0.0
    %3121 = vmatprep.subr.mxu0 0.0
    %3122 = vmatpush1.msra.mxu0 0.0
    %3123 = vmatprep.subr.mxu0 0.0
    %3124 = vmatpush1.msra.mxu0 0.0
    %3125 = vmatprep.subr.mxu0 0.0
    %3126 = vmatpush1.msra.mxu0 0.0
    %3127 = vmatprep.subr.mxu0 0.0
    %3128 = vmatpush1.msra.mxu0 0.0
    %3129 = vmatprep.subr.mxu0 0.0
    %3130 = vmatpush1.msra.mxu0 0.0
    %3131 = vmatprep.subr.mxu0 0.0
    %3132 = vmatpush1.msra.mxu0 0.0
    %3133 = vmatprep.subr.mxu0 0.0
    %3134 = vmatpush1.msra.mxu0 0.0
    %3135 = vmatprep.subr.mxu0 0.0
    %3136 = vmatpush1.msra.mxu0 0.0
    %3137 = vmatprep.subr.mxu0 0.0
    %3138 = vmatpush1.msra.mxu0 0.0
    %3139 = vmatprep.subr.mxu0 0.0
    %3140 = vmatpush1.msra.mxu0 0.0
    %3141 = vmatprep.subr.mxu0 0.0
    %3142 = vmatpush1.msra.mxu0 0.0
    %3143 = vmatprep.subr.mxu0 0.0
    %3144 = vmatpush1.msra.mxu0 0.0
    %3145 = vmatprep.subr.mxu0 0.0
    %3146 = vmatpush1.msra.mxu0 0.0
    %3147 = vmatprep.subr.mxu0 0.0
    %3148 = vmatpush1.msra.mxu0 0.0
    %3149 = vmatprep.subr.mxu0 0.0
    %3150 = vmatpush1.msra.mxu0 0.0
    %3151 = vmatprep.subr.mxu0 0.0
    %3152 = vmatpush1.msra.mxu0 0.0
    %3153 = vmatprep.subr.mxu0 0.0
    %3154 = vmatpush1.msra.mxu0 0.0
    %3155 = vmatprep.subr.mxu0 0.0
    %3156 = vmatpush1.msra.mxu0 0.0
    %3157 = vmatprep.subr.mxu0 0.0
    %3158 = vmatpush1.msra.mxu0 0.0
    %3159 = vmatprep.subr.mxu0 0.0
    %3160 = vmatpush1.msra.mxu0 0.0
    %3161 = vmatprep.subr.mxu0 0.0
    %3162 = vmatpush1.msra.mxu0 0.0
    %3163 = vmatprep.subr.mxu0 0.0
    %3164 = vmatpush1.msra.mxu0 0.0
    %3165 = vmatprep.subr.mxu0 0.0
    %3166 = vmatpush1.msra.mxu0 0.0
    %3167 = vmatprep.subr.mxu0 0.0
    %3168 = vmatpush1.msra.mxu0 0.0
    %3169 = vmatprep.mubr.f32.mxu0 0.0
    %3170 = vmatmul.mubr.f32.gmra.mrb[0].mxu0 %v3100
    %v3171 = vpop.f32.mrb[0].mxu0
    %v3172 = vadd.f32 0.0, %v3171
    %v3173 = vpop.f32.mrb[0].mxu0
    %3174 = vmatprep.mubr.f32.mxu0 0.0
    %3175 = vmatmul.mubr.f32.gmra.mrb[0].mxu0 %v3103
    %v3176 = vpop.f32.mrb[0].mxu0
    %v3177 = vadd.f32 0.0, %v3176
    %v3178 = vpop.f32.mrb[0].mxu0
    %3179 = vdwg.mxu0
    %3182 = vrot.lane.b32.xlu0 %v1967, 112
    %v3183 = vpop.permute.xlu0 %3182
    %3184 = vrot.lane.b32.xlu0 %v1968, 112
    %v3185 = vpop.permute.xlu0 %3184
    %v3189 = vsel %vm378, %v2903, 0
    %v3192 = vsel %vm378, %v2904, 0
    %3194 = vmatprep.subr.mxu0 0.0
    %3195 = vmatpush1.msra.mxu0 %v3183
    %3196 = vmatprep.subr.mxu0 0.0
    %3197 = vmatpush1.msra.mxu0 %v3185
    %3198 = vmatprep.subr.mxu0 0.0
    %3199 = vmatpush1.msra.mxu0 0.0
    %3200 = vmatprep.subr.mxu0 0.0
    %3201 = vmatpush1.msra.mxu0 0.0
    %3202 = vmatprep.subr.mxu0 0.0
    %3203 = vmatpush1.msra.mxu0 0.0
    %3204 = vmatprep.subr.mxu0 0.0
    %3205 = vmatpush1.msra.mxu0 0.0
    %3206 = vmatprep.subr.mxu0 0.0
    %3207 = vmatpush1.msra.mxu0 0.0
    %3208 = vmatprep.subr.mxu0 0.0
    %3209 = vmatpush1.msra.mxu0 0.0
    %3210 = vmatprep.subr.mxu0 0.0
    %3211 = vmatpush1.msra.mxu0 0.0
    %3212 = vmatprep.subr.mxu0 0.0
    %3213 = vmatpush1.msra.mxu0 0.0
    %3214 = vmatprep.subr.mxu0 0.0
    %3215 = vmatpush1.msra.mxu0 0.0
    %3216 = vmatprep.subr.mxu0 0.0
    %3217 = vmatpush1.msra.mxu0 0.0
    %3218 = vmatprep.subr.mxu0 0.0
    %3219 = vmatpush1.msra.mxu0 0.0
    %3220 = vmatprep.subr.mxu0 0.0
    %3221 = vmatpush1.msra.mxu0 0.0
    %3222 = vmatprep.subr.mxu0 0.0
    %3223 = vmatpush1.msra.mxu0 0.0
    %3224 = vmatprep.subr.mxu0 0.0
    %3225 = vmatpush1.msra.mxu0 0.0
    %3226 = vmatprep.subr.mxu0 0.0
    %3227 = vmatpush1.msra.mxu0 0.0
    %3228 = vmatprep.subr.mxu0 0.0
    %3229 = vmatpush1.msra.mxu0 0.0
    %3230 = vmatprep.subr.mxu0 0.0
    %3231 = vmatpush1.msra.mxu0 0.0
    %3232 = vmatprep.subr.mxu0 0.0
    %3233 = vmatpush1.msra.mxu0 0.0
    %3234 = vmatprep.subr.mxu0 0.0
    %3235 = vmatpush1.msra.mxu0 0.0
    %3236 = vmatprep.subr.mxu0 0.0
    %3237 = vmatpush1.msra.mxu0 0.0
    %3238 = vmatprep.subr.mxu0 0.0
    %3239 = vmatpush1.msra.mxu0 0.0
    %3240 = vmatprep.subr.mxu0 0.0
    %3241 = vmatpush1.msra.mxu0 0.0
    %3242 = vmatprep.subr.mxu0 0.0
    %3243 = vmatpush1.msra.mxu0 0.0
    %3244 = vmatprep.subr.mxu0 0.0
    %3245 = vmatpush1.msra.mxu0 0.0
    %3246 = vmatprep.subr.mxu0 0.0
    %3247 = vmatpush1.msra.mxu0 0.0
    %3248 = vmatprep.subr.mxu0 0.0
    %3249 = vmatpush1.msra.mxu0 0.0
    %3250 = vmatprep.subr.mxu0 0.0
    %3251 = vmatpush1.msra.mxu0 0.0
    %3252 = vmatprep.subr.mxu0 0.0
    %3253 = vmatpush1.msra.mxu0 0.0
    %3254 = vmatprep.subr.mxu0 0.0
    %3255 = vmatpush1.msra.mxu0 0.0
    %3256 = vmatprep.subr.mxu0 0.0
    %3257 = vmatpush1.msra.mxu0 0.0
    %3258 = vmatprep.mubr.f32.mxu0 0.0
    %3259 = vmatmul.mubr.f32.gmra.mrb[0].mxu0 %v3189
    %v3260 = vpop.f32.mrb[0].mxu0
    %v3261 = vadd.f32 0.0, %v3260
    %v3262 = vpop.f32.mrb[0].mxu0
    %3263 = vmatprep.mubr.f32.mxu0 0.0
    %3264 = vmatmul.mubr.f32.gmra.mrb[0].mxu0 %v3192
    %v3265 = vpop.f32.mrb[0].mxu0
    %v3266 = vadd.f32 0.0, %v3265
    %v3267 = vpop.f32.mrb[0].mxu0
    %3268 = vdwg.mxu0
    %3271 = vrot.lane.b32.xlu0 %v1969, 112
    %v3272 = vpop.permute.xlu0 %3271
    %3273 = vrot.lane.b32.xlu0 %v1970, 112
    %v3274 = vpop.permute.xlu0 %3273
    %v3278 = vsel %vm378, %v2905, 0
    %v3281 = vsel %vm378, %v2906, 0
    %3283 = vmatprep.subr.mxu0 0.0
    %3284 = vmatpush1.msra.mxu0 %v3272
    %3285 = vmatprep.subr.mxu0 0.0
    %3286 = vmatpush1.msra.mxu0 %v3274
    %3287 = vmatprep.subr.mxu0 0.0
    %3288 = vmatpush1.msra.mxu0 0.0
    %3289 = vmatprep.subr.mxu0 0.0
    %3290 = vmatpush1.msra.mxu0 0.0
    %3291 = vmatprep.subr.mxu0 0.0
    %3292 = vmatpush1.msra.mxu0 0.0
    %3293 = vmatprep.subr.mxu0 0.0
    %3294 = vmatpush1.msra.mxu0 0.0
    %3295 = vmatprep.subr.mxu0 0.0
    %3296 = vmatpush1.msra.mxu0 0.0
    %3297 = vmatprep.subr.mxu0 0.0
    %3298 = vmatpush1.msra.mxu0 0.0
    %3299 = vmatprep.subr.mxu0 0.0
    %3300 = vmatpush1.msra.mxu0 0.0
    %3301 = vmatprep.subr.mxu0 0.0
    %3302 = vmatpush1.msra.mxu0 0.0
    %3303 = vmatprep.subr.mxu0 0.0
    %3304 = vmatpush1.msra.mxu0 0.0
    %3305 = vmatprep.subr.mxu0 0.0
    %3306 = vmatpush1.msra.mxu0 0.0
    %3307 = vmatprep.subr.mxu0 0.0
    %3308 = vmatpush1.msra.mxu0 0.0
    %3309 = vmatprep.subr.mxu0 0.0
    %3310 = vmatpush1.msra.mxu0 0.0
    %3311 = vmatprep.subr.mxu0 0.0
    %3312 = vmatpush1.msra.mxu0 0.0
    %3313 = vmatprep.subr.mxu0 0.0
    %3314 = vmatpush1.msra.mxu0 0.0
    %3315 = vmatprep.subr.mxu0 0.0
    %3316 = vmatpush1.msra.mxu0 0.0
    %3317 = vmatprep.subr.mxu0 0.0
    %3318 = vmatpush1.msra.mxu0 0.0
    %3319 = vmatprep.subr.mxu0 0.0
    %3320 = vmatpush1.msra.mxu0 0.0
    %3321 = vmatprep.subr.mxu0 0.0
    %3322 = vmatpush1.msra.mxu0 0.0
    %3323 = vmatprep.subr.mxu0 0.0
    %3324 = vmatpush1.msra.mxu0 0.0
    %3325 = vmatprep.subr.mxu0 0.0
    %3326 = vmatpush1.msra.mxu0 0.0
    %3327 = vmatprep.subr.mxu0 0.0
    %3328 = vmatpush1.msra.mxu0 0.0
    %3329 = vmatprep.subr.mxu0 0.0
    %3330 = vmatpush1.msra.mxu0 0.0
    %3331 = vmatprep.subr.mxu0 0.0
    %3332 = vmatpush1.msra.mxu0 0.0
    %3333 = vmatprep.subr.mxu0 0.0
    %3334 = vmatpush1.msra.mxu0 0.0
    %3335 = vmatprep.subr.mxu0 0.0
    %3336 = vmatpush1.msra.mxu0 0.0
    %3337 = vmatprep.subr.mxu0 0.0
    %3338 = vmatpush1.msra.mxu0 0.0
    %3339 = vmatprep.subr.mxu0 0.0
    %3340 = vmatpush1.msra.mxu0 0.0
    %3341 = vmatprep.subr.mxu0 0.0
    %3342 = vmatpush1.msra.mxu0 0.0
    %3343 = vmatprep.subr.mxu0 0.0
    %3344 = vmatpush1.msra.mxu0 0.0
    %3345 = vmatprep.subr.mxu0 0.0
    %3346 = vmatpush1.msra.mxu0 0.0
    %3347 = vmatprep.mubr.f32.mxu0 0.0
    %3348 = vmatmul.mubr.f32.gmra.mrb[0].mxu0 %v3278
    %v3349 = vpop.f32.mrb[0].mxu0
    %v3350 = vadd.f32 0.0, %v3349
    %v3351 = vpop.f32.mrb[0].mxu0
    %3352 = vmatprep.mubr.f32.mxu0 0.0
    %3353 = vmatmul.mubr.f32.gmra.mrb[0].mxu0 %v3281
    %v3354 = vpop.f32.mrb[0].mxu0
    %v3355 = vadd.f32 0.0, %v3354
    %v3356 = vpop.f32.mrb[0].mxu0
    %3357 = vdwg.mxu0
    %3360 = vrot.lane.b32.xlu0 %v1971, 112
    %v3361 = vpop.permute.xlu0 %3360
    %3362 = vrot.lane.b32.xlu0 %v1972, 112
    %v3363 = vpop.permute.xlu0 %3362
    %v3367 = vsel %vm378, %v2907, 0
    %v3370 = vsel %vm378, %v2908, 0
    %3372 = vmatprep.subr.mxu0 0.0
    %3373 = vmatpush1.msra.mxu0 %v3361
    %3374 = vmatprep.subr.mxu0 0.0
    %3375 = vmatpush1.msra.mxu0 %v3363
    %3376 = vmatprep.subr.mxu0 0.0
    %3377 = vmatpush1.msra.mxu0 0.0
    %3378 = vmatprep.subr.mxu0 0.0
    %3379 = vmatpush1.msra.mxu0 0.0
    %3380 = vmatprep.subr.mxu0 0.0
    %3381 = vmatpush1.msra.mxu0 0.0
    %3382 = vmatprep.subr.mxu0 0.0
    %3383 = vmatpush1.msra.mxu0 0.0
    %3384 = vmatprep.subr.mxu0 0.0
    %3385 = vmatpush1.msra.mxu0 0.0
    %3386 = vmatprep.subr.mxu0 0.0
    %3387 = vmatpush1.msra.mxu0 0.0
    %3388 = vmatprep.subr.mxu0 0.0
    %3389 = vmatpush1.msra.mxu0 0.0
    %3390 = vmatprep.subr.mxu0 0.0
    %3391 = vmatpush1.msra.mxu0 0.0
    %3392 = vmatprep.subr.mxu0 0.0
    %3393 = vmatpush1.msra.mxu0 0.0
    %3394 = vmatprep.subr.mxu0 0.0
    %3395 = vmatpush1.msra.mxu0 0.0
    %3396 = vmatprep.subr.mxu0 0.0
    %3397 = vmatpush1.msra.mxu0 0.0
    %3398 = vmatprep.subr.mxu0 0.0
    %3399 = vmatpush1.msra.mxu0 0.0
    %3400 = vmatprep.subr.mxu0 0.0
    %3401 = vmatpush1.msra.mxu0 0.0
    %3402 = vmatprep.subr.mxu0 0.0
    %3403 = vmatpush1.msra.mxu0 0.0
    %3404 = vmatprep.subr.mxu0 0.0
    %3405 = vmatpush1.msra.mxu0 0.0
    %3406 = vmatprep.subr.mxu0 0.0
    %3407 = vmatpush1.msra.mxu0 0.0
    %3408 = vmatprep.subr.mxu0 0.0
    %3409 = vmatpush1.msra.mxu0 0.0
    %3410 = vmatprep.subr.mxu0 0.0
    %3411 = vmatpush1.msra.mxu0 0.0
    %3412 = vmatprep.subr.mxu0 0.0
    %3413 = vmatpush1.msra.mxu0 0.0
    %3414 = vmatprep.subr.mxu0 0.0
    %3415 = vmatpush1.msra.mxu0 0.0
    %3416 = vmatprep.subr.mxu0 0.0
    %3417 = vmatpush1.msra.mxu0 0.0
    %3418 = vmatprep.subr.mxu0 0.0
    %3419 = vmatpush1.msra.mxu0 0.0
    %3420 = vmatprep.subr.mxu0 0.0
    %3421 = vmatpush1.msra.mxu0 0.0
    %3422 = vmatprep.subr.mxu0 0.0
    %3423 = vmatpush1.msra.mxu0 0.0
    %3424 = vmatprep.subr.mxu0 0.0
    %3425 = vmatpush1.msra.mxu0 0.0
    %3426 = vmatprep.subr.mxu0 0.0
    %3427 = vmatpush1.msra.mxu0 0.0
    %3428 = vmatprep.subr.mxu0 0.0
    %3429 = vmatpush1.msra.mxu0 0.0
    %3430 = vmatprep.subr.mxu0 0.0
    %3431 = vmatpush1.msra.mxu0 0.0
    %3432 = vmatprep.subr.mxu0 0.0
    %3433 = vmatpush1.msra.mxu0 0.0
    %3434 = vmatprep.subr.mxu0 0.0
    %3435 = vmatpush1.msra.mxu0 0.0
    %3436 = vmatprep.mubr.f32.mxu0 0.0
    %3437 = vmatmul.mubr.f32.gmra.mrb[0].mxu0 %v3367
    %v3438 = vpop.f32.mrb[0].mxu0
    %v3439 = vadd.f32 0.0, %v3438
    %v3440 = vpop.f32.mrb[0].mxu0
    %3441 = vmatprep.mubr.f32.mxu0 0.0
    %3442 = vmatmul.mubr.f32.gmra.mrb[0].mxu0 %v3370
    %v3443 = vpop.f32.mrb[0].mxu0
    %v3444 = vadd.f32 0.0, %v3443
    %v3445 = vpop.f32.mrb[0].mxu0
    %3446 = vdwg.mxu0
    %3449 = vrot.lane.b32.xlu0 %v1973, 112
    %v3450 = vpop.permute.xlu0 %3449
    %3451 = vrot.lane.b32.xlu0 %v1974, 112
    %v3452 = vpop.permute.xlu0 %3451
    %v3456 = vsel %vm378, %v2909, 0
    %v3459 = vsel %vm378, %v2910, 0
    %3461 = vmatprep.subr.mxu0 0.0
    %3462 = vmatpush1.msra.mxu0 %v3450
    %3463 = vmatprep.subr.mxu0 0.0
    %3464 = vmatpush1.msra.mxu0 %v3452
    %3465 = vmatprep.subr.mxu0 0.0
    %3466 = vmatpush1.msra.mxu0 0.0
    %3467 = vmatprep.subr.mxu0 0.0
    %3468 = vmatpush1.msra.mxu0 0.0
    %3469 = vmatprep.subr.mxu0 0.0
    %3470 = vmatpush1.msra.mxu0 0.0
    %3471 = vmatprep.subr.mxu0 0.0
    %3472 = vmatpush1.msra.mxu0 0.0
    %3473 = vmatprep.subr.mxu0 0.0
    %3474 = vmatpush1.msra.mxu0 0.0
    %3475 = vmatprep.subr.mxu0 0.0
    %3476 = vmatpush1.msra.mxu0 0.0
    %3477 = vmatprep.subr.mxu0 0.0
    %3478 = vmatpush1.msra.mxu0 0.0
    %3479 = vmatprep.subr.mxu0 0.0
    %3480 = vmatpush1.msra.mxu0 0.0
    %3481 = vmatprep.subr.mxu0 0.0
    %3482 = vmatpush1.msra.mxu0 0.0
    %3483 = vmatprep.subr.mxu0 0.0
    %3484 = vmatpush1.msra.mxu0 0.0
    %3485 = vmatprep.subr.mxu0 0.0
    %3486 = vmatpush1.msra.mxu0 0.0
    %3487 = vmatprep.subr.mxu0 0.0
    %3488 = vmatpush1.msra.mxu0 0.0
    %3489 = vmatprep.subr.mxu0 0.0
    %3490 = vmatpush1.msra.mxu0 0.0
    %3491 = vmatprep.subr.mxu0 0.0
    %3492 = vmatpush1.msra.mxu0 0.0
    %3493 = vmatprep.subr.mxu0 0.0
    %3494 = vmatpush1.msra.mxu0 0.0
    %3495 = vmatprep.subr.mxu0 0.0
    %3496 = vmatpush1.msra.mxu0 0.0
    %3497 = vmatprep.subr.mxu0 0.0
    %3498 = vmatpush1.msra.mxu0 0.0
    %3499 = vmatprep.subr.mxu0 0.0
    %3500 = vmatpush1.msra.mxu0 0.0
    %3501 = vmatprep.subr.mxu0 0.0
    %3502 = vmatpush1.msra.mxu0 0.0
    %3503 = vmatprep.subr.mxu0 0.0
    %3504 = vmatpush1.msra.mxu0 0.0
    %3505 = vmatprep.subr.mxu0 0.0
    %3506 = vmatpush1.msra.mxu0 0.0
    %3507 = vmatprep.subr.mxu0 0.0
    %3508 = vmatpush1.msra.mxu0 0.0
    %3509 = vmatprep.subr.mxu0 0.0
    %3510 = vmatpush1.msra.mxu0 0.0
    %3511 = vmatprep.subr.mxu0 0.0
    %3512 = vmatpush1.msra.mxu0 0.0
    %3513 = vmatprep.subr.mxu0 0.0
    %3514 = vmatpush1.msra.mxu0 0.0
    %3515 = vmatprep.subr.mxu0 0.0
    %3516 = vmatpush1.msra.mxu0 0.0
    %3517 = vmatprep.subr.mxu0 0.0
    %3518 = vmatpush1.msra.mxu0 0.0
    %3519 = vmatprep.subr.mxu0 0.0
    %3520 = vmatpush1.msra.mxu0 0.0
    %3521 = vmatprep.subr.mxu0 0.0
    %3522 = vmatpush1.msra.mxu0 0.0
    %3523 = vmatprep.subr.mxu0 0.0
    %3524 = vmatpush1.msra.mxu0 0.0
    %3525 = vmatprep.mubr.f32.mxu0 0.0
    %3526 = vmatmul.mubr.f32.gmra.mrb[0].mxu0 %v3456
    %v3527 = vpop.f32.mrb[0].mxu0
    %v3528 = vadd.f32 0.0, %v3527
    %v3529 = vpop.f32.mrb[0].mxu0
    %3530 = vmatprep.mubr.f32.mxu0 0.0
    %3531 = vmatmul.mubr.f32.gmra.mrb[0].mxu0 %v3459
    %v3532 = vpop.f32.mrb[0].mxu0
    %v3533 = vadd.f32 0.0, %v3532
    %v3534 = vpop.f32.mrb[0].mxu0
    %3535 = vdwg.mxu0
    %3538 = vrot.lane.b32.xlu0 %v1975, 112
    %v3539 = vpop.permute.xlu0 %3538
    %3540 = vrot.lane.b32.xlu0 %v1976, 112
    %v3541 = vpop.permute.xlu0 %3540
    %v3545 = vsel %vm378, %v2911, 0
    %v3548 = vsel %vm378, %v2912, 0
    %3550 = vmatprep.subr.mxu0 0.0
    %3551 = vmatpush1.msra.mxu0 %v3539
    %3552 = vmatprep.subr.mxu0 0.0
    %3553 = vmatpush1.msra.mxu0 %v3541
    %3554 = vmatprep.subr.mxu0 0.0
    %3555 = vmatpush1.msra.mxu0 0.0
    %3556 = vmatprep.subr.mxu0 0.0
    %3557 = vmatpush1.msra.mxu0 0.0
    %3558 = vmatprep.subr.mxu0 0.0
    %3559 = vmatpush1.msra.mxu0 0.0
    %3560 = vmatprep.subr.mxu0 0.0
    %3561 = vmatpush1.msra.mxu0 0.0
    %3562 = vmatprep.subr.mxu0 0.0
    %3563 = vmatpush1.msra.mxu0 0.0
    %3564 = vmatprep.subr.mxu0 0.0
    %3565 = vmatpush1.msra.mxu0 0.0
    %3566 = vmatprep.subr.mxu0 0.0
    %3567 = vmatpush1.msra.mxu0 0.0
    %3568 = vmatprep.subr.mxu0 0.0
    %3569 = vmatpush1.msra.mxu0 0.0
    %3570 = vmatprep.subr.mxu0 0.0
    %3571 = vmatpush1.msra.mxu0 0.0
    %3572 = vmatprep.subr.mxu0 0.0
    %3573 = vmatpush1.msra.mxu0 0.0
    %3574 = vmatprep.subr.mxu0 0.0
    %3575 = vmatpush1.msra.mxu0 0.0
    %3576 = vmatprep.subr.mxu0 0.0
    %3577 = vmatpush1.msra.mxu0 0.0
    %3578 = vmatprep.subr.mxu0 0.0
    %3579 = vmatpush1.msra.mxu0 0.0
    %3580 = vmatprep.subr.mxu0 0.0
    %3581 = vmatpush1.msra.mxu0 0.0
    %3582 = vmatprep.subr.mxu0 0.0
    %3583 = vmatpush1.msra.mxu0 0.0
    %3584 = vmatprep.subr.mxu0 0.0
    %3585 = vmatpush1.msra.mxu0 0.0
    %3586 = vmatprep.subr.mxu0 0.0
    %3587 = vmatpush1.msra.mxu0 0.0
    %3588 = vmatprep.subr.mxu0 0.0
    %3589 = vmatpush1.msra.mxu0 0.0
    %3590 = vmatprep.subr.mxu0 0.0
    %3591 = vmatpush1.msra.mxu0 0.0
    %3592 = vmatprep.subr.mxu0 0.0
    %3593 = vmatpush1.msra.mxu0 0.0
    %3594 = vmatprep.subr.mxu0 0.0
    %3595 = vmatpush1.msra.mxu0 0.0
    %3596 = vmatprep.subr.mxu0 0.0
    %3597 = vmatpush1.msra.mxu0 0.0
    %3598 = vmatprep.subr.mxu0 0.0
    %3599 = vmatpush1.msra.mxu0 0.0
    %3600 = vmatprep.subr.mxu0 0.0
    %3601 = vmatpush1.msra.mxu0 0.0
    %3602 = vmatprep.subr.mxu0 0.0
    %3603 = vmatpush1.msra.mxu0 0.0
    %3604 = vmatprep.subr.mxu0 0.0
    %3605 = vmatpush1.msra.mxu0 0.0
    %3606 = vmatprep.subr.mxu0 0.0
    %3607 = vmatpush1.msra.mxu0 0.0
    %3608 = vmatprep.subr.mxu0 0.0
    %3609 = vmatpush1.msra.mxu0 0.0
    %3610 = vmatprep.subr.mxu0 0.0
    %3611 = vmatpush1.msra.mxu0 0.0
    %3612 = vmatprep.subr.mxu0 0.0
    %3613 = vmatpush1.msra.mxu0 0.0
    %3614 = vmatprep.mubr.f32.mxu0 0.0
    %3615 = vmatmul.mubr.f32.gmra.mrb[0].mxu0 %v3545
    %v3616 = vpop.f32.mrb[0].mxu0
    %v3617 = vadd.f32 0.0, %v3616
    %v3618 = vpop.f32.mrb[0].mxu0
    %3619 = vmatprep.mubr.f32.mxu0 0.0
    %3620 = vmatmul.mubr.f32.gmra.mrb[0].mxu0 %v3548
    %v3621 = vpop.f32.mrb[0].mxu0
    %v3622 = vadd.f32 0.0, %v3621
    %v3623 = vpop.f32.mrb[0].mxu0
    %3624 = vdwg.mxu0
    %3641 = vrot.lane.b32.xlu0 %v2994, 16
    %v3642 = vpop.permute.xlu0 %3641
    %3643 = vrot.lane.b32.xlu0 %v2999, 16
    %v3644 = vpop.permute.xlu0 %3643
    %3645 = vrot.lane.b32.xlu0 %v3083, 16
    %v3646 = vpop.permute.xlu0 %3645
    %3647 = vrot.lane.b32.xlu0 %v3088, 16
    %v3648 = vpop.permute.xlu0 %3647
    %3649 = vrot.lane.b32.xlu0 %v3172, 16
    %v3650 = vpop.permute.xlu0 %3649
    %3651 = vrot.lane.b32.xlu0 %v3177, 16
    %v3652 = vpop.permute.xlu0 %3651
    %3653 = vrot.lane.b32.xlu0 %v3261, 16
    %v3654 = vpop.permute.xlu0 %3653
    %3655 = vrot.lane.b32.xlu0 %v3266, 16
    %v3656 = vpop.permute.xlu0 %3655
    %3657 = vrot.lane.b32.xlu0 %v3350, 16
    %v3658 = vpop.permute.xlu0 %3657
    %3659 = vrot.lane.b32.xlu0 %v3355, 16
    %v3660 = vpop.permute.xlu0 %3659
    %3661 = vrot.lane.b32.xlu0 %v3439, 16
    %v3662 = vpop.permute.xlu0 %3661
    %3663 = vrot.lane.b32.xlu0 %v3444, 16
    %v3664 = vpop.permute.xlu0 %3663
    %3665 = vrot.lane.b32.xlu0 %v3528, 16
    %v3666 = vpop.permute.xlu0 %3665
    %3667 = vrot.lane.b32.xlu0 %v3533, 16
    %v3668 = vpop.permute.xlu0 %3667
    %3669 = vrot.lane.b32.xlu0 %v3617, 16
    %v3670 = vpop.permute.xlu0 %3669
    %3671 = vrot.lane.b32.xlu0 %v3622, 16
    %v3672 = vpop.permute.xlu0 %3671
    %vm3689 = vcmask 261248
    %3690 = vst.msk [vmem:[#allocation3] sm:$0xff] %vm3689, %v3642
    %3691 = vst.msk [vmem:[#allocation3 + $0x8] sm:$0xff] %vm3689, %v3644
    %3692 = vst.msk [vmem:[#allocation3 + $0x10] sm:$0xff] %vm3689, %v3646
    %3693 = vst.msk [vmem:[#allocation3 + $0x18] sm:$0xff] %vm3689, %v3648
    %3694 = vst.msk [vmem:[#allocation3 + $0x20] sm:$0xff] %vm3689, %v3650
    %3695 = vst.msk [vmem:[#allocation3 + $0x28] sm:$0xff] %vm3689, %v3652
    %3696 = vst.msk [vmem:[#allocation3 + $0x30] sm:$0xff] %vm3689, %v3654
    %3697 = vst.msk [vmem:[#allocation3 + $0x38] sm:$0xff] %vm3689, %v3656
    %3698 = vst.msk [vmem:[#allocation3 + $0x40] sm:$0xff] %vm3689, %v3658
    %3699 = vst.msk [vmem:[#allocation3 + $0x48] sm:$0xff] %vm3689, %v3660
    %3700 = vst.msk [vmem:[#allocation3 + $0x50] sm:$0xff] %vm3689, %v3662
    %3701 = vst.msk [vmem:[#allocation3 + $0x58] sm:$0xff] %vm3689, %v3664
    %3702 = vst.msk [vmem:[#allocation3 + $0x60] sm:$0xff] %vm3689, %v3666
    %3703 = vst.msk [vmem:[#allocation3 + $0x68] sm:$0xff] %vm3689, %v3668
    %3704 = vst.msk [vmem:[#allocation3 + $0x70] sm:$0xff] %vm3689, %v3670
    %3705 = vst.msk [vmem:[#allocation3 + $0x78] sm:$0xff] %vm3689, %v3672
    %v3706 = vld [vmem:[#allocation2] sm:$0xff]
    %v3707 = vld [vmem:[#allocation2 + $0x10] sm:$0xff]
    %v3708 = vld [vmem:[#allocation2 + $0x20] sm:$0xff]
    %v3709 = vld [vmem:[#allocation2 + $0x30] sm:$0xff]
    %v3710 = vld [vmem:[#allocation2 + $0x40] sm:$0xff]
    %v3711 = vld [vmem:[#allocation2 + $0x50] sm:$0xff]
    %v3712 = vld [vmem:[#allocation2 + $0x60] sm:$0xff]
    %v3713 = vld [vmem:[#allocation2 + $0x70] sm:$0xff]
    %v3714 = vld [vmem:[#allocation2 + $0x80] sm:$0xff]
    %v3715 = vld [vmem:[#allocation2 + $0x90] sm:$0xff]
    %v3716 = vld [vmem:[#allocation2 + $0xa0] sm:$0xff]
    %v3717 = vld [vmem:[#allocation2 + $0xb0] sm:$0xff]
    %v3718 = vld [vmem:[#allocation2 + $0xc0] sm:$0xff]
    %v3719 = vld [vmem:[#allocation2 + $0xd0] sm:$0xff]
    %v3720 = vld [vmem:[#allocation2 + $0xe0] sm:$0xff]
    %v3721 = vld [vmem:[#allocation2 + $0xf0] sm:$0xff]
    %v3722 = vld [vmem:[#allocation2 + $0x8] sm:$0xff]
    %v3723 = vld [vmem:[#allocation2 + $0x18] sm:$0xff]
    %v3724 = vld [vmem:[#allocation2 + $0x28] sm:$0xff]
    %v3725 = vld [vmem:[#allocation2 + $0x38] sm:$0xff]
    %v3726 = vld [vmem:[#allocation2 + $0x48] sm:$0xff]
    %v3727 = vld [vmem:[#allocation2 + $0x58] sm:$0xff]
    %v3728 = vld [vmem:[#allocation2 + $0x68] sm:$0xff]
    %v3729 = vld [vmem:[#allocation2 + $0x78] sm:$0xff]
    %v3730 = vld [vmem:[#allocation2 + $0x88] sm:$0xff]
    %v3731 = vld [vmem:[#allocation2 + $0x98] sm:$0xff]
    %v3732 = vld [vmem:[#allocation2 + $0xa8] sm:$0xff]
    %v3733 = vld [vmem:[#allocation2 + $0xb8] sm:$0xff]
    %v3734 = vld [vmem:[#allocation2 + $0xc8] sm:$0xff]
    %v3735 = vld [vmem:[#allocation2 + $0xd8] sm:$0xff]
    %v3736 = vld [vmem:[#allocation2 + $0xe8] sm:$0xff]
    %v3737 = vld [vmem:[#allocation2 + $0xf8] sm:$0xff]
    %3740 = vrot.lane.b32.xlu0 %v3706, 96
    %v3741 = vpop.permute.xlu0 %3740
    %3742 = vrot.lane.b32.xlu0 %v3707, 96
    %v3743 = vpop.permute.xlu0 %3742
    %3744 = vrot.lane.b32.xlu0 %v3706, 32
    %v3745 = vpop.permute.xlu0 %3744
    %3746 = vrot.lane.b32.xlu0 %v3707, 32
    %v3747 = vpop.permute.xlu0 %3746
    %v3748 = vsel %vm378, %v3741, 0
    %v3750 = vsel %vm378, %v3743, 0
    %v3752 = vsel %vm378, %v3745, 0
    %v3754 = vsel %vm378, %v3747, 0
    %3756 = vmatprep.subr.mxu0 0.0
    %3757 = vmatpush1.xpose.msra.mxu0 %v3752
    %3758 = vmatprep.subr.mxu0 0.0
    %3759 = vmatpush1.xpose.msra.mxu0 %v3754
    %3760 = vmatprep.subr.mxu0 0.0
    %3761 = vmatpush1.xpose.msra.mxu0 0.0
    %3762 = vmatprep.subr.mxu0 0.0
    %3763 = vmatpush1.xpose.msra.mxu0 0.0
    %3764 = vmatprep.subr.mxu0 0.0
    %3765 = vmatpush1.xpose.msra.mxu0 0.0
    %3766 = vmatprep.subr.mxu0 0.0
    %3767 = vmatpush1.xpose.msra.mxu0 0.0
    %3768 = vmatprep.subr.mxu0 0.0
    %3769 = vmatpush1.xpose.msra.mxu0 0.0
    %3770 = vmatprep.subr.mxu0 0.0
    %3771 = vmatpush1.xpose.msra.mxu0 0.0
    %3772 = vmatprep.subr.mxu0 0.0
    %3773 = vmatpush1.xpose.msra.mxu0 0.0
    %3774 = vmatprep.subr.mxu0 0.0
    %3775 = vmatpush1.xpose.msra.mxu0 0.0
    %3776 = vmatprep.subr.mxu0 0.0
    %3777 = vmatpush1.xpose.msra.mxu0 0.0
    %3778 = vmatprep.subr.mxu0 0.0
    %3779 = vmatpush1.xpose.msra.mxu0 0.0
    %3780 = vmatprep.subr.mxu0 0.0
    %3781 = vmatpush1.xpose.msra.mxu0 0.0
    %3782 = vmatprep.subr.mxu0 0.0
    %3783 = vmatpush1.xpose.msra.mxu0 0.0
    %3784 = vmatprep.subr.mxu0 0.0
    %3785 = vmatpush1.xpose.msra.mxu0 0.0
    %3786 = vmatprep.subr.mxu0 0.0
    %3787 = vmatpush1.xpose.msra.mxu0 0.0
    %3788 = vmatprep.subr.mxu0 0.0
    %3789 = vmatpush1.xpose.msra.mxu0 0.0
    %3790 = vmatprep.subr.mxu0 0.0
    %3791 = vmatpush1.xpose.msra.mxu0 0.0
    %3792 = vmatprep.subr.mxu0 0.0
    %3793 = vmatpush1.xpose.msra.mxu0 0.0
    %3794 = vmatprep.subr.mxu0 0.0
    %3795 = vmatpush1.xpose.msra.mxu0 0.0
    %3796 = vmatprep.subr.mxu0 0.0
    %3797 = vmatpush1.xpose.msra.mxu0 0.0
    %3798 = vmatprep.subr.mxu0 0.0
    %3799 = vmatpush1.xpose.msra.mxu0 0.0
    %3800 = vmatprep.subr.mxu0 0.0
    %3801 = vmatpush1.xpose.msra.mxu0 0.0
    %3802 = vmatprep.subr.mxu0 0.0
    %3803 = vmatpush1.xpose.msra.mxu0 0.0
    %3804 = vmatprep.subr.mxu0 0.0
    %3805 = vmatpush1.xpose.msra.mxu0 0.0
    %3806 = vmatprep.subr.mxu0 0.0
    %3807 = vmatpush1.xpose.msra.mxu0 0.0
    %3808 = vmatprep.subr.mxu0 0.0
    %3809 = vmatpush1.xpose.msra.mxu0 0.0
    %3810 = vmatprep.subr.mxu0 0.0
    %3811 = vmatpush1.xpose.msra.mxu0 0.0
    %3812 = vmatprep.subr.mxu0 0.0
    %3813 = vmatpush1.xpose.msra.mxu0 0.0
    %3814 = vmatprep.subr.mxu0 0.0
    %3815 = vmatpush1.xpose.msra.mxu0 0.0
    %3816 = vmatprep.subr.mxu0 0.0
    %3817 = vmatpush1.xpose.msra.mxu0 0.0
    %3818 = vmatprep.subr.mxu0 0.0
    %3819 = vmatpush1.xpose.msra.mxu0 0.0
    %3820 = vmatprep.mubr.f32.mxu0 0.0
    %3821 = vmatmul.mubr.f32.gmra.mrb[0].mxu0 %v3748
    %v3822 = vpop.f32.mrb[0].mxu0
    %v3823 = vadd.f32 0.0, %v3822
    %v3824 = vpop.f32.mrb[0].mxu0
    %3825 = vmatprep.mubr.f32.mxu0 0.0
    %3826 = vmatmul.mubr.f32.gmra.mrb[0].mxu0 %v3750
    %v3827 = vpop.f32.mrb[0].mxu0
    %v3828 = vadd.f32 0.0, %v3827
    %v3829 = vpop.f32.mrb[0].mxu0
    %3830 = vdwg.mxu0
    %3833 = vrot.lane.b32.xlu0 %v3708, 96
    %v3834 = vpop.permute.xlu0 %3833
    %3835 = vrot.lane.b32.xlu0 %v3709, 96
    %v3836 = vpop.permute.xlu0 %3835
    %3837 = vrot.lane.b32.xlu0 %v3708, 32
    %v3838 = vpop.permute.xlu0 %3837
    %3839 = vrot.lane.b32.xlu0 %v3709, 32
    %v3840 = vpop.permute.xlu0 %3839
    %v3841 = vsel %vm378, %v3834, 0
    %v3843 = vsel %vm378, %v3836, 0
    %v3845 = vsel %vm378, %v3838, 0
    %v3847 = vsel %vm378, %v3840, 0
    %3849 = vmatprep.subr.mxu0 0.0
    %3850 = vmatpush1.xpose.msra.mxu0 %v3845
    %3851 = vmatprep.subr.mxu0 0.0
    %3852 = vmatpush1.xpose.msra.mxu0 %v3847
    %3853 = vmatprep.subr.mxu0 0.0
    %3854 = vmatpush1.xpose.msra.mxu0 0.0
    %3855 = vmatprep.subr.mxu0 0.0
    %3856 = vmatpush1.xpose.msra.mxu0 0.0
    %3857 = vmatprep.subr.mxu0 0.0
    %3858 = vmatpush1.xpose.msra.mxu0 0.0
    %3859 = vmatprep.subr.mxu0 0.0
    %3860 = vmatpush1.xpose.msra.mxu0 0.0
    %3861 = vmatprep.subr.mxu0 0.0
    %3862 = vmatpush1.xpose.msra.mxu0 0.0
    %3863 = vmatprep.subr.mxu0 0.0
    %3864 = vmatpush1.xpose.msra.mxu0 0.0
    %3865 = vmatprep.subr.mxu0 0.0
    %3866 = vmatpush1.xpose.msra.mxu0 0.0
    %3867 = vmatprep.subr.mxu0 0.0
    %3868 = vmatpush1.xpose.msra.mxu0 0.0
    %3869 = vmatprep.subr.mxu0 0.0
    %3870 = vmatpush1.xpose.msra.mxu0 0.0
    %3871 = vmatprep.subr.mxu0 0.0
    %3872 = vmatpush1.xpose.msra.mxu0 0.0
    %3873 = vmatprep.subr.mxu0 0.0
    %3874 = vmatpush1.xpose.msra.mxu0 0.0
    %3875 = vmatprep.subr.mxu0 0.0
    %3876 = vmatpush1.xpose.msra.mxu0 0.0
    %3877 = vmatprep.subr.mxu0 0.0
    %3878 = vmatpush1.xpose.msra.mxu0 0.0
    %3879 = vmatprep.subr.mxu0 0.0
    %3880 = vmatpush1.xpose.msra.mxu0 0.0
    %3881 = vmatprep.subr.mxu0 0.0
    %3882 = vmatpush1.xpose.msra.mxu0 0.0
    %3883 = vmatprep.subr.mxu0 0.0
    %3884 = vmatpush1.xpose.msra.mxu0 0.0
    %3885 = vmatprep.subr.mxu0 0.0
    %3886 = vmatpush1.xpose.msra.mxu0 0.0
    %3887 = vmatprep.subr.mxu0 0.0
    %3888 = vmatpush1.xpose.msra.mxu0 0.0
    %3889 = vmatprep.subr.mxu0 0.0
    %3890 = vmatpush1.xpose.msra.mxu0 0.0
    %3891 = vmatprep.subr.mxu0 0.0
    %3892 = vmatpush1.xpose.msra.mxu0 0.0
    %3893 = vmatprep.subr.mxu0 0.0
    %3894 = vmatpush1.xpose.msra.mxu0 0.0
    %3895 = vmatprep.subr.mxu0 0.0
    %3896 = vmatpush1.xpose.msra.mxu0 0.0
    %3897 = vmatprep.subr.mxu0 0.0
    %3898 = vmatpush1.xpose.msra.mxu0 0.0
    %3899 = vmatprep.subr.mxu0 0.0
    %3900 = vmatpush1.xpose.msra.mxu0 0.0
    %3901 = vmatprep.subr.mxu0 0.0
    %3902 = vmatpush1.xpose.msra.mxu0 0.0
    %3903 = vmatprep.subr.mxu0 0.0
    %3904 = vmatpush1.xpose.msra.mxu0 0.0
    %3905 = vmatprep.subr.mxu0 0.0
    %3906 = vmatpush1.xpose.msra.mxu0 0.0
    %3907 = vmatprep.subr.mxu0 0.0
    %3908 = vmatpush1.xpose.msra.mxu0 0.0
    %3909 = vmatprep.subr.mxu0 0.0
    %3910 = vmatpush1.xpose.msra.mxu0 0.0
    %3911 = vmatprep.subr.mxu0 0.0
    %3912 = vmatpush1.xpose.msra.mxu0 0.0
    %3913 = vmatprep.mubr.f32.mxu0 0.0
    %3914 = vmatmul.mubr.f32.gmra.mrb[0].mxu0 %v3841
    %v3915 = vpop.f32.mrb[0].mxu0
    %v3916 = vadd.f32 0.0, %v3915
    %v3917 = vpop.f32.mrb[0].mxu0
    %3918 = vmatprep.mubr.f32.mxu0 0.0
    %3919 = vmatmul.mubr.f32.gmra.mrb[0].mxu0 %v3843
    %v3920 = vpop.f32.mrb[0].mxu0
    %v3921 = vadd.f32 0.0, %v3920
    %v3922 = vpop.f32.mrb[0].mxu0
    %3923 = vdwg.mxu0
    %3926 = vrot.lane.b32.xlu0 %v3710, 96
    %v3927 = vpop.permute.xlu0 %3926
    %3928 = vrot.lane.b32.xlu0 %v3711, 96
    %v3929 = vpop.permute.xlu0 %3928
    %3930 = vrot.lane.b32.xlu0 %v3710, 32
    %v3931 = vpop.permute.xlu0 %3930
    %3932 = vrot.lane.b32.xlu0 %v3711, 32
    %v3933 = vpop.permute.xlu0 %3932
    %v3934 = vsel %vm378, %v3927, 0
    %v3936 = vsel %vm378, %v3929, 0
    %v3938 = vsel %vm378, %v3931, 0
    %v3940 = vsel %vm378, %v3933, 0
    %3942 = vmatprep.subr.mxu0 0.0
    %3943 = vmatpush1.xpose.msra.mxu0 %v3938
    %3944 = vmatprep.subr.mxu0 0.0
    %3945 = vmatpush1.xpose.msra.mxu0 %v3940
    %3946 = vmatprep.subr.mxu0 0.0
    %3947 = vmatpush1.xpose.msra.mxu0 0.0
    %3948 = vmatprep.subr.mxu0 0.0
    %3949 = vmatpush1.xpose.msra.mxu0 0.0
    %3950 = vmatprep.subr.mxu0 0.0
    %3951 = vmatpush1.xpose.msra.mxu0 0.0
    %3952 = vmatprep.subr.mxu0 0.0
    %3953 = vmatpush1.xpose.msra.mxu0 0.0
    %3954 = vmatprep.subr.mxu0 0.0
    %3955 = vmatpush1.xpose.msra.mxu0 0.0
    %3956 = vmatprep.subr.mxu0 0.0
    %3957 = vmatpush1.xpose.msra.mxu0 0.0
    %3958 = vmatprep.subr.mxu0 0.0
    %3959 = vmatpush1.xpose.msra.mxu0 0.0
    %3960 = vmatprep.subr.mxu0 0.0
    %3961 = vmatpush1.xpose.msra.mxu0 0.0
    %3962 = vmatprep.subr.mxu0 0.0
    %3963 = vmatpush1.xpose.msra.mxu0 0.0
    %3964 = vmatprep.subr.mxu0 0.0
    %3965 = vmatpush1.xpose.msra.mxu0 0.0
    %3966 = vmatprep.subr.mxu0 0.0
    %3967 = vmatpush1.xpose.msra.mxu0 0.0
    %3968 = vmatprep.subr.mxu0 0.0
    %3969 = vmatpush1.xpose.msra.mxu0 0.0
    %3970 = vmatprep.subr.mxu0 0.0
    %3971 = vmatpush1.xpose.msra.mxu0 0.0
    %3972 = vmatprep.subr.mxu0 0.0
    %3973 = vmatpush1.xpose.msra.mxu0 0.0
    %3974 = vmatprep.subr.mxu0 0.0
    %3975 = vmatpush1.xpose.msra.mxu0 0.0
    %3976 = vmatprep.subr.mxu0 0.0
    %3977 = vmatpush1.xpose.msra.mxu0 0.0
    %3978 = vmatprep.subr.mxu0 0.0
    %3979 = vmatpush1.xpose.msra.mxu0 0.0
    %3980 = vmatprep.subr.mxu0 0.0
    %3981 = vmatpush1.xpose.msra.mxu0 0.0
    %3982 = vmatprep.subr.mxu0 0.0
    %3983 = vmatpush1.xpose.msra.mxu0 0.0
    %3984 = vmatprep.subr.mxu0 0.0
    %3985 = vmatpush1.xpose.msra.mxu0 0.0
    %3986 = vmatprep.subr.mxu0 0.0
    %3987 = vmatpush1.xpose.msra.mxu0 0.0
    %3988 = vmatprep.subr.mxu0 0.0
    %3989 = vmatpush1.xpose.msra.mxu0 0.0
    %3990 = vmatprep.subr.mxu0 0.0
    %3991 = vmatpush1.xpose.msra.mxu0 0.0
    %3992 = vmatprep.subr.mxu0 0.0
    %3993 = vmatpush1.xpose.msra.mxu0 0.0
    %3994 = vmatprep.subr.mxu0 0.0
    %3995 = vmatpush1.xpose.msra.mxu0 0.0
    %3996 = vmatprep.subr.mxu0 0.0
    %3997 = vmatpush1.xpose.msra.mxu0 0.0
    %3998 = vmatprep.subr.mxu0 0.0
    %3999 = vmatpush1.xpose.msra.mxu0 0.0
    %4000 = vmatprep.subr.mxu0 0.0
    %4001 = vmatpush1.xpose.msra.mxu0 0.0
    %4002 = vmatprep.subr.mxu0 0.0
    %4003 = vmatpush1.xpose.msra.mxu0 0.0
    %4004 = vmatprep.subr.mxu0 0.0
    %4005 = vmatpush1.xpose.msra.mxu0 0.0
    %4006 = vmatprep.mubr.f32.mxu0 0.0
    %4007 = vmatmul.mubr.f32.gmra.mrb[0].mxu0 %v3934
    %v4008 = vpop.f32.mrb[0].mxu0
    %v4009 = vadd.f32 0.0, %v4008
    %v4010 = vpop.f32.mrb[0].mxu0
    %4011 = vmatprep.mubr.f32.mxu0 0.0
    %4012 = vmatmul.mubr.f32.gmra.mrb[0].mxu0 %v3936
    %v4013 = vpop.f32.mrb[0].mxu0
    %v4014 = vadd.f32 0.0, %v4013
    %v4015 = vpop.f32.mrb[0].mxu0
    %4016 = vdwg.mxu0
    %4019 = vrot.lane.b32.xlu0 %v3712, 96
    %v4020 = vpop.permute.xlu0 %4019
    %4021 = vrot.lane.b32.xlu0 %v3713, 96
    %v4022 = vpop.permute.xlu0 %4021
    %4023 = vrot.lane.b32.xlu0 %v3712, 32
    %v4024 = vpop.permute.xlu0 %4023
    %4025 = vrot.lane.b32.xlu0 %v3713, 32
    %v4026 = vpop.permute.xlu0 %4025
    %v4027 = vsel %vm378, %v4020, 0
    %v4029 = vsel %vm378, %v4022, 0
    %v4031 = vsel %vm378, %v4024, 0
    %v4033 = vsel %vm378, %v4026, 0
    %4035 = vmatprep.subr.mxu0 0.0
    %4036 = vmatpush1.xpose.msra.mxu0 %v4031
    %4037 = vmatprep.subr.mxu0 0.0
    %4038 = vmatpush1.xpose.msra.mxu0 %v4033
    %4039 = vmatprep.subr.mxu0 0.0
    %4040 = vmatpush1.xpose.msra.mxu0 0.0
    %4041 = vmatprep.subr.mxu0 0.0
    %4042 = vmatpush1.xpose.msra.mxu0 0.0
    %4043 = vmatprep.subr.mxu0 0.0
    %4044 = vmatpush1.xpose.msra.mxu0 0.0
    %4045 = vmatprep.subr.mxu0 0.0
    %4046 = vmatpush1.xpose.msra.mxu0 0.0
    %4047 = vmatprep.subr.mxu0 0.0
    %4048 = vmatpush1.xpose.msra.mxu0 0.0
    %4049 = vmatprep.subr.mxu0 0.0
    %4050 = vmatpush1.xpose.msra.mxu0 0.0
    %4051 = vmatprep.subr.mxu0 0.0
    %4052 = vmatpush1.xpose.msra.mxu0 0.0
    %4053 = vmatprep.subr.mxu0 0.0
    %4054 = vmatpush1.xpose.msra.mxu0 0.0
    %4055 = vmatprep.subr.mxu0 0.0
    %4056 = vmatpush1.xpose.msra.mxu0 0.0
    %4057 = vmatprep.subr.mxu0 0.0
    %4058 = vmatpush1.xpose.msra.mxu0 0.0
    %4059 = vmatprep.subr.mxu0 0.0
    %4060 = vmatpush1.xpose.msra.mxu0 0.0
    %4061 = vmatprep.subr.mxu0 0.0
    %4062 = vmatpush1.xpose.msra.mxu0 0.0
    %4063 = vmatprep.subr.mxu0 0.0
    %4064 = vmatpush1.xpose.msra.mxu0 0.0
    %4065 = vmatprep.subr.mxu0 0.0
    %4066 = vmatpush1.xpose.msra.mxu0 0.0
    %4067 = vmatprep.subr.mxu0 0.0
    %4068 = vmatpush1.xpose.msra.mxu0 0.0
    %4069 = vmatprep.subr.mxu0 0.0
    %4070 = vmatpush1.xpose.msra.mxu0 0.0
    %4071 = vmatprep.subr.mxu0 0.0
    %4072 = vmatpush1.xpose.msra.mxu0 0.0
    %4073 = vmatprep.subr.mxu0 0.0
    %4074 = vmatpush1.xpose.msra.mxu0 0.0
    %4075 = vmatprep.subr.mxu0 0.0
    %4076 = vmatpush1.xpose.msra.mxu0 0.0
    %4077 = vmatprep.subr.mxu0 0.0
    %4078 = vmatpush1.xpose.msra.mxu0 0.0
    %4079 = vmatprep.subr.mxu0 0.0
    %4080 = vmatpush1.xpose.msra.mxu0 0.0
    %4081 = vmatprep.subr.mxu0 0.0
    %4082 = vmatpush1.xpose.msra.mxu0 0.0
    %4083 = vmatprep.subr.mxu0 0.0
    %4084 = vmatpush1.xpose.msra.mxu0 0.0
    %4085 = vmatprep.subr.mxu0 0.0
    %4086 = vmatpush1.xpose.msra.mxu0 0.0
    %4087 = vmatprep.subr.mxu0 0.0
    %4088 = vmatpush1.xpose.msra.mxu0 0.0
    %4089 = vmatprep.subr.mxu0 0.0
    %4090 = vmatpush1.xpose.msra.mxu0 0.0
    %4091 = vmatprep.subr.mxu0 0.0
    %4092 = vmatpush1.xpose.msra.mxu0 0.0
    %4093 = vmatprep.subr.mxu0 0.0
    %4094 = vmatpush1.xpose.msra.mxu0 0.0
    %4095 = vmatprep.subr.mxu0 0.0
    %4096 = vmatpush1.xpose.msra.mxu0 0.0
    %4097 = vmatprep.subr.mxu0 0.0
    %4098 = vmatpush1.xpose.msra.mxu0 0.0
    %4099 = vmatprep.mubr.f32.mxu0 0.0
    %4100 = vmatmul.mubr.f32.gmra.mrb[0].mxu0 %v4027
    %v4101 = vpop.f32.mrb[0].mxu0
    %v4102 = vadd.f32 0.0, %v4101
    %v4103 = vpop.f32.mrb[0].mxu0
    %4104 = vmatprep.mubr.f32.mxu0 0.0
    %4105 = vmatmul.mubr.f32.gmra.mrb[0].mxu0 %v4029
    %v4106 = vpop.f32.mrb[0].mxu0
    %v4107 = vadd.f32 0.0, %v4106
    %v4108 = vpop.f32.mrb[0].mxu0
    %4109 = vdwg.mxu0
    %4112 = vrot.lane.b32.xlu0 %v3714, 96
    %v4113 = vpop.permute.xlu0 %4112
    %4114 = vrot.lane.b32.xlu0 %v3715, 96
    %v4115 = vpop.permute.xlu0 %4114
    %4116 = vrot.lane.b32.xlu0 %v3714, 32
    %v4117 = vpop.permute.xlu0 %4116
    %4118 = vrot.lane.b32.xlu0 %v3715, 32
    %v4119 = vpop.permute.xlu0 %4118
    %v4120 = vsel %vm378, %v4113, 0
    %v4122 = vsel %vm378, %v4115, 0
    %v4124 = vsel %vm378, %v4117, 0
    %v4126 = vsel %vm378, %v4119, 0
    %4128 = vmatprep.subr.mxu0 0.0
    %4129 = vmatpush1.xpose.msra.mxu0 %v4124
    %4130 = vmatprep.subr.mxu0 0.0
    %4131 = vmatpush1.xpose.msra.mxu0 %v4126
    %4132 = vmatprep.subr.mxu0 0.0
    %4133 = vmatpush1.xpose.msra.mxu0 0.0
    %4134 = vmatprep.subr.mxu0 0.0
    %4135 = vmatpush1.xpose.msra.mxu0 0.0
    %4136 = vmatprep.subr.mxu0 0.0
    %4137 = vmatpush1.xpose.msra.mxu0 0.0
    %4138 = vmatprep.subr.mxu0 0.0
    %4139 = vmatpush1.xpose.msra.mxu0 0.0
    %4140 = vmatprep.subr.mxu0 0.0
    %4141 = vmatpush1.xpose.msra.mxu0 0.0
    %4142 = vmatprep.subr.mxu0 0.0
    %4143 = vmatpush1.xpose.msra.mxu0 0.0
    %4144 = vmatprep.subr.mxu0 0.0
    %4145 = vmatpush1.xpose.msra.mxu0 0.0
    %4146 = vmatprep.subr.mxu0 0.0
    %4147 = vmatpush1.xpose.msra.mxu0 0.0
    %4148 = vmatprep.subr.mxu0 0.0
    %4149 = vmatpush1.xpose.msra.mxu0 0.0
    %4150 = vmatprep.subr.mxu0 0.0
    %4151 = vmatpush1.xpose.msra.mxu0 0.0
    %4152 = vmatprep.subr.mxu0 0.0
    %4153 = vmatpush1.xpose.msra.mxu0 0.0
    %4154 = vmatprep.subr.mxu0 0.0
    %4155 = vmatpush1.xpose.msra.mxu0 0.0
    %4156 = vmatprep.subr.mxu0 0.0
    %4157 = vmatpush1.xpose.msra.mxu0 0.0
    %4158 = vmatprep.subr.mxu0 0.0
    %4159 = vmatpush1.xpose.msra.mxu0 0.0
    %4160 = vmatprep.subr.mxu0 0.0
    %4161 = vmatpush1.xpose.msra.mxu0 0.0
    %4162 = vmatprep.subr.mxu0 0.0
    %4163 = vmatpush1.xpose.msra.mxu0 0.0
    %4164 = vmatprep.subr.mxu0 0.0
    %4165 = vmatpush1.xpose.msra.mxu0 0.0
    %4166 = vmatprep.subr.mxu0 0.0
    %4167 = vmatpush1.xpose.msra.mxu0 0.0
    %4168 = vmatprep.subr.mxu0 0.0
    %4169 = vmatpush1.xpose.msra.mxu0 0.0
    %4170 = vmatprep.subr.mxu0 0.0
    %4171 = vmatpush1.xpose.msra.mxu0 0.0
    %4172 = vmatprep.subr.mxu0 0.0
    %4173 = vmatpush1.xpose.msra.mxu0 0.0
    %4174 = vmatprep.subr.mxu0 0.0
    %4175 = vmatpush1.xpose.msra.mxu0 0.0
    %4176 = vmatprep.subr.mxu0 0.0
    %4177 = vmatpush1.xpose.msra.mxu0 0.0
    %4178 = vmatprep.subr.mxu0 0.0
    %4179 = vmatpush1.xpose.msra.mxu0 0.0
    %4180 = vmatprep.subr.mxu0 0.0
    %4181 = vmatpush1.xpose.msra.mxu0 0.0
    %4182 = vmatprep.subr.mxu0 0.0
    %4183 = vmatpush1.xpose.msra.mxu0 0.0
    %4184 = vmatprep.subr.mxu0 0.0
    %4185 = vmatpush1.xpose.msra.mxu0 0.0
    %4186 = vmatprep.subr.mxu0 0.0
    %4187 = vmatpush1.xpose.msra.mxu0 0.0
    %4188 = vmatprep.subr.mxu0 0.0
    %4189 = vmatpush1.xpose.msra.mxu0 0.0
    %4190 = vmatprep.subr.mxu0 0.0
    %4191 = vmatpush1.xpose.msra.mxu0 0.0
    %4192 = vmatprep.mubr.f32.mxu0 0.0
    %4193 = vmatmul.mubr.f32.gmra.mrb[0].mxu0 %v4120
    %v4194 = vpop.f32.mrb[0].mxu0
    %v4195 = vadd.f32 0.0, %v4194
    %v4196 = vpop.f32.mrb[0].mxu0
    %4197 = vmatprep.mubr.f32.mxu0 0.0
    %4198 = vmatmul.mubr.f32.gmra.mrb[0].mxu0 %v4122
    %v4199 = vpop.f32.mrb[0].mxu0
    %v4200 = vadd.f32 0.0, %v4199
    %v4201 = vpop.f32.mrb[0].mxu0
    %4202 = vdwg.mxu0
    %4205 = vrot.lane.b32.xlu0 %v3716, 96
    %v4206 = vpop.permute.xlu0 %4205
    %4207 = vrot.lane.b32.xlu0 %v3717, 96
    %v4208 = vpop.permute.xlu0 %4207
    %4209 = vrot.lane.b32.xlu0 %v3716, 32
    %v4210 = vpop.permute.xlu0 %4209
    %4211 = vrot.lane.b32.xlu0 %v3717, 32
    %v4212 = vpop.permute.xlu0 %4211
    %v4213 = vsel %vm378, %v4206, 0
    %v4215 = vsel %vm378, %v4208, 0
    %v4217 = vsel %vm378, %v4210, 0
    %v4219 = vsel %vm378, %v4212, 0
    %4221 = vmatprep.subr.mxu0 0.0
    %4222 = vmatpush1.xpose.msra.mxu0 %v4217
    %4223 = vmatprep.subr.mxu0 0.0
    %4224 = vmatpush1.xpose.msra.mxu0 %v4219
    %4225 = vmatprep.subr.mxu0 0.0
    %4226 = vmatpush1.xpose.msra.mxu0 0.0
    %4227 = vmatprep.subr.mxu0 0.0
    %4228 = vmatpush1.xpose.msra.mxu0 0.0
    %4229 = vmatprep.subr.mxu0 0.0
    %4230 = vmatpush1.xpose.msra.mxu0 0.0
    %4231 = vmatprep.subr.mxu0 0.0
    %4232 = vmatpush1.xpose.msra.mxu0 0.0
    %4233 = vmatprep.subr.mxu0 0.0
    %4234 = vmatpush1.xpose.msra.mxu0 0.0
    %4235 = vmatprep.subr.mxu0 0.0
    %4236 = vmatpush1.xpose.msra.mxu0 0.0
    %4237 = vmatprep.subr.mxu0 0.0
    %4238 = vmatpush1.xpose.msra.mxu0 0.0
    %4239 = vmatprep.subr.mxu0 0.0
    %4240 = vmatpush1.xpose.msra.mxu0 0.0
    %4241 = vmatprep.subr.mxu0 0.0
    %4242 = vmatpush1.xpose.msra.mxu0 0.0
    %4243 = vmatprep.subr.mxu0 0.0
    %4244 = vmatpush1.xpose.msra.mxu0 0.0
    %4245 = vmatprep.subr.mxu0 0.0
    %4246 = vmatpush1.xpose.msra.mxu0 0.0
    %4247 = vmatprep.subr.mxu0 0.0
    %4248 = vmatpush1.xpose.msra.mxu0 0.0
    %4249 = vmatprep.subr.mxu0 0.0
    %4250 = vmatpush1.xpose.msra.mxu0 0.0
    %4251 = vmatprep.subr.mxu0 0.0
    %4252 = vmatpush1.xpose.msra.mxu0 0.0
    %4253 = vmatprep.subr.mxu0 0.0
    %4254 = vmatpush1.xpose.msra.mxu0 0.0
    %4255 = vmatprep.subr.mxu0 0.0
    %4256 = vmatpush1.xpose.msra.mxu0 0.0
    %4257 = vmatprep.subr.mxu0 0.0
    %4258 = vmatpush1.xpose.msra.mxu0 0.0
    %4259 = vmatprep.subr.mxu0 0.0
    %4260 = vmatpush1.xpose.msra.mxu0 0.0
    %4261 = vmatprep.subr.mxu0 0.0
    %4262 = vmatpush1.xpose.msra.mxu0 0.0
    %4263 = vmatprep.subr.mxu0 0.0
    %4264 = vmatpush1.xpose.msra.mxu0 0.0
    %4265 = vmatprep.subr.mxu0 0.0
    %4266 = vmatpush1.xpose.msra.mxu0 0.0
    %4267 = vmatprep.subr.mxu0 0.0
    %4268 = vmatpush1.xpose.msra.mxu0 0.0
    %4269 = vmatprep.subr.mxu0 0.0
    %4270 = vmatpush1.xpose.msra.mxu0 0.0
    %4271 = vmatprep.subr.mxu0 0.0
    %4272 = vmatpush1.xpose.msra.mxu0 0.0
    %4273 = vmatprep.subr.mxu0 0.0
    %4274 = vmatpush1.xpose.msra.mxu0 0.0
    %4275 = vmatprep.subr.mxu0 0.0
    %4276 = vmatpush1.xpose.msra.mxu0 0.0
    %4277 = vmatprep.subr.mxu0 0.0
    %4278 = vmatpush1.xpose.msra.mxu0 0.0
    %4279 = vmatprep.subr.mxu0 0.0
    %4280 = vmatpush1.xpose.msra.mxu0 0.0
    %4281 = vmatprep.subr.mxu0 0.0
    %4282 = vmatpush1.xpose.msra.mxu0 0.0
    %4283 = vmatprep.subr.mxu0 0.0
    %4284 = vmatpush1.xpose.msra.mxu0 0.0
    %4285 = vmatprep.mubr.f32.mxu0 0.0
    %4286 = vmatmul.mubr.f32.gmra.mrb[0].mxu0 %v4213
    %v4287 = vpop.f32.mrb[0].mxu0
    %v4288 = vadd.f32 0.0, %v4287
    %v4289 = vpop.f32.mrb[0].mxu0
    %4290 = vmatprep.mubr.f32.mxu0 0.0
    %4291 = vmatmul.mubr.f32.gmra.mrb[0].mxu0 %v4215
    %v4292 = vpop.f32.mrb[0].mxu0
    %v4293 = vadd.f32 0.0, %v4292
    %v4294 = vpop.f32.mrb[0].mxu0
    %4295 = vdwg.mxu0
    %4298 = vrot.lane.b32.xlu0 %v3718, 96
    %v4299 = vpop.permute.xlu0 %4298
    %4300 = vrot.lane.b32.xlu0 %v3719, 96
    %v4301 = vpop.permute.xlu0 %4300
    %4302 = vrot.lane.b32.xlu0 %v3718, 32
    %v4303 = vpop.permute.xlu0 %4302
    %4304 = vrot.lane.b32.xlu0 %v3719, 32
    %v4305 = vpop.permute.xlu0 %4304
    %v4306 = vsel %vm378, %v4299, 0
    %v4308 = vsel %vm378, %v4301, 0
    %v4310 = vsel %vm378, %v4303, 0
    %v4312 = vsel %vm378, %v4305, 0
    %4314 = vmatprep.subr.mxu0 0.0
    %4315 = vmatpush1.xpose.msra.mxu0 %v4310
    %4316 = vmatprep.subr.mxu0 0.0
    %4317 = vmatpush1.xpose.msra.mxu0 %v4312
    %4318 = vmatprep.subr.mxu0 0.0
    %4319 = vmatpush1.xpose.msra.mxu0 0.0
    %4320 = vmatprep.subr.mxu0 0.0
    %4321 = vmatpush1.xpose.msra.mxu0 0.0
    %4322 = vmatprep.subr.mxu0 0.0
    %4323 = vmatpush1.xpose.msra.mxu0 0.0
    %4324 = vmatprep.subr.mxu0 0.0
    %4325 = vmatpush1.xpose.msra.mxu0 0.0
    %4326 = vmatprep.subr.mxu0 0.0
    %4327 = vmatpush1.xpose.msra.mxu0 0.0
    %4328 = vmatprep.subr.mxu0 0.0
    %4329 = vmatpush1.xpose.msra.mxu0 0.0
    %4330 = vmatprep.subr.mxu0 0.0
    %4331 = vmatpush1.xpose.msra.mxu0 0.0
    %4332 = vmatprep.subr.mxu0 0.0
    %4333 = vmatpush1.xpose.msra.mxu0 0.0
    %4334 = vmatprep.subr.mxu0 0.0
    %4335 = vmatpush1.xpose.msra.mxu0 0.0
    %4336 = vmatprep.subr.mxu0 0.0
    %4337 = vmatpush1.xpose.msra.mxu0 0.0
    %4338 = vmatprep.subr.mxu0 0.0
    %4339 = vmatpush1.xpose.msra.mxu0 0.0
    %4340 = vmatprep.subr.mxu0 0.0
    %4341 = vmatpush1.xpose.msra.mxu0 0.0
    %4342 = vmatprep.subr.mxu0 0.0
    %4343 = vmatpush1.xpose.msra.mxu0 0.0
    %4344 = vmatprep.subr.mxu0 0.0
    %4345 = vmatpush1.xpose.msra.mxu0 0.0
    %4346 = vmatprep.subr.mxu0 0.0
    %4347 = vmatpush1.xpose.msra.mxu0 0.0
    %4348 = vmatprep.subr.mxu0 0.0
    %4349 = vmatpush1.xpose.msra.mxu0 0.0
    %4350 = vmatprep.subr.mxu0 0.0
    %4351 = vmatpush1.xpose.msra.mxu0 0.0
    %4352 = vmatprep.subr.mxu0 0.0
    %4353 = vmatpush1.xpose.msra.mxu0 0.0
    %4354 = vmatprep.subr.mxu0 0.0
    %4355 = vmatpush1.xpose.msra.mxu0 0.0
    %4356 = vmatprep.subr.mxu0 0.0
    %4357 = vmatpush1.xpose.msra.mxu0 0.0
    %4358 = vmatprep.subr.mxu0 0.0
    %4359 = vmatpush1.xpose.msra.mxu0 0.0
    %4360 = vmatprep.subr.mxu0 0.0
    %4361 = vmatpush1.xpose.msra.mxu0 0.0
    %4362 = vmatprep.subr.mxu0 0.0
    %4363 = vmatpush1.xpose.msra.mxu0 0.0
    %4364 = vmatprep.subr.mxu0 0.0
    %4365 = vmatpush1.xpose.msra.mxu0 0.0
    %4366 = vmatprep.subr.mxu0 0.0
    %4367 = vmatpush1.xpose.msra.mxu0 0.0
    %4368 = vmatprep.subr.mxu0 0.0
    %4369 = vmatpush1.xpose.msra.mxu0 0.0
    %4370 = vmatprep.subr.mxu0 0.0
    %4371 = vmatpush1.xpose.msra.mxu0 0.0
    %4372 = vmatprep.subr.mxu0 0.0
    %4373 = vmatpush1.xpose.msra.mxu0 0.0
    %4374 = vmatprep.subr.mxu0 0.0
    %4375 = vmatpush1.xpose.msra.mxu0 0.0
    %4376 = vmatprep.subr.mxu0 0.0
    %4377 = vmatpush1.xpose.msra.mxu0 0.0
    %4378 = vmatprep.mubr.f32.mxu0 0.0
    %4379 = vmatmul.mubr.f32.gmra.mrb[0].mxu0 %v4306
    %v4380 = vpop.f32.mrb[0].mxu0
    %v4381 = vadd.f32 0.0, %v4380
    %v4382 = vpop.f32.mrb[0].mxu0
    %4383 = vmatprep.mubr.f32.mxu0 0.0
    %4384 = vmatmul.mubr.f32.gmra.mrb[0].mxu0 %v4308
    %v4385 = vpop.f32.mrb[0].mxu0
    %v4386 = vadd.f32 0.0, %v4385
    %v4387 = vpop.f32.mrb[0].mxu0
    %4388 = vdwg.mxu0
    %4391 = vrot.lane.b32.xlu0 %v3720, 96
    %v4392 = vpop.permute.xlu0 %4391
    %4393 = vrot.lane.b32.xlu0 %v3721, 96
    %v4394 = vpop.permute.xlu0 %4393
    %4395 = vrot.lane.b32.xlu0 %v3720, 32
    %v4396 = vpop.permute.xlu0 %4395
    %4397 = vrot.lane.b32.xlu0 %v3721, 32
    %v4398 = vpop.permute.xlu0 %4397
    %v4399 = vsel %vm378, %v4392, 0
    %v4401 = vsel %vm378, %v4394, 0
    %v4403 = vsel %vm378, %v4396, 0
    %v4405 = vsel %vm378, %v4398, 0
    %4407 = vmatprep.subr.mxu0 0.0
    %4408 = vmatpush1.xpose.msra.mxu0 %v4403
    %4409 = vmatprep.subr.mxu0 0.0
    %4410 = vmatpush1.xpose.msra.mxu0 %v4405
    %4411 = vmatprep.subr.mxu0 0.0
    %4412 = vmatpush1.xpose.msra.mxu0 0.0
    %4413 = vmatprep.subr.mxu0 0.0
    %4414 = vmatpush1.xpose.msra.mxu0 0.0
    %4415 = vmatprep.subr.mxu0 0.0
    %4416 = vmatpush1.xpose.msra.mxu0 0.0
    %4417 = vmatprep.subr.mxu0 0.0
    %4418 = vmatpush1.xpose.msra.mxu0 0.0
    %4419 = vmatprep.subr.mxu0 0.0
    %4420 = vmatpush1.xpose.msra.mxu0 0.0
    %4421 = vmatprep.subr.mxu0 0.0
    %4422 = vmatpush1.xpose.msra.mxu0 0.0
    %4423 = vmatprep.subr.mxu0 0.0
    %4424 = vmatpush1.xpose.msra.mxu0 0.0
    %4425 = vmatprep.subr.mxu0 0.0
    %4426 = vmatpush1.xpose.msra.mxu0 0.0
    %4427 = vmatprep.subr.mxu0 0.0
    %4428 = vmatpush1.xpose.msra.mxu0 0.0
    %4429 = vmatprep.subr.mxu0 0.0
    %4430 = vmatpush1.xpose.msra.mxu0 0.0
    %4431 = vmatprep.subr.mxu0 0.0
    %4432 = vmatpush1.xpose.msra.mxu0 0.0
    %4433 = vmatprep.subr.mxu0 0.0
    %4434 = vmatpush1.xpose.msra.mxu0 0.0
    %4435 = vmatprep.subr.mxu0 0.0
    %4436 = vmatpush1.xpose.msra.mxu0 0.0
    %4437 = vmatprep.subr.mxu0 0.0
    %4438 = vmatpush1.xpose.msra.mxu0 0.0
    %4439 = vmatprep.subr.mxu0 0.0
    %4440 = vmatpush1.xpose.msra.mxu0 0.0
    %4441 = vmatprep.subr.mxu0 0.0
    %4442 = vmatpush1.xpose.msra.mxu0 0.0
    %4443 = vmatprep.subr.mxu0 0.0
    %4444 = vmatpush1.xpose.msra.mxu0 0.0
    %4445 = vmatprep.subr.mxu0 0.0
    %4446 = vmatpush1.xpose.msra.mxu0 0.0
    %4447 = vmatprep.subr.mxu0 0.0
    %4448 = vmatpush1.xpose.msra.mxu0 0.0
    %4449 = vmatprep.subr.mxu0 0.0
    %4450 = vmatpush1.xpose.msra.mxu0 0.0
    %4451 = vmatprep.subr.mxu0 0.0
    %4452 = vmatpush1.xpose.msra.mxu0 0.0
    %4453 = vmatprep.subr.mxu0 0.0
    %4454 = vmatpush1.xpose.msra.mxu0 0.0
    %4455 = vmatprep.subr.mxu0 0.0
    %4456 = vmatpush1.xpose.msra.mxu0 0.0
    %4457 = vmatprep.subr.mxu0 0.0
    %4458 = vmatpush1.xpose.msra.mxu0 0.0
    %4459 = vmatprep.subr.mxu0 0.0
    %4460 = vmatpush1.xpose.msra.mxu0 0.0
    %4461 = vmatprep.subr.mxu0 0.0
    %4462 = vmatpush1.xpose.msra.mxu0 0.0
    %4463 = vmatprep.subr.mxu0 0.0
    %4464 = vmatpush1.xpose.msra.mxu0 0.0
    %4465 = vmatprep.subr.mxu0 0.0
    %4466 = vmatpush1.xpose.msra.mxu0 0.0
    %4467 = vmatprep.subr.mxu0 0.0
    %4468 = vmatpush1.xpose.msra.mxu0 0.0
    %4469 = vmatprep.subr.mxu0 0.0
    %4470 = vmatpush1.xpose.msra.mxu0 0.0
    %4471 = vmatprep.mubr.f32.mxu0 0.0
    %4472 = vmatmul.mubr.f32.gmra.mrb[0].mxu0 %v4399
    %v4473 = vpop.f32.mrb[0].mxu0
    %v4474 = vadd.f32 0.0, %v4473
    %v4475 = vpop.f32.mrb[0].mxu0
    %4476 = vmatprep.mubr.f32.mxu0 0.0
    %4477 = vmatmul.mubr.f32.gmra.mrb[0].mxu0 %v4401
    %v4478 = vpop.f32.mrb[0].mxu0
    %v4479 = vadd.f32 0.0, %v4478
    %v4480 = vpop.f32.mrb[0].mxu0
    %4481 = vdwg.mxu0
    %v4482 = vsel %vm1087, %v3823, -1.7014117e+38
    %v4483 = vsel %vm1088, %v3828, -1.7014117e+38
    %v4484 = vsel %vm1087, %v3916, -1.7014117e+38
    %v4485 = vsel %vm1088, %v3921, -1.7014117e+38
    %v4486 = vsel %vm1087, %v4009, -1.7014117e+38
    %v4487 = vsel %vm1088, %v4014, -1.7014117e+38
    %v4488 = vsel %vm1087, %v4102, -1.7014117e+38
    %v4489 = vsel %vm1088, %v4107, -1.7014117e+38
    %v4490 = vsel %vm1087, %v4195, -1.7014117e+38
    %v4491 = vsel %vm1088, %v4200, -1.7014117e+38
    %v4492 = vsel %vm1087, %v4288, -1.7014117e+38
    %v4493 = vsel %vm1088, %v4293, -1.7014117e+38
    %v4494 = vsel %vm1087, %v4381, -1.7014117e+38
    %v4495 = vsel %vm1088, %v4386, -1.7014117e+38
    %v4496 = vsel %vm1087, %v4474, -1.7014117e+38
    %v4497 = vsel %vm1088, %v4479, -1.7014117e+38
    %v4498 = vsel %vm378, %v4482, -inf
    %4499 = vmax.xlane.f32.xlu0 %v4498
    %v4500 = vpop.xlane.xlu0 %4499
    %v4501 = vsel %vm378, %v4483, -inf
    %4502 = vmax.xlane.f32.xlu0 %v4501
    %v4503 = vpop.xlane.xlu0 %4502
    %v4504 = vsel %vm378, %v4484, -inf
    %4505 = vmax.xlane.f32.xlu0 %v4504
    %v4506 = vpop.xlane.xlu0 %4505
    %v4507 = vsel %vm378, %v4485, -inf
    %4508 = vmax.xlane.f32.xlu0 %v4507
    %v4509 = vpop.xlane.xlu0 %4508
    %v4510 = vsel %vm378, %v4486, -inf
    %4511 = vmax.xlane.f32.xlu0 %v4510
    %v4512 = vpop.xlane.xlu0 %4511
    %v4513 = vsel %vm378, %v4487, -inf
    %4514 = vmax.xlane.f32.xlu0 %v4513
    %v4515 = vpop.xlane.xlu0 %4514
    %v4516 = vsel %vm378, %v4488, -inf
    %4517 = vmax.xlane.f32.xlu0 %v4516
    %v4518 = vpop.xlane.xlu0 %4517
    %v4519 = vsel %vm378, %v4489, -inf
    %4520 = vmax.xlane.f32.xlu0 %v4519
    %v4521 = vpop.xlane.xlu0 %4520
    %v4522 = vsel %vm378, %v4490, -inf
    %4523 = vmax.xlane.f32.xlu0 %v4522
    %v4524 = vpop.xlane.xlu0 %4523
    %v4525 = vsel %vm378, %v4491, -inf
    %4526 = vmax.xlane.f32.xlu0 %v4525
    %v4527 = vpop.xlane.xlu0 %4526
    %v4528 = vsel %vm378, %v4492, -inf
    %4529 = vmax.xlane.f32.xlu0 %v4528
    %v4530 = vpop.xlane.xlu0 %4529
    %v4531 = vsel %vm378, %v4493, -inf
    %4532 = vmax.xlane.f32.xlu0 %v4531
    %v4533 = vpop.xlane.xlu0 %4532
    %v4534 = vsel %vm378, %v4494, -inf
    %4535 = vmax.xlane.f32.xlu0 %v4534
    %v4536 = vpop.xlane.xlu0 %4535
    %v4537 = vsel %vm378, %v4495, -inf
    %4538 = vmax.xlane.f32.xlu0 %v4537
    %v4539 = vpop.xlane.xlu0 %4538
    %v4540 = vsel %vm378, %v4496, -inf
    %4541 = vmax.xlane.f32.xlu0 %v4540
    %v4542 = vpop.xlane.xlu0 %4541
    %v4543 = vsel %vm378, %v4497, -inf
    %4544 = vmax.xlane.f32.xlu0 %v4543
    %v4545 = vpop.xlane.xlu0 %4544
    %v4546 = vsub.f32 %v4482, %v4500
    %v4547 = vsub.f32 %v4483, %v4503
    %v4548 = vsub.f32 %v4484, %v4506
    %v4549 = vsub.f32 %v4485, %v4509
    %v4550 = vsub.f32 %v4486, %v4512
    %v4551 = vsub.f32 %v4487, %v4515
    %v4552 = vsub.f32 %v4488, %v4518
    %v4553 = vsub.f32 %v4489, %v4521
    %v4554 = vsub.f32 %v4490, %v4524
    %v4555 = vsub.f32 %v4491, %v4527
    %v4556 = vsub.f32 %v4492, %v4530
    %v4557 = vsub.f32 %v4493, %v4533
    %v4558 = vsub.f32 %v4494, %v4536
    %v4559 = vsub.f32 %v4495, %v4539
    %v4560 = vsub.f32 %v4496, %v4542
    %v4561 = vsub.f32 %v4497, %v4545
    %v4562 = vmul.f32 %v4546, 1.442695
    %v4563 = vpow.pop %v4562
    %v4564 = vmul.f32 %v4547, 1.442695
    %v4565 = vpow.pop %v4564
    %v4566 = vmul.f32 %v4548, 1.442695
    %v4567 = vpow.pop %v4566
    %v4568 = vmul.f32 %v4549, 1.442695
    %v4569 = vpow.pop %v4568
    %v4570 = vmul.f32 %v4550, 1.442695
    %v4571 = vpow.pop %v4570
    %v4572 = vmul.f32 %v4551, 1.442695
    %v4573 = vpow.pop %v4572
    %v4574 = vmul.f32 %v4552, 1.442695
    %v4575 = vpow.pop %v4574
    %v4576 = vmul.f32 %v4553, 1.442695
    %v4577 = vpow.pop %v4576
    %v4578 = vmul.f32 %v4554, 1.442695
    %v4579 = vpow.pop %v4578
    %v4580 = vmul.f32 %v4555, 1.442695
    %v4581 = vpow.pop %v4580
    %v4582 = vmul.f32 %v4556, 1.442695
    %v4583 = vpow.pop %v4582
    %v4584 = vmul.f32 %v4557, 1.442695
    %v4585 = vpow.pop %v4584
    %v4586 = vmul.f32 %v4558, 1.442695
    %v4587 = vpow.pop %v4586
    %v4588 = vmul.f32 %v4559, 1.442695
    %v4589 = vpow.pop %v4588
    %v4590 = vmul.f32 %v4560, 1.442695
    %v4591 = vpow.pop %v4590
    %v4592 = vmul.f32 %v4561, 1.442695
    %v4593 = vpow.pop %v4592
    %v4594 = vsel %vm378, %v4563, 0.0
    %4595 = vadd.xlane.f32.xlu0 %v4594
    %v4596 = vpop.xlane.xlu0 %4595
    %v4597 = vsel %vm378, %v4565, 0.0
    %4598 = vadd.xlane.f32.xlu0 %v4597
    %v4599 = vpop.xlane.xlu0 %4598
    %v4600 = vsel %vm378, %v4567, 0.0
    %4601 = vadd.xlane.f32.xlu0 %v4600
    %v4602 = vpop.xlane.xlu0 %4601
    %v4603 = vsel %vm378, %v4569, 0.0
    %4604 = vadd.xlane.f32.xlu0 %v4603
    %v4605 = vpop.xlane.xlu0 %4604
    %v4606 = vsel %vm378, %v4571, 0.0
    %4607 = vadd.xlane.f32.xlu0 %v4606
    %v4608 = vpop.xlane.xlu0 %4607
    %v4609 = vsel %vm378, %v4573, 0.0
    %4610 = vadd.xlane.f32.xlu0 %v4609
    %v4611 = vpop.xlane.xlu0 %4610
    %v4612 = vsel %vm378, %v4575, 0.0
    %4613 = vadd.xlane.f32.xlu0 %v4612
    %v4614 = vpop.xlane.xlu0 %4613
    %v4615 = vsel %vm378, %v4577, 0.0
    %4616 = vadd.xlane.f32.xlu0 %v4615
    %v4617 = vpop.xlane.xlu0 %4616
    %v4618 = vsel %vm378, %v4579, 0.0
    %4619 = vadd.xlane.f32.xlu0 %v4618
    %v4620 = vpop.xlane.xlu0 %4619
    %v4621 = vsel %vm378, %v4581, 0.0
    %4622 = vadd.xlane.f32.xlu0 %v4621
    %v4623 = vpop.xlane.xlu0 %4622
    %v4624 = vsel %vm378, %v4583, 0.0
    %4625 = vadd.xlane.f32.xlu0 %v4624
    %v4626 = vpop.xlane.xlu0 %4625
    %v4627 = vsel %vm378, %v4585, 0.0
    %4628 = vadd.xlane.f32.xlu0 %v4627
    %v4629 = vpop.xlane.xlu0 %4628
    %v4630 = vsel %vm378, %v4587, 0.0
    %4631 = vadd.xlane.f32.xlu0 %v4630
    %v4632 = vpop.xlane.xlu0 %4631
    %v4633 = vsel %vm378, %v4589, 0.0
    %4634 = vadd.xlane.f32.xlu0 %v4633
    %v4635 = vpop.xlane.xlu0 %4634
    %v4636 = vsel %vm378, %v4591, 0.0
    %4637 = vadd.xlane.f32.xlu0 %v4636
    %v4638 = vpop.xlane.xlu0 %4637
    %v4639 = vsel %vm378, %v4593, 0.0
    %4640 = vadd.xlane.f32.xlu0 %v4639
    %v4641 = vpop.xlane.xlu0 %4640
    %v4642 = vrcp.pop %v4596
    %v4643 = vrcp.pop %v4599
    %v4644 = vrcp.pop %v4602
    %v4645 = vrcp.pop %v4605
    %v4646 = vrcp.pop %v4608
    %v4647 = vrcp.pop %v4611
    %v4648 = vrcp.pop %v4614
    %v4649 = vrcp.pop %v4617
    %v4650 = vrcp.pop %v4620
    %v4651 = vrcp.pop %v4623
    %v4652 = vrcp.pop %v4626
    %v4653 = vrcp.pop %v4629
    %v4654 = vrcp.pop %v4632
    %v4655 = vrcp.pop %v4635
    %v4656 = vrcp.pop %v4638
    %v4657 = vrcp.pop %v4641
    %v4658 = vmul.f32 %v4563, %v4642
    %v4659 = vmul.f32 %v4565, %v4643
    %v4660 = vmul.f32 %v4567, %v4644
    %v4661 = vmul.f32 %v4569, %v4645
    %v4662 = vmul.f32 %v4571, %v4646
    %v4663 = vmul.f32 %v4573, %v4647
    %v4664 = vmul.f32 %v4575, %v4648
    %v4665 = vmul.f32 %v4577, %v4649
    %v4666 = vmul.f32 %v4579, %v4650
    %v4667 = vmul.f32 %v4581, %v4651
    %v4668 = vmul.f32 %v4583, %v4652
    %v4669 = vmul.f32 %v4585, %v4653
    %v4670 = vmul.f32 %v4587, %v4654
    %v4671 = vmul.f32 %v4589, %v4655
    %v4672 = vmul.f32 %v4591, %v4656
    %v4673 = vmul.f32 %v4593, %v4657
    %4676 = vrot.lane.b32.xlu0 %v3722, 96
    %v4677 = vpop.permute.xlu0 %4676
    %4678 = vrot.lane.b32.xlu0 %v3723, 96
    %v4679 = vpop.permute.xlu0 %4678
    %v4683 = vsel %vm378, %v4658, 0
    %v4686 = vsel %vm378, %v4659, 0
    %4688 = vmatprep.subr.mxu0 0.0
    %4689 = vmatpush1.msra.mxu0 %v4677
    %4690 = vmatprep.subr.mxu0 0.0
    %4691 = vmatpush1.msra.mxu0 %v4679
    %4692 = vmatprep.subr.mxu0 0.0
    %4693 = vmatpush1.msra.mxu0 0.0
    %4694 = vmatprep.subr.mxu0 0.0
    %4695 = vmatpush1.msra.mxu0 0.0
    %4696 = vmatprep.subr.mxu0 0.0
    %4697 = vmatpush1.msra.mxu0 0.0
    %4698 = vmatprep.subr.mxu0 0.0
    %4699 = vmatpush1.msra.mxu0 0.0
    %4700 = vmatprep.subr.mxu0 0.0
    %4701 = vmatpush1.msra.mxu0 0.0
    %4702 = vmatprep.subr.mxu0 0.0
    %4703 = vmatpush1.msra.mxu0 0.0
    %4704 = vmatprep.subr.mxu0 0.0
    %4705 = vmatpush1.msra.mxu0 0.0
    %4706 = vmatprep.subr.mxu0 0.0
    %4707 = vmatpush1.msra.mxu0 0.0
    %4708 = vmatprep.subr.mxu0 0.0
    %4709 = vmatpush1.msra.mxu0 0.0
    %4710 = vmatprep.subr.mxu0 0.0
    %4711 = vmatpush1.msra.mxu0 0.0
    %4712 = vmatprep.subr.mxu0 0.0
    %4713 = vmatpush1.msra.mxu0 0.0
    %4714 = vmatprep.subr.mxu0 0.0
    %4715 = vmatpush1.msra.mxu0 0.0
    %4716 = vmatprep.subr.mxu0 0.0
    %4717 = vmatpush1.msra.mxu0 0.0
    %4718 = vmatprep.subr.mxu0 0.0
    %4719 = vmatpush1.msra.mxu0 0.0
    %4720 = vmatprep.subr.mxu0 0.0
    %4721 = vmatpush1.msra.mxu0 0.0
    %4722 = vmatprep.subr.mxu0 0.0
    %4723 = vmatpush1.msra.mxu0 0.0
    %4724 = vmatprep.subr.mxu0 0.0
    %4725 = vmatpush1.msra.mxu0 0.0
    %4726 = vmatprep.subr.mxu0 0.0
    %4727 = vmatpush1.msra.mxu0 0.0
    %4728 = vmatprep.subr.mxu0 0.0
    %4729 = vmatpush1.msra.mxu0 0.0
    %4730 = vmatprep.subr.mxu0 0.0
    %4731 = vmatpush1.msra.mxu0 0.0
    %4732 = vmatprep.subr.mxu0 0.0
    %4733 = vmatpush1.msra.mxu0 0.0
    %4734 = vmatprep.subr.mxu0 0.0
    %4735 = vmatpush1.msra.mxu0 0.0
    %4736 = vmatprep.subr.mxu0 0.0
    %4737 = vmatpush1.msra.mxu0 0.0
    %4738 = vmatprep.subr.mxu0 0.0
    %4739 = vmatpush1.msra.mxu0 0.0
    %4740 = vmatprep.subr.mxu0 0.0
    %4741 = vmatpush1.msra.mxu0 0.0
    %4742 = vmatprep.subr.mxu0 0.0
    %4743 = vmatpush1.msra.mxu0 0.0
    %4744 = vmatprep.subr.mxu0 0.0
    %4745 = vmatpush1.msra.mxu0 0.0
    %4746 = vmatprep.subr.mxu0 0.0
    %4747 = vmatpush1.msra.mxu0 0.0
    %4748 = vmatprep.subr.mxu0 0.0
    %4749 = vmatpush1.msra.mxu0 0.0
    %4750 = vmatprep.subr.mxu0 0.0
    %4751 = vmatpush1.msra.mxu0 0.0
    %4752 = vmatprep.mubr.f32.mxu0 0.0
    %4753 = vmatmul.mubr.f32.gmra.mrb[0].mxu0 %v4683
    %v4754 = vpop.f32.mrb[0].mxu0
    %v4755 = vadd.f32 0.0, %v4754
    %v4756 = vpop.f32.mrb[0].mxu0
    %4757 = vmatprep.mubr.f32.mxu0 0.0
    %4758 = vmatmul.mubr.f32.gmra.mrb[0].mxu0 %v4686
    %v4759 = vpop.f32.mrb[0].mxu0
    %v4760 = vadd.f32 0.0, %v4759
    %v4761 = vpop.f32.mrb[0].mxu0
    %4762 = vdwg.mxu0
    %4765 = vrot.lane.b32.xlu0 %v3724, 96
    %v4766 = vpop.permute.xlu0 %4765
    %4767 = vrot.lane.b32.xlu0 %v3725, 96
    %v4768 = vpop.permute.xlu0 %4767
    %v4772 = vsel %vm378, %v4660, 0
    %v4775 = vsel %vm378, %v4661, 0
    %4777 = vmatprep.subr.mxu0 0.0
    %4778 = vmatpush1.msra.mxu0 %v4766
    %4779 = vmatprep.subr.mxu0 0.0
    %4780 = vmatpush1.msra.mxu0 %v4768
    %4781 = vmatprep.subr.mxu0 0.0
    %4782 = vmatpush1.msra.mxu0 0.0
    %4783 = vmatprep.subr.mxu0 0.0
    %4784 = vmatpush1.msra.mxu0 0.0
    %4785 = vmatprep.subr.mxu0 0.0
    %4786 = vmatpush1.msra.mxu0 0.0
    %4787 = vmatprep.subr.mxu0 0.0
    %4788 = vmatpush1.msra.mxu0 0.0
    %4789 = vmatprep.subr.mxu0 0.0
    %4790 = vmatpush1.msra.mxu0 0.0
    %4791 = vmatprep.subr.mxu0 0.0
    %4792 = vmatpush1.msra.mxu0 0.0
    %4793 = vmatprep.subr.mxu0 0.0
    %4794 = vmatpush1.msra.mxu0 0.0
    %4795 = vmatprep.subr.mxu0 0.0
    %4796 = vmatpush1.msra.mxu0 0.0
    %4797 = vmatprep.subr.mxu0 0.0
    %4798 = vmatpush1.msra.mxu0 0.0
    %4799 = vmatprep.subr.mxu0 0.0
    %4800 = vmatpush1.msra.mxu0 0.0
    %4801 = vmatprep.subr.mxu0 0.0
    %4802 = vmatpush1.msra.mxu0 0.0
    %4803 = vmatprep.subr.mxu0 0.0
    %4804 = vmatpush1.msra.mxu0 0.0
    %4805 = vmatprep.subr.mxu0 0.0
    %4806 = vmatpush1.msra.mxu0 0.0
    %4807 = vmatprep.subr.mxu0 0.0
    %4808 = vmatpush1.msra.mxu0 0.0
    %4809 = vmatprep.subr.mxu0 0.0
    %4810 = vmatpush1.msra.mxu0 0.0
    %4811 = vmatprep.subr.mxu0 0.0
    %4812 = vmatpush1.msra.mxu0 0.0
    %4813 = vmatprep.subr.mxu0 0.0
    %4814 = vmatpush1.msra.mxu0 0.0
    %4815 = vmatprep.subr.mxu0 0.0
    %4816 = vmatpush1.msra.mxu0 0.0
    %4817 = vmatprep.subr.mxu0 0.0
    %4818 = vmatpush1.msra.mxu0 0.0
    %4819 = vmatprep.subr.mxu0 0.0
    %4820 = vmatpush1.msra.mxu0 0.0
    %4821 = vmatprep.subr.mxu0 0.0
    %4822 = vmatpush1.msra.mxu0 0.0
    %4823 = vmatprep.subr.mxu0 0.0
    %4824 = vmatpush1.msra.mxu0 0.0
    %4825 = vmatprep.subr.mxu0 0.0
    %4826 = vmatpush1.msra.mxu0 0.0
    %4827 = vmatprep.subr.mxu0 0.0
    %4828 = vmatpush1.msra.mxu0 0.0
    %4829 = vmatprep.subr.mxu0 0.0
    %4830 = vmatpush1.msra.mxu0 0.0
    %4831 = vmatprep.subr.mxu0 0.0
    %4832 = vmatpush1.msra.mxu0 0.0
    %4833 = vmatprep.subr.mxu0 0.0
    %4834 = vmatpush1.msra.mxu0 0.0
    %4835 = vmatprep.subr.mxu0 0.0
    %4836 = vmatpush1.msra.mxu0 0.0
    %4837 = vmatprep.subr.mxu0 0.0
    %4838 = vmatpush1.msra.mxu0 0.0
    %4839 = vmatprep.subr.mxu0 0.0
    %4840 = vmatpush1.msra.mxu0 0.0
    %4841 = vmatprep.mubr.f32.mxu0 0.0
    %4842 = vmatmul.mubr.f32.gmra.mrb[0].mxu0 %v4772
    %v4843 = vpop.f32.mrb[0].mxu0
    %v4844 = vadd.f32 0.0, %v4843
    %v4845 = vpop.f32.mrb[0].mxu0
    %4846 = vmatprep.mubr.f32.mxu0 0.0
    %4847 = vmatmul.mubr.f32.gmra.mrb[0].mxu0 %v4775
    %v4848 = vpop.f32.mrb[0].mxu0
    %v4849 = vadd.f32 0.0, %v4848
    %v4850 = vpop.f32.mrb[0].mxu0
    %4851 = vdwg.mxu0
    %4854 = vrot.lane.b32.xlu0 %v3726, 96
    %v4855 = vpop.permute.xlu0 %4854
    %4856 = vrot.lane.b32.xlu0 %v3727, 96
    %v4857 = vpop.permute.xlu0 %4856
    %v4861 = vsel %vm378, %v4662, 0
    %v4864 = vsel %vm378, %v4663, 0
    %4866 = vmatprep.subr.mxu0 0.0
    %4867 = vmatpush1.msra.mxu0 %v4855
    %4868 = vmatprep.subr.mxu0 0.0
    %4869 = vmatpush1.msra.mxu0 %v4857
    %4870 = vmatprep.subr.mxu0 0.0
    %4871 = vmatpush1.msra.mxu0 0.0
    %4872 = vmatprep.subr.mxu0 0.0
    %4873 = vmatpush1.msra.mxu0 0.0
    %4874 = vmatprep.subr.mxu0 0.0
    %4875 = vmatpush1.msra.mxu0 0.0
    %4876 = vmatprep.subr.mxu0 0.0
    %4877 = vmatpush1.msra.mxu0 0.0
    %4878 = vmatprep.subr.mxu0 0.0
    %4879 = vmatpush1.msra.mxu0 0.0
    %4880 = vmatprep.subr.mxu0 0.0
    %4881 = vmatpush1.msra.mxu0 0.0
    %4882 = vmatprep.subr.mxu0 0.0
    %4883 = vmatpush1.msra.mxu0 0.0
    %4884 = vmatprep.subr.mxu0 0.0
    %4885 = vmatpush1.msra.mxu0 0.0
    %4886 = vmatprep.subr.mxu0 0.0
    %4887 = vmatpush1.msra.mxu0 0.0
    %4888 = vmatprep.subr.mxu0 0.0
    %4889 = vmatpush1.msra.mxu0 0.0
    %4890 = vmatprep.subr.mxu0 0.0
    %4891 = vmatpush1.msra.mxu0 0.0
    %4892 = vmatprep.subr.mxu0 0.0
    %4893 = vmatpush1.msra.mxu0 0.0
    %4894 = vmatprep.subr.mxu0 0.0
    %4895 = vmatpush1.msra.mxu0 0.0
    %4896 = vmatprep.subr.mxu0 0.0
    %4897 = vmatpush1.msra.mxu0 0.0
    %4898 = vmatprep.subr.mxu0 0.0
    %4899 = vmatpush1.msra.mxu0 0.0
    %4900 = vmatprep.subr.mxu0 0.0
    %4901 = vmatpush1.msra.mxu0 0.0
    %4902 = vmatprep.subr.mxu0 0.0
    %4903 = vmatpush1.msra.mxu0 0.0
    %4904 = vmatprep.subr.mxu0 0.0
    %4905 = vmatpush1.msra.mxu0 0.0
    %4906 = vmatprep.subr.mxu0 0.0
    %4907 = vmatpush1.msra.mxu0 0.0
    %4908 = vmatprep.subr.mxu0 0.0
    %4909 = vmatpush1.msra.mxu0 0.0
    %4910 = vmatprep.subr.mxu0 0.0
    %4911 = vmatpush1.msra.mxu0 0.0
    %4912 = vmatprep.subr.mxu0 0.0
    %4913 = vmatpush1.msra.mxu0 0.0
    %4914 = vmatprep.subr.mxu0 0.0
    %4915 = vmatpush1.msra.mxu0 0.0
    %4916 = vmatprep.subr.mxu0 0.0
    %4917 = vmatpush1.msra.mxu0 0.0
    %4918 = vmatprep.subr.mxu0 0.0
    %4919 = vmatpush1.msra.mxu0 0.0
    %4920 = vmatprep.subr.mxu0 0.0
    %4921 = vmatpush1.msra.mxu0 0.0
    %4922 = vmatprep.subr.mxu0 0.0
    %4923 = vmatpush1.msra.mxu0 0.0
    %4924 = vmatprep.subr.mxu0 0.0
    %4925 = vmatpush1.msra.mxu0 0.0
    %4926 = vmatprep.subr.mxu0 0.0
    %4927 = vmatpush1.msra.mxu0 0.0
    %4928 = vmatprep.subr.mxu0 0.0
    %4929 = vmatpush1.msra.mxu0 0.0
    %4930 = vmatprep.mubr.f32.mxu0 0.0
    %4931 = vmatmul.mubr.f32.gmra.mrb[0].mxu0 %v4861
    %v4932 = vpop.f32.mrb[0].mxu0
    %v4933 = vadd.f32 0.0, %v4932
    %v4934 = vpop.f32.mrb[0].mxu0
    %4935 = vmatprep.mubr.f32.mxu0 0.0
    %4936 = vmatmul.mubr.f32.gmra.mrb[0].mxu0 %v4864
    %v4937 = vpop.f32.mrb[0].mxu0
    %v4938 = vadd.f32 0.0, %v4937
    %v4939 = vpop.f32.mrb[0].mxu0
    %4940 = vdwg.mxu0
    %4943 = vrot.lane.b32.xlu0 %v3728, 96
    %v4944 = vpop.permute.xlu0 %4943
    %4945 = vrot.lane.b32.xlu0 %v3729, 96
    %v4946 = vpop.permute.xlu0 %4945
    %v4950 = vsel %vm378, %v4664, 0
    %v4953 = vsel %vm378, %v4665, 0
    %4955 = vmatprep.subr.mxu0 0.0
    %4956 = vmatpush1.msra.mxu0 %v4944
    %4957 = vmatprep.subr.mxu0 0.0
    %4958 = vmatpush1.msra.mxu0 %v4946
    %4959 = vmatprep.subr.mxu0 0.0
    %4960 = vmatpush1.msra.mxu0 0.0
    %4961 = vmatprep.subr.mxu0 0.0
    %4962 = vmatpush1.msra.mxu0 0.0
    %4963 = vmatprep.subr.mxu0 0.0
    %4964 = vmatpush1.msra.mxu0 0.0
    %4965 = vmatprep.subr.mxu0 0.0
    %4966 = vmatpush1.msra.mxu0 0.0
    %4967 = vmatprep.subr.mxu0 0.0
    %4968 = vmatpush1.msra.mxu0 0.0
    %4969 = vmatprep.subr.mxu0 0.0
    %4970 = vmatpush1.msra.mxu0 0.0
    %4971 = vmatprep.subr.mxu0 0.0
    %4972 = vmatpush1.msra.mxu0 0.0
    %4973 = vmatprep.subr.mxu0 0.0
    %4974 = vmatpush1.msra.mxu0 0.0
    %4975 = vmatprep.subr.mxu0 0.0
    %4976 = vmatpush1.msra.mxu0 0.0
    %4977 = vmatprep.subr.mxu0 0.0
    %4978 = vmatpush1.msra.mxu0 0.0
    %4979 = vmatprep.subr.mxu0 0.0
    %4980 = vmatpush1.msra.mxu0 0.0
    %4981 = vmatprep.subr.mxu0 0.0
    %4982 = vmatpush1.msra.mxu0 0.0
    %4983 = vmatprep.subr.mxu0 0.0
    %4984 = vmatpush1.msra.mxu0 0.0
    %4985 = vmatprep.subr.mxu0 0.0
    %4986 = vmatpush1.msra.mxu0 0.0
    %4987 = vmatprep.subr.mxu0 0.0
    %4988 = vmatpush1.msra.mxu0 0.0
    %4989 = vmatprep.subr.mxu0 0.0
    %4990 = vmatpush1.msra.mxu0 0.0
    %4991 = vmatprep.subr.mxu0 0.0
    %4992 = vmatpush1.msra.mxu0 0.0
    %4993 = vmatprep.subr.mxu0 0.0
    %4994 = vmatpush1.msra.mxu0 0.0
    %4995 = vmatprep.subr.mxu0 0.0
    %4996 = vmatpush1.msra.mxu0 0.0
    %4997 = vmatprep.subr.mxu0 0.0
    %4998 = vmatpush1.msra.mxu0 0.0
    %4999 = vmatprep.subr.mxu0 0.0
    %5000 = vmatpush1.msra.mxu0 0.0
    %5001 = vmatprep.subr.mxu0 0.0
    %5002 = vmatpush1.msra.mxu0 0.0
    %5003 = vmatprep.subr.mxu0 0.0
    %5004 = vmatpush1.msra.mxu0 0.0
    %5005 = vmatprep.subr.mxu0 0.0
    %5006 = vmatpush1.msra.mxu0 0.0
    %5007 = vmatprep.subr.mxu0 0.0
    %5008 = vmatpush1.msra.mxu0 0.0
    %5009 = vmatprep.subr.mxu0 0.0
    %5010 = vmatpush1.msra.mxu0 0.0
    %5011 = vmatprep.subr.mxu0 0.0
    %5012 = vmatpush1.msra.mxu0 0.0
    %5013 = vmatprep.subr.mxu0 0.0
    %5014 = vmatpush1.msra.mxu0 0.0
    %5015 = vmatprep.subr.mxu0 0.0
    %5016 = vmatpush1.msra.mxu0 0.0
    %5017 = vmatprep.subr.mxu0 0.0
    %5018 = vmatpush1.msra.mxu0 0.0
    %5019 = vmatprep.mubr.f32.mxu0 0.0
    %5020 = vmatmul.mubr.f32.gmra.mrb[0].mxu0 %v4950
    %v5021 = vpop.f32.mrb[0].mxu0
    %v5022 = vadd.f32 0.0, %v5021
    %v5023 = vpop.f32.mrb[0].mxu0
    %5024 = vmatprep.mubr.f32.mxu0 0.0
    %5025 = vmatmul.mubr.f32.gmra.mrb[0].mxu0 %v4953
    %v5026 = vpop.f32.mrb[0].mxu0
    %v5027 = vadd.f32 0.0, %v5026
    %v5028 = vpop.f32.mrb[0].mxu0
    %5029 = vdwg.mxu0
    %5032 = vrot.lane.b32.xlu0 %v3730, 96
    %v5033 = vpop.permute.xlu0 %5032
    %5034 = vrot.lane.b32.xlu0 %v3731, 96
    %v5035 = vpop.permute.xlu0 %5034
    %v5039 = vsel %vm378, %v4666, 0
    %v5042 = vsel %vm378, %v4667, 0
    %5044 = vmatprep.subr.mxu0 0.0
    %5045 = vmatpush1.msra.mxu0 %v5033
    %5046 = vmatprep.subr.mxu0 0.0
    %5047 = vmatpush1.msra.mxu0 %v5035
    %5048 = vmatprep.subr.mxu0 0.0
    %5049 = vmatpush1.msra.mxu0 0.0
    %5050 = vmatprep.subr.mxu0 0.0
    %5051 = vmatpush1.msra.mxu0 0.0
    %5052 = vmatprep.subr.mxu0 0.0
    %5053 = vmatpush1.msra.mxu0 0.0
    %5054 = vmatprep.subr.mxu0 0.0
    %5055 = vmatpush1.msra.mxu0 0.0
    %5056 = vmatprep.subr.mxu0 0.0
    %5057 = vmatpush1.msra.mxu0 0.0
    %5058 = vmatprep.subr.mxu0 0.0
    %5059 = vmatpush1.msra.mxu0 0.0
    %5060 = vmatprep.subr.mxu0 0.0
    %5061 = vmatpush1.msra.mxu0 0.0
    %5062 = vmatprep.subr.mxu0 0.0
    %5063 = vmatpush1.msra.mxu0 0.0
    %5064 = vmatprep.subr.mxu0 0.0
    %5065 = vmatpush1.msra.mxu0 0.0
    %5066 = vmatprep.subr.mxu0 0.0
    %5067 = vmatpush1.msra.mxu0 0.0
    %5068 = vmatprep.subr.mxu0 0.0
    %5069 = vmatpush1.msra.mxu0 0.0
    %5070 = vmatprep.subr.mxu0 0.0
    %5071 = vmatpush1.msra.mxu0 0.0
    %5072 = vmatprep.subr.mxu0 0.0
    %5073 = vmatpush1.msra.mxu0 0.0
    %5074 = vmatprep.subr.mxu0 0.0
    %5075 = vmatpush1.msra.mxu0 0.0
    %5076 = vmatprep.subr.mxu0 0.0
    %5077 = vmatpush1.msra.mxu0 0.0
    %5078 = vmatprep.subr.mxu0 0.0
    %5079 = vmatpush1.msra.mxu0 0.0
    %5080 = vmatprep.subr.mxu0 0.0
    %5081 = vmatpush1.msra.mxu0 0.0
    %5082 = vmatprep.subr.mxu0 0.0
    %5083 = vmatpush1.msra.mxu0 0.0
    %5084 = vmatprep.subr.mxu0 0.0
    %5085 = vmatpush1.msra.mxu0 0.0
    %5086 = vmatprep.subr.mxu0 0.0
    %5087 = vmatpush1.msra.mxu0 0.0
    %5088 = vmatprep.subr.mxu0 0.0
    %5089 = vmatpush1.msra.mxu0 0.0
    %5090 = vmatprep.subr.mxu0 0.0
    %5091 = vmatpush1.msra.mxu0 0.0
    %5092 = vmatprep.subr.mxu0 0.0
    %5093 = vmatpush1.msra.mxu0 0.0
    %5094 = vmatprep.subr.mxu0 0.0
    %5095 = vmatpush1.msra.mxu0 0.0
    %5096 = vmatprep.subr.mxu0 0.0
    %5097 = vmatpush1.msra.mxu0 0.0
    %5098 = vmatprep.subr.mxu0 0.0
    %5099 = vmatpush1.msra.mxu0 0.0
    %5100 = vmatprep.subr.mxu0 0.0
    %5101 = vmatpush1.msra.mxu0 0.0
    %5102 = vmatprep.subr.mxu0 0.0
    %5103 = vmatpush1.msra.mxu0 0.0
    %5104 = vmatprep.subr.mxu0 0.0
    %5105 = vmatpush1.msra.mxu0 0.0
    %5106 = vmatprep.subr.mxu0 0.0
    %5107 = vmatpush1.msra.mxu0 0.0
    %5108 = vmatprep.mubr.f32.mxu0 0.0
    %5109 = vmatmul.mubr.f32.gmra.mrb[0].mxu0 %v5039
    %v5110 = vpop.f32.mrb[0].mxu0
    %v5111 = vadd.f32 0.0, %v5110
    %v5112 = vpop.f32.mrb[0].mxu0
    %5113 = vmatprep.mubr.f32.mxu0 0.0
    %5114 = vmatmul.mubr.f32.gmra.mrb[0].mxu0 %v5042
    %v5115 = vpop.f32.mrb[0].mxu0
    %v5116 = vadd.f32 0.0, %v5115
    %v5117 = vpop.f32.mrb[0].mxu0
    %5118 = vdwg.mxu0
    %5121 = vrot.lane.b32.xlu0 %v3732, 96
    %v5122 = vpop.permute.xlu0 %5121
    %5123 = vrot.lane.b32.xlu0 %v3733, 96
    %v5124 = vpop.permute.xlu0 %5123
    %v5128 = vsel %vm378, %v4668, 0
    %v5131 = vsel %vm378, %v4669, 0
    %5133 = vmatprep.subr.mxu0 0.0
    %5134 = vmatpush1.msra.mxu0 %v5122
    %5135 = vmatprep.subr.mxu0 0.0
    %5136 = vmatpush1.msra.mxu0 %v5124
    %5137 = vmatprep.subr.mxu0 0.0
    %5138 = vmatpush1.msra.mxu0 0.0
    %5139 = vmatprep.subr.mxu0 0.0
    %5140 = vmatpush1.msra.mxu0 0.0
    %5141 = vmatprep.subr.mxu0 0.0
    %5142 = vmatpush1.msra.mxu0 0.0
    %5143 = vmatprep.subr.mxu0 0.0
    %5144 = vmatpush1.msra.mxu0 0.0
    %5145 = vmatprep.subr.mxu0 0.0
    %5146 = vmatpush1.msra.mxu0 0.0
    %5147 = vmatprep.subr.mxu0 0.0
    %5148 = vmatpush1.msra.mxu0 0.0
    %5149 = vmatprep.subr.mxu0 0.0
    %5150 = vmatpush1.msra.mxu0 0.0
    %5151 = vmatprep.subr.mxu0 0.0
    %5152 = vmatpush1.msra.mxu0 0.0
    %5153 = vmatprep.subr.mxu0 0.0
    %5154 = vmatpush1.msra.mxu0 0.0
    %5155 = vmatprep.subr.mxu0 0.0
    %5156 = vmatpush1.msra.mxu0 0.0
    %5157 = vmatprep.subr.mxu0 0.0
    %5158 = vmatpush1.msra.mxu0 0.0
    %5159 = vmatprep.subr.mxu0 0.0
    %5160 = vmatpush1.msra.mxu0 0.0
    %5161 = vmatprep.subr.mxu0 0.0
    %5162 = vmatpush1.msra.mxu0 0.0
    %5163 = vmatprep.subr.mxu0 0.0
    %5164 = vmatpush1.msra.mxu0 0.0
    %5165 = vmatprep.subr.mxu0 0.0
    %5166 = vmatpush1.msra.mxu0 0.0
    %5167 = vmatprep.subr.mxu0 0.0
    %5168 = vmatpush1.msra.mxu0 0.0
    %5169 = vmatprep.subr.mxu0 0.0
    %5170 = vmatpush1.msra.mxu0 0.0
    %5171 = vmatprep.subr.mxu0 0.0
    %5172 = vmatpush1.msra.mxu0 0.0
    %5173 = vmatprep.subr.mxu0 0.0
    %5174 = vmatpush1.msra.mxu0 0.0
    %5175 = vmatprep.subr.mxu0 0.0
    %5176 = vmatpush1.msra.mxu0 0.0
    %5177 = vmatprep.subr.mxu0 0.0
    %5178 = vmatpush1.msra.mxu0 0.0
    %5179 = vmatprep.subr.mxu0 0.0
    %5180 = vmatpush1.msra.mxu0 0.0
    %5181 = vmatprep.subr.mxu0 0.0
    %5182 = vmatpush1.msra.mxu0 0.0
    %5183 = vmatprep.subr.mxu0 0.0
    %5184 = vmatpush1.msra.mxu0 0.0
    %5185 = vmatprep.subr.mxu0 0.0
    %5186 = vmatpush1.msra.mxu0 0.0
    %5187 = vmatprep.subr.mxu0 0.0
    %5188 = vmatpush1.msra.mxu0 0.0
    %5189 = vmatprep.subr.mxu0 0.0
    %5190 = vmatpush1.msra.mxu0 0.0
    %5191 = vmatprep.subr.mxu0 0.0
    %5192 = vmatpush1.msra.mxu0 0.0
    %5193 = vmatprep.subr.mxu0 0.0
    %5194 = vmatpush1.msra.mxu0 0.0
    %5195 = vmatprep.subr.mxu0 0.0
    %5196 = vmatpush1.msra.mxu0 0.0
    %5197 = vmatprep.mubr.f32.mxu0 0.0
    %5198 = vmatmul.mubr.f32.gmra.mrb[0].mxu0 %v5128
    %v5199 = vpop.f32.mrb[0].mxu0
    %v5200 = vadd.f32 0.0, %v5199
    %v5201 = vpop.f32.mrb[0].mxu0
    %5202 = vmatprep.mubr.f32.mxu0 0.0
    %5203 = vmatmul.mubr.f32.gmra.mrb[0].mxu0 %v5131
    %v5204 = vpop.f32.mrb[0].mxu0
    %v5205 = vadd.f32 0.0, %v5204
    %v5206 = vpop.f32.mrb[0].mxu0
    %5207 = vdwg.mxu0
    %5210 = vrot.lane.b32.xlu0 %v3734, 96
    %v5211 = vpop.permute.xlu0 %5210
    %5212 = vrot.lane.b32.xlu0 %v3735, 96
    %v5213 = vpop.permute.xlu0 %5212
    %v5217 = vsel %vm378, %v4670, 0
    %v5220 = vsel %vm378, %v4671, 0
    %5222 = vmatprep.subr.mxu0 0.0
    %5223 = vmatpush1.msra.mxu0 %v5211
    %5224 = vmatprep.subr.mxu0 0.0
    %5225 = vmatpush1.msra.mxu0 %v5213
    %5226 = vmatprep.subr.mxu0 0.0
    %5227 = vmatpush1.msra.mxu0 0.0
    %5228 = vmatprep.subr.mxu0 0.0
    %5229 = vmatpush1.msra.mxu0 0.0
    %5230 = vmatprep.subr.mxu0 0.0
    %5231 = vmatpush1.msra.mxu0 0.0
    %5232 = vmatprep.subr.mxu0 0.0
    %5233 = vmatpush1.msra.mxu0 0.0
    %5234 = vmatprep.subr.mxu0 0.0
    %5235 = vmatpush1.msra.mxu0 0.0
    %5236 = vmatprep.subr.mxu0 0.0
    %5237 = vmatpush1.msra.mxu0 0.0
    %5238 = vmatprep.subr.mxu0 0.0
    %5239 = vmatpush1.msra.mxu0 0.0
    %5240 = vmatprep.subr.mxu0 0.0
    %5241 = vmatpush1.msra.mxu0 0.0
    %5242 = vmatprep.subr.mxu0 0.0
    %5243 = vmatpush1.msra.mxu0 0.0
    %5244 = vmatprep.subr.mxu0 0.0
    %5245 = vmatpush1.msra.mxu0 0.0
    %5246 = vmatprep.subr.mxu0 0.0
    %5247 = vmatpush1.msra.mxu0 0.0
    %5248 = vmatprep.subr.mxu0 0.0
    %5249 = vmatpush1.msra.mxu0 0.0
    %5250 = vmatprep.subr.mxu0 0.0
    %5251 = vmatpush1.msra.mxu0 0.0
    %5252 = vmatprep.subr.mxu0 0.0
    %5253 = vmatpush1.msra.mxu0 0.0
    %5254 = vmatprep.subr.mxu0 0.0
    %5255 = vmatpush1.msra.mxu0 0.0
    %5256 = vmatprep.subr.mxu0 0.0
    %5257 = vmatpush1.msra.mxu0 0.0
    %5258 = vmatprep.subr.mxu0 0.0
    %5259 = vmatpush1.msra.mxu0 0.0
    %5260 = vmatprep.subr.mxu0 0.0
    %5261 = vmatpush1.msra.mxu0 0.0
    %5262 = vmatprep.subr.mxu0 0.0
    %5263 = vmatpush1.msra.mxu0 0.0
    %5264 = vmatprep.subr.mxu0 0.0
    %5265 = vmatpush1.msra.mxu0 0.0
    %5266 = vmatprep.subr.mxu0 0.0
    %5267 = vmatpush1.msra.mxu0 0.0
    %5268 = vmatprep.subr.mxu0 0.0
    %5269 = vmatpush1.msra.mxu0 0.0
    %5270 = vmatprep.subr.mxu0 0.0
    %5271 = vmatpush1.msra.mxu0 0.0
    %5272 = vmatprep.subr.mxu0 0.0
    %5273 = vmatpush1.msra.mxu0 0.0
    %5274 = vmatprep.subr.mxu0 0.0
    %5275 = vmatpush1.msra.mxu0 0.0
    %5276 = vmatprep.subr.mxu0 0.0
    %5277 = vmatpush1.msra.mxu0 0.0
    %5278 = vmatprep.subr.mxu0 0.0
    %5279 = vmatpush1.msra.mxu0 0.0
    %5280 = vmatprep.subr.mxu0 0.0
    %5281 = vmatpush1.msra.mxu0 0.0
    %5282 = vmatprep.subr.mxu0 0.0
    %5283 = vmatpush1.msra.mxu0 0.0
    %5284 = vmatprep.subr.mxu0 0.0
    %5285 = vmatpush1.msra.mxu0 0.0
    %5286 = vmatprep.mubr.f32.mxu0 0.0
    %5287 = vmatmul.mubr.f32.gmra.mrb[0].mxu0 %v5217
    %v5288 = vpop.f32.mrb[0].mxu0
    %v5289 = vadd.f32 0.0, %v5288
    %v5290 = vpop.f32.mrb[0].mxu0
    %5291 = vmatprep.mubr.f32.mxu0 0.0
    %5292 = vmatmul.mubr.f32.gmra.mrb[0].mxu0 %v5220
    %v5293 = vpop.f32.mrb[0].mxu0
    %v5294 = vadd.f32 0.0, %v5293
    %v5295 = vpop.f32.mrb[0].mxu0
    %5296 = vdwg.mxu0
    %5299 = vrot.lane.b32.xlu0 %v3736, 96
    %v5300 = vpop.permute.xlu0 %5299
    %5301 = vrot.lane.b32.xlu0 %v3737, 96
    %v5302 = vpop.permute.xlu0 %5301
    %v5306 = vsel %vm378, %v4672, 0
    %v5309 = vsel %vm378, %v4673, 0
    %5311 = vmatprep.subr.mxu0 0.0
    %5312 = vmatpush1.msra.mxu0 %v5300
    %5313 = vmatprep.subr.mxu0 0.0
    %5314 = vmatpush1.msra.mxu0 %v5302
    %5315 = vmatprep.subr.mxu0 0.0
    %5316 = vmatpush1.msra.mxu0 0.0
    %5317 = vmatprep.subr.mxu0 0.0
    %5318 = vmatpush1.msra.mxu0 0.0
    %5319 = vmatprep.subr.mxu0 0.0
    %5320 = vmatpush1.msra.mxu0 0.0
    %5321 = vmatprep.subr.mxu0 0.0
    %5322 = vmatpush1.msra.mxu0 0.0
    %5323 = vmatprep.subr.mxu0 0.0
    %5324 = vmatpush1.msra.mxu0 0.0
    %5325 = vmatprep.subr.mxu0 0.0
    %5326 = vmatpush1.msra.mxu0 0.0
    %5327 = vmatprep.subr.mxu0 0.0
    %5328 = vmatpush1.msra.mxu0 0.0
    %5329 = vmatprep.subr.mxu0 0.0
    %5330 = vmatpush1.msra.mxu0 0.0
    %5331 = vmatprep.subr.mxu0 0.0
    %5332 = vmatpush1.msra.mxu0 0.0
    %5333 = vmatprep.subr.mxu0 0.0
    %5334 = vmatpush1.msra.mxu0 0.0
    %5335 = vmatprep.subr.mxu0 0.0
    %5336 = vmatpush1.msra.mxu0 0.0
    %5337 = vmatprep.subr.mxu0 0.0
    %5338 = vmatpush1.msra.mxu0 0.0
    %5339 = vmatprep.subr.mxu0 0.0
    %5340 = vmatpush1.msra.mxu0 0.0
    %5341 = vmatprep.subr.mxu0 0.0
    %5342 = vmatpush1.msra.mxu0 0.0
    %5343 = vmatprep.subr.mxu0 0.0
    %5344 = vmatpush1.msra.mxu0 0.0
    %5345 = vmatprep.subr.mxu0 0.0
    %5346 = vmatpush1.msra.mxu0 0.0
    %5347 = vmatprep.subr.mxu0 0.0
    %5348 = vmatpush1.msra.mxu0 0.0
    %5349 = vmatprep.subr.mxu0 0.0
    %5350 = vmatpush1.msra.mxu0 0.0
    %5351 = vmatprep.subr.mxu0 0.0
    %5352 = vmatpush1.msra.mxu0 0.0
    %5353 = vmatprep.subr.mxu0 0.0
    %5354 = vmatpush1.msra.mxu0 0.0
    %5355 = vmatprep.subr.mxu0 0.0
    %5356 = vmatpush1.msra.mxu0 0.0
    %5357 = vmatprep.subr.mxu0 0.0
    %5358 = vmatpush1.msra.mxu0 0.0
    %5359 = vmatprep.subr.mxu0 0.0
    %5360 = vmatpush1.msra.mxu0 0.0
    %5361 = vmatprep.subr.mxu0 0.0
    %5362 = vmatpush1.msra.mxu0 0.0
    %5363 = vmatprep.subr.mxu0 0.0
    %5364 = vmatpush1.msra.mxu0 0.0
    %5365 = vmatprep.subr.mxu0 0.0
    %5366 = vmatpush1.msra.mxu0 0.0
    %5367 = vmatprep.subr.mxu0 0.0
    %5368 = vmatpush1.msra.mxu0 0.0
    %5369 = vmatprep.subr.mxu0 0.0
    %5370 = vmatpush1.msra.mxu0 0.0
    %5371 = vmatprep.subr.mxu0 0.0
    %5372 = vmatpush1.msra.mxu0 0.0
    %5373 = vmatprep.subr.mxu0 0.0
    %5374 = vmatpush1.msra.mxu0 0.0
    %5375 = vmatprep.mubr.f32.mxu0 0.0
    %5376 = vmatmul.mubr.f32.gmra.mrb[0].mxu0 %v5306
    %v5377 = vpop.f32.mrb[0].mxu0
    %v5378 = vadd.f32 0.0, %v5377
    %v5379 = vpop.f32.mrb[0].mxu0
    %5380 = vmatprep.mubr.f32.mxu0 0.0
    %5381 = vmatmul.mubr.f32.gmra.mrb[0].mxu0 %v5309
    %v5382 = vpop.f32.mrb[0].mxu0
    %v5383 = vadd.f32 0.0, %v5382
    %v5384 = vpop.f32.mrb[0].mxu0
    %5385 = vdwg.mxu0
    %5402 = vrot.lane.b32.xlu0 %v4755, 32
    %v5403 = vpop.permute.xlu0 %5402
    %5404 = vrot.lane.b32.xlu0 %v4760, 32
    %v5405 = vpop.permute.xlu0 %5404
    %5406 = vrot.lane.b32.xlu0 %v4844, 32
    %v5407 = vpop.permute.xlu0 %5406
    %5408 = vrot.lane.b32.xlu0 %v4849, 32
    %v5409 = vpop.permute.xlu0 %5408
    %5410 = vrot.lane.b32.xlu0 %v4933, 32
    %v5411 = vpop.permute.xlu0 %5410
    %5412 = vrot.lane.b32.xlu0 %v4938, 32
    %v5413 = vpop.permute.xlu0 %5412
    %5414 = vrot.lane.b32.xlu0 %v5022, 32
    %v5415 = vpop.permute.xlu0 %5414
    %5416 = vrot.lane.b32.xlu0 %v5027, 32
    %v5417 = vpop.permute.xlu0 %5416
    %5418 = vrot.lane.b32.xlu0 %v5111, 32
    %v5419 = vpop.permute.xlu0 %5418
    %5420 = vrot.lane.b32.xlu0 %v5116, 32
    %v5421 = vpop.permute.xlu0 %5420
    %5422 = vrot.lane.b32.xlu0 %v5200, 32
    %v5423 = vpop.permute.xlu0 %5422
    %5424 = vrot.lane.b32.xlu0 %v5205, 32
    %v5425 = vpop.permute.xlu0 %5424
    %5426 = vrot.lane.b32.xlu0 %v5289, 32
    %v5427 = vpop.permute.xlu0 %5426
    %5428 = vrot.lane.b32.xlu0 %v5294, 32
    %v5429 = vpop.permute.xlu0 %5428
    %5430 = vrot.lane.b32.xlu0 %v5378, 32
    %v5431 = vpop.permute.xlu0 %5430
    %5432 = vrot.lane.b32.xlu0 %v5383, 32
    %v5433 = vpop.permute.xlu0 %5432
    %vm5450 = vcmask 392448
    %5451 = vst.msk [vmem:[#allocation3] sm:$0xff] %vm5450, %v5403
    %5452 = vst.msk [vmem:[#allocation3 + $0x8] sm:$0xff] %vm5450, %v5405
    %5453 = vst.msk [vmem:[#allocation3 + $0x10] sm:$0xff] %vm5450, %v5407
    %5454 = vst.msk [vmem:[#allocation3 + $0x18] sm:$0xff] %vm5450, %v5409
    %5455 = vst.msk [vmem:[#allocation3 + $0x20] sm:$0xff] %vm5450, %v5411
    %5456 = vst.msk [vmem:[#allocation3 + $0x28] sm:$0xff] %vm5450, %v5413
    %5457 = vst.msk [vmem:[#allocation3 + $0x30] sm:$0xff] %vm5450, %v5415
    %5458 = vst.msk [vmem:[#allocation3 + $0x38] sm:$0xff] %vm5450, %v5417
    %5459 = vst.msk [vmem:[#allocation3 + $0x40] sm:$0xff] %vm5450, %v5419
    %5460 = vst.msk [vmem:[#allocation3 + $0x48] sm:$0xff] %vm5450, %v5421
    %5461 = vst.msk [vmem:[#allocation3 + $0x50] sm:$0xff] %vm5450, %v5423
    %5462 = vst.msk [vmem:[#allocation3 + $0x58] sm:$0xff] %vm5450, %v5425
    %5463 = vst.msk [vmem:[#allocation3 + $0x60] sm:$0xff] %vm5450, %v5427
    %5464 = vst.msk [vmem:[#allocation3 + $0x68] sm:$0xff] %vm5450, %v5429
    %5465 = vst.msk [vmem:[#allocation3 + $0x70] sm:$0xff] %vm5450, %v5431
    %5466 = vst.msk [vmem:[#allocation3 + $0x78] sm:$0xff] %vm5450, %v5433
    %v5467 = vld [vmem:[#allocation2] sm:$0xff]
    %v5468 = vld [vmem:[#allocation2 + $0x10] sm:$0xff]
    %v5469 = vld [vmem:[#allocation2 + $0x20] sm:$0xff]
    %v5470 = vld [vmem:[#allocation2 + $0x30] sm:$0xff]
    %v5471 = vld [vmem:[#allocation2 + $0x40] sm:$0xff]
    %v5472 = vld [vmem:[#allocation2 + $0x50] sm:$0xff]
    %v5473 = vld [vmem:[#allocation2 + $0x60] sm:$0xff]
    %v5474 = vld [vmem:[#allocation2 + $0x70] sm:$0xff]
    %v5475 = vld [vmem:[#allocation2 + $0x80] sm:$0xff]
    %v5476 = vld [vmem:[#allocation2 + $0x90] sm:$0xff]
    %v5477 = vld [vmem:[#allocation2 + $0xa0] sm:$0xff]
    %v5478 = vld [vmem:[#allocation2 + $0xb0] sm:$0xff]
    %v5479 = vld [vmem:[#allocation2 + $0xc0] sm:$0xff]
    %v5480 = vld [vmem:[#allocation2 + $0xd0] sm:$0xff]
    %v5481 = vld [vmem:[#allocation2 + $0xe0] sm:$0xff]
    %v5482 = vld [vmem:[#allocation2 + $0xf0] sm:$0xff]
    %v5483 = vld [vmem:[#allocation2 + $0x8] sm:$0xff]
    %v5484 = vld [vmem:[#allocation2 + $0x18] sm:$0xff]
    %v5485 = vld [vmem:[#allocation2 + $0x28] sm:$0xff]
    %v5486 = vld [vmem:[#allocation2 + $0x38] sm:$0xff]
    %v5487 = vld [vmem:[#allocation2 + $0x48] sm:$0xff]
    %v5488 = vld [vmem:[#allocation2 + $0x58] sm:$0xff]
    %v5489 = vld [vmem:[#allocation2 + $0x68] sm:$0xff]
    %v5490 = vld [vmem:[#allocation2 + $0x78] sm:$0xff]
    %v5491 = vld [vmem:[#allocation2 + $0x88] sm:$0xff]
    %v5492 = vld [vmem:[#allocation2 + $0x98] sm:$0xff]
    %v5493 = vld [vmem:[#allocation2 + $0xa8] sm:$0xff]
    %v5494 = vld [vmem:[#allocation2 + $0xb8] sm:$0xff]
    %v5495 = vld [vmem:[#allocation2 + $0xc8] sm:$0xff]
    %v5496 = vld [vmem:[#allocation2 + $0xd8] sm:$0xff]
    %v5497 = vld [vmem:[#allocation2 + $0xe8] sm:$0xff]
    %v5498 = vld [vmem:[#allocation2 + $0xf8] sm:$0xff]
    %5501 = vrot.lane.b32.xlu0 %v5467, 80
    %v5502 = vpop.permute.xlu0 %5501
    %5503 = vrot.lane.b32.xlu0 %v5468, 80
    %v5504 = vpop.permute.xlu0 %5503
    %5505 = vrot.lane.b32.xlu0 %v5467, 16
    %v5506 = vpop.permute.xlu0 %5505
    %5507 = vrot.lane.b32.xlu0 %v5468, 16
    %v5508 = vpop.permute.xlu0 %5507
    %v5509 = vsel %vm378, %v5502, 0
    %v5511 = vsel %vm378, %v5504, 0
    %v5513 = vsel %vm378, %v5506, 0
    %v5515 = vsel %vm378, %v5508, 0
    %5517 = vmatprep.subr.mxu0 0.0
    %5518 = vmatpush1.xpose.msra.mxu0 %v5513
    %5519 = vmatprep.subr.mxu0 0.0
    %5520 = vmatpush1.xpose.msra.mxu0 %v5515
    %5521 = vmatprep.subr.mxu0 0.0
    %5522 = vmatpush1.xpose.msra.mxu0 0.0
    %5523 = vmatprep.subr.mxu0 0.0
    %5524 = vmatpush1.xpose.msra.mxu0 0.0
    %5525 = vmatprep.subr.mxu0 0.0
    %5526 = vmatpush1.xpose.msra.mxu0 0.0
    %5527 = vmatprep.subr.mxu0 0.0
    %5528 = vmatpush1.xpose.msra.mxu0 0.0
    %5529 = vmatprep.subr.mxu0 0.0
    %5530 = vmatpush1.xpose.msra.mxu0 0.0
    %5531 = vmatprep.subr.mxu0 0.0
    %5532 = vmatpush1.xpose.msra.mxu0 0.0
    %5533 = vmatprep.subr.mxu0 0.0
    %5534 = vmatpush1.xpose.msra.mxu0 0.0
    %5535 = vmatprep.subr.mxu0 0.0
    %5536 = vmatpush1.xpose.msra.mxu0 0.0
    %5537 = vmatprep.subr.mxu0 0.0
    %5538 = vmatpush1.xpose.msra.mxu0 0.0
    %5539 = vmatprep.subr.mxu0 0.0
    %5540 = vmatpush1.xpose.msra.mxu0 0.0
    %5541 = vmatprep.subr.mxu0 0.0
    %5542 = vmatpush1.xpose.msra.mxu0 0.0
    %5543 = vmatprep.subr.mxu0 0.0
    %5544 = vmatpush1.xpose.msra.mxu0 0.0
    %5545 = vmatprep.subr.mxu0 0.0
    %5546 = vmatpush1.xpose.msra.mxu0 0.0
    %5547 = vmatprep.subr.mxu0 0.0
    %5548 = vmatpush1.xpose.msra.mxu0 0.0
    %5549 = vmatprep.subr.mxu0 0.0
    %5550 = vmatpush1.xpose.msra.mxu0 0.0
    %5551 = vmatprep.subr.mxu0 0.0
    %5552 = vmatpush1.xpose.msra.mxu0 0.0
    %5553 = vmatprep.subr.mxu0 0.0
    %5554 = vmatpush1.xpose.msra.mxu0 0.0
    %5555 = vmatprep.subr.mxu0 0.0
    %5556 = vmatpush1.xpose.msra.mxu0 0.0
    %5557 = vmatprep.subr.mxu0 0.0
    %5558 = vmatpush1.xpose.msra.mxu0 0.0
    %5559 = vmatprep.subr.mxu0 0.0
    %5560 = vmatpush1.xpose.msra.mxu0 0.0
    %5561 = vmatprep.subr.mxu0 0.0
    %5562 = vmatpush1.xpose.msra.mxu0 0.0
    %5563 = vmatprep.subr.mxu0 0.0
    %5564 = vmatpush1.xpose.msra.mxu0 0.0
    %5565 = vmatprep.subr.mxu0 0.0
    %5566 = vmatpush1.xpose.msra.mxu0 0.0
    %5567 = vmatprep.subr.mxu0 0.0
    %5568 = vmatpush1.xpose.msra.mxu0 0.0
    %5569 = vmatprep.subr.mxu0 0.0
    %5570 = vmatpush1.xpose.msra.mxu0 0.0
    %5571 = vmatprep.subr.mxu0 0.0
    %5572 = vmatpush1.xpose.msra.mxu0 0.0
    %5573 = vmatprep.subr.mxu0 0.0
    %5574 = vmatpush1.xpose.msra.mxu0 0.0
    %5575 = vmatprep.subr.mxu0 0.0
    %5576 = vmatpush1.xpose.msra.mxu0 0.0
    %5577 = vmatprep.subr.mxu0 0.0
    %5578 = vmatpush1.xpose.msra.mxu0 0.0
    %5579 = vmatprep.subr.mxu0 0.0
    %5580 = vmatpush1.xpose.msra.mxu0 0.0
    %5581 = vmatprep.mubr.f32.mxu0 0.0
    %5582 = vmatmul.mubr.f32.gmra.mrb[0].mxu0 %v5509
    %v5583 = vpop.f32.mrb[0].mxu0
    %v5584 = vadd.f32 0.0, %v5583
    %v5585 = vpop.f32.mrb[0].mxu0
    %5586 = vmatprep.mubr.f32.mxu0 0.0
    %5587 = vmatmul.mubr.f32.gmra.mrb[0].mxu0 %v5511
    %v5588 = vpop.f32.mrb[0].mxu0
    %v5589 = vadd.f32 0.0, %v5588
    %v5590 = vpop.f32.mrb[0].mxu0
    %5591 = vdwg.mxu0
    %5594 = vrot.lane.b32.xlu0 %v5469, 80
    %v5595 = vpop.permute.xlu0 %5594
    %5596 = vrot.lane.b32.xlu0 %v5470, 80
    %v5597 = vpop.permute.xlu0 %5596
    %5598 = vrot.lane.b32.xlu0 %v5469, 16
    %v5599 = vpop.permute.xlu0 %5598
    %5600 = vrot.lane.b32.xlu0 %v5470, 16
    %v5601 = vpop.permute.xlu0 %5600
    %v5602 = vsel %vm378, %v5595, 0
    %v5604 = vsel %vm378, %v5597, 0
    %v5606 = vsel %vm378, %v5599, 0
    %v5608 = vsel %vm378, %v5601, 0
    %5610 = vmatprep.subr.mxu0 0.0
    %5611 = vmatpush1.xpose.msra.mxu0 %v5606
    %5612 = vmatprep.subr.mxu0 0.0
    %5613 = vmatpush1.xpose.msra.mxu0 %v5608
    %5614 = vmatprep.subr.mxu0 0.0
    %5615 = vmatpush1.xpose.msra.mxu0 0.0
    %5616 = vmatprep.subr.mxu0 0.0
    %5617 = vmatpush1.xpose.msra.mxu0 0.0
    %5618 = vmatprep.subr.mxu0 0.0
    %5619 = vmatpush1.xpose.msra.mxu0 0.0
    %5620 = vmatprep.subr.mxu0 0.0
    %5621 = vmatpush1.xpose.msra.mxu0 0.0
    %5622 = vmatprep.subr.mxu0 0.0
    %5623 = vmatpush1.xpose.msra.mxu0 0.0
    %5624 = vmatprep.subr.mxu0 0.0
    %5625 = vmatpush1.xpose.msra.mxu0 0.0
    %5626 = vmatprep.subr.mxu0 0.0
    %5627 = vmatpush1.xpose.msra.mxu0 0.0
    %5628 = vmatprep.subr.mxu0 0.0
    %5629 = vmatpush1.xpose.msra.mxu0 0.0
    %5630 = vmatprep.subr.mxu0 0.0
    %5631 = vmatpush1.xpose.msra.mxu0 0.0
    %5632 = vmatprep.subr.mxu0 0.0
    %5633 = vmatpush1.xpose.msra.mxu0 0.0
    %5634 = vmatprep.subr.mxu0 0.0
    %5635 = vmatpush1.xpose.msra.mxu0 0.0
    %5636 = vmatprep.subr.mxu0 0.0
    %5637 = vmatpush1.xpose.msra.mxu0 0.0
    %5638 = vmatprep.subr.mxu0 0.0
    %5639 = vmatpush1.xpose.msra.mxu0 0.0
    %5640 = vmatprep.subr.mxu0 0.0
    %5641 = vmatpush1.xpose.msra.mxu0 0.0
    %5642 = vmatprep.subr.mxu0 0.0
    %5643 = vmatpush1.xpose.msra.mxu0 0.0
    %5644 = vmatprep.subr.mxu0 0.0
    %5645 = vmatpush1.xpose.msra.mxu0 0.0
    %5646 = vmatprep.subr.mxu0 0.0
    %5647 = vmatpush1.xpose.msra.mxu0 0.0
    %5648 = vmatprep.subr.mxu0 0.0
    %5649 = vmatpush1.xpose.msra.mxu0 0.0
    %5650 = vmatprep.subr.mxu0 0.0
    %5651 = vmatpush1.xpose.msra.mxu0 0.0
    %5652 = vmatprep.subr.mxu0 0.0
    %5653 = vmatpush1.xpose.msra.mxu0 0.0
    %5654 = vmatprep.subr.mxu0 0.0
    %5655 = vmatpush1.xpose.msra.mxu0 0.0
    %5656 = vmatprep.subr.mxu0 0.0
    %5657 = vmatpush1.xpose.msra.mxu0 0.0
    %5658 = vmatprep.subr.mxu0 0.0
    %5659 = vmatpush1.xpose.msra.mxu0 0.0
    %5660 = vmatprep.subr.mxu0 0.0
    %5661 = vmatpush1.xpose.msra.mxu0 0.0
    %5662 = vmatprep.subr.mxu0 0.0
    %5663 = vmatpush1.xpose.msra.mxu0 0.0
    %5664 = vmatprep.subr.mxu0 0.0
    %5665 = vmatpush1.xpose.msra.mxu0 0.0
    %5666 = vmatprep.subr.mxu0 0.0
    %5667 = vmatpush1.xpose.msra.mxu0 0.0
    %5668 = vmatprep.subr.mxu0 0.0
    %5669 = vmatpush1.xpose.msra.mxu0 0.0
    %5670 = vmatprep.subr.mxu0 0.0
    %5671 = vmatpush1.xpose.msra.mxu0 0.0
    %5672 = vmatprep.subr.mxu0 0.0
    %5673 = vmatpush1.xpose.msra.mxu0 0.0
    %5674 = vmatprep.mubr.f32.mxu0 0.0
    %5675 = vmatmul.mubr.f32.gmra.mrb[0].mxu0 %v5602
    %v5676 = vpop.f32.mrb[0].mxu0
    %v5677 = vadd.f32 0.0, %v5676
    %v5678 = vpop.f32.mrb[0].mxu0
    %5679 = vmatprep.mubr.f32.mxu0 0.0
    %5680 = vmatmul.mubr.f32.gmra.mrb[0].mxu0 %v5604
    %v5681 = vpop.f32.mrb[0].mxu0
    %v5682 = vadd.f32 0.0, %v5681
    %v5683 = vpop.f32.mrb[0].mxu0
    %5684 = vdwg.mxu0
    %5687 = vrot.lane.b32.xlu0 %v5471, 80
    %v5688 = vpop.permute.xlu0 %5687
    %5689 = vrot.lane.b32.xlu0 %v5472, 80
    %v5690 = vpop.permute.xlu0 %5689
    %5691 = vrot.lane.b32.xlu0 %v5471, 16
    %v5692 = vpop.permute.xlu0 %5691
    %5693 = vrot.lane.b32.xlu0 %v5472, 16
    %v5694 = vpop.permute.xlu0 %5693
    %v5695 = vsel %vm378, %v5688, 0
    %v5697 = vsel %vm378, %v5690, 0
    %v5699 = vsel %vm378, %v5692, 0
    %v5701 = vsel %vm378, %v5694, 0
    %5703 = vmatprep.subr.mxu0 0.0
    %5704 = vmatpush1.xpose.msra.mxu0 %v5699
    %5705 = vmatprep.subr.mxu0 0.0
    %5706 = vmatpush1.xpose.msra.mxu0 %v5701
    %5707 = vmatprep.subr.mxu0 0.0
    %5708 = vmatpush1.xpose.msra.mxu0 0.0
    %5709 = vmatprep.subr.mxu0 0.0
    %5710 = vmatpush1.xpose.msra.mxu0 0.0
    %5711 = vmatprep.subr.mxu0 0.0
    %5712 = vmatpush1.xpose.msra.mxu0 0.0
    %5713 = vmatprep.subr.mxu0 0.0
    %5714 = vmatpush1.xpose.msra.mxu0 0.0
    %5715 = vmatprep.subr.mxu0 0.0
    %5716 = vmatpush1.xpose.msra.mxu0 0.0
    %5717 = vmatprep.subr.mxu0 0.0
    %5718 = vmatpush1.xpose.msra.mxu0 0.0
    %5719 = vmatprep.subr.mxu0 0.0
    %5720 = vmatpush1.xpose.msra.mxu0 0.0
    %5721 = vmatprep.subr.mxu0 0.0
    %5722 = vmatpush1.xpose.msra.mxu0 0.0
    %5723 = vmatprep.subr.mxu0 0.0
    %5724 = vmatpush1.xpose.msra.mxu0 0.0
    %5725 = vmatprep.subr.mxu0 0.0
    %5726 = vmatpush1.xpose.msra.mxu0 0.0
    %5727 = vmatprep.subr.mxu0 0.0
    %5728 = vmatpush1.xpose.msra.mxu0 0.0
    %5729 = vmatprep.subr.mxu0 0.0
    %5730 = vmatpush1.xpose.msra.mxu0 0.0
    %5731 = vmatprep.subr.mxu0 0.0
    %5732 = vmatpush1.xpose.msra.mxu0 0.0
    %5733 = vmatprep.subr.mxu0 0.0
    %5734 = vmatpush1.xpose.msra.mxu0 0.0
    %5735 = vmatprep.subr.mxu0 0.0
    %5736 = vmatpush1.xpose.msra.mxu0 0.0
    %5737 = vmatprep.subr.mxu0 0.0
    %5738 = vmatpush1.xpose.msra.mxu0 0.0
    %5739 = vmatprep.subr.mxu0 0.0
    %5740 = vmatpush1.xpose.msra.mxu0 0.0
    %5741 = vmatprep.subr.mxu0 0.0
    %5742 = vmatpush1.xpose.msra.mxu0 0.0
    %5743 = vmatprep.subr.mxu0 0.0
    %5744 = vmatpush1.xpose.msra.mxu0 0.0
    %5745 = vmatprep.subr.mxu0 0.0
    %5746 = vmatpush1.xpose.msra.mxu0 0.0
    %5747 = vmatprep.subr.mxu0 0.0
    %5748 = vmatpush1.xpose.msra.mxu0 0.0
    %5749 = vmatprep.subr.mxu0 0.0
    %5750 = vmatpush1.xpose.msra.mxu0 0.0
    %5751 = vmatprep.subr.mxu0 0.0
    %5752 = vmatpush1.xpose.msra.mxu0 0.0
    %5753 = vmatprep.subr.mxu0 0.0
    %5754 = vmatpush1.xpose.msra.mxu0 0.0
    %5755 = vmatprep.subr.mxu0 0.0
    %5756 = vmatpush1.xpose.msra.mxu0 0.0
    %5757 = vmatprep.subr.mxu0 0.0
    %5758 = vmatpush1.xpose.msra.mxu0 0.0
    %5759 = vmatprep.subr.mxu0 0.0
    %5760 = vmatpush1.xpose.msra.mxu0 0.0
    %5761 = vmatprep.subr.mxu0 0.0
    %5762 = vmatpush1.xpose.msra.mxu0 0.0
    %5763 = vmatprep.subr.mxu0 0.0
    %5764 = vmatpush1.xpose.msra.mxu0 0.0
    %5765 = vmatprep.subr.mxu0 0.0
    %5766 = vmatpush1.xpose.msra.mxu0 0.0
    %5767 = vmatprep.mubr.f32.mxu0 0.0
    %5768 = vmatmul.mubr.f32.gmra.mrb[0].mxu0 %v5695
    %v5769 = vpop.f32.mrb[0].mxu0
    %v5770 = vadd.f32 0.0, %v5769
    %v5771 = vpop.f32.mrb[0].mxu0
    %5772 = vmatprep.mubr.f32.mxu0 0.0
    %5773 = vmatmul.mubr.f32.gmra.mrb[0].mxu0 %v5697
    %v5774 = vpop.f32.mrb[0].mxu0
    %v5775 = vadd.f32 0.0, %v5774
    %v5776 = vpop.f32.mrb[0].mxu0
    %5777 = vdwg.mxu0
    %5780 = vrot.lane.b32.xlu0 %v5473, 80
    %v5781 = vpop.permute.xlu0 %5780
    %5782 = vrot.lane.b32.xlu0 %v5474, 80
    %v5783 = vpop.permute.xlu0 %5782
    %5784 = vrot.lane.b32.xlu0 %v5473, 16
    %v5785 = vpop.permute.xlu0 %5784
    %5786 = vrot.lane.b32.xlu0 %v5474, 16
    %v5787 = vpop.permute.xlu0 %5786
    %v5788 = vsel %vm378, %v5781, 0
    %v5790 = vsel %vm378, %v5783, 0
    %v5792 = vsel %vm378, %v5785, 0
    %v5794 = vsel %vm378, %v5787, 0
    %5796 = vmatprep.subr.mxu0 0.0
    %5797 = vmatpush1.xpose.msra.mxu0 %v5792
    %5798 = vmatprep.subr.mxu0 0.0
    %5799 = vmatpush1.xpose.msra.mxu0 %v5794
    %5800 = vmatprep.subr.mxu0 0.0
    %5801 = vmatpush1.xpose.msra.mxu0 0.0
    %5802 = vmatprep.subr.mxu0 0.0
    %5803 = vmatpush1.xpose.msra.mxu0 0.0
    %5804 = vmatprep.subr.mxu0 0.0
    %5805 = vmatpush1.xpose.msra.mxu0 0.0
    %5806 = vmatprep.subr.mxu0 0.0
    %5807 = vmatpush1.xpose.msra.mxu0 0.0
    %5808 = vmatprep.subr.mxu0 0.0
    %5809 = vmatpush1.xpose.msra.mxu0 0.0
    %5810 = vmatprep.subr.mxu0 0.0
    %5811 = vmatpush1.xpose.msra.mxu0 0.0
    %5812 = vmatprep.subr.mxu0 0.0
    %5813 = vmatpush1.xpose.msra.mxu0 0.0
    %5814 = vmatprep.subr.mxu0 0.0
    %5815 = vmatpush1.xpose.msra.mxu0 0.0
    %5816 = vmatprep.subr.mxu0 0.0
    %5817 = vmatpush1.xpose.msra.mxu0 0.0
    %5818 = vmatprep.subr.mxu0 0.0
    %5819 = vmatpush1.xpose.msra.mxu0 0.0
    %5820 = vmatprep.subr.mxu0 0.0
    %5821 = vmatpush1.xpose.msra.mxu0 0.0
    %5822 = vmatprep.subr.mxu0 0.0
    %5823 = vmatpush1.xpose.msra.mxu0 0.0
    %5824 = vmatprep.subr.mxu0 0.0
    %5825 = vmatpush1.xpose.msra.mxu0 0.0
    %5826 = vmatprep.subr.mxu0 0.0
    %5827 = vmatpush1.xpose.msra.mxu0 0.0
    %5828 = vmatprep.subr.mxu0 0.0
    %5829 = vmatpush1.xpose.msra.mxu0 0.0
    %5830 = vmatprep.subr.mxu0 0.0
    %5831 = vmatpush1.xpose.msra.mxu0 0.0
    %5832 = vmatprep.subr.mxu0 0.0
    %5833 = vmatpush1.xpose.msra.mxu0 0.0
    %5834 = vmatprep.subr.mxu0 0.0
    %5835 = vmatpush1.xpose.msra.mxu0 0.0
    %5836 = vmatprep.subr.mxu0 0.0
    %5837 = vmatpush1.xpose.msra.mxu0 0.0
    %5838 = vmatprep.subr.mxu0 0.0
    %5839 = vmatpush1.xpose.msra.mxu0 0.0
    %5840 = vmatprep.subr.mxu0 0.0
    %5841 = vmatpush1.xpose.msra.mxu0 0.0
    %5842 = vmatprep.subr.mxu0 0.0
    %5843 = vmatpush1.xpose.msra.mxu0 0.0
    %5844 = vmatprep.subr.mxu0 0.0
    %5845 = vmatpush1.xpose.msra.mxu0 0.0
    %5846 = vmatprep.subr.mxu0 0.0
    %5847 = vmatpush1.xpose.msra.mxu0 0.0
    %5848 = vmatprep.subr.mxu0 0.0
    %5849 = vmatpush1.xpose.msra.mxu0 0.0
    %5850 = vmatprep.subr.mxu0 0.0
    %5851 = vmatpush1.xpose.msra.mxu0 0.0
    %5852 = vmatprep.subr.mxu0 0.0
    %5853 = vmatpush1.xpose.msra.mxu0 0.0
    %5854 = vmatprep.subr.mxu0 0.0
    %5855 = vmatpush1.xpose.msra.mxu0 0.0
    %5856 = vmatprep.subr.mxu0 0.0
    %5857 = vmatpush1.xpose.msra.mxu0 0.0
    %5858 = vmatprep.subr.mxu0 0.0
    %5859 = vmatpush1.xpose.msra.mxu0 0.0
    %5860 = vmatprep.mubr.f32.mxu0 0.0
    %5861 = vmatmul.mubr.f32.gmra.mrb[0].mxu0 %v5788
    %v5862 = vpop.f32.mrb[0].mxu0
    %v5863 = vadd.f32 0.0, %v5862
    %v5864 = vpop.f32.mrb[0].mxu0
    %5865 = vmatprep.mubr.f32.mxu0 0.0
    %5866 = vmatmul.mubr.f32.gmra.mrb[0].mxu0 %v5790
    %v5867 = vpop.f32.mrb[0].mxu0
    %v5868 = vadd.f32 0.0, %v5867
    %v5869 = vpop.f32.mrb[0].mxu0
    %5870 = vdwg.mxu0
    %5873 = vrot.lane.b32.xlu0 %v5475, 80
    %v5874 = vpop.permute.xlu0 %5873
    %5875 = vrot.lane.b32.xlu0 %v5476, 80
    %v5876 = vpop.permute.xlu0 %5875
    %5877 = vrot.lane.b32.xlu0 %v5475, 16
    %v5878 = vpop.permute.xlu0 %5877
    %5879 = vrot.lane.b32.xlu0 %v5476, 16
    %v5880 = vpop.permute.xlu0 %5879
    %v5881 = vsel %vm378, %v5874, 0
    %v5883 = vsel %vm378, %v5876, 0
    %v5885 = vsel %vm378, %v5878, 0
    %v5887 = vsel %vm378, %v5880, 0
    %5889 = vmatprep.subr.mxu0 0.0
    %5890 = vmatpush1.xpose.msra.mxu0 %v5885
    %5891 = vmatprep.subr.mxu0 0.0
    %5892 = vmatpush1.xpose.msra.mxu0 %v5887
    %5893 = vmatprep.subr.mxu0 0.0
    %5894 = vmatpush1.xpose.msra.mxu0 0.0
    %5895 = vmatprep.subr.mxu0 0.0
    %5896 = vmatpush1.xpose.msra.mxu0 0.0
    %5897 = vmatprep.subr.mxu0 0.0
    %5898 = vmatpush1.xpose.msra.mxu0 0.0
    %5899 = vmatprep.subr.mxu0 0.0
    %5900 = vmatpush1.xpose.msra.mxu0 0.0
    %5901 = vmatprep.subr.mxu0 0.0
    %5902 = vmatpush1.xpose.msra.mxu0 0.0
    %5903 = vmatprep.subr.mxu0 0.0
    %5904 = vmatpush1.xpose.msra.mxu0 0.0
    %5905 = vmatprep.subr.mxu0 0.0
    %5906 = vmatpush1.xpose.msra.mxu0 0.0
    %5907 = vmatprep.subr.mxu0 0.0
    %5908 = vmatpush1.xpose.msra.mxu0 0.0
    %5909 = vmatprep.subr.mxu0 0.0
    %5910 = vmatpush1.xpose.msra.mxu0 0.0
    %5911 = vmatprep.subr.mxu0 0.0
    %5912 = vmatpush1.xpose.msra.mxu0 0.0
    %5913 = vmatprep.subr.mxu0 0.0
    %5914 = vmatpush1.xpose.msra.mxu0 0.0
    %5915 = vmatprep.subr.mxu0 0.0
    %5916 = vmatpush1.xpose.msra.mxu0 0.0
    %5917 = vmatprep.subr.mxu0 0.0
    %5918 = vmatpush1.xpose.msra.mxu0 0.0
    %5919 = vmatprep.subr.mxu0 0.0
    %5920 = vmatpush1.xpose.msra.mxu0 0.0
    %5921 = vmatprep.subr.mxu0 0.0
    %5922 = vmatpush1.xpose.msra.mxu0 0.0
    %5923 = vmatprep.subr.mxu0 0.0
    %5924 = vmatpush1.xpose.msra.mxu0 0.0
    %5925 = vmatprep.subr.mxu0 0.0
    %5926 = vmatpush1.xpose.msra.mxu0 0.0
    %5927 = vmatprep.subr.mxu0 0.0
    %5928 = vmatpush1.xpose.msra.mxu0 0.0
    %5929 = vmatprep.subr.mxu0 0.0
    %5930 = vmatpush1.xpose.msra.mxu0 0.0
    %5931 = vmatprep.subr.mxu0 0.0
    %5932 = vmatpush1.xpose.msra.mxu0 0.0
    %5933 = vmatprep.subr.mxu0 0.0
    %5934 = vmatpush1.xpose.msra.mxu0 0.0
    %5935 = vmatprep.subr.mxu0 0.0
    %5936 = vmatpush1.xpose.msra.mxu0 0.0
    %5937 = vmatprep.subr.mxu0 0.0
    %5938 = vmatpush1.xpose.msra.mxu0 0.0
    %5939 = vmatprep.subr.mxu0 0.0
    %5940 = vmatpush1.xpose.msra.mxu0 0.0
    %5941 = vmatprep.subr.mxu0 0.0
    %5942 = vmatpush1.xpose.msra.mxu0 0.0
    %5943 = vmatprep.subr.mxu0 0.0
    %5944 = vmatpush1.xpose.msra.mxu0 0.0
    %5945 = vmatprep.subr.mxu0 0.0
    %5946 = vmatpush1.xpose.msra.mxu0 0.0
    %5947 = vmatprep.subr.mxu0 0.0
    %5948 = vmatpush1.xpose.msra.mxu0 0.0
    %5949 = vmatprep.subr.mxu0 0.0
    %5950 = vmatpush1.xpose.msra.mxu0 0.0
    %5951 = vmatprep.subr.mxu0 0.0
    %5952 = vmatpush1.xpose.msra.mxu0 0.0
    %5953 = vmatprep.mubr.f32.mxu0 0.0
    %5954 = vmatmul.mubr.f32.gmra.mrb[0].mxu0 %v5881
    %v5955 = vpop.f32.mrb[0].mxu0
    %v5956 = vadd.f32 0.0, %v5955
    %v5957 = vpop.f32.mrb[0].mxu0
    %5958 = vmatprep.mubr.f32.mxu0 0.0
    %5959 = vmatmul.mubr.f32.gmra.mrb[0].mxu0 %v5883
    %v5960 = vpop.f32.mrb[0].mxu0
    %v5961 = vadd.f32 0.0, %v5960
    %v5962 = vpop.f32.mrb[0].mxu0
    %5963 = vdwg.mxu0
    %5966 = vrot.lane.b32.xlu0 %v5477, 80
    %v5967 = vpop.permute.xlu0 %5966
    %5968 = vrot.lane.b32.xlu0 %v5478, 80
    %v5969 = vpop.permute.xlu0 %5968
    %5970 = vrot.lane.b32.xlu0 %v5477, 16
    %v5971 = vpop.permute.xlu0 %5970
    %5972 = vrot.lane.b32.xlu0 %v5478, 16
    %v5973 = vpop.permute.xlu0 %5972
    %v5974 = vsel %vm378, %v5967, 0
    %v5976 = vsel %vm378, %v5969, 0
    %v5978 = vsel %vm378, %v5971, 0
    %v5980 = vsel %vm378, %v5973, 0
    %5982 = vmatprep.subr.mxu0 0.0
    %5983 = vmatpush1.xpose.msra.mxu0 %v5978
    %5984 = vmatprep.subr.mxu0 0.0
    %5985 = vmatpush1.xpose.msra.mxu0 %v5980
    %5986 = vmatprep.subr.mxu0 0.0
    %5987 = vmatpush1.xpose.msra.mxu0 0.0
    %5988 = vmatprep.subr.mxu0 0.0
    %5989 = vmatpush1.xpose.msra.mxu0 0.0
    %5990 = vmatprep.subr.mxu0 0.0
    %5991 = vmatpush1.xpose.msra.mxu0 0.0
    %5992 = vmatprep.subr.mxu0 0.0
    %5993 = vmatpush1.xpose.msra.mxu0 0.0
    %5994 = vmatprep.subr.mxu0 0.0
    %5995 = vmatpush1.xpose.msra.mxu0 0.0
    %5996 = vmatprep.subr.mxu0 0.0
    %5997 = vmatpush1.xpose.msra.mxu0 0.0
    %5998 = vmatprep.subr.mxu0 0.0
    %5999 = vmatpush1.xpose.msra.mxu0 0.0
    %6000 = vmatprep.subr.mxu0 0.0
    %6001 = vmatpush1.xpose.msra.mxu0 0.0
    %6002 = vmatprep.subr.mxu0 0.0
    %6003 = vmatpush1.xpose.msra.mxu0 0.0
    %6004 = vmatprep.subr.mxu0 0.0
    %6005 = vmatpush1.xpose.msra.mxu0 0.0
    %6006 = vmatprep.subr.mxu0 0.0
    %6007 = vmatpush1.xpose.msra.mxu0 0.0
    %6008 = vmatprep.subr.mxu0 0.0
    %6009 = vmatpush1.xpose.msra.mxu0 0.0
    %6010 = vmatprep.subr.mxu0 0.0
    %6011 = vmatpush1.xpose.msra.mxu0 0.0
    %6012 = vmatprep.subr.mxu0 0.0
    %6013 = vmatpush1.xpose.msra.mxu0 0.0
    %6014 = vmatprep.subr.mxu0 0.0
    %6015 = vmatpush1.xpose.msra.mxu0 0.0
    %6016 = vmatprep.subr.mxu0 0.0
    %6017 = vmatpush1.xpose.msra.mxu0 0.0
    %6018 = vmatprep.subr.mxu0 0.0
    %6019 = vmatpush1.xpose.msra.mxu0 0.0
    %6020 = vmatprep.subr.mxu0 0.0
    %6021 = vmatpush1.xpose.msra.mxu0 0.0
    %6022 = vmatprep.subr.mxu0 0.0
    %6023 = vmatpush1.xpose.msra.mxu0 0.0
    %6024 = vmatprep.subr.mxu0 0.0
    %6025 = vmatpush1.xpose.msra.mxu0 0.0
    %6026 = vmatprep.subr.mxu0 0.0
    %6027 = vmatpush1.xpose.msra.mxu0 0.0
    %6028 = vmatprep.subr.mxu0 0.0
    %6029 = vmatpush1.xpose.msra.mxu0 0.0
    %6030 = vmatprep.subr.mxu0 0.0
    %6031 = vmatpush1.xpose.msra.mxu0 0.0
    %6032 = vmatprep.subr.mxu0 0.0
    %6033 = vmatpush1.xpose.msra.mxu0 0.0
    %6034 = vmatprep.subr.mxu0 0.0
    %6035 = vmatpush1.xpose.msra.mxu0 0.0
    %6036 = vmatprep.subr.mxu0 0.0
    %6037 = vmatpush1.xpose.msra.mxu0 0.0
    %6038 = vmatprep.subr.mxu0 0.0
    %6039 = vmatpush1.xpose.msra.mxu0 0.0
    %6040 = vmatprep.subr.mxu0 0.0
    %6041 = vmatpush1.xpose.msra.mxu0 0.0
    %6042 = vmatprep.subr.mxu0 0.0
    %6043 = vmatpush1.xpose.msra.mxu0 0.0
    %6044 = vmatprep.subr.mxu0 0.0
    %6045 = vmatpush1.xpose.msra.mxu0 0.0
    %6046 = vmatprep.mubr.f32.mxu0 0.0
    %6047 = vmatmul.mubr.f32.gmra.mrb[0].mxu0 %v5974
    %v6048 = vpop.f32.mrb[0].mxu0
    %v6049 = vadd.f32 0.0, %v6048
    %v6050 = vpop.f32.mrb[0].mxu0
    %6051 = vmatprep.mubr.f32.mxu0 0.0
    %6052 = vmatmul.mubr.f32.gmra.mrb[0].mxu0 %v5976
    %v6053 = vpop.f32.mrb[0].mxu0
    %v6054 = vadd.f32 0.0, %v6053
    %v6055 = vpop.f32.mrb[0].mxu0
    %6056 = vdwg.mxu0
    %6059 = vrot.lane.b32.xlu0 %v5479, 80
    %v6060 = vpop.permute.xlu0 %6059
    %6061 = vrot.lane.b32.xlu0 %v5480, 80
    %v6062 = vpop.permute.xlu0 %6061
    %6063 = vrot.lane.b32.xlu0 %v5479, 16
    %v6064 = vpop.permute.xlu0 %6063
    %6065 = vrot.lane.b32.xlu0 %v5480, 16
    %v6066 = vpop.permute.xlu0 %6065
    %v6067 = vsel %vm378, %v6060, 0
    %v6069 = vsel %vm378, %v6062, 0
    %v6071 = vsel %vm378, %v6064, 0
    %v6073 = vsel %vm378, %v6066, 0
    %6075 = vmatprep.subr.mxu0 0.0
    %6076 = vmatpush1.xpose.msra.mxu0 %v6071
    %6077 = vmatprep.subr.mxu0 0.0
    %6078 = vmatpush1.xpose.msra.mxu0 %v6073
    %6079 = vmatprep.subr.mxu0 0.0
    %6080 = vmatpush1.xpose.msra.mxu0 0.0
    %6081 = vmatprep.subr.mxu0 0.0
    %6082 = vmatpush1.xpose.msra.mxu0 0.0
    %6083 = vmatprep.subr.mxu0 0.0
    %6084 = vmatpush1.xpose.msra.mxu0 0.0
    %6085 = vmatprep.subr.mxu0 0.0
    %6086 = vmatpush1.xpose.msra.mxu0 0.0
    %6087 = vmatprep.subr.mxu0 0.0
    %6088 = vmatpush1.xpose.msra.mxu0 0.0
    %6089 = vmatprep.subr.mxu0 0.0
    %6090 = vmatpush1.xpose.msra.mxu0 0.0
    %6091 = vmatprep.subr.mxu0 0.0
    %6092 = vmatpush1.xpose.msra.mxu0 0.0
    %6093 = vmatprep.subr.mxu0 0.0
    %6094 = vmatpush1.xpose.msra.mxu0 0.0
    %6095 = vmatprep.subr.mxu0 0.0
    %6096 = vmatpush1.xpose.msra.mxu0 0.0
    %6097 = vmatprep.subr.mxu0 0.0
    %6098 = vmatpush1.xpose.msra.mxu0 0.0
    %6099 = vmatprep.subr.mxu0 0.0
    %6100 = vmatpush1.xpose.msra.mxu0 0.0
    %6101 = vmatprep.subr.mxu0 0.0
    %6102 = vmatpush1.xpose.msra.mxu0 0.0
    %6103 = vmatprep.subr.mxu0 0.0
    %6104 = vmatpush1.xpose.msra.mxu0 0.0
    %6105 = vmatprep.subr.mxu0 0.0
    %6106 = vmatpush1.xpose.msra.mxu0 0.0
    %6107 = vmatprep.subr.mxu0 0.0
    %6108 = vmatpush1.xpose.msra.mxu0 0.0
    %6109 = vmatprep.subr.mxu0 0.0
    %6110 = vmatpush1.xpose.msra.mxu0 0.0
    %6111 = vmatprep.subr.mxu0 0.0
    %6112 = vmatpush1.xpose.msra.mxu0 0.0
    %6113 = vmatprep.subr.mxu0 0.0
    %6114 = vmatpush1.xpose.msra.mxu0 0.0
    %6115 = vmatprep.subr.mxu0 0.0
    %6116 = vmatpush1.xpose.msra.mxu0 0.0
    %6117 = vmatprep.subr.mxu0 0.0
    %6118 = vmatpush1.xpose.msra.mxu0 0.0
    %6119 = vmatprep.subr.mxu0 0.0
    %6120 = vmatpush1.xpose.msra.mxu0 0.0
    %6121 = vmatprep.subr.mxu0 0.0
    %6122 = vmatpush1.xpose.msra.mxu0 0.0
    %6123 = vmatprep.subr.mxu0 0.0
    %6124 = vmatpush1.xpose.msra.mxu0 0.0
    %6125 = vmatprep.subr.mxu0 0.0
    %6126 = vmatpush1.xpose.msra.mxu0 0.0
    %6127 = vmatprep.subr.mxu0 0.0
    %6128 = vmatpush1.xpose.msra.mxu0 0.0
    %6129 = vmatprep.subr.mxu0 0.0
    %6130 = vmatpush1.xpose.msra.mxu0 0.0
    %6131 = vmatprep.subr.mxu0 0.0
    %6132 = vmatpush1.xpose.msra.mxu0 0.0
    %6133 = vmatprep.subr.mxu0 0.0
    %6134 = vmatpush1.xpose.msra.mxu0 0.0
    %6135 = vmatprep.subr.mxu0 0.0
    %6136 = vmatpush1.xpose.msra.mxu0 0.0
    %6137 = vmatprep.subr.mxu0 0.0
    %6138 = vmatpush1.xpose.msra.mxu0 0.0
    %6139 = vmatprep.mubr.f32.mxu0 0.0
    %6140 = vmatmul.mubr.f32.gmra.mrb[0].mxu0 %v6067
    %v6141 = vpop.f32.mrb[0].mxu0
    %v6142 = vadd.f32 0.0, %v6141
    %v6143 = vpop.f32.mrb[0].mxu0
    %6144 = vmatprep.mubr.f32.mxu0 0.0
    %6145 = vmatmul.mubr.f32.gmra.mrb[0].mxu0 %v6069
    %v6146 = vpop.f32.mrb[0].mxu0
    %v6147 = vadd.f32 0.0, %v6146
    %v6148 = vpop.f32.mrb[0].mxu0
    %6149 = vdwg.mxu0
    %6152 = vrot.lane.b32.xlu0 %v5481, 80
    %v6153 = vpop.permute.xlu0 %6152
    %6154 = vrot.lane.b32.xlu0 %v5482, 80
    %v6155 = vpop.permute.xlu0 %6154
    %6156 = vrot.lane.b32.xlu0 %v5481, 16
    %v6157 = vpop.permute.xlu0 %6156
    %6158 = vrot.lane.b32.xlu0 %v5482, 16
    %v6159 = vpop.permute.xlu0 %6158
    %v6160 = vsel %vm378, %v6153, 0
    %v6162 = vsel %vm378, %v6155, 0
    %v6164 = vsel %vm378, %v6157, 0
    %v6166 = vsel %vm378, %v6159, 0
    %6168 = vmatprep.subr.mxu0 0.0
    %6169 = vmatpush1.xpose.msra.mxu0 %v6164
    %6170 = vmatprep.subr.mxu0 0.0
    %6171 = vmatpush1.xpose.msra.mxu0 %v6166
    %6172 = vmatprep.subr.mxu0 0.0
    %6173 = vmatpush1.xpose.msra.mxu0 0.0
    %6174 = vmatprep.subr.mxu0 0.0
    %6175 = vmatpush1.xpose.msra.mxu0 0.0
    %6176 = vmatprep.subr.mxu0 0.0
    %6177 = vmatpush1.xpose.msra.mxu0 0.0
    %6178 = vmatprep.subr.mxu0 0.0
    %6179 = vmatpush1.xpose.msra.mxu0 0.0
    %6180 = vmatprep.subr.mxu0 0.0
    %6181 = vmatpush1.xpose.msra.mxu0 0.0
    %6182 = vmatprep.subr.mxu0 0.0
    %6183 = vmatpush1.xpose.msra.mxu0 0.0
    %6184 = vmatprep.subr.mxu0 0.0
    %6185 = vmatpush1.xpose.msra.mxu0 0.0
    %6186 = vmatprep.subr.mxu0 0.0
    %6187 = vmatpush1.xpose.msra.mxu0 0.0
    %6188 = vmatprep.subr.mxu0 0.0
    %6189 = vmatpush1.xpose.msra.mxu0 0.0
    %6190 = vmatprep.subr.mxu0 0.0
    %6191 = vmatpush1.xpose.msra.mxu0 0.0
    %6192 = vmatprep.subr.mxu0 0.0
    %6193 = vmatpush1.xpose.msra.mxu0 0.0
    %6194 = vmatprep.subr.mxu0 0.0
    %6195 = vmatpush1.xpose.msra.mxu0 0.0
    %6196 = vmatprep.subr.mxu0 0.0
    %6197 = vmatpush1.xpose.msra.mxu0 0.0
    %6198 = vmatprep.subr.mxu0 0.0
    %6199 = vmatpush1.xpose.msra.mxu0 0.0
    %6200 = vmatprep.subr.mxu0 0.0
    %6201 = vmatpush1.xpose.msra.mxu0 0.0
    %6202 = vmatprep.subr.mxu0 0.0
    %6203 = vmatpush1.xpose.msra.mxu0 0.0
    %6204 = vmatprep.subr.mxu0 0.0
    %6205 = vmatpush1.xpose.msra.mxu0 0.0
    %6206 = vmatprep.subr.mxu0 0.0
    %6207 = vmatpush1.xpose.msra.mxu0 0.0
    %6208 = vmatprep.subr.mxu0 0.0
    %6209 = vmatpush1.xpose.msra.mxu0 0.0
    %6210 = vmatprep.subr.mxu0 0.0
    %6211 = vmatpush1.xpose.msra.mxu0 0.0
    %6212 = vmatprep.subr.mxu0 0.0
    %6213 = vmatpush1.xpose.msra.mxu0 0.0
    %6214 = vmatprep.subr.mxu0 0.0
    %6215 = vmatpush1.xpose.msra.mxu0 0.0
    %6216 = vmatprep.subr.mxu0 0.0
    %6217 = vmatpush1.xpose.msra.mxu0 0.0
    %6218 = vmatprep.subr.mxu0 0.0
    %6219 = vmatpush1.xpose.msra.mxu0 0.0
    %6220 = vmatprep.subr.mxu0 0.0
    %6221 = vmatpush1.xpose.msra.mxu0 0.0
    %6222 = vmatprep.subr.mxu0 0.0
    %6223 = vmatpush1.xpose.msra.mxu0 0.0
    %6224 = vmatprep.subr.mxu0 0.0
    %6225 = vmatpush1.xpose.msra.mxu0 0.0
    %6226 = vmatprep.subr.mxu0 0.0
    %6227 = vmatpush1.xpose.msra.mxu0 0.0
    %6228 = vmatprep.subr.mxu0 0.0
    %6229 = vmatpush1.xpose.msra.mxu0 0.0
    %6230 = vmatprep.subr.mxu0 0.0
    %6231 = vmatpush1.xpose.msra.mxu0 0.0
    %6232 = vmatprep.mubr.f32.mxu0 0.0
    %6233 = vmatmul.mubr.f32.gmra.mrb[0].mxu0 %v6160
    %v6234 = vpop.f32.mrb[0].mxu0
    %v6235 = vadd.f32 0.0, %v6234
    %v6236 = vpop.f32.mrb[0].mxu0
    %6237 = vmatprep.mubr.f32.mxu0 0.0
    %6238 = vmatmul.mubr.f32.gmra.mrb[0].mxu0 %v6162
    %v6239 = vpop.f32.mrb[0].mxu0
    %v6240 = vadd.f32 0.0, %v6239
    %v6241 = vpop.f32.mrb[0].mxu0
    %6242 = vdwg.mxu0
    %v6243 = vsel %vm1087, %v5584, -1.7014117e+38
    %v6244 = vsel %vm1088, %v5589, -1.7014117e+38
    %v6245 = vsel %vm1087, %v5677, -1.7014117e+38
    %v6246 = vsel %vm1088, %v5682, -1.7014117e+38
    %v6247 = vsel %vm1087, %v5770, -1.7014117e+38
    %v6248 = vsel %vm1088, %v5775, -1.7014117e+38
    %v6249 = vsel %vm1087, %v5863, -1.7014117e+38
    %v6250 = vsel %vm1088, %v5868, -1.7014117e+38
    %v6251 = vsel %vm1087, %v5956, -1.7014117e+38
    %v6252 = vsel %vm1088, %v5961, -1.7014117e+38
    %v6253 = vsel %vm1087, %v6049, -1.7014117e+38
    %v6254 = vsel %vm1088, %v6054, -1.7014117e+38
    %v6255 = vsel %vm1087, %v6142, -1.7014117e+38
    %v6256 = vsel %vm1088, %v6147, -1.7014117e+38
    %v6257 = vsel %vm1087, %v6235, -1.7014117e+38
    %v6258 = vsel %vm1088, %v6240, -1.7014117e+38
    %v6259 = vsel %vm378, %v6243, -inf
    %6260 = vmax.xlane.f32.xlu0 %v6259
    %v6261 = vpop.xlane.xlu0 %6260
    %v6262 = vsel %vm378, %v6244, -inf
    %6263 = vmax.xlane.f32.xlu0 %v6262
    %v6264 = vpop.xlane.xlu0 %6263
    %v6265 = vsel %vm378, %v6245, -inf
    %6266 = vmax.xlane.f32.xlu0 %v6265
    %v6267 = vpop.xlane.xlu0 %6266
    %v6268 = vsel %vm378, %v6246, -inf
    %6269 = vmax.xlane.f32.xlu0 %v6268
    %v6270 = vpop.xlane.xlu0 %6269
    %v6271 = vsel %vm378, %v6247, -inf
    %6272 = vmax.xlane.f32.xlu0 %v6271
    %v6273 = vpop.xlane.xlu0 %6272
    %v6274 = vsel %vm378, %v6248, -inf
    %6275 = vmax.xlane.f32.xlu0 %v6274
    %v6276 = vpop.xlane.xlu0 %6275
    %v6277 = vsel %vm378, %v6249, -inf
    %6278 = vmax.xlane.f32.xlu0 %v6277
    %v6279 = vpop.xlane.xlu0 %6278
    %v6280 = vsel %vm378, %v6250, -inf
    %6281 = vmax.xlane.f32.xlu0 %v6280
    %v6282 = vpop.xlane.xlu0 %6281
    %v6283 = vsel %vm378, %v6251, -inf
    %6284 = vmax.xlane.f32.xlu0 %v6283
    %v6285 = vpop.xlane.xlu0 %6284
    %v6286 = vsel %vm378, %v6252, -inf
    %6287 = vmax.xlane.f32.xlu0 %v6286
    %v6288 = vpop.xlane.xlu0 %6287
    %v6289 = vsel %vm378, %v6253, -inf
    %6290 = vmax.xlane.f32.xlu0 %v6289
    %v6291 = vpop.xlane.xlu0 %6290
    %v6292 = vsel %vm378, %v6254, -inf
    %6293 = vmax.xlane.f32.xlu0 %v6292
    %v6294 = vpop.xlane.xlu0 %6293
    %v6295 = vsel %vm378, %v6255, -inf
    %6296 = vmax.xlane.f32.xlu0 %v6295
    %v6297 = vpop.xlane.xlu0 %6296
    %v6298 = vsel %vm378, %v6256, -inf
    %6299 = vmax.xlane.f32.xlu0 %v6298
    %v6300 = vpop.xlane.xlu0 %6299
    %v6301 = vsel %vm378, %v6257, -inf
    %6302 = vmax.xlane.f32.xlu0 %v6301
    %v6303 = vpop.xlane.xlu0 %6302
    %v6304 = vsel %vm378, %v6258, -inf
    %6305 = vmax.xlane.f32.xlu0 %v6304
    %v6306 = vpop.xlane.xlu0 %6305
    %v6307 = vsub.f32 %v6243, %v6261
    %v6308 = vsub.f32 %v6244, %v6264
    %v6309 = vsub.f32 %v6245, %v6267
    %v6310 = vsub.f32 %v6246, %v6270
    %v6311 = vsub.f32 %v6247, %v6273
    %v6312 = vsub.f32 %v6248, %v6276
    %v6313 = vsub.f32 %v6249, %v6279
    %v6314 = vsub.f32 %v6250, %v6282
    %v6315 = vsub.f32 %v6251, %v6285
    %v6316 = vsub.f32 %v6252, %v6288
    %v6317 = vsub.f32 %v6253, %v6291
    %v6318 = vsub.f32 %v6254, %v6294
    %v6319 = vsub.f32 %v6255, %v6297
    %v6320 = vsub.f32 %v6256, %v6300
    %v6321 = vsub.f32 %v6257, %v6303
    %v6322 = vsub.f32 %v6258, %v6306
    %v6323 = vmul.f32 %v6307, 1.442695
    %v6324 = vpow.pop %v6323
    %v6325 = vmul.f32 %v6308, 1.442695
    %v6326 = vpow.pop %v6325
    %v6327 = vmul.f32 %v6309, 1.442695
    %v6328 = vpow.pop %v6327
    %v6329 = vmul.f32 %v6310, 1.442695
    %v6330 = vpow.pop %v6329
    %v6331 = vmul.f32 %v6311, 1.442695
    %v6332 = vpow.pop %v6331
    %v6333 = vmul.f32 %v6312, 1.442695
    %v6334 = vpow.pop %v6333
    %v6335 = vmul.f32 %v6313, 1.442695
    %v6336 = vpow.pop %v6335
    %v6337 = vmul.f32 %v6314, 1.442695
    %v6338 = vpow.pop %v6337
    %v6339 = vmul.f32 %v6315, 1.442695
    %v6340 = vpow.pop %v6339
    %v6341 = vmul.f32 %v6316, 1.442695
    %v6342 = vpow.pop %v6341
    %v6343 = vmul.f32 %v6317, 1.442695
    %v6344 = vpow.pop %v6343
    %v6345 = vmul.f32 %v6318, 1.442695
    %v6346 = vpow.pop %v6345
    %v6347 = vmul.f32 %v6319, 1.442695
    %v6348 = vpow.pop %v6347
    %v6349 = vmul.f32 %v6320, 1.442695
    %v6350 = vpow.pop %v6349
    %v6351 = vmul.f32 %v6321, 1.442695
    %v6352 = vpow.pop %v6351
    %v6353 = vmul.f32 %v6322, 1.442695
    %v6354 = vpow.pop %v6353
    %v6355 = vsel %vm378, %v6324, 0.0
    %6356 = vadd.xlane.f32.xlu0 %v6355
    %v6357 = vpop.xlane.xlu0 %6356
    %v6358 = vsel %vm378, %v6326, 0.0
    %6359 = vadd.xlane.f32.xlu0 %v6358
    %v6360 = vpop.xlane.xlu0 %6359
    %v6361 = vsel %vm378, %v6328, 0.0
    %6362 = vadd.xlane.f32.xlu0 %v6361
    %v6363 = vpop.xlane.xlu0 %6362
    %v6364 = vsel %vm378, %v6330, 0.0
    %6365 = vadd.xlane.f32.xlu0 %v6364
    %v6366 = vpop.xlane.xlu0 %6365
    %v6367 = vsel %vm378, %v6332, 0.0
    %6368 = vadd.xlane.f32.xlu0 %v6367
    %v6369 = vpop.xlane.xlu0 %6368
    %v6370 = vsel %vm378, %v6334, 0.0
    %6371 = vadd.xlane.f32.xlu0 %v6370
    %v6372 = vpop.xlane.xlu0 %6371
    %v6373 = vsel %vm378, %v6336, 0.0
    %6374 = vadd.xlane.f32.xlu0 %v6373
    %v6375 = vpop.xlane.xlu0 %6374
    %v6376 = vsel %vm378, %v6338, 0.0
    %6377 = vadd.xlane.f32.xlu0 %v6376
    %v6378 = vpop.xlane.xlu0 %6377
    %v6379 = vsel %vm378, %v6340, 0.0
    %6380 = vadd.xlane.f32.xlu0 %v6379
    %v6381 = vpop.xlane.xlu0 %6380
    %v6382 = vsel %vm378, %v6342, 0.0
    %6383 = vadd.xlane.f32.xlu0 %v6382
    %v6384 = vpop.xlane.xlu0 %6383
    %v6385 = vsel %vm378, %v6344, 0.0
    %6386 = vadd.xlane.f32.xlu0 %v6385
    %v6387 = vpop.xlane.xlu0 %6386
    %v6388 = vsel %vm378, %v6346, 0.0
    %6389 = vadd.xlane.f32.xlu0 %v6388
    %v6390 = vpop.xlane.xlu0 %6389
    %v6391 = vsel %vm378, %v6348, 0.0
    %6392 = vadd.xlane.f32.xlu0 %v6391
    %v6393 = vpop.xlane.xlu0 %6392
    %v6394 = vsel %vm378, %v6350, 0.0
    %6395 = vadd.xlane.f32.xlu0 %v6394
    %v6396 = vpop.xlane.xlu0 %6395
    %v6397 = vsel %vm378, %v6352, 0.0
    %6398 = vadd.xlane.f32.xlu0 %v6397
    %v6399 = vpop.xlane.xlu0 %6398
    %v6400 = vsel %vm378, %v6354, 0.0
    %6401 = vadd.xlane.f32.xlu0 %v6400
    %v6402 = vpop.xlane.xlu0 %6401
    %v6403 = vrcp.pop %v6357
    %v6404 = vrcp.pop %v6360
    %v6405 = vrcp.pop %v6363
    %v6406 = vrcp.pop %v6366
    %v6407 = vrcp.pop %v6369
    %v6408 = vrcp.pop %v6372
    %v6409 = vrcp.pop %v6375
    %v6410 = vrcp.pop %v6378
    %v6411 = vrcp.pop %v6381
    %v6412 = vrcp.pop %v6384
    %v6413 = vrcp.pop %v6387
    %v6414 = vrcp.pop %v6390
    %v6415 = vrcp.pop %v6393
    %v6416 = vrcp.pop %v6396
    %v6417 = vrcp.pop %v6399
    %v6418 = vrcp.pop %v6402
    %v6419 = vmul.f32 %v6324, %v6403
    %v6420 = vmul.f32 %v6326, %v6404
    %v6421 = vmul.f32 %v6328, %v6405
    %v6422 = vmul.f32 %v6330, %v6406
    %v6423 = vmul.f32 %v6332, %v6407
    %v6424 = vmul.f32 %v6334, %v6408
    %v6425 = vmul.f32 %v6336, %v6409
    %v6426 = vmul.f32 %v6338, %v6410
    %v6427 = vmul.f32 %v6340, %v6411
    %v6428 = vmul.f32 %v6342, %v6412
    %v6429 = vmul.f32 %v6344, %v6413
    %v6430 = vmul.f32 %v6346, %v6414
    %v6431 = vmul.f32 %v6348, %v6415
    %v6432 = vmul.f32 %v6350, %v6416
    %v6433 = vmul.f32 %v6352, %v6417
    %v6434 = vmul.f32 %v6354, %v6418
    %6437 = vrot.lane.b32.xlu0 %v5483, 80
    %v6438 = vpop.permute.xlu0 %6437
    %6439 = vrot.lane.b32.xlu0 %v5484, 80
    %v6440 = vpop.permute.xlu0 %6439
    %v6444 = vsel %vm378, %v6419, 0
    %v6447 = vsel %vm378, %v6420, 0
    %6449 = vmatprep.subr.mxu0 0.0
    %6450 = vmatpush1.msra.mxu0 %v6438
    %6451 = vmatprep.subr.mxu0 0.0
    %6452 = vmatpush1.msra.mxu0 %v6440
    %6453 = vmatprep.subr.mxu0 0.0
    %6454 = vmatpush1.msra.mxu0 0.0
    %6455 = vmatprep.subr.mxu0 0.0
    %6456 = vmatpush1.msra.mxu0 0.0
    %6457 = vmatprep.subr.mxu0 0.0
    %6458 = vmatpush1.msra.mxu0 0.0
    %6459 = vmatprep.subr.mxu0 0.0
    %6460 = vmatpush1.msra.mxu0 0.0
    %6461 = vmatprep.subr.mxu0 0.0
    %6462 = vmatpush1.msra.mxu0 0.0
    %6463 = vmatprep.subr.mxu0 0.0
    %6464 = vmatpush1.msra.mxu0 0.0
    %6465 = vmatprep.subr.mxu0 0.0
    %6466 = vmatpush1.msra.mxu0 0.0
    %6467 = vmatprep.subr.mxu0 0.0
    %6468 = vmatpush1.msra.mxu0 0.0
    %6469 = vmatprep.subr.mxu0 0.0
    %6470 = vmatpush1.msra.mxu0 0.0
    %6471 = vmatprep.subr.mxu0 0.0
    %6472 = vmatpush1.msra.mxu0 0.0
    %6473 = vmatprep.subr.mxu0 0.0
    %6474 = vmatpush1.msra.mxu0 0.0
    %6475 = vmatprep.subr.mxu0 0.0
    %6476 = vmatpush1.msra.mxu0 0.0
    %6477 = vmatprep.subr.mxu0 0.0
    %6478 = vmatpush1.msra.mxu0 0.0
    %6479 = vmatprep.subr.mxu0 0.0
    %6480 = vmatpush1.msra.mxu0 0.0
    %6481 = vmatprep.subr.mxu0 0.0
    %6482 = vmatpush1.msra.mxu0 0.0
    %6483 = vmatprep.subr.mxu0 0.0
    %6484 = vmatpush1.msra.mxu0 0.0
    %6485 = vmatprep.subr.mxu0 0.0
    %6486 = vmatpush1.msra.mxu0 0.0
    %6487 = vmatprep.subr.mxu0 0.0
    %6488 = vmatpush1.msra.mxu0 0.0
    %6489 = vmatprep.subr.mxu0 0.0
    %6490 = vmatpush1.msra.mxu0 0.0
    %6491 = vmatprep.subr.mxu0 0.0
    %6492 = vmatpush1.msra.mxu0 0.0
    %6493 = vmatprep.subr.mxu0 0.0
    %6494 = vmatpush1.msra.mxu0 0.0
    %6495 = vmatprep.subr.mxu0 0.0
    %6496 = vmatpush1.msra.mxu0 0.0
    %6497 = vmatprep.subr.mxu0 0.0
    %6498 = vmatpush1.msra.mxu0 0.0
    %6499 = vmatprep.subr.mxu0 0.0
    %6500 = vmatpush1.msra.mxu0 0.0
    %6501 = vmatprep.subr.mxu0 0.0
    %6502 = vmatpush1.msra.mxu0 0.0
    %6503 = vmatprep.subr.mxu0 0.0
    %6504 = vmatpush1.msra.mxu0 0.0
    %6505 = vmatprep.subr.mxu0 0.0
    %6506 = vmatpush1.msra.mxu0 0.0
    %6507 = vmatprep.subr.mxu0 0.0
    %6508 = vmatpush1.msra.mxu0 0.0
    %6509 = vmatprep.subr.mxu0 0.0
    %6510 = vmatpush1.msra.mxu0 0.0
    %6511 = vmatprep.subr.mxu0 0.0
    %6512 = vmatpush1.msra.mxu0 0.0
    %6513 = vmatprep.mubr.f32.mxu0 0.0
    %6514 = vmatmul.mubr.f32.gmra.mrb[0].mxu0 %v6444
    %v6515 = vpop.f32.mrb[0].mxu0
    %v6516 = vadd.f32 0.0, %v6515
    %v6517 = vpop.f32.mrb[0].mxu0
    %6518 = vmatprep.mubr.f32.mxu0 0.0
    %6519 = vmatmul.mubr.f32.gmra.mrb[0].mxu0 %v6447
    %v6520 = vpop.f32.mrb[0].mxu0
    %v6521 = vadd.f32 0.0, %v6520
    %v6522 = vpop.f32.mrb[0].mxu0
    %6523 = vdwg.mxu0
    %6526 = vrot.lane.b32.xlu0 %v5485, 80
    %v6527 = vpop.permute.xlu0 %6526
    %6528 = vrot.lane.b32.xlu0 %v5486, 80
    %v6529 = vpop.permute.xlu0 %6528
    %v6533 = vsel %vm378, %v6421, 0
    %v6536 = vsel %vm378, %v6422, 0
    %6538 = vmatprep.subr.mxu0 0.0
    %6539 = vmatpush1.msra.mxu0 %v6527
    %6540 = vmatprep.subr.mxu0 0.0
    %6541 = vmatpush1.msra.mxu0 %v6529
    %6542 = vmatprep.subr.mxu0 0.0
    %6543 = vmatpush1.msra.mxu0 0.0
    %6544 = vmatprep.subr.mxu0 0.0
    %6545 = vmatpush1.msra.mxu0 0.0
    %6546 = vmatprep.subr.mxu0 0.0
    %6547 = vmatpush1.msra.mxu0 0.0
    %6548 = vmatprep.subr.mxu0 0.0
    %6549 = vmatpush1.msra.mxu0 0.0
    %6550 = vmatprep.subr.mxu0 0.0
    %6551 = vmatpush1.msra.mxu0 0.0
    %6552 = vmatprep.subr.mxu0 0.0
    %6553 = vmatpush1.msra.mxu0 0.0
    %6554 = vmatprep.subr.mxu0 0.0
    %6555 = vmatpush1.msra.mxu0 0.0
    %6556 = vmatprep.subr.mxu0 0.0
    %6557 = vmatpush1.msra.mxu0 0.0
    %6558 = vmatprep.subr.mxu0 0.0
    %6559 = vmatpush1.msra.mxu0 0.0
    %6560 = vmatprep.subr.mxu0 0.0
    %6561 = vmatpush1.msra.mxu0 0.0
    %6562 = vmatprep.subr.mxu0 0.0
    %6563 = vmatpush1.msra.mxu0 0.0
    %6564 = vmatprep.subr.mxu0 0.0
    %6565 = vmatpush1.msra.mxu0 0.0
    %6566 = vmatprep.subr.mxu0 0.0
    %6567 = vmatpush1.msra.mxu0 0.0
    %6568 = vmatprep.subr.mxu0 0.0
    %6569 = vmatpush1.msra.mxu0 0.0
    %6570 = vmatprep.subr.mxu0 0.0
    %6571 = vmatpush1.msra.mxu0 0.0
    %6572 = vmatprep.subr.mxu0 0.0
    %6573 = vmatpush1.msra.mxu0 0.0
    %6574 = vmatprep.subr.mxu0 0.0
    %6575 = vmatpush1.msra.mxu0 0.0
    %6576 = vmatprep.subr.mxu0 0.0
    %6577 = vmatpush1.msra.mxu0 0.0
    %6578 = vmatprep.subr.mxu0 0.0
    %6579 = vmatpush1.msra.mxu0 0.0
    %6580 = vmatprep.subr.mxu0 0.0
    %6581 = vmatpush1.msra.mxu0 0.0
    %6582 = vmatprep.subr.mxu0 0.0
    %6583 = vmatpush1.msra.mxu0 0.0
    %6584 = vmatprep.subr.mxu0 0.0
    %6585 = vmatpush1.msra.mxu0 0.0
    %6586 = vmatprep.subr.mxu0 0.0
    %6587 = vmatpush1.msra.mxu0 0.0
    %6588 = vmatprep.subr.mxu0 0.0
    %6589 = vmatpush1.msra.mxu0 0.0
    %6590 = vmatprep.subr.mxu0 0.0
    %6591 = vmatpush1.msra.mxu0 0.0
    %6592 = vmatprep.subr.mxu0 0.0
    %6593 = vmatpush1.msra.mxu0 0.0
    %6594 = vmatprep.subr.mxu0 0.0
    %6595 = vmatpush1.msra.mxu0 0.0
    %6596 = vmatprep.subr.mxu0 0.0
    %6597 = vmatpush1.msra.mxu0 0.0
    %6598 = vmatprep.subr.mxu0 0.0
    %6599 = vmatpush1.msra.mxu0 0.0
    %6600 = vmatprep.subr.mxu0 0.0
    %6601 = vmatpush1.msra.mxu0 0.0
    %6602 = vmatprep.mubr.f32.mxu0 0.0
    %6603 = vmatmul.mubr.f32.gmra.mrb[0].mxu0 %v6533
    %v6604 = vpop.f32.mrb[0].mxu0
    %v6605 = vadd.f32 0.0, %v6604
    %v6606 = vpop.f32.mrb[0].mxu0
    %6607 = vmatprep.mubr.f32.mxu0 0.0
    %6608 = vmatmul.mubr.f32.gmra.mrb[0].mxu0 %v6536
    %v6609 = vpop.f32.mrb[0].mxu0
    %v6610 = vadd.f32 0.0, %v6609
    %v6611 = vpop.f32.mrb[0].mxu0
    %6612 = vdwg.mxu0
    %6615 = vrot.lane.b32.xlu0 %v5487, 80
    %v6616 = vpop.permute.xlu0 %6615
    %6617 = vrot.lane.b32.xlu0 %v5488, 80
    %v6618 = vpop.permute.xlu0 %6617
    %v6622 = vsel %vm378, %v6423, 0
    %v6625 = vsel %vm378, %v6424, 0
    %6627 = vmatprep.subr.mxu0 0.0
    %6628 = vmatpush1.msra.mxu0 %v6616
    %6629 = vmatprep.subr.mxu0 0.0
    %6630 = vmatpush1.msra.mxu0 %v6618
    %6631 = vmatprep.subr.mxu0 0.0
    %6632 = vmatpush1.msra.mxu0 0.0
    %6633 = vmatprep.subr.mxu0 0.0
    %6634 = vmatpush1.msra.mxu0 0.0
    %6635 = vmatprep.subr.mxu0 0.0
    %6636 = vmatpush1.msra.mxu0 0.0
    %6637 = vmatprep.subr.mxu0 0.0
    %6638 = vmatpush1.msra.mxu0 0.0
    %6639 = vmatprep.subr.mxu0 0.0
    %6640 = vmatpush1.msra.mxu0 0.0
    %6641 = vmatprep.subr.mxu0 0.0
    %6642 = vmatpush1.msra.mxu0 0.0
    %6643 = vmatprep.subr.mxu0 0.0
    %6644 = vmatpush1.msra.mxu0 0.0
    %6645 = vmatprep.subr.mxu0 0.0
    %6646 = vmatpush1.msra.mxu0 0.0
    %6647 = vmatprep.subr.mxu0 0.0
    %6648 = vmatpush1.msra.mxu0 0.0
    %6649 = vmatprep.subr.mxu0 0.0
    %6650 = vmatpush1.msra.mxu0 0.0
    %6651 = vmatprep.subr.mxu0 0.0
    %6652 = vmatpush1.msra.mxu0 0.0
    %6653 = vmatprep.subr.mxu0 0.0
    %6654 = vmatpush1.msra.mxu0 0.0
    %6655 = vmatprep.subr.mxu0 0.0
    %6656 = vmatpush1.msra.mxu0 0.0
    %6657 = vmatprep.subr.mxu0 0.0
    %6658 = vmatpush1.msra.mxu0 0.0
    %6659 = vmatprep.subr.mxu0 0.0
    %6660 = vmatpush1.msra.mxu0 0.0
    %6661 = vmatprep.subr.mxu0 0.0
    %6662 = vmatpush1.msra.mxu0 0.0
    %6663 = vmatprep.subr.mxu0 0.0
    %6664 = vmatpush1.msra.mxu0 0.0
    %6665 = vmatprep.subr.mxu0 0.0
    %6666 = vmatpush1.msra.mxu0 0.0
    %6667 = vmatprep.subr.mxu0 0.0
    %6668 = vmatpush1.msra.mxu0 0.0
    %6669 = vmatprep.subr.mxu0 0.0
    %6670 = vmatpush1.msra.mxu0 0.0
    %6671 = vmatprep.subr.mxu0 0.0
    %6672 = vmatpush1.msra.mxu0 0.0
    %6673 = vmatprep.subr.mxu0 0.0
    %6674 = vmatpush1.msra.mxu0 0.0
    %6675 = vmatprep.subr.mxu0 0.0
    %6676 = vmatpush1.msra.mxu0 0.0
    %6677 = vmatprep.subr.mxu0 0.0
    %6678 = vmatpush1.msra.mxu0 0.0
    %6679 = vmatprep.subr.mxu0 0.0
    %6680 = vmatpush1.msra.mxu0 0.0
    %6681 = vmatprep.subr.mxu0 0.0
    %6682 = vmatpush1.msra.mxu0 0.0
    %6683 = vmatprep.subr.mxu0 0.0
    %6684 = vmatpush1.msra.mxu0 0.0
    %6685 = vmatprep.subr.mxu0 0.0
    %6686 = vmatpush1.msra.mxu0 0.0
    %6687 = vmatprep.subr.mxu0 0.0
    %6688 = vmatpush1.msra.mxu0 0.0
    %6689 = vmatprep.subr.mxu0 0.0
    %6690 = vmatpush1.msra.mxu0 0.0
    %6691 = vmatprep.mubr.f32.mxu0 0.0
    %6692 = vmatmul.mubr.f32.gmra.mrb[0].mxu0 %v6622
    %v6693 = vpop.f32.mrb[0].mxu0
    %v6694 = vadd.f32 0.0, %v6693
    %v6695 = vpop.f32.mrb[0].mxu0
    %6696 = vmatprep.mubr.f32.mxu0 0.0
    %6697 = vmatmul.mubr.f32.gmra.mrb[0].mxu0 %v6625
    %v6698 = vpop.f32.mrb[0].mxu0
    %v6699 = vadd.f32 0.0, %v6698
    %v6700 = vpop.f32.mrb[0].mxu0
    %6701 = vdwg.mxu0
    %6704 = vrot.lane.b32.xlu0 %v5489, 80
    %v6705 = vpop.permute.xlu0 %6704
    %6706 = vrot.lane.b32.xlu0 %v5490, 80
    %v6707 = vpop.permute.xlu0 %6706
    %v6711 = vsel %vm378, %v6425, 0
    %v6714 = vsel %vm378, %v6426, 0
    %6716 = vmatprep.subr.mxu0 0.0
    %6717 = vmatpush1.msra.mxu0 %v6705
    %6718 = vmatprep.subr.mxu0 0.0
    %6719 = vmatpush1.msra.mxu0 %v6707
    %6720 = vmatprep.subr.mxu0 0.0
    %6721 = vmatpush1.msra.mxu0 0.0
    %6722 = vmatprep.subr.mxu0 0.0
    %6723 = vmatpush1.msra.mxu0 0.0
    %6724 = vmatprep.subr.mxu0 0.0
    %6725 = vmatpush1.msra.mxu0 0.0
    %6726 = vmatprep.subr.mxu0 0.0
    %6727 = vmatpush1.msra.mxu0 0.0
    %6728 = vmatprep.subr.mxu0 0.0
    %6729 = vmatpush1.msra.mxu0 0.0
    %6730 = vmatprep.subr.mxu0 0.0
    %6731 = vmatpush1.msra.mxu0 0.0
    %6732 = vmatprep.subr.mxu0 0.0
    %6733 = vmatpush1.msra.mxu0 0.0
    %6734 = vmatprep.subr.mxu0 0.0
    %6735 = vmatpush1.msra.mxu0 0.0
    %6736 = vmatprep.subr.mxu0 0.0
    %6737 = vmatpush1.msra.mxu0 0.0
    %6738 = vmatprep.subr.mxu0 0.0
    %6739 = vmatpush1.msra.mxu0 0.0
    %6740 = vmatprep.subr.mxu0 0.0
    %6741 = vmatpush1.msra.mxu0 0.0
    %6742 = vmatprep.subr.mxu0 0.0
    %6743 = vmatpush1.msra.mxu0 0.0
    %6744 = vmatprep.subr.mxu0 0.0
    %6745 = vmatpush1.msra.mxu0 0.0
    %6746 = vmatprep.subr.mxu0 0.0
    %6747 = vmatpush1.msra.mxu0 0.0
    %6748 = vmatprep.subr.mxu0 0.0
    %6749 = vmatpush1.msra.mxu0 0.0
    %6750 = vmatprep.subr.mxu0 0.0
    %6751 = vmatpush1.msra.mxu0 0.0
    %6752 = vmatprep.subr.mxu0 0.0
    %6753 = vmatpush1.msra.mxu0 0.0
    %6754 = vmatprep.subr.mxu0 0.0
    %6755 = vmatpush1.msra.mxu0 0.0
    %6756 = vmatprep.subr.mxu0 0.0
    %6757 = vmatpush1.msra.mxu0 0.0
    %6758 = vmatprep.subr.mxu0 0.0
    %6759 = vmatpush1.msra.mxu0 0.0
    %6760 = vmatprep.subr.mxu0 0.0
    %6761 = vmatpush1.msra.mxu0 0.0
    %6762 = vmatprep.subr.mxu0 0.0
    %6763 = vmatpush1.msra.mxu0 0.0
    %6764 = vmatprep.subr.mxu0 0.0
    %6765 = vmatpush1.msra.mxu0 0.0
    %6766 = vmatprep.subr.mxu0 0.0
    %6767 = vmatpush1.msra.mxu0 0.0
    %6768 = vmatprep.subr.mxu0 0.0
    %6769 = vmatpush1.msra.mxu0 0.0
    %6770 = vmatprep.subr.mxu0 0.0
    %6771 = vmatpush1.msra.mxu0 0.0
    %6772 = vmatprep.subr.mxu0 0.0
    %6773 = vmatpush1.msra.mxu0 0.0
    %6774 = vmatprep.subr.mxu0 0.0
    %6775 = vmatpush1.msra.mxu0 0.0
    %6776 = vmatprep.subr.mxu0 0.0
    %6777 = vmatpush1.msra.mxu0 0.0
    %6778 = vmatprep.subr.mxu0 0.0
    %6779 = vmatpush1.msra.mxu0 0.0
    %6780 = vmatprep.mubr.f32.mxu0 0.0
    %6781 = vmatmul.mubr.f32.gmra.mrb[0].mxu0 %v6711
    %v6782 = vpop.f32.mrb[0].mxu0
    %v6783 = vadd.f32 0.0, %v6782
    %v6784 = vpop.f32.mrb[0].mxu0
    %6785 = vmatprep.mubr.f32.mxu0 0.0
    %6786 = vmatmul.mubr.f32.gmra.mrb[0].mxu0 %v6714
    %v6787 = vpop.f32.mrb[0].mxu0
    %v6788 = vadd.f32 0.0, %v6787
    %v6789 = vpop.f32.mrb[0].mxu0
    %6790 = vdwg.mxu0
    %6793 = vrot.lane.b32.xlu0 %v5491, 80
    %v6794 = vpop.permute.xlu0 %6793
    %6795 = vrot.lane.b32.xlu0 %v5492, 80
    %v6796 = vpop.permute.xlu0 %6795
    %v6800 = vsel %vm378, %v6427, 0
    %v6803 = vsel %vm378, %v6428, 0
    %6805 = vmatprep.subr.mxu0 0.0
    %6806 = vmatpush1.msra.mxu0 %v6794
    %6807 = vmatprep.subr.mxu0 0.0
    %6808 = vmatpush1.msra.mxu0 %v6796
    %6809 = vmatprep.subr.mxu0 0.0
    %6810 = vmatpush1.msra.mxu0 0.0
    %6811 = vmatprep.subr.mxu0 0.0
    %6812 = vmatpush1.msra.mxu0 0.0
    %6813 = vmatprep.subr.mxu0 0.0
    %6814 = vmatpush1.msra.mxu0 0.0
    %6815 = vmatprep.subr.mxu0 0.0
    %6816 = vmatpush1.msra.mxu0 0.0
    %6817 = vmatprep.subr.mxu0 0.0
    %6818 = vmatpush1.msra.mxu0 0.0
    %6819 = vmatprep.subr.mxu0 0.0
    %6820 = vmatpush1.msra.mxu0 0.0
    %6821 = vmatprep.subr.mxu0 0.0
    %6822 = vmatpush1.msra.mxu0 0.0
    %6823 = vmatprep.subr.mxu0 0.0
    %6824 = vmatpush1.msra.mxu0 0.0
    %6825 = vmatprep.subr.mxu0 0.0
    %6826 = vmatpush1.msra.mxu0 0.0
    %6827 = vmatprep.subr.mxu0 0.0
    %6828 = vmatpush1.msra.mxu0 0.0
    %6829 = vmatprep.subr.mxu0 0.0
    %6830 = vmatpush1.msra.mxu0 0.0
    %6831 = vmatprep.subr.mxu0 0.0
    %6832 = vmatpush1.msra.mxu0 0.0
    %6833 = vmatprep.subr.mxu0 0.0
    %6834 = vmatpush1.msra.mxu0 0.0
    %6835 = vmatprep.subr.mxu0 0.0
    %6836 = vmatpush1.msra.mxu0 0.0
    %6837 = vmatprep.subr.mxu0 0.0
    %6838 = vmatpush1.msra.mxu0 0.0
    %6839 = vmatprep.subr.mxu0 0.0
    %6840 = vmatpush1.msra.mxu0 0.0
    %6841 = vmatprep.subr.mxu0 0.0
    %6842 = vmatpush1.msra.mxu0 0.0
    %6843 = vmatprep.subr.mxu0 0.0
    %6844 = vmatpush1.msra.mxu0 0.0
    %6845 = vmatprep.subr.mxu0 0.0
    %6846 = vmatpush1.msra.mxu0 0.0
    %6847 = vmatprep.subr.mxu0 0.0
    %6848 = vmatpush1.msra.mxu0 0.0
    %6849 = vmatprep.subr.mxu0 0.0
    %6850 = vmatpush1.msra.mxu0 0.0
    %6851 = vmatprep.subr.mxu0 0.0
    %6852 = vmatpush1.msra.mxu0 0.0
    %6853 = vmatprep.subr.mxu0 0.0
    %6854 = vmatpush1.msra.mxu0 0.0
    %6855 = vmatprep.subr.mxu0 0.0
    %6856 = vmatpush1.msra.mxu0 0.0
    %6857 = vmatprep.subr.mxu0 0.0
    %6858 = vmatpush1.msra.mxu0 0.0
    %6859 = vmatprep.subr.mxu0 0.0
    %6860 = vmatpush1.msra.mxu0 0.0
    %6861 = vmatprep.subr.mxu0 0.0
    %6862 = vmatpush1.msra.mxu0 0.0
    %6863 = vmatprep.subr.mxu0 0.0
    %6864 = vmatpush1.msra.mxu0 0.0
    %6865 = vmatprep.subr.mxu0 0.0
    %6866 = vmatpush1.msra.mxu0 0.0
    %6867 = vmatprep.subr.mxu0 0.0
    %6868 = vmatpush1.msra.mxu0 0.0
    %6869 = vmatprep.mubr.f32.mxu0 0.0
    %6870 = vmatmul.mubr.f32.gmra.mrb[0].mxu0 %v6800
    %v6871 = vpop.f32.mrb[0].mxu0
    %v6872 = vadd.f32 0.0, %v6871
    %v6873 = vpop.f32.mrb[0].mxu0
    %6874 = vmatprep.mubr.f32.mxu0 0.0
    %6875 = vmatmul.mubr.f32.gmra.mrb[0].mxu0 %v6803
    %v6876 = vpop.f32.mrb[0].mxu0
    %v6877 = vadd.f32 0.0, %v6876
    %v6878 = vpop.f32.mrb[0].mxu0
    %6879 = vdwg.mxu0
    %6882 = vrot.lane.b32.xlu0 %v5493, 80
    %v6883 = vpop.permute.xlu0 %6882
    %6884 = vrot.lane.b32.xlu0 %v5494, 80
    %v6885 = vpop.permute.xlu0 %6884
    %v6889 = vsel %vm378, %v6429, 0
    %v6892 = vsel %vm378, %v6430, 0
    %6894 = vmatprep.subr.mxu0 0.0
    %6895 = vmatpush1.msra.mxu0 %v6883
    %6896 = vmatprep.subr.mxu0 0.0
    %6897 = vmatpush1.msra.mxu0 %v6885
    %6898 = vmatprep.subr.mxu0 0.0
    %6899 = vmatpush1.msra.mxu0 0.0
    %6900 = vmatprep.subr.mxu0 0.0
    %6901 = vmatpush1.msra.mxu0 0.0
    %6902 = vmatprep.subr.mxu0 0.0
    %6903 = vmatpush1.msra.mxu0 0.0
    %6904 = vmatprep.subr.mxu0 0.0
    %6905 = vmatpush1.msra.mxu0 0.0
    %6906 = vmatprep.subr.mxu0 0.0
    %6907 = vmatpush1.msra.mxu0 0.0
    %6908 = vmatprep.subr.mxu0 0.0
    %6909 = vmatpush1.msra.mxu0 0.0
    %6910 = vmatprep.subr.mxu0 0.0
    %6911 = vmatpush1.msra.mxu0 0.0
    %6912 = vmatprep.subr.mxu0 0.0
    %6913 = vmatpush1.msra.mxu0 0.0
    %6914 = vmatprep.subr.mxu0 0.0
    %6915 = vmatpush1.msra.mxu0 0.0
    %6916 = vmatprep.subr.mxu0 0.0
    %6917 = vmatpush1.msra.mxu0 0.0
    %6918 = vmatprep.subr.mxu0 0.0
    %6919 = vmatpush1.msra.mxu0 0.0
    %6920 = vmatprep.subr.mxu0 0.0
    %6921 = vmatpush1.msra.mxu0 0.0
    %6922 = vmatprep.subr.mxu0 0.0
    %6923 = vmatpush1.msra.mxu0 0.0
    %6924 = vmatprep.subr.mxu0 0.0
    %6925 = vmatpush1.msra.mxu0 0.0
    %6926 = vmatprep.subr.mxu0 0.0
    %6927 = vmatpush1.msra.mxu0 0.0
    %6928 = vmatprep.subr.mxu0 0.0
    %6929 = vmatpush1.msra.mxu0 0.0
    %6930 = vmatprep.subr.mxu0 0.0
    %6931 = vmatpush1.msra.mxu0 0.0
    %6932 = vmatprep.subr.mxu0 0.0
    %6933 = vmatpush1.msra.mxu0 0.0
    %6934 = vmatprep.subr.mxu0 0.0
    %6935 = vmatpush1.msra.mxu0 0.0
    %6936 = vmatprep.subr.mxu0 0.0
    %6937 = vmatpush1.msra.mxu0 0.0
    %6938 = vmatprep.subr.mxu0 0.0
    %6939 = vmatpush1.msra.mxu0 0.0
    %6940 = vmatprep.subr.mxu0 0.0
    %6941 = vmatpush1.msra.mxu0 0.0
    %6942 = vmatprep.subr.mxu0 0.0
    %6943 = vmatpush1.msra.mxu0 0.0
    %6944 = vmatprep.subr.mxu0 0.0
    %6945 = vmatpush1.msra.mxu0 0.0
    %6946 = vmatprep.subr.mxu0 0.0
    %6947 = vmatpush1.msra.mxu0 0.0
    %6948 = vmatprep.subr.mxu0 0.0
    %6949 = vmatpush1.msra.mxu0 0.0
    %6950 = vmatprep.subr.mxu0 0.0
    %6951 = vmatpush1.msra.mxu0 0.0
    %6952 = vmatprep.subr.mxu0 0.0
    %6953 = vmatpush1.msra.mxu0 0.0
    %6954 = vmatprep.subr.mxu0 0.0
    %6955 = vmatpush1.msra.mxu0 0.0
    %6956 = vmatprep.subr.mxu0 0.0
    %6957 = vmatpush1.msra.mxu0 0.0
    %6958 = vmatprep.mubr.f32.mxu0 0.0
    %6959 = vmatmul.mubr.f32.gmra.mrb[0].mxu0 %v6889
    %v6960 = vpop.f32.mrb[0].mxu0
    %v6961 = vadd.f32 0.0, %v6960
    %v6962 = vpop.f32.mrb[0].mxu0
    %6963 = vmatprep.mubr.f32.mxu0 0.0
    %6964 = vmatmul.mubr.f32.gmra.mrb[0].mxu0 %v6892
    %v6965 = vpop.f32.mrb[0].mxu0
    %v6966 = vadd.f32 0.0, %v6965
    %v6967 = vpop.f32.mrb[0].mxu0
    %6968 = vdwg.mxu0
    %6971 = vrot.lane.b32.xlu0 %v5495, 80
    %v6972 = vpop.permute.xlu0 %6971
    %6973 = vrot.lane.b32.xlu0 %v5496, 80
    %v6974 = vpop.permute.xlu0 %6973
    %v6978 = vsel %vm378, %v6431, 0
    %v6981 = vsel %vm378, %v6432, 0
    %6983 = vmatprep.subr.mxu0 0.0
    %6984 = vmatpush1.msra.mxu0 %v6972
    %6985 = vmatprep.subr.mxu0 0.0
    %6986 = vmatpush1.msra.mxu0 %v6974
    %6987 = vmatprep.subr.mxu0 0.0
    %6988 = vmatpush1.msra.mxu0 0.0
    %6989 = vmatprep.subr.mxu0 0.0
    %6990 = vmatpush1.msra.mxu0 0.0
    %6991 = vmatprep.subr.mxu0 0.0
    %6992 = vmatpush1.msra.mxu0 0.0
    %6993 = vmatprep.subr.mxu0 0.0
    %6994 = vmatpush1.msra.mxu0 0.0
    %6995 = vmatprep.subr.mxu0 0.0
    %6996 = vmatpush1.msra.mxu0 0.0
    %6997 = vmatprep.subr.mxu0 0.0
    %6998 = vmatpush1.msra.mxu0 0.0
    %6999 = vmatprep.subr.mxu0 0.0
    %7000 = vmatpush1.msra.mxu0 0.0
    %7001 = vmatprep.subr.mxu0 0.0
    %7002 = vmatpush1.msra.mxu0 0.0
    %7003 = vmatprep.subr.mxu0 0.0
    %7004 = vmatpush1.msra.mxu0 0.0
    %7005 = vmatprep.subr.mxu0 0.0
    %7006 = vmatpush1.msra.mxu0 0.0
    %7007 = vmatprep.subr.mxu0 0.0
    %7008 = vmatpush1.msra.mxu0 0.0
    %7009 = vmatprep.subr.mxu0 0.0
    %7010 = vmatpush1.msra.mxu0 0.0
    %7011 = vmatprep.subr.mxu0 0.0
    %7012 = vmatpush1.msra.mxu0 0.0
    %7013 = vmatprep.subr.mxu0 0.0
    %7014 = vmatpush1.msra.mxu0 0.0
    %7015 = vmatprep.subr.mxu0 0.0
    %7016 = vmatpush1.msra.mxu0 0.0
    %7017 = vmatprep.subr.mxu0 0.0
    %7018 = vmatpush1.msra.mxu0 0.0
    %7019 = vmatprep.subr.mxu0 0.0
    %7020 = vmatpush1.msra.mxu0 0.0
    %7021 = vmatprep.subr.mxu0 0.0
    %7022 = vmatpush1.msra.mxu0 0.0
    %7023 = vmatprep.subr.mxu0 0.0
    %7024 = vmatpush1.msra.mxu0 0.0
    %7025 = vmatprep.subr.mxu0 0.0
    %7026 = vmatpush1.msra.mxu0 0.0
    %7027 = vmatprep.subr.mxu0 0.0
    %7028 = vmatpush1.msra.mxu0 0.0
    %7029 = vmatprep.subr.mxu0 0.0
    %7030 = vmatpush1.msra.mxu0 0.0
    %7031 = vmatprep.subr.mxu0 0.0
    %7032 = vmatpush1.msra.mxu0 0.0
    %7033 = vmatprep.subr.mxu0 0.0
    %7034 = vmatpush1.msra.mxu0 0.0
    %7035 = vmatprep.subr.mxu0 0.0
    %7036 = vmatpush1.msra.mxu0 0.0
    %7037 = vmatprep.subr.mxu0 0.0
    %7038 = vmatpush1.msra.mxu0 0.0
    %7039 = vmatprep.subr.mxu0 0.0
    %7040 = vmatpush1.msra.mxu0 0.0
    %7041 = vmatprep.subr.mxu0 0.0
    %7042 = vmatpush1.msra.mxu0 0.0
    %7043 = vmatprep.subr.mxu0 0.0
    %7044 = vmatpush1.msra.mxu0 0.0
    %7045 = vmatprep.subr.mxu0 0.0
    %7046 = vmatpush1.msra.mxu0 0.0
    %7047 = vmatprep.mubr.f32.mxu0 0.0
    %7048 = vmatmul.mubr.f32.gmra.mrb[0].mxu0 %v6978
    %v7049 = vpop.f32.mrb[0].mxu0
    %v7050 = vadd.f32 0.0, %v7049
    %v7051 = vpop.f32.mrb[0].mxu0
    %7052 = vmatprep.mubr.f32.mxu0 0.0
    %7053 = vmatmul.mubr.f32.gmra.mrb[0].mxu0 %v6981
    %v7054 = vpop.f32.mrb[0].mxu0
    %v7055 = vadd.f32 0.0, %v7054
    %v7056 = vpop.f32.mrb[0].mxu0
    %7057 = vdwg.mxu0
    %7060 = vrot.lane.b32.xlu0 %v5497, 80
    %v7061 = vpop.permute.xlu0 %7060
    %7062 = vrot.lane.b32.xlu0 %v5498, 80
    %v7063 = vpop.permute.xlu0 %7062
    %v7067 = vsel %vm378, %v6433, 0
    %v7070 = vsel %vm378, %v6434, 0
    %7072 = vmatprep.subr.mxu0 0.0
    %7073 = vmatpush1.msra.mxu0 %v7061
    %7074 = vmatprep.subr.mxu0 0.0
    %7075 = vmatpush1.msra.mxu0 %v7063
    %7076 = vmatprep.subr.mxu0 0.0
    %7077 = vmatpush1.msra.mxu0 0.0
    %7078 = vmatprep.subr.mxu0 0.0
    %7079 = vmatpush1.msra.mxu0 0.0
    %7080 = vmatprep.subr.mxu0 0.0
    %7081 = vmatpush1.msra.mxu0 0.0
    %7082 = vmatprep.subr.mxu0 0.0
    %7083 = vmatpush1.msra.mxu0 0.0
    %7084 = vmatprep.subr.mxu0 0.0
    %7085 = vmatpush1.msra.mxu0 0.0
    %7086 = vmatprep.subr.mxu0 0.0
    %7087 = vmatpush1.msra.mxu0 0.0
    %7088 = vmatprep.subr.mxu0 0.0
    %7089 = vmatpush1.msra.mxu0 0.0
    %7090 = vmatprep.subr.mxu0 0.0
    %7091 = vmatpush1.msra.mxu0 0.0
    %7092 = vmatprep.subr.mxu0 0.0
    %7093 = vmatpush1.msra.mxu0 0.0
    %7094 = vmatprep.subr.mxu0 0.0
    %7095 = vmatpush1.msra.mxu0 0.0
    %7096 = vmatprep.subr.mxu0 0.0
    %7097 = vmatpush1.msra.mxu0 0.0
    %7098 = vmatprep.subr.mxu0 0.0
    %7099 = vmatpush1.msra.mxu0 0.0
    %7100 = vmatprep.subr.mxu0 0.0
    %7101 = vmatpush1.msra.mxu0 0.0
    %7102 = vmatprep.subr.mxu0 0.0
    %7103 = vmatpush1.msra.mxu0 0.0
    %7104 = vmatprep.subr.mxu0 0.0
    %7105 = vmatpush1.msra.mxu0 0.0
    %7106 = vmatprep.subr.mxu0 0.0
    %7107 = vmatpush1.msra.mxu0 0.0
    %7108 = vmatprep.subr.mxu0 0.0
    %7109 = vmatpush1.msra.mxu0 0.0
    %7110 = vmatprep.subr.mxu0 0.0
    %7111 = vmatpush1.msra.mxu0 0.0
    %7112 = vmatprep.subr.mxu0 0.0
    %7113 = vmatpush1.msra.mxu0 0.0
    %7114 = vmatprep.subr.mxu0 0.0
    %7115 = vmatpush1.msra.mxu0 0.0
    %7116 = vmatprep.subr.mxu0 0.0
    %7117 = vmatpush1.msra.mxu0 0.0
    %7118 = vmatprep.subr.mxu0 0.0
    %7119 = vmatpush1.msra.mxu0 0.0
    %7120 = vmatprep.subr.mxu0 0.0
    %7121 = vmatpush1.msra.mxu0 0.0
    %7122 = vmatprep.subr.mxu0 0.0
    %7123 = vmatpush1.msra.mxu0 0.0
    %7124 = vmatprep.subr.mxu0 0.0
    %7125 = vmatpush1.msra.mxu0 0.0
    %7126 = vmatprep.subr.mxu0 0.0
    %7127 = vmatpush1.msra.mxu0 0.0
    %7128 = vmatprep.subr.mxu0 0.0
    %7129 = vmatpush1.msra.mxu0 0.0
    %7130 = vmatprep.subr.mxu0 0.0
    %7131 = vmatpush1.msra.mxu0 0.0
    %7132 = vmatprep.subr.mxu0 0.0
    %7133 = vmatpush1.msra.mxu0 0.0
    %7134 = vmatprep.subr.mxu0 0.0
    %7135 = vmatpush1.msra.mxu0 0.0
    %7136 = vmatprep.mubr.f32.mxu0 0.0
    %7137 = vmatmul.mubr.f32.gmra.mrb[0].mxu0 %v7067
    %v7138 = vpop.f32.mrb[0].mxu0
    %v7139 = vadd.f32 0.0, %v7138
    %v7140 = vpop.f32.mrb[0].mxu0
    %7141 = vmatprep.mubr.f32.mxu0 0.0
    %7142 = vmatmul.mubr.f32.gmra.mrb[0].mxu0 %v7070
    %v7143 = vpop.f32.mrb[0].mxu0
    %v7144 = vadd.f32 0.0, %v7143
    %v7145 = vpop.f32.mrb[0].mxu0
    %7146 = vdwg.mxu0
    %7163 = vrot.lane.b32.xlu0 %v6516, 48
    %v7164 = vpop.permute.xlu0 %7163
    %7165 = vrot.lane.b32.xlu0 %v6521, 48
    %v7166 = vpop.permute.xlu0 %7165
    %7167 = vrot.lane.b32.xlu0 %v6605, 48
    %v7168 = vpop.permute.xlu0 %7167
    %7169 = vrot.lane.b32.xlu0 %v6610, 48
    %v7170 = vpop.permute.xlu0 %7169
    %7171 = vrot.lane.b32.xlu0 %v6694, 48
    %v7172 = vpop.permute.xlu0 %7171
    %7173 = vrot.lane.b32.xlu0 %v6699, 48
    %v7174 = vpop.permute.xlu0 %7173
    %7175 = vrot.lane.b32.xlu0 %v6783, 48
    %v7176 = vpop.permute.xlu0 %7175
    %7177 = vrot.lane.b32.xlu0 %v6788, 48
    %v7178 = vpop.permute.xlu0 %7177
    %7179 = vrot.lane.b32.xlu0 %v6872, 48
    %v7180 = vpop.permute.xlu0 %7179
    %7181 = vrot.lane.b32.xlu0 %v6877, 48
    %v7182 = vpop.permute.xlu0 %7181
    %7183 = vrot.lane.b32.xlu0 %v6961, 48
    %v7184 = vpop.permute.xlu0 %7183
    %7185 = vrot.lane.b32.xlu0 %v6966, 48
    %v7186 = vpop.permute.xlu0 %7185
    %7187 = vrot.lane.b32.xlu0 %v7050, 48
    %v7188 = vpop.permute.xlu0 %7187
    %7189 = vrot.lane.b32.xlu0 %v7055, 48
    %v7190 = vpop.permute.xlu0 %7189
    %7191 = vrot.lane.b32.xlu0 %v7139, 48
    %v7192 = vpop.permute.xlu0 %7191
    %7193 = vrot.lane.b32.xlu0 %v7144, 48
    %v7194 = vpop.permute.xlu0 %7193
    %vm7211 = vcmask 523648
    %7212 = vst.msk [vmem:[#allocation3] sm:$0xff] %vm7211, %v7164
    %7213 = vst.msk [vmem:[#allocation3 + $0x8] sm:$0xff] %vm7211, %v7166
    %7214 = vst.msk [vmem:[#allocation3 + $0x10] sm:$0xff] %vm7211, %v7168
    %7215 = vst.msk [vmem:[#allocation3 + $0x18] sm:$0xff] %vm7211, %v7170
    %7216 = vst.msk [vmem:[#allocation3 + $0x20] sm:$0xff] %vm7211, %v7172
    %7217 = vst.msk [vmem:[#allocation3 + $0x28] sm:$0xff] %vm7211, %v7174
    %7218 = vst.msk [vmem:[#allocation3 + $0x30] sm:$0xff] %vm7211, %v7176
    %7219 = vst.msk [vmem:[#allocation3 + $0x38] sm:$0xff] %vm7211, %v7178
    %7220 = vst.msk [vmem:[#allocation3 + $0x40] sm:$0xff] %vm7211, %v7180
    %7221 = vst.msk [vmem:[#allocation3 + $0x48] sm:$0xff] %vm7211, %v7182
    %7222 = vst.msk [vmem:[#allocation3 + $0x50] sm:$0xff] %vm7211, %v7184
    %7223 = vst.msk [vmem:[#allocation3 + $0x58] sm:$0xff] %vm7211, %v7186
    %7224 = vst.msk [vmem:[#allocation3 + $0x60] sm:$0xff] %vm7211, %v7188
    %7225 = vst.msk [vmem:[#allocation3 + $0x68] sm:$0xff] %vm7211, %v7190
    %7226 = vst.msk [vmem:[#allocation3 + $0x70] sm:$0xff] %vm7211, %v7192
    %7227 = vst.msk [vmem:[#allocation3 + $0x78] sm:$0xff] %vm7211, %v7194
    %v7228 = vld [vmem:[#allocation3] sm:$0xff]
    %v7229 = vld [vmem:[#allocation3 + $0x8] sm:$0xff]
    %v7230 = vld [vmem:[#allocation3 + $0x10] sm:$0xff]
    %v7231 = vld [vmem:[#allocation3 + $0x18] sm:$0xff]
    %v7232 = vld [vmem:[#allocation3 + $0x20] sm:$0xff]
    %v7233 = vld [vmem:[#allocation3 + $0x28] sm:$0xff]
    %v7234 = vld [vmem:[#allocation3 + $0x30] sm:$0xff]
    %v7235 = vld [vmem:[#allocation3 + $0x38] sm:$0xff]
    %v7236 = vld [vmem:[#allocation3 + $0x40] sm:$0xff]
    %v7237 = vld [vmem:[#allocation3 + $0x48] sm:$0xff]
    %v7238 = vld [vmem:[#allocation3 + $0x50] sm:$0xff]
    %v7239 = vld [vmem:[#allocation3 + $0x58] sm:$0xff]
    %v7240 = vld [vmem:[#allocation3 + $0x60] sm:$0xff]
    %v7241 = vld [vmem:[#allocation3 + $0x68] sm:$0xff]
    %v7242 = vld [vmem:[#allocation3 + $0x70] sm:$0xff]
    %v7243 = vld [vmem:[#allocation3 + $0x78] sm:$0xff]
    %v7244 = vld [vmem:[#allocation9] sm:$0xff]
    %v7245 = vld [vmem:[#allocation9 + $0x8] sm:$0xff]
    %v7246 = vld [vmem:[#allocation9 + $0x10] sm:$0xff]
    %v7247 = vld [vmem:[#allocation9 + $0x18] sm:$0xff]
    %v7248 = vld [vmem:[#allocation9 + $0x20] sm:$0xff]
    %v7249 = vld [vmem:[#allocation9 + $0x28] sm:$0xff]
    %v7250 = vld [vmem:[#allocation9 + $0x30] sm:$0xff]
    %v7251 = vld [vmem:[#allocation9 + $0x38] sm:$0xff]
    %v7252 = vld [vmem:[%s3] sm:$0x1]
    %v7254 = vlaneseq
    %v7255 = vshrl.u32 %v7254, 7
    %v7256 = vsub.s32 0, %v7255
    %v7257 = vrot.slane %v7252, %v7256
    %v7260 = vsel %vm91, %v7228, 0
    %v7263 = vsel %vm91, %v7229, 0
    %v7266 = vsel %vm91, %v7230, 0
    %v7269 = vsel %vm91, %v7231, 0
    %v7272 = vsel %vm91, %v7232, 0
    %v7275 = vsel %vm91, %v7233, 0
    %v7278 = vsel %vm91, %v7234, 0
    %v7281 = vsel %vm91, %v7235, 0
    %v7284 = vsel %vm91, %v7236, 0
    %v7287 = vsel %vm91, %v7237, 0
    %v7290 = vsel %vm91, %v7238, 0
    %v7293 = vsel %vm91, %v7239, 0
    %v7296 = vsel %vm91, %v7240, 0
    %v7299 = vsel %vm91, %v7241, 0
    %v7302 = vsel %vm91, %v7242, 0
    %v7305 = vsel %vm91, %v7243, 0
    %7307 = vmatprep.subr.mxu0 0.0
    %7308 = vmatpush1.msra.mxu0 %v7244
    %7309 = vmatprep.subr.mxu0 0.0
    %7310 = vmatpush1.msra.mxu0 %v7245
    %7311 = vmatprep.subr.mxu0 0.0
    %7312 = vmatpush1.msra.mxu0 %v7246
    %7313 = vmatprep.subr.mxu0 0.0
    %7314 = vmatpush1.msra.mxu0 %v7247
    %7315 = vmatprep.subr.mxu0 0.0
    %7316 = vmatpush1.msra.mxu0 %v7248
    %7317 = vmatprep.subr.mxu0 0.0
    %7318 = vmatpush1.msra.mxu0 %v7249
    %7319 = vmatprep.subr.mxu0 0.0
    %7320 = vmatpush1.msra.mxu0 %v7250
    %7321 = vmatprep.subr.mxu0 0.0
    %7322 = vmatpush1.msra.mxu0 %v7251
    %7323 = vmatprep.subr.mxu0 0.0
    %7324 = vmatpush1.msra.mxu0 0.0
    %7325 = vmatprep.subr.mxu0 0.0
    %7326 = vmatpush1.msra.mxu0 0.0
    %7327 = vmatprep.subr.mxu0 0.0
    %7328 = vmatpush1.msra.mxu0 0.0
    %7329 = vmatprep.subr.mxu0 0.0
    %7330 = vmatpush1.msra.mxu0 0.0
    %7331 = vmatprep.subr.mxu0 0.0
    %7332 = vmatpush1.msra.mxu0 0.0
    %7333 = vmatprep.subr.mxu0 0.0
    %7334 = vmatpush1.msra.mxu0 0.0
    %7335 = vmatprep.subr.mxu0 0.0
    %7336 = vmatpush1.msra.mxu0 0.0
    %7337 = vmatprep.subr.mxu0 0.0
    %7338 = vmatpush1.msra.mxu0 0.0
    %7339 = vmatprep.subr.mxu0 0.0
    %7340 = vmatpush1.msra.mxu0 0.0
    %7341 = vmatprep.subr.mxu0 0.0
    %7342 = vmatpush1.msra.mxu0 0.0
    %7343 = vmatprep.subr.mxu0 0.0
    %7344 = vmatpush1.msra.mxu0 0.0
    %7345 = vmatprep.subr.mxu0 0.0
    %7346 = vmatpush1.msra.mxu0 0.0
    %7347 = vmatprep.subr.mxu0 0.0
    %7348 = vmatpush1.msra.mxu0 0.0
    %7349 = vmatprep.subr.mxu0 0.0
    %7350 = vmatpush1.msra.mxu0 0.0
    %7351 = vmatprep.subr.mxu0 0.0
    %7352 = vmatpush1.msra.mxu0 0.0
    %7353 = vmatprep.subr.mxu0 0.0
    %7354 = vmatpush1.msra.mxu0 0.0
    %7355 = vmatprep.subr.mxu0 0.0
    %7356 = vmatpush1.msra.mxu0 0.0
    %7357 = vmatprep.subr.mxu0 0.0
    %7358 = vmatpush1.msra.mxu0 0.0
    %7359 = vmatprep.subr.mxu0 0.0
    %7360 = vmatpush1.msra.mxu0 0.0
    %7361 = vmatprep.subr.mxu0 0.0
    %7362 = vmatpush1.msra.mxu0 0.0
    %7363 = vmatprep.subr.mxu0 0.0
    %7364 = vmatpush1.msra.mxu0 0.0
    %7365 = vmatprep.subr.mxu0 0.0
    %7366 = vmatpush1.msra.mxu0 0.0
    %7367 = vmatprep.subr.mxu0 0.0
    %7368 = vmatpush1.msra.mxu0 0.0
    %7369 = vmatprep.subr.mxu0 0.0
    %7370 = vmatpush1.msra.mxu0 0.0
    %7371 = vmatprep.mubr.f32.mxu0 0.0
    %7372 = vmatmul.mubr.f32.gmra.mrb[0].mxu0 %v7260
    %v7373 = vpop.f32.mrb[0].mxu0
    %v7374 = vadd.f32 %v7257, %v7373
    %v7375 = vpop.f32.mrb[0].mxu0
    %7376 = vmatprep.mubr.f32.mxu0 0.0
    %7377 = vmatmul.mubr.f32.gmra.mrb[0].mxu0 %v7263
    %v7378 = vpop.f32.mrb[0].mxu0
    %v7379 = vadd.f32 %v7257, %v7378
    %v7380 = vpop.f32.mrb[0].mxu0
    %7381 = vmatprep.mubr.f32.mxu0 0.0
    %7382 = vmatmul.mubr.f32.gmra.mrb[0].mxu0 %v7266
    %v7383 = vpop.f32.mrb[0].mxu0
    %v7384 = vadd.f32 %v7257, %v7383
    %v7385 = vpop.f32.mrb[0].mxu0
    %7386 = vmatprep.mubr.f32.mxu0 0.0
    %7387 = vmatmul.mubr.f32.gmra.mrb[0].mxu0 %v7269
    %v7388 = vpop.f32.mrb[0].mxu0
    %v7389 = vadd.f32 %v7257, %v7388
    %v7390 = vpop.f32.mrb[0].mxu0
    %7391 = vmatprep.mubr.f32.mxu0 0.0
    %7392 = vmatmul.mubr.f32.gmra.mrb[0].mxu0 %v7272
    %v7393 = vpop.f32.mrb[0].mxu0
    %v7394 = vadd.f32 %v7257, %v7393
    %v7395 = vpop.f32.mrb[0].mxu0
    %7396 = vmatprep.mubr.f32.mxu0 0.0
    %7397 = vmatmul.mubr.f32.gmra.mrb[0].mxu0 %v7275
    %v7398 = vpop.f32.mrb[0].mxu0
    %v7399 = vadd.f32 %v7257, %v7398
    %v7400 = vpop.f32.mrb[0].mxu0
    %7401 = vmatprep.mubr.f32.mxu0 0.0
    %7402 = vmatmul.mubr.f32.gmra.mrb[0].mxu0 %v7278
    %v7403 = vpop.f32.mrb[0].mxu0
    %v7404 = vadd.f32 %v7257, %v7403
    %v7405 = vpop.f32.mrb[0].mxu0
    %7406 = vmatprep.mubr.f32.mxu0 0.0
    %7407 = vmatmul.mubr.f32.gmra.mrb[0].mxu0 %v7281
    %v7408 = vpop.f32.mrb[0].mxu0
    %v7409 = vadd.f32 %v7257, %v7408
    %v7410 = vpop.f32.mrb[0].mxu0
    %7411 = vmatprep.mubr.f32.mxu0 0.0
    %7412 = vmatmul.mubr.f32.gmra.mrb[0].mxu0 %v7284
    %v7413 = vpop.f32.mrb[0].mxu0
    %v7414 = vadd.f32 %v7257, %v7413
    %v7415 = vpop.f32.mrb[0].mxu0
    %7416 = vmatprep.mubr.f32.mxu0 0.0
    %7417 = vmatmul.mubr.f32.gmra.mrb[0].mxu0 %v7287
    %v7418 = vpop.f32.mrb[0].mxu0
    %v7419 = vadd.f32 %v7257, %v7418
    %v7420 = vpop.f32.mrb[0].mxu0
    %7421 = vmatprep.mubr.f32.mxu0 0.0
    %7422 = vmatmul.mubr.f32.gmra.mrb[0].mxu0 %v7290
    %v7423 = vpop.f32.mrb[0].mxu0
    %v7424 = vadd.f32 %v7257, %v7423
    %v7425 = vpop.f32.mrb[0].mxu0
    %7426 = vmatprep.mubr.f32.mxu0 0.0
    %7427 = vmatmul.mubr.f32.gmra.mrb[0].mxu0 %v7293
    %v7428 = vpop.f32.mrb[0].mxu0
    %v7429 = vadd.f32 %v7257, %v7428
    %v7430 = vpop.f32.mrb[0].mxu0
    %7431 = vmatprep.mubr.f32.mxu0 0.0
    %7432 = vmatmul.mubr.f32.gmra.mrb[0].mxu0 %v7296
    %v7433 = vpop.f32.mrb[0].mxu0
    %v7434 = vadd.f32 %v7257, %v7433
    %v7435 = vpop.f32.mrb[0].mxu0
    %7436 = vmatprep.mubr.f32.mxu0 0.0
    %7437 = vmatmul.mubr.f32.gmra.mrb[0].mxu0 %v7299
    %v7438 = vpop.f32.mrb[0].mxu0
    %v7439 = vadd.f32 %v7257, %v7438
    %v7440 = vpop.f32.mrb[0].mxu0
    %7441 = vmatprep.mubr.f32.mxu0 0.0
    %7442 = vmatmul.mubr.f32.gmra.mrb[0].mxu0 %v7302
    %v7443 = vpop.f32.mrb[0].mxu0
    %v7444 = vadd.f32 %v7257, %v7443
    %v7445 = vpop.f32.mrb[0].mxu0
    %7446 = vmatprep.mubr.f32.mxu0 0.0
    %7447 = vmatmul.mubr.f32.gmra.mrb[0].mxu0 %v7305
    %v7448 = vpop.f32.mrb[0].mxu0
    %v7449 = vadd.f32 %v7257, %v7448
    %v7450 = vpop.f32.mrb[0].mxu0
    %7451 = vdwg.mxu0
    %7452 = vst.msk [vmem:[#allocation10] sm:$0xff] %vm91, %v7374
    %7453 = vst.msk [vmem:[#allocation10 + $0x8] sm:$0xff] %vm91, %v7379
    %7454 = vst.msk [vmem:[#allocation10 + $0x10] sm:$0xff] %vm91, %v7384
    %7455 = vst.msk [vmem:[#allocation10 + $0x18] sm:$0xff] %vm91, %v7389
    %7456 = vst.msk [vmem:[#allocation10 + $0x20] sm:$0xff] %vm91, %v7394
    %7457 = vst.msk [vmem:[#allocation10 + $0x28] sm:$0xff] %vm91, %v7399
    %7458 = vst.msk [vmem:[#allocation10 + $0x30] sm:$0xff] %vm91, %v7404
    %7459 = vst.msk [vmem:[#allocation10 + $0x38] sm:$0xff] %vm91, %v7409
    %7460 = vst.msk [vmem:[#allocation10 + $0x40] sm:$0xff] %vm91, %v7414
    %7461 = vst.msk [vmem:[#allocation10 + $0x48] sm:$0xff] %vm91, %v7419
    %7462 = vst.msk [vmem:[#allocation10 + $0x50] sm:$0xff] %vm91, %v7424
    %7463 = vst.msk [vmem:[#allocation10 + $0x58] sm:$0xff] %vm91, %v7429
    %7464 = vst.msk [vmem:[#allocation10 + $0x60] sm:$0xff] %vm91, %v7434
    %7465 = vst.msk [vmem:[#allocation10 + $0x68] sm:$0xff] %vm91, %v7439
    %7466 = vst.msk [vmem:[#allocation10 + $0x70] sm:$0xff] %vm91, %v7444
    %7467 = vst.msk [vmem:[#allocation10 + $0x78] sm:$0xff] %vm91, %v7449
    // Predicated region
    $region30: #{tpu_custom_call.1} parent=1 // pred_check
      _
    $region31: #{tpu_custom_call.1} parent=1 // pred_check_branch
      %7469 = sbr.rel (0) target = $region33
    $region32: #{tpu_custom_call.1} parent=1 // pred_region
      %s7471 = ssub.s32 2048, 2048
      %7472 = vsyncadd [#allocation6], %s7471
      %s7473 = sshll.u32 [#allocation10], 4
      %s7474 = int_to_ptr.vmem [resolvable:$true] %s7473
      %7479 = dma.vmem_to_hbm [thread:$0]  %s7474, 2048, %s4, [#allocation6], 128, 128, 8
    $region33: #{tpu_custom_call.1} parent=1 // pred_fallthru
      _
    // Predicated region
    $region34: #{tpu_custom_call.1} parent=1 // pred_check
      _
    $region35: #{tpu_custom_call.1} parent=1 // pred_check_branch
      %7481 = sbr.rel (0) target = $region37
    $region36: #{tpu_custom_call.1} parent=1 // pred_region
      %7482 = dma.done [#allocation6], 2048
    $region37: #{tpu_custom_call.1} parent=1 // pred_fallthru
      _
    %7483 = vsyncpa [#allocation5], 1
    %7484 = vsyncpa [#allocation8], 1
    %7485 = vsyncpa [#allocation6], 1

</llo_original>
